<compile_context>
chip_gen: v6e
topology: v6e:2x2x1
jax: 0.10.0
libtpu: 0.0.40
codegen_flags: <defaults>
</compile_context>

<pallas_src>
import functools

import jax
import jax.numpy as jnp
from jax import lax
from jax.experimental import pallas as pl
from jax.experimental.pallas import tpu as pltpu

EPS = 1e-5
LANES = 128


def _round_up(x, m):
    return (x + m - 1) // m * m


# ---------------------------------------------------------------------------
# Pallas kernels
# ---------------------------------------------------------------------------
def _conv1_skip_kernel(x_ref, w1_ref, wc_ref, cmask_ref,
                       p1_ref, p3_ref, st_ref, *, W, RA, CP, LP):
    """p1 = conv3x3(x) (padded-ring layout), p3 = conv1x1(x) skip (compact layout),
    plus per-image BN1/BN3 partial statistics (reduced over the batch on the host)."""
    bf16 = jnp.bfloat16
    wp2 = W + 2

    # 8 off-centre taps of the 3x3 conv: shifted windows of the flattened padded image.
    acc1 = jnp.zeros((RA, CP), jnp.float32)
    t = 0
    for kh in range(3):
        for kw in range(3):
            if kh == 1 and kw == 1:
                continue
            s = kh * wp2 + kw
            acc1 = acc1 + jnp.dot(x_ref[0, pl.ds(s, RA), :].astype(bf16), w1_ref[t],
                                  preferred_element_type=jnp.float32)
            t += 1

    # Centre tap fused with the 1x1 skip conv: one (RA, Cin) x (Cin, 2*CP) matmul.
    accc = jnp.dot(x_ref[0, pl.ds(wp2 + 1, RA), :].astype(bf16), wc_ref[...],
                   preferred_element_type=jnp.float32)
    acc1 = acc1 + accc[:, :CP]
    acc3 = accc[:, CP:]

    m = cmask_ref[...]                      # (RA, 1): zero wrap-around / overrun rows
    acc1 = acc1 * m
    acc3 = acc3 * m

    # Per-grid-step BN statistics (plain writes -> grid axis stays "parallel").
    st_ref[0, 0:1, :] = jnp.sum(acc1, axis=0, keepdims=True)
    st_ref[0, 1:2, :] = jnp.sum(acc1 * acc1, axis=0, keepdims=True)
    st_ref[0, 2:3, :] = jnp.sum(acc3, axis=0, keepdims=True)
    st_ref[0, 3:4, :] = jnp.sum(acc3 * acc3, axis=0, keepdims=True)

    # p1: padded-ring layout; zero only the border rows, write the interior exactly once.
    zc = W + 3
    p1_ref[0, pl.ds(0, zc), :] = jnp.zeros((zc, CP), p1_ref.dtype)
    p1_ref[0, pl.ds(zc, RA), :] = acc1
    p1_ref[0, pl.ds(zc + RA, LP - zc - RA), :] = jnp.zeros((LP - zc - RA, CP), p1_ref.dtype)

    # p3 never feeds a conv -> compact layout, single aligned full-block bf16 store.
    p3_ref[0] = acc3.astype(p3_ref.dtype)


def _bn1_relu_conv2_kernel(p1_ref, sc1_ref, sh1_ref, w2_ref, imask_ref, cmask_ref,
                           p2_ref, st_ref, y_scr, *, W, RA, CP, LP):
    """y1 = relu(bn1(p1)); p2 = conv3x3(y1); plus per-image BN2 partial statistics."""
    bf16 = jnp.bfloat16
    wp2 = W + 2

    # BN1 + ReLU in f32 on the VPU; re-zero the spatial padding ring; stage in VMEM scratch.
    y = jnp.maximum(p1_ref[0] * sc1_ref[...] + sh1_ref[...], 0.0)
    y_scr[...] = y * imask_ref[...]

    acc = jnp.zeros((RA, CP), jnp.float32)
    for kh in range(3):
        for kw in range(3):
            s = kh * wp2 + kw
            acc = acc + jnp.dot(y_scr[pl.ds(s, RA), :].astype(bf16), w2_ref[kh * 3 + kw],
                                preferred_element_type=jnp.float32)
    acc = acc * cmask_ref[...]

    st_ref[0, 0:1, :] = jnp.sum(acc, axis=0, keepdims=True)
    st_ref[0, 1:2, :] = jnp.sum(acc * acc, axis=0, keepdims=True)

    zc = W + 3
    p2_ref[0, pl.ds(0, zc), :] = jnp.zeros((zc, CP), p2_ref.dtype)
    p2_ref[0, pl.ds(zc, RA), :] = acc
    p2_ref[0, pl.ds(zc + RA, LP - zc - RA), :] = jnp.zeros((LP - zc - RA, CP), p2_ref.dtype)


def _bn2_bn3_add_kernel(p2_ref, p3_ref, sc2_ref, sh2_ref, sc3_ref, sh3_ref, o_ref, *, W, RA):
    """out = relu(bn2(p2)) + relu(bn3(p3)), emitted in the compact layout."""
    y = jnp.maximum(p2_ref[0, pl.ds(W + 3, RA), :] * sc2_ref[...] + sh2_ref[...], 0.0)
    z = jnp.maximum(p3_ref[0].astype(jnp.float32) * sc3_ref[...] + sh3_ref[...], 0.0)
    o_ref[0] = (y + z).astype(o_ref.dtype)


# ---------------------------------------------------------------------------
# Wrapper
# ---------------------------------------------------------------------------
@jax.jit
def residual_block_forward(x_nchw, params):
    f32, bf16 = jnp.float32, jnp.bfloat16
    N, Cin, H, W = x_nchw.shape
    Cout = params["w1"].shape[0]
    CP = _round_up(max(Cout, LANES), LANES)         # lane-dense channel padding (>= 128)
    wp2, hp2 = W + 2, H + 2
    Lf = hp2 * wp2                                  # flattened, spatially padded image length
    RA = _round_up(H * wp2, 8)                      # compact / accumulator row count
    LP = _round_up(max(Lf, 2 * wp2 + 2 + RA), 8)    # padded-image rows (room for all taps)
    cnt = f32(N * H * W)                            # BN statistics count (interior pixels)

    # ---- host-side layout prep (cheap, single pass over small tensors) -----
    x = jnp.transpose(x_nchw, (0, 2, 3, 1)).astype(f32)                    # NHWC
    xp = jnp.pad(x, ((0, 0), (1, 1), (1, 1), (0, 0))).reshape(N, Lf, Cin)
    xp = jnp.pad(xp, ((0, 0), (0, LP - Lf), (0, 0)))
    # TODO(synk): fold this padded-image materialization into pass 1 (VMEM scratch + imask).

    def pad_to(a, axis, size):
        pads = [(0, 0)] * a.ndim
        pads[axis] = (0, size - a.shape[axis])
        return jnp.pad(a, pads)

    # torch conv weight (Cout, Cin, kh, kw) -> per-tap matrices, bf16 for the MXU.
    w1_all = jnp.transpose(params["w1"], (2, 3, 1, 0)).reshape(9, Cin, Cout).astype(f32)
    w1_off = pad_to(jnp.concatenate([w1_all[:4], w1_all[5:]], axis=0), 2, CP).astype(bf16)
    w3 = jnp.transpose(params["w3"][:, :, 0, 0], (1, 0)).astype(f32)       # (Cin, Cout)
    wc = jnp.concatenate([pad_to(w1_all[4], 1, CP), pad_to(w3, 1, CP)],
                         axis=1).astype(bf16)                              # (Cin, 2*CP)
    w2 = jnp.transpose(params["w2"], (2, 3, 1, 0)).reshape(9, Cout, Cout).astype(f32)
    w2 = pad_to(pad_to(w2, 2, CP), 1, CP).astype(bf16)                     # (9, CP, CP)

    g1 = pad_to(params["gamma1"].astype(f32), 0, CP)
    be1 = pad_to(params["beta1"].astype(f32), 0, CP)
    g2 = pad_to(params["gamma2"].astype(f32), 0, CP)
    be2 = pad_to(params["beta2"].astype(f32), 0, CP)
    g3 = pad_to(params["gamma3"].astype(f32), 0, CP)
    be3 = pad_to(params["beta3"].astype(f32), 0, CP)
    # NOTE: conv biases b1/b2/b3 intentionally unused (BN mean subtraction cancels them).

    # Host-built masks: valid-row mask of the accumulator (kills the 2 wrap-around columns
    # per stripe and the overrun rows), interior mask of the padded image.
    r = jnp.arange(RA, dtype=jnp.int32)
    cmask = ((r < H * wp2 - 2) & (r % wp2 < W)).astype(f32).reshape(RA, 1)
    rr = jnp.arange(LP, dtype=jnp.int32)
    hh, ww = rr // wp2, rr % wp2
    imask = ((hh >= 1) & (hh <= H) & (ww >= 1) & (ww <= W)).astype(f32).reshape(LP, 1)

    img_pad = pl.BlockSpec((1, LP, CP), lambda i: (i, 0, 0))   # padded-ring activation slab
    img_cin = pl.BlockSpec((1, LP, Cin), lambda i: (i, 0, 0))
    img_cmp = pl.BlockSpec((1, RA, CP), lambda i: (i, 0, 0))   # compact activation slab
    full2 = lambda shp: pl.BlockSpec(shp, lambda i: (0, 0))
    full3 = lambda shp: pl.BlockSpec(shp, lambda i: (0, 0, 0))
    par = pltpu.CompilerParams(dimension_semantics=("parallel",))

    # ---- pass 1: conv1 + fused 1x1 skip conv (+ per-image BN1/BN3 stats) ----
    p1, p3, st13 = pl.pallas_call(
        functools.partial(_conv1_skip_kernel, W=W, RA=RA, CP=CP, LP=LP),
        grid=(N,),
        in_specs=[img_cin, full3((8, Cin, CP)), full2((Cin, 2 * CP)), full2((RA, 1))],
        out_specs=[img_pad, img_cmp, pl.BlockSpec((1, 4, CP), lambda i: (i, 0, 0))],
        out_shape=[jax.ShapeDtypeStruct((N, LP, CP), f32),
                   jax.ShapeDtypeStruct((N, RA, CP), bf16),
                   jax.ShapeDtypeStruct((N, 4, CP), f32)],
        compiler_params=par,
    )(xp, w1_off, wc, cmask)

    st13 = jnp.sum(st13, axis=0)

    def bn_affine(gamma, beta, s, sq):
        mean = s / cnt
        var = jnp.maximum(sq / cnt - mean * mean, 0.0)
        scale = gamma * lax.rsqrt(var + EPS)
        shift = beta - mean * scale
        return scale.reshape(1, CP), shift.reshape(1, CP)

    sc1, sh1 = bn_affine(g1, be1, st13[0], st13[1])
    sc3, sh3 = bn_affine(g3, be3, st13[2], st13[3])

    # ---- pass 2: y1 = relu(bn1(p1)); p2 = conv2(y1) (+ per-image BN2 stats) ----
    p2, st2 = pl.pallas_call(
        functools.partial(_bn1_relu_conv2_kernel, W=W, RA=RA, CP=CP, LP=LP),
        grid=(N,),
        in_specs=[img_pad, full2((1, CP)), full2((1, CP)),
                  full3((9, CP, CP)), full2((LP, 1)), full2((RA, 1))],
        out_specs=[img_pad, pl.BlockSpec((1, 2, CP), lambda i: (i, 0, 0))],
        out_shape=[jax.ShapeDtypeStruct((N, LP, CP), f32),
                   jax.ShapeDtypeStruct((N, 2, CP), f32)],
        scratch_shapes=[pltpu.VMEM((LP, CP), f32)],
        compiler_params=par,
    )(p1, sc1, sh1, w2, imask, cmask)

    st2 = jnp.sum(st2, axis=0)
    sc2, sh2 = bn_affine(g2, be2, st2[0], st2[1])

    # ---- pass 3: out = relu(bn2(p2)) + relu(bn3(p3)), compact layout ---------
    outp = pl.pallas_call(
        functools.partial(_bn2_bn3_add_kernel, W=W, RA=RA),
        grid=(N,),
        in_specs=[img_pad, img_cmp, full2((1, CP)), full2((1, CP)),
                  full2((1, CP)), full2((1, CP))],
        out_specs=img_cmp,
        out_shape=jax.ShapeDtypeStruct((N, RA, CP), f32),
        compiler_params=par,
    )(p2, p3, sc2, sh2, sc3, sh3)

    out = outp[:, :H * wp2, :].reshape(N, H, wp2, CP)[:, :, :W, :Cout]
    return jnp.transpose(out, (0, 3, 1, 2))                                # back to NCHW


# ---------------------------------------------------------------------------
# Pure-JAX reference (for correctness check only)
# ---------------------------------------------------------------------------
def _reference(x_nchw, params):
    x = jnp.transpose(x_nchw, (0, 2, 3, 1)).astype(jnp.float32)

    def conv(h, w, b, pad):
        wt = jnp.transpose(w, (2, 3, 1, 0))  # HWIO
        y = lax.conv_general_dilated(
            h, wt, (1, 1), pad,
            dimension_numbers=("NHWC", "HWIO", "NHWC"),
            precision=lax.Precision.HIGHEST)
        return y + b

    def bn(h, g, be):
        m = jnp.mean(h, axis=(0, 1, 2), keepdims=True)
        v = jnp.mean((h - m) ** 2, axis=(0, 1, 2), keepdims=True)
        return (h - m) * lax.rsqrt(v + EPS) * g + be

    p = ((1, 1), (1, 1))
    y = jax.nn.relu(bn(conv(x, params["w1"], params["b1"], p), params["gamma1"], params["beta1"]))
    y = jax.nn.relu(bn(conv(y, params["w2"], params["b2"], p), params["gamma2"], params["beta2"]))
    z = jax.nn.relu(bn(conv(x, params["w3"], params["b3"], ((0, 0), (0, 0))),
                       params["gamma3"], params["beta3"]))
    return jnp.transpose(z + y, (0, 3, 1, 2))


# ---------------------------------------------------------------------------
if __name__ == "__main__":
    N, Cin, H, W = 2, 4, 16, 16
    Cout = 16

    key = jax.random.PRNGKey(0)
    ks = jax.random.split(key, 13)
    params = {
        "w1": 0.1 * jax.random.normal(ks[0], (Cout, Cin, 3, 3), jnp.float32),
        "b1": 0.1 * jax.random.normal(ks[1], (Cout,), jnp.float32),
        "w2": 0.1 * jax.random.normal(ks[2], (Cout, Cout, 3, 3), jnp.float32),
        "b2": 0.1 * jax.random.normal(ks[3], (Cout,), jnp.float32),
        "w3": 0.1 * jax.random.normal(ks[4], (Cout, Cin, 1, 1), jnp.float32),
        "b3": 0.1 * jax.random.normal(ks[5], (Cout,), jnp.float32),
        "gamma1": 1.0 + 0.1 * jax.random.normal(ks[6], (Cout,), jnp.float32),
        "beta1": 0.1 * jax.random.normal(ks[7], (Cout,), jnp.float32),
        "gamma2": 1.0 + 0.1 * jax.random.normal(ks[8], (Cout,), jnp.float32),
        "beta2": 0.1 * jax.random.normal(ks[9], (Cout,), jnp.float32),
        "gamma3": 1.0 + 0.1 * jax.random.normal(ks[10], (Cout,), jnp.float32),
        "beta3": 0.1 * jax.random.normal(ks[11], (Cout,), jnp.float32),
    }

    x = jax.random.normal(ks[12], (N, Cin, H, W), jnp.float32)

    out = residual_block_forward(x, params)
    out = jax.block_until_ready(out)
    assert out.shape == (N, Cout, H, W), out.shape

    ref = jax.block_until_ready(_reference(x, params))
    # Tolerance widened vs pure-f32: matmul operands are bf16 (accumulation and BN stats f32).
    err = float(jnp.max(jnp.abs(out - ref)))
    assert jnp.allclose(out, ref, atol=2e-2, rtol=2e-2), err

    print("KERNEL_OK")
</pallas_src>

<mosaic_0001>
module attributes {stable_mosaic.version = 11 : i64} {
  func.func @_conv1_skip_kernel(%arg0: i32, %arg1: memref<1x328x4xf32, #tpu.memory_space<vmem>>, %arg2: memref<8x4x128xbf16, #tpu.memory_space<vmem>>, %arg3: memref<4x256xbf16, #tpu.memory_space<vmem>>, %arg4: memref<288x1xf32, #tpu.memory_space<vmem>>, %arg5: memref<1x328x128xf32, #tpu.memory_space<vmem>>, %arg6: memref<1x288x128xbf16, #tpu.memory_space<vmem>>, %arg7: memref<1x4x128xf32, #tpu.memory_space<vmem>>) attributes {dimension_semantics = [#tpu.dimension_semantics<parallel>], iteration_bounds = array<i64: 2>, scalar_prefetch = 0 : i64, scratch_operands = 0 : i64, tpu.core_type = #tpu.core_type<tc>, window_params = [{transform_indices = @transform_0, window_bounds = array<i64: 1, 328, 4>}, {pipeline_mode = #tpu.pipeline_mode<synchronous>, transform_indices = @transform_1, window_bounds = array<i64: 8, 4, 128>}, {pipeline_mode = #tpu.pipeline_mode<synchronous>, transform_indices = @transform_2, window_bounds = array<i64: 4, 256>}, {pipeline_mode = #tpu.pipeline_mode<synchronous>, transform_indices = @transform_3, window_bounds = array<i64: 288, 1>}, {transform_indices = @transform_4, window_bounds = array<i64: 1, 328, 128>}, {transform_indices = @transform_5, window_bounds = array<i64: 1, 288, 128>}, {transform_indices = @transform_6, window_bounds = array<i64: 1, 4, 128>}]} {
    %cst = arith.constant 0.000000e+00 : f32
    %0 = vector.broadcast %cst : f32 to vector<288x128xf32>
    %c0 = arith.constant 0 : index
    %c0_0 = arith.constant 0 : index
    %c0_1 = arith.constant 0 : index
    %1 = vector.load %arg1[%c0, %c0_0, %c0_1] : memref<1x328x4xf32, #tpu.memory_space<vmem>>, vector<1x288x4xf32>
    %2 = vector.shape_cast %1 : vector<1x288x4xf32> to vector<288x4xf32>
    %3 = arith.truncf %2 : vector<288x4xf32> to vector<288x4xbf16>
    %c0_2 = arith.constant 0 : index
    %c0_3 = arith.constant 0 : index
    %c0_4 = arith.constant 0 : index
    %4 = vector.load %arg2[%c0_2, %c0_3, %c0_4] : memref<8x4x128xbf16, #tpu.memory_space<vmem>>, vector<1x4x128xbf16>
    %5 = vector.shape_cast %4 : vector<1x4x128xbf16> to vector<4x128xbf16>
    %cst_5 = arith.constant dense<0.000000e+00> : vector<288x128xf32>
    %6 = tpu.matmul %3, %5, %cst_5 {dimension_numbers = #tpu.dot_dimension_numbers<[1], [0], [0], [1], [0, 0, 1, 1], [], []>} : vector<288x4xbf16>, vector<4x128xbf16>, vector<288x128xf32> -> vector<288x128xf32>
    %7 = arith.addf %0, %6 : vector<288x128xf32>
    %c0_6 = arith.constant 0 : index
    %c1 = arith.constant 1 : index
    %c0_7 = arith.constant 0 : index
    %8 = vector.load %arg1[%c0_6, %c1, %c0_7] : memref<1x328x4xf32, #tpu.memory_space<vmem>>, vector<1x288x4xf32>
    %9 = vector.shape_cast %8 : vector<1x288x4xf32> to vector<288x4xf32>
    %10 = arith.truncf %9 : vector<288x4xf32> to vector<288x4xbf16>
    %c1_8 = arith.constant 1 : index
    %c0_9 = arith.constant 0 : index
    %c0_10 = arith.constant 0 : index
    %11 = vector.load %arg2[%c1_8, %c0_9, %c0_10] : memref<8x4x128xbf16, #tpu.memory_space<vmem>>, vector<1x4x128xbf16>
    %12 = vector.shape_cast %11 : vector<1x4x128xbf16> to vector<4x128xbf16>
    %cst_11 = arith.constant dense<0.000000e+00> : vector<288x128xf32>
    %13 = tpu.matmul %10, %12, %cst_11 {dimension_numbers = #tpu.dot_dimension_numbers<[1], [0], [0], [1], [0, 0, 1, 1], [], []>} : vector<288x4xbf16>, vector<4x128xbf16>, vector<288x128xf32> -> vector<288x128xf32>
    %14 = arith.addf %7, %13 : vector<288x128xf32>
    %c0_12 = arith.constant 0 : index
    %c2 = arith.constant 2 : index
    %c0_13 = arith.constant 0 : index
    %15 = vector.load %arg1[%c0_12, %c2, %c0_13] : memref<1x328x4xf32, #tpu.memory_space<vmem>>, vector<1x288x4xf32>
    %16 = vector.shape_cast %15 : vector<1x288x4xf32> to vector<288x4xf32>
    %17 = arith.truncf %16 : vector<288x4xf32> to vector<288x4xbf16>
    %c2_14 = arith.constant 2 : index
    %c0_15 = arith.constant 0 : index
    %c0_16 = arith.constant 0 : index
    %18 = vector.load %arg2[%c2_14, %c0_15, %c0_16] : memref<8x4x128xbf16, #tpu.memory_space<vmem>>, vector<1x4x128xbf16>
    %19 = vector.shape_cast %18 : vector<1x4x128xbf16> to vector<4x128xbf16>
    %cst_17 = arith.constant dense<0.000000e+00> : vector<288x128xf32>
    %20 = tpu.matmul %17, %19, %cst_17 {dimension_numbers = #tpu.dot_dimension_numbers<[1], [0], [0], [1], [0, 0, 1, 1], [], []>} : vector<288x4xbf16>, vector<4x128xbf16>, vector<288x128xf32> -> vector<288x128xf32>
    %21 = arith.addf %14, %20 : vector<288x128xf32>
    %c0_18 = arith.constant 0 : index
    %c18 = arith.constant 18 : index
    %c0_19 = arith.constant 0 : index
    %22 = vector.load %arg1[%c0_18, %c18, %c0_19] : memref<1x328x4xf32, #tpu.memory_space<vmem>>, vector<1x288x4xf32>
    %23 = vector.shape_cast %22 : vector<1x288x4xf32> to vector<288x4xf32>
    %24 = arith.truncf %23 : vector<288x4xf32> to vector<288x4xbf16>
    %c3 = arith.constant 3 : index
    %c0_20 = arith.constant 0 : index
    %c0_21 = arith.constant 0 : index
    %25 = vector.load %arg2[%c3, %c0_20, %c0_21] : memref<8x4x128xbf16, #tpu.memory_space<vmem>>, vector<1x4x128xbf16>
    %26 = vector.shape_cast %25 : vector<1x4x128xbf16> to vector<4x128xbf16>
    %cst_22 = arith.constant dense<0.000000e+00> : vector<288x128xf32>
    %27 = tpu.matmul %24, %26, %cst_22 {dimension_numbers = #tpu.dot_dimension_numbers<[1], [0], [0], [1], [0, 0, 1, 1], [], []>} : vector<288x4xbf16>, vector<4x128xbf16>, vector<288x128xf32> -> vector<288x128xf32>
    %28 = arith.addf %21, %27 : vector<288x128xf32>
    %c0_23 = arith.constant 0 : index
    %c20 = arith.constant 20 : index
    %c0_24 = arith.constant 0 : index
    %29 = vector.load %arg1[%c0_23, %c20, %c0_24] : memref<1x328x4xf32, #tpu.memory_space<vmem>>, vector<1x288x4xf32>
    %30 = vector.shape_cast %29 : vector<1x288x4xf32> to vector<288x4xf32>
    %31 = arith.truncf %30 : vector<288x4xf32> to vector<288x4xbf16>
    %c4 = arith.constant 4 : index
    %c0_25 = arith.constant 0 : index
    %c0_26 = arith.constant 0 : index
    %32 = vector.load %arg2[%c4, %c0_25, %c0_26] : memref<8x4x128xbf16, #tpu.memory_space<vmem>>, vector<1x4x128xbf16>
    %33 = vector.shape_cast %32 : vector<1x4x128xbf16> to vector<4x128xbf16>
    %cst_27 = arith.constant dense<0.000000e+00> : vector<288x128xf32>
    %34 = tpu.matmul %31, %33, %cst_27 {dimension_numbers = #tpu.dot_dimension_numbers<[1], [0], [0], [1], [0, 0, 1, 1], [], []>} : vector<288x4xbf16>, vector<4x128xbf16>, vector<288x128xf32> -> vector<288x128xf32>
    %35 = arith.addf %28, %34 : vector<288x128xf32>
    %c0_28 = arith.constant 0 : index
    %c36 = arith.constant 36 : index
    %c0_29 = arith.constant 0 : index
    %36 = vector.load %arg1[%c0_28, %c36, %c0_29] : memref<1x328x4xf32, #tpu.memory_space<vmem>>, vector<1x288x4xf32>
    %37 = vector.shape_cast %36 : vector<1x288x4xf32> to vector<288x4xf32>
    %38 = arith.truncf %37 : vector<288x4xf32> to vector<288x4xbf16>
    %c5 = arith.constant 5 : index
    %c0_30 = arith.constant 0 : index
    %c0_31 = arith.constant 0 : index
    %39 = vector.load %arg2[%c5, %c0_30, %c0_31] : memref<8x4x128xbf16, #tpu.memory_space<vmem>>, vector<1x4x128xbf16>
    %40 = vector.shape_cast %39 : vector<1x4x128xbf16> to vector<4x128xbf16>
    %cst_32 = arith.constant dense<0.000000e+00> : vector<288x128xf32>
    %41 = tpu.matmul %38, %40, %cst_32 {dimension_numbers = #tpu.dot_dimension_numbers<[1], [0], [0], [1], [0, 0, 1, 1], [], []>} : vector<288x4xbf16>, vector<4x128xbf16>, vector<288x128xf32> -> vector<288x128xf32>
    %42 = arith.addf %35, %41 : vector<288x128xf32>
    %c0_33 = arith.constant 0 : index
    %c37 = arith.constant 37 : index
    %c0_34 = arith.constant 0 : index
    %43 = vector.load %arg1[%c0_33, %c37, %c0_34] : memref<1x328x4xf32, #tpu.memory_space<vmem>>, vector<1x288x4xf32>
    %44 = vector.shape_cast %43 : vector<1x288x4xf32> to vector<288x4xf32>
    %45 = arith.truncf %44 : vector<288x4xf32> to vector<288x4xbf16>
    %c6 = arith.constant 6 : index
    %c0_35 = arith.constant 0 : index
    %c0_36 = arith.constant 0 : index
    %46 = vector.load %arg2[%c6, %c0_35, %c0_36] : memref<8x4x128xbf16, #tpu.memory_space<vmem>>, vector<1x4x128xbf16>
    %47 = vector.shape_cast %46 : vector<1x4x128xbf16> to vector<4x128xbf16>
    %cst_37 = arith.constant dense<0.000000e+00> : vector<288x128xf32>
    %48 = tpu.matmul %45, %47, %cst_37 {dimension_numbers = #tpu.dot_dimension_numbers<[1], [0], [0], [1], [0, 0, 1, 1], [], []>} : vector<288x4xbf16>, vector<4x128xbf16>, vector<288x128xf32> -> vector<288x128xf32>
    %49 = arith.addf %42, %48 : vector<288x128xf32>
    %c0_38 = arith.constant 0 : index
    %c38 = arith.constant 38 : index
    %c0_39 = arith.constant 0 : index
    %50 = vector.load %arg1[%c0_38, %c38, %c0_39] : memref<1x328x4xf32, #tpu.memory_space<vmem>>, vector<1x288x4xf32>
    %51 = vector.shape_cast %50 : vector<1x288x4xf32> to vector<288x4xf32>
    %52 = arith.truncf %51 : vector<288x4xf32> to vector<288x4xbf16>
    %c7 = arith.constant 7 : index
    %c0_40 = arith.constant 0 : index
    %c0_41 = arith.constant 0 : index
    %53 = vector.load %arg2[%c7, %c0_40, %c0_41] : memref<8x4x128xbf16, #tpu.memory_space<vmem>>, vector<1x4x128xbf16>
    %54 = vector.shape_cast %53 : vector<1x4x128xbf16> to vector<4x128xbf16>
    %cst_42 = arith.constant dense<0.000000e+00> : vector<288x128xf32>
    %55 = tpu.matmul %52, %54, %cst_42 {dimension_numbers = #tpu.dot_dimension_numbers<[1], [0], [0], [1], [0, 0, 1, 1], [], []>} : vector<288x4xbf16>, vector<4x128xbf16>, vector<288x128xf32> -> vector<288x128xf32>
    %56 = arith.addf %49, %55 : vector<288x128xf32>
    %c0_43 = arith.constant 0 : index
    %c19 = arith.constant 19 : index
    %c0_44 = arith.constant 0 : index
    %57 = vector.load %arg1[%c0_43, %c19, %c0_44] : memref<1x328x4xf32, #tpu.memory_space<vmem>>, vector<1x288x4xf32>
    %58 = vector.shape_cast %57 : vector<1x288x4xf32> to vector<288x4xf32>
    %59 = arith.truncf %58 : vector<288x4xf32> to vector<288x4xbf16>
    %c0_45 = arith.constant 0 : index
    %c0_46 = arith.constant 0 : index
    %60 = vector.load %arg3[%c0_45, %c0_46] : memref<4x256xbf16, #tpu.memory_space<vmem>>, vector<4x256xbf16>
    %cst_47 = arith.constant dense<0.000000e+00> : vector<288x256xf32>
    %61 = tpu.matmul %59, %60, %cst_47 {dimension_numbers = #tpu.dot_dimension_numbers<[1], [0], [0], [1], [0, 0, 1, 1], [], []>} : vector<288x4xbf16>, vector<4x256xbf16>, vector<288x256xf32> -> vector<288x256xf32>
    %62 = vector.extract_strided_slice %61 {offsets = [0, 0], sizes = [288, 128], strides = [1, 1]} : vector<288x256xf32> to vector<288x128xf32>
    %63 = arith.addf %56, %62 : vector<288x128xf32>
    %64 = vector.extract_strided_slice %61 {offsets = [0, 128], sizes = [288, 128], strides = [1, 1]} : vector<288x256xf32> to vector<288x128xf32>
    %c0_48 = arith.constant 0 : index
    %c0_49 = arith.constant 0 : index
    %65 = vector.load %arg4[%c0_48, %c0_49] : memref<288x1xf32, #tpu.memory_space<vmem>>, vector<288x1xf32>
    %66 = vector.broadcast %65 : vector<288x1xf32> to vector<288x128xf32>
    %67 = arith.mulf %63, %66 : vector<288x128xf32>
    %68 = vector.broadcast %65 : vector<288x1xf32> to vector<288x128xf32>
    %69 = arith.mulf %64, %68 : vector<288x128xf32>
    %cst_50 = arith.constant dense<0.000000e+00> : vector<128xf32>
    %70 = vector.multi_reduction <add>, %67, %cst_50 [0] : vector<288x128xf32> to vector<128xf32>
    %71 = vector.shape_cast %70 : vector<128xf32> to vector<1x128xf32>
    %c0_51 = arith.constant 0 : index
    %c0_52 = arith.constant 0 : index
    %c0_53 = arith.constant 0 : index
    %72 = vector.load %arg7[%c0_51, %c0_52, %c0_53] : memref<1x4x128xf32, #tpu.memory_space<vmem>>, vector<1x1x128xf32>
    %73 = vector.shape_cast %72 : vector<1x1x128xf32> to vector<1x128xf32>
    %74 = vector.shape_cast %71 : vector<1x128xf32> to vector<1x1x128xf32>
    tpu.vector_store %arg7[%c0_51, %c0_52, %c0_53], %74 {strides = array<i32>} : memref<1x4x128xf32, #tpu.memory_space<vmem>>, vector<1x1x128xf32>,
    %75 = arith.mulf %67, %67 : vector<288x128xf32>
    %cst_54 = arith.constant dense<0.000000e+00> : vector<128xf32>
    %76 = vector.multi_reduction <add>, %75, %cst_54 [0] : vector<288x128xf32> to vector<128xf32>
    %77 = vector.shape_cast %76 : vector<128xf32> to vector<1x128xf32>
    %c0_55 = arith.constant 0 : index
    %c1_56 = arith.constant 1 : index
    %c0_57 = arith.constant 0 : index
    %78 = vector.load %arg7[%c0_55, %c1_56, %c0_57] : memref<1x4x128xf32, #tpu.memory_space<vmem>>, vector<1x1x128xf32>
    %79 = vector.shape_cast %78 : vector<1x1x128xf32> to vector<1x128xf32>
    %80 = vector.shape_cast %77 : vector<1x128xf32> to vector<1x1x128xf32>
    tpu.vector_store %arg7[%c0_55, %c1_56, %c0_57], %80 {strides = array<i32>} : memref<1x4x128xf32, #tpu.memory_space<vmem>>, vector<1x1x128xf32>,
    %cst_58 = arith.constant dense<0.000000e+00> : vector<128xf32>
    %81 = vector.multi_reduction <add>, %69, %cst_58 [0] : vector<288x128xf32> to vector<128xf32>
    %82 = vector.shape_cast %81 : vector<128xf32> to vector<1x128xf32>
    %c0_59 = arith.constant 0 : index
    %c2_60 = arith.constant 2 : index
    %c0_61 = arith.constant 0 : index
    %83 = vector.load %arg7[%c0_59, %c2_60, %c0_61] : memref<1x4x128xf32, #tpu.memory_space<vmem>>, vector<1x1x128xf32>
    %84 = vector.shape_cast %83 : vector<1x1x128xf32> to vector<1x128xf32>
    %85 = vector.shape_cast %82 : vector<1x128xf32> to vector<1x1x128xf32>
    tpu.vector_store %arg7[%c0_59, %c2_60, %c0_61], %85 {strides = array<i32>} : memref<1x4x128xf32, #tpu.memory_space<vmem>>, vector<1x1x128xf32>,
    %86 = arith.mulf %69, %69 : vector<288x128xf32>
    %cst_62 = arith.constant dense<0.000000e+00> : vector<128xf32>
    %87 = vector.multi_reduction <add>, %86, %cst_62 [0] : vector<288x128xf32> to vector<128xf32>
    %88 = vector.shape_cast %87 : vector<128xf32> to vector<1x128xf32>
    %c0_63 = arith.constant 0 : index
    %c3_64 = arith.constant 3 : index
    %c0_65 = arith.constant 0 : index
    %89 = vector.load %arg7[%c0_63, %c3_64, %c0_65] : memref<1x4x128xf32, #tpu.memory_space<vmem>>, vector<1x1x128xf32>
    %90 = vector.shape_cast %89 : vector<1x1x128xf32> to vector<1x128xf32>
    %91 = vector.shape_cast %88 : vector<1x128xf32> to vector<1x1x128xf32>
    tpu.vector_store %arg7[%c0_63, %c3_64, %c0_65], %91 {strides = array<i32>} : memref<1x4x128xf32, #tpu.memory_space<vmem>>, vector<1x1x128xf32>,
    %cst_66 = arith.constant 0.000000e+00 : f32
    %92 = vector.broadcast %cst_66 : f32 to vector<19x128xf32>
    %c0_67 = arith.constant 0 : index
    %c0_68 = arith.constant 0 : index
    %c0_69 = arith.constant 0 : index
    %93 = vector.load %arg5[%c0_67, %c0_68, %c0_69] : memref<1x328x128xf32, #tpu.memory_space<vmem>>, vector<1x19x128xf32>
    %94 = vector.shape_cast %93 : vector<1x19x128xf32> to vector<19x128xf32>
    %95 = vector.shape_cast %92 : vector<19x128xf32> to vector<1x19x128xf32>
    tpu.vector_store %arg5[%c0_67, %c0_68, %c0_69], %95 {strides = array<i32>} : memref<1x328x128xf32, #tpu.memory_space<vmem>>, vector<1x19x128xf32>,
    %c0_70 = arith.constant 0 : index
    %c19_71 = arith.constant 19 : index
    %c0_72 = arith.constant 0 : index
    %96 = vector.load %arg5[%c0_70, %c19_71, %c0_72] : memref<1x328x128xf32, #tpu.memory_space<vmem>>, vector<1x288x128xf32>
    %97 = vector.shape_cast %96 : vector<1x288x128xf32> to vector<288x128xf32>
    %98 = vector.shape_cast %67 : vector<288x128xf32> to vector<1x288x128xf32>
    tpu.vector_store %arg5[%c0_70, %c19_71, %c0_72], %98 {strides = array<i32>} : memref<1x328x128xf32, #tpu.memory_space<vmem>>, vector<1x288x128xf32>,
    %cst_73 = arith.constant 0.000000e+00 : f32
    %99 = vector.broadcast %cst_73 : f32 to vector<21x128xf32>
    %c0_74 = arith.constant 0 : index
    %c307 = arith.constant 307 : index
    %c0_75 = arith.constant 0 : index
    %100 = vector.load %arg5[%c0_74, %c307, %c0_75] : memref<1x328x128xf32, #tpu.memory_space<vmem>>, vector<1x21x128xf32>
    %101 = vector.shape_cast %100 : vector<1x21x128xf32> to vector<21x128xf32>
    %102 = vector.shape_cast %99 : vector<21x128xf32> to vector<1x21x128xf32>
    tpu.vector_store %arg5[%c0_74, %c307, %c0_75], %102 {strides = array<i32>} : memref<1x328x128xf32, #tpu.memory_space<vmem>>, vector<1x21x128xf32>,
    %103 = arith.truncf %69 : vector<288x128xf32> to vector<288x128xbf16>
    %c0_76 = arith.constant 0 : index
    %c0_77 = arith.constant 0 : index
    %c0_78 = arith.constant 0 : index
    %104 = vector.load %arg6[%c0_76, %c0_77, %c0_78] : memref<1x288x128xbf16, #tpu.memory_space<vmem>>, vector<1x288x128xbf16>
    %105 = vector.shape_cast %104 : vector<1x288x128xbf16> to vector<288x128xbf16>
    %106 = vector.shape_cast %103 : vector<288x128xbf16> to vector<1x288x128xbf16>
    tpu.vector_store %arg6[%c0_76, %c0_77, %c0_78], %106 {strides = array<i32>} : memref<1x288x128xbf16, #tpu.memory_space<vmem>>, vector<1x288x128xbf16>,
    return
  }
  func.func @transform_0(%arg0: i32) -> (i32, i32, i32) {
    %c0_i32 = arith.constant 0 : i32
    %c0_i32_0 = arith.constant 0 : i32
    %c0_i32_1 = arith.constant 0 : i32
    return %arg0, %c0_i32, %c0_i32_0 : i32, i32, i32
  }
  func.func @transform_1(%arg0: i32) -> (i32, i32, i32) {
    %c0_i32 = arith.constant 0 : i32
    %c0_i32_0 = arith.constant 0 : i32
    %c0_i32_1 = arith.constant 0 : i32
    %c0_i32_2 = arith.constant 0 : i32
    return %c0_i32, %c0_i32_0, %c0_i32_1 : i32, i32, i32
  }
  func.func @transform_2(%arg0: i32) -> (i32, i32) {
    %c0_i32 = arith.constant 0 : i32
    %c0_i32_0 = arith.constant 0 : i32
    %c0_i32_1 = arith.constant 0 : i32
    return %c0_i32, %c0_i32_0 : i32, i32
  }
  func.func @transform_3(%arg0: i32) -> (i32, i32) {
    %c0_i32 = arith.constant 0 : i32
    %c0_i32_0 = arith.constant 0 : i32
    %c0_i32_1 = arith.constant 0 : i32
    return %c0_i32, %c0_i32_0 : i32, i32
  }
  func.func @transform_4(%arg0: i32) -> (i32, i32, i32) {
    %c0_i32 = arith.constant 0 : i32
    %c0_i32_0 = arith.constant 0 : i32
    %c0_i32_1 = arith.constant 0 : i32
    return %arg0, %c0_i32, %c0_i32_0 : i32, i32, i32
  }
  func.func @transform_5(%arg0: i32) -> (i32, i32, i32) {
    %c0_i32 = arith.constant 0 : i32
    %c0_i32_0 = arith.constant 0 : i32
    %c0_i32_1 = arith.constant 0 : i32
    return %arg0, %c0_i32, %c0_i32_0 : i32, i32, i32
  }
  func.func @transform_6(%arg0: i32) -> (i32, i32, i32) {
    %c0_i32 = arith.constant 0 : i32
    %c0_i32_0 = arith.constant 0 : i32
    %c0_i32_1 = arith.constant 0 : i32
    return %arg0, %c0_i32, %c0_i32_0 : i32, i32, i32
  }
}

module attributes {stable_mosaic.version = 11 : i64} {
  func.func @_bn1_relu_conv2_kernel(%arg0: i32, %arg1: memref<1x328x128xf32, #tpu.memory_space<vmem>>, %arg2: memref<1x128xf32, #tpu.memory_space<vmem>>, %arg3: memref<1x128xf32, #tpu.memory_space<vmem>>, %arg4: memref<9x128x128xbf16, #tpu.memory_space<vmem>>, %arg5: memref<328x1xf32, #tpu.memory_space<vmem>>, %arg6: memref<288x1xf32, #tpu.memory_space<vmem>>, %arg7: memref<1x328x128xf32, #tpu.memory_space<vmem>>, %arg8: memref<1x2x128xf32, #tpu.memory_space<vmem>>, %arg9: memref<328x128xf32, #tpu.memory_space<vmem>>) attributes {dimension_semantics = [#tpu.dimension_semantics<parallel>], iteration_bounds = array<i64: 2>, scalar_prefetch = 0 : i64, scratch_operands = 1 : i64, tpu.core_type = #tpu.core_type<tc>, window_params = [{transform_indices = @transform_0, window_bounds = array<i64: 1, 328, 128>}, {pipeline_mode = #tpu.pipeline_mode<synchronous>, transform_indices = @transform_1, window_bounds = array<i64: 1, 128>}, {pipeline_mode = #tpu.pipeline_mode<synchronous>, transform_indices = @transform_2, window_bounds = array<i64: 1, 128>}, {pipeline_mode = #tpu.pipeline_mode<synchronous>, transform_indices = @transform_3, window_bounds = array<i64: 9, 128, 128>}, {pipeline_mode = #tpu.pipeline_mode<synchronous>, transform_indices = @transform_4, window_bounds = array<i64: 328, 1>}, {pipeline_mode = #tpu.pipeline_mode<synchronous>, transform_indices = @transform_5, window_bounds = array<i64: 288, 1>}, {transform_indices = @transform_6, window_bounds = array<i64: 1, 328, 128>}, {transform_indices = @transform_7, window_bounds = array<i64: 1, 2, 128>}]} {
    %c0 = arith.constant 0 : index
    %c0_0 = arith.constant 0 : index
    %c0_1 = arith.constant 0 : index
    %0 = vector.load %arg1[%c0, %c0_0, %c0_1] : memref<1x328x128xf32, #tpu.memory_space<vmem>>, vector<1x328x128xf32>
    %1 = vector.shape_cast %0 : vector<1x328x128xf32> to vector<328x128xf32>
    %c0_2 = arith.constant 0 : index
    %c0_3 = arith.constant 0 : index
    %2 = vector.load %arg2[%c0_2, %c0_3] : memref<1x128xf32, #tpu.memory_space<vmem>>, vector<1x128xf32>
    %3 = vector.broadcast %2 : vector<1x128xf32> to vector<328x128xf32>
    %4 = arith.mulf %1, %3 : vector<328x128xf32>
    %c0_4 = arith.constant 0 : index
    %c0_5 = arith.constant 0 : index
    %5 = vector.load %arg3[%c0_4, %c0_5] : memref<1x128xf32, #tpu.memory_space<vmem>>, vector<1x128xf32>
    %6 = vector.broadcast %5 : vector<1x128xf32> to vector<328x128xf32>
    %7 = arith.addf %4, %6 : vector<328x128xf32>
    %cst = arith.constant 0.000000e+00 : f32
    %8 = vector.broadcast %cst : f32 to vector<328x128xf32>
    %9 = arith.maximumf %7, %8 : vector<328x128xf32>
    %c0_6 = arith.constant 0 : index
    %c0_7 = arith.constant 0 : index
    %10 = vector.load %arg5[%c0_6, %c0_7] : memref<328x1xf32, #tpu.memory_space<vmem>>, vector<328x1xf32>
    %11 = vector.broadcast %10 : vector<328x1xf32> to vector<328x128xf32>
    %12 = arith.mulf %9, %11 : vector<328x128xf32>
    %c0_8 = arith.constant 0 : index
    %c0_9 = arith.constant 0 : index
    %13 = vector.load %arg9[%c0_8, %c0_9] : memref<328x128xf32, #tpu.memory_space<vmem>>, vector<328x128xf32>
    tpu.vector_store %arg9[%c0_8, %c0_9], %12 {strides = array<i32>} : memref<328x128xf32, #tpu.memory_space<vmem>>, vector<328x128xf32>,
    %cst_10 = arith.constant 0.000000e+00 : f32
    %14 = vector.broadcast %cst_10 : f32 to vector<288x128xf32>
    %c0_11 = arith.constant 0 : index
    %c0_12 = arith.constant 0 : index
    %15 = vector.load %arg9[%c0_11, %c0_12] : memref<328x128xf32, #tpu.memory_space<vmem>>, vector<288x128xf32>
    %16 = arith.truncf %15 : vector<288x128xf32> to vector<288x128xbf16>
    %c0_13 = arith.constant 0 : index
    %c0_14 = arith.constant 0 : index
    %c0_15 = arith.constant 0 : index
    %17 = vector.load %arg4[%c0_13, %c0_14, %c0_15] : memref<9x128x128xbf16, #tpu.memory_space<vmem>>, vector<1x128x128xbf16>
    %18 = vector.shape_cast %17 : vector<1x128x128xbf16> to vector<128x128xbf16>
    %cst_16 = arith.constant dense<0.000000e+00> : vector<288x128xf32>
    %19 = tpu.matmul %16, %18, %cst_16 {dimension_numbers = #tpu.dot_dimension_numbers<[1], [0], [0], [1], [0, 0, 1, 1], [], []>} : vector<288x128xbf16>, vector<128x128xbf16>, vector<288x128xf32> -> vector<288x128xf32>
    %20 = arith.addf %14, %19 : vector<288x128xf32>
    %c1 = arith.constant 1 : index
    %c0_17 = arith.constant 0 : index
    %21 = vector.load %arg9[%c1, %c0_17] : memref<328x128xf32, #tpu.memory_space<vmem>>, vector<288x128xf32>
    %22 = arith.truncf %21 : vector<288x128xf32> to vector<288x128xbf16>
    %c1_18 = arith.constant 1 : index
    %c0_19 = arith.constant 0 : index
    %c0_20 = arith.constant 0 : index
    %23 = vector.load %arg4[%c1_18, %c0_19, %c0_20] : memref<9x128x128xbf16, #tpu.memory_space<vmem>>, vector<1x128x128xbf16>
    %24 = vector.shape_cast %23 : vector<1x128x128xbf16> to vector<128x128xbf16>
    %cst_21 = arith.constant dense<0.000000e+00> : vector<288x128xf32>
    %25 = tpu.matmul %22, %24, %cst_21 {dimension_numbers = #tpu.dot_dimension_numbers<[1], [0], [0], [1], [0, 0, 1, 1], [], []>} : vector<288x128xbf16>, vector<128x128xbf16>, vector<288x128xf32> -> vector<288x128xf32>
    %26 = arith.addf %20, %25 : vector<288x128xf32>
    %c2 = arith.constant 2 : index
    %c0_22 = arith.constant 0 : index
    %27 = vector.load %arg9[%c2, %c0_22] : memref<328x128xf32, #tpu.memory_space<vmem>>, vector<288x128xf32>
    %28 = arith.truncf %27 : vector<288x128xf32> to vector<288x128xbf16>
    %c2_23 = arith.constant 2 : index
    %c0_24 = arith.constant 0 : index
    %c0_25 = arith.constant 0 : index
    %29 = vector.load %arg4[%c2_23, %c0_24, %c0_25] : memref<9x128x128xbf16, #tpu.memory_space<vmem>>, vector<1x128x128xbf16>
    %30 = vector.shape_cast %29 : vector<1x128x128xbf16> to vector<128x128xbf16>
    %cst_26 = arith.constant dense<0.000000e+00> : vector<288x128xf32>
    %31 = tpu.matmul %28, %30, %cst_26 {dimension_numbers = #tpu.dot_dimension_numbers<[1], [0], [0], [1], [0, 0, 1, 1], [], []>} : vector<288x128xbf16>, vector<128x128xbf16>, vector<288x128xf32> -> vector<288x128xf32>
    %32 = arith.addf %26, %31 : vector<288x128xf32>
    %c18 = arith.constant 18 : index
    %c0_27 = arith.constant 0 : index
    %33 = vector.load %arg9[%c18, %c0_27] : memref<328x128xf32, #tpu.memory_space<vmem>>, vector<288x128xf32>
    %34 = arith.truncf %33 : vector<288x128xf32> to vector<288x128xbf16>
    %c3 = arith.constant 3 : index
    %c0_28 = arith.constant 0 : index
    %c0_29 = arith.constant 0 : index
    %35 = vector.load %arg4[%c3, %c0_28, %c0_29] : memref<9x128x128xbf16, #tpu.memory_space<vmem>>, vector<1x128x128xbf16>
    %36 = vector.shape_cast %35 : vector<1x128x128xbf16> to vector<128x128xbf16>
    %cst_30 = arith.constant dense<0.000000e+00> : vector<288x128xf32>
    %37 = tpu.matmul %34, %36, %cst_30 {dimension_numbers = #tpu.dot_dimension_numbers<[1], [0], [0], [1], [0, 0, 1, 1], [], []>} : vector<288x128xbf16>, vector<128x128xbf16>, vector<288x128xf32> -> vector<288x128xf32>
    %38 = arith.addf %32, %37 : vector<288x128xf32>
    %c19 = arith.constant 19 : index
    %c0_31 = arith.constant 0 : index
    %39 = vector.load %arg9[%c19, %c0_31] : memref<328x128xf32, #tpu.memory_space<vmem>>, vector<288x128xf32>
    %40 = arith.truncf %39 : vector<288x128xf32> to vector<288x128xbf16>
    %c4 = arith.constant 4 : index
    %c0_32 = arith.constant 0 : index
    %c0_33 = arith.constant 0 : index
    %41 = vector.load %arg4[%c4, %c0_32, %c0_33] : memref<9x128x128xbf16, #tpu.memory_space<vmem>>, vector<1x128x128xbf16>
    %42 = vector.shape_cast %41 : vector<1x128x128xbf16> to vector<128x128xbf16>
    %cst_34 = arith.constant dense<0.000000e+00> : vector<288x128xf32>
    %43 = tpu.matmul %40, %42, %cst_34 {dimension_numbers = #tpu.dot_dimension_numbers<[1], [0], [0], [1], [0, 0, 1, 1], [], []>} : vector<288x128xbf16>, vector<128x128xbf16>, vector<288x128xf32> -> vector<288x128xf32>
    %44 = arith.addf %38, %43 : vector<288x128xf32>
    %c20 = arith.constant 20 : index
    %c0_35 = arith.constant 0 : index
    %45 = vector.load %arg9[%c20, %c0_35] : memref<328x128xf32, #tpu.memory_space<vmem>>, vector<288x128xf32>
    %46 = arith.truncf %45 : vector<288x128xf32> to vector<288x128xbf16>
    %c5 = arith.constant 5 : index
    %c0_36 = arith.constant 0 : index
    %c0_37 = arith.constant 0 : index
    %47 = vector.load %arg4[%c5, %c0_36, %c0_37] : memref<9x128x128xbf16, #tpu.memory_space<vmem>>, vector<1x128x128xbf16>
    %48 = vector.shape_cast %47 : vector<1x128x128xbf16> to vector<128x128xbf16>
    %cst_38 = arith.constant dense<0.000000e+00> : vector<288x128xf32>
    %49 = tpu.matmul %46, %48, %cst_38 {dimension_numbers = #tpu.dot_dimension_numbers<[1], [0], [0], [1], [0, 0, 1, 1], [], []>} : vector<288x128xbf16>, vector<128x128xbf16>, vector<288x128xf32> -> vector<288x128xf32>
    %50 = arith.addf %44, %49 : vector<288x128xf32>
    %c36 = arith.constant 36 : index
    %c0_39 = arith.constant 0 : index
    %51 = vector.load %arg9[%c36, %c0_39] : memref<328x128xf32, #tpu.memory_space<vmem>>, vector<288x128xf32>
    %52 = arith.truncf %51 : vector<288x128xf32> to vector<288x128xbf16>
    %c6 = arith.constant 6 : index
    %c0_40 = arith.constant 0 : index
    %c0_41 = arith.constant 0 : index
    %53 = vector.load %arg4[%c6, %c0_40, %c0_41] : memref<9x128x128xbf16, #tpu.memory_space<vmem>>, vector<1x128x128xbf16>
    %54 = vector.shape_cast %53 : vector<1x128x128xbf16> to vector<128x128xbf16>
    %cst_42 = arith.constant dense<0.000000e+00> : vector<288x128xf32>
    %55 = tpu.matmul %52, %54, %cst_42 {dimension_numbers = #tpu.dot_dimension_numbers<[1], [0], [0], [1], [0, 0, 1, 1], [], []>} : vector<288x128xbf16>, vector<128x128xbf16>, vector<288x128xf32> -> vector<288x128xf32>
    %56 = arith.addf %50, %55 : vector<288x128xf32>
    %c37 = arith.constant 37 : index
    %c0_43 = arith.constant 0 : index
    %57 = vector.load %arg9[%c37, %c0_43] : memref<328x128xf32, #tpu.memory_space<vmem>>, vector<288x128xf32>
    %58 = arith.truncf %57 : vector<288x128xf32> to vector<288x128xbf16>
    %c7 = arith.constant 7 : index
    %c0_44 = arith.constant 0 : index
    %c0_45 = arith.constant 0 : index
    %59 = vector.load %arg4[%c7, %c0_44, %c0_45] : memref<9x128x128xbf16, #tpu.memory_space<vmem>>, vector<1x128x128xbf16>
    %60 = vector.shape_cast %59 : vector<1x128x128xbf16> to vector<128x128xbf16>
    %cst_46 = arith.constant dense<0.000000e+00> : vector<288x128xf32>
    %61 = tpu.matmul %58, %60, %cst_46 {dimension_numbers = #tpu.dot_dimension_numbers<[1], [0], [0], [1], [0, 0, 1, 1], [], []>} : vector<288x128xbf16>, vector<128x128xbf16>, vector<288x128xf32> -> vector<288x128xf32>
    %62 = arith.addf %56, %61 : vector<288x128xf32>
    %c38 = arith.constant 38 : index
    %c0_47 = arith.constant 0 : index
    %63 = vector.load %arg9[%c38, %c0_47] : memref<328x128xf32, #tpu.memory_space<vmem>>, vector<288x128xf32>
    %64 = arith.truncf %63 : vector<288x128xf32> to vector<288x128xbf16>
    %c8 = arith.constant 8 : index
    %c0_48 = arith.constant 0 : index
    %c0_49 = arith.constant 0 : index
    %65 = vector.load %arg4[%c8, %c0_48, %c0_49] : memref<9x128x128xbf16, #tpu.memory_space<vmem>>, vector<1x128x128xbf16>
    %66 = vector.shape_cast %65 : vector<1x128x128xbf16> to vector<128x128xbf16>
    %cst_50 = arith.constant dense<0.000000e+00> : vector<288x128xf32>
    %67 = tpu.matmul %64, %66, %cst_50 {dimension_numbers = #tpu.dot_dimension_numbers<[1], [0], [0], [1], [0, 0, 1, 1], [], []>} : vector<288x128xbf16>, vector<128x128xbf16>, vector<288x128xf32> -> vector<288x128xf32>
    %68 = arith.addf %62, %67 : vector<288x128xf32>
    %c0_51 = arith.constant 0 : index
    %c0_52 = arith.constant 0 : index
    %69 = vector.load %arg6[%c0_51, %c0_52] : memref<288x1xf32, #tpu.memory_space<vmem>>, vector<288x1xf32>
    %70 = vector.broadcast %69 : vector<288x1xf32> to vector<288x128xf32>
    %71 = arith.mulf %68, %70 : vector<288x128xf32>
    %cst_53 = arith.constant dense<0.000000e+00> : vector<128xf32>
    %72 = vector.multi_reduction <add>, %71, %cst_53 [0] : vector<288x128xf32> to vector<128xf32>
    %73 = vector.shape_cast %72 : vector<128xf32> to vector<1x128xf32>
    %c0_54 = arith.constant 0 : index
    %c0_55 = arith.constant 0 : index
    %c0_56 = arith.constant 0 : index
    %74 = vector.load %arg8[%c0_54, %c0_55, %c0_56] : memref<1x2x128xf32, #tpu.memory_space<vmem>>, vector<1x1x128xf32>
    %75 = vector.shape_cast %74 : vector<1x1x128xf32> to vector<1x128xf32>
    %76 = vector.shape_cast %73 : vector<1x128xf32> to vector<1x1x128xf32>
    tpu.vector_store %arg8[%c0_54, %c0_55, %c0_56], %76 {strides = array<i32>} : memref<1x2x128xf32, #tpu.memory_space<vmem>>, vector<1x1x128xf32>,
    %77 = arith.mulf %71, %71 : vector<288x128xf32>
    %cst_57 = arith.constant dense<0.000000e+00> : vector<128xf32>
    %78 = vector.multi_reduction <add>, %77, %cst_57 [0] : vector<288x128xf32> to vector<128xf32>
    %79 = vector.shape_cast %78 : vector<128xf32> to vector<1x128xf32>
    %c0_58 = arith.constant 0 : index
    %c1_59 = arith.constant 1 : index
    %c0_60 = arith.constant 0 : index
    %80 = vector.load %arg8[%c0_58, %c1_59, %c0_60] : memref<1x2x128xf32, #tpu.memory_space<vmem>>, vector<1x1x128xf32>
    %81 = vector.shape_cast %80 : vector<1x1x128xf32> to vector<1x128xf32>
    %82 = vector.shape_cast %79 : vector<1x128xf32> to vector<1x1x128xf32>
    tpu.vector_store %arg8[%c0_58, %c1_59, %c0_60], %82 {strides = array<i32>} : memref<1x2x128xf32, #tpu.memory_space<vmem>>, vector<1x1x128xf32>,
    %cst_61 = arith.constant 0.000000e+00 : f32
    %83 = vector.broadcast %cst_61 : f32 to vector<19x128xf32>
    %c0_62 = arith.constant 0 : index
    %c0_63 = arith.constant 0 : index
    %c0_64 = arith.constant 0 : index
    %84 = vector.load %arg7[%c0_62, %c0_63, %c0_64] : memref<1x328x128xf32, #tpu.memory_space<vmem>>, vector<1x19x128xf32>
    %85 = vector.shape_cast %84 : vector<1x19x128xf32> to vector<19x128xf32>
    %86 = vector.shape_cast %83 : vector<19x128xf32> to vector<1x19x128xf32>
    tpu.vector_store %arg7[%c0_62, %c0_63, %c0_64], %86 {strides = array<i32>} : memref<1x328x128xf32, #tpu.memory_space<vmem>>, vector<1x19x128xf32>,
    %c0_65 = arith.constant 0 : index
    %c19_66 = arith.constant 19 : index
    %c0_67 = arith.constant 0 : index
    %87 = vector.load %arg7[%c0_65, %c19_66, %c0_67] : memref<1x328x128xf32, #tpu.memory_space<vmem>>, vector<1x288x128xf32>
    %88 = vector.shape_cast %87 : vector<1x288x128xf32> to vector<288x128xf32>
    %89 = vector.shape_cast %71 : vector<288x128xf32> to vector<1x288x128xf32>
    tpu.vector_store %arg7[%c0_65, %c19_66, %c0_67], %89 {strides = array<i32>} : memref<1x328x128xf32, #tpu.memory_space<vmem>>, vector<1x288x128xf32>,
    %cst_68 = arith.constant 0.000000e+00 : f32
    %90 = vector.broadcast %cst_68 : f32 to vector<21x128xf32>
    %c0_69 = arith.constant 0 : index
    %c307 = arith.constant 307 : index
    %c0_70 = arith.constant 0 : index
    %91 = vector.load %arg7[%c0_69, %c307, %c0_70] : memref<1x328x128xf32, #tpu.memory_space<vmem>>, vector<1x21x128xf32>
    %92 = vector.shape_cast %91 : vector<1x21x128xf32> to vector<21x128xf32>
    %93 = vector.shape_cast %90 : vector<21x128xf32> to vector<1x21x128xf32>
    tpu.vector_store %arg7[%c0_69, %c307, %c0_70], %93 {strides = array<i32>} : memref<1x328x128xf32, #tpu.memory_space<vmem>>, vector<1x21x128xf32>,
    return
  }
  func.func @transform_0(%arg0: i32) -> (i32, i32, i32) {
    %c0_i32 = arith.constant 0 : i32
    %c0_i32_0 = arith.constant 0 : i32
    %c0_i32_1 = arith.constant 0 : i32
    return %arg0, %c0_i32, %c0_i32_0 : i32, i32, i32
  }
  func.func @transform_1(%arg0: i32) -> (i32, i32) {
    %c0_i32 = arith.constant 0 : i32
    %c0_i32_0 = arith.constant 0 : i32
    %c0_i32_1 = arith.constant 0 : i32
    return %c0_i32, %c0_i32_0 : i32, i32
  }
  func.func @transform_2(%arg0: i32) -> (i32, i32) {
    %c0_i32 = arith.constant 0 : i32
    %c0_i32_0 = arith.constant 0 : i32
    %c0_i32_1 = arith.constant 0 : i32
    return %c0_i32, %c0_i32_0 : i32, i32
  }
  func.func @transform_3(%arg0: i32) -> (i32, i32, i32) {
    %c0_i32 = arith.constant 0 : i32
    %c0_i32_0 = arith.constant 0 : i32
    %c0_i32_1 = arith.constant 0 : i32
    %c0_i32_2 = arith.constant 0 : i32
    return %c0_i32, %c0_i32_0, %c0_i32_1 : i32, i32, i32
  }
  func.func @transform_4(%arg0: i32) -> (i32, i32) {
    %c0_i32 = arith.constant 0 : i32
    %c0_i32_0 = arith.constant 0 : i32
    %c0_i32_1 = arith.constant 0 : i32
    return %c0_i32, %c0_i32_0 : i32, i32
  }
  func.func @transform_5(%arg0: i32) -> (i32, i32) {
    %c0_i32 = arith.constant 0 : i32
    %c0_i32_0 = arith.constant 0 : i32
    %c0_i32_1 = arith.constant 0 : i32
    return %c0_i32, %c0_i32_0 : i32, i32
  }
  func.func @transform_6(%arg0: i32) -> (i32, i32, i32) {
    %c0_i32 = arith.constant 0 : i32
    %c0_i32_0 = arith.constant 0 : i32
    %c0_i32_1 = arith.constant 0 : i32
    return %arg0, %c0_i32, %c0_i32_0 : i32, i32, i32
  }
  func.func @transform_7(%arg0: i32) -> (i32, i32, i32) {
    %c0_i32 = arith.constant 0 : i32
    %c0_i32_0 = arith.constant 0 : i32
    %c0_i32_1 = arith.constant 0 : i32
    return %arg0, %c0_i32, %c0_i32_0 : i32, i32, i32
  }
}

module attributes {stable_mosaic.version = 11 : i64} {
  func.func @_bn2_bn3_add_kernel(%arg0: i32, %arg1: memref<1x328x128xf32, #tpu.memory_space<vmem>>, %arg2: memref<1x288x128xbf16, #tpu.memory_space<vmem>>, %arg3: memref<1x128xf32, #tpu.memory_space<vmem>>, %arg4: memref<1x128xf32, #tpu.memory_space<vmem>>, %arg5: memref<1x128xf32, #tpu.memory_space<vmem>>, %arg6: memref<1x128xf32, #tpu.memory_space<vmem>>, %arg7: memref<1x288x128xf32, #tpu.memory_space<vmem>>) attributes {dimension_semantics = [#tpu.dimension_semantics<parallel>], iteration_bounds = array<i64: 2>, scalar_prefetch = 0 : i64, scratch_operands = 0 : i64, tpu.core_type = #tpu.core_type<tc>, window_params = [{transform_indices = @transform_0, window_bounds = array<i64: 1, 328, 128>}, {transform_indices = @transform_1, window_bounds = array<i64: 1, 288, 128>}, {pipeline_mode = #tpu.pipeline_mode<synchronous>, transform_indices = @transform_2, window_bounds = array<i64: 1, 128>}, {pipeline_mode = #tpu.pipeline_mode<synchronous>, transform_indices = @transform_3, window_bounds = array<i64: 1, 128>}, {pipeline_mode = #tpu.pipeline_mode<synchronous>, transform_indices = @transform_4, window_bounds = array<i64: 1, 128>}, {pipeline_mode = #tpu.pipeline_mode<synchronous>, transform_indices = @transform_5, window_bounds = array<i64: 1, 128>}, {transform_indices = @transform_6, window_bounds = array<i64: 1, 288, 128>}]} {
    %c0 = arith.constant 0 : index
    %c19 = arith.constant 19 : index
    %c0_0 = arith.constant 0 : index
    %0 = vector.load %arg1[%c0, %c19, %c0_0] : memref<1x328x128xf32, #tpu.memory_space<vmem>>, vector<1x288x128xf32>
    %1 = vector.shape_cast %0 : vector<1x288x128xf32> to vector<288x128xf32>
    %c0_1 = arith.constant 0 : index
    %c0_2 = arith.constant 0 : index
    %2 = vector.load %arg3[%c0_1, %c0_2] : memref<1x128xf32, #tpu.memory_space<vmem>>, vector<1x128xf32>
    %3 = vector.broadcast %2 : vector<1x128xf32> to vector<288x128xf32>
    %4 = arith.mulf %1, %3 : vector<288x128xf32>
    %c0_3 = arith.constant 0 : index
    %c0_4 = arith.constant 0 : index
    %5 = vector.load %arg4[%c0_3, %c0_4] : memref<1x128xf32, #tpu.memory_space<vmem>>, vector<1x128xf32>
    %6 = vector.broadcast %5 : vector<1x128xf32> to vector<288x128xf32>
    %7 = arith.addf %4, %6 : vector<288x128xf32>
    %cst = arith.constant 0.000000e+00 : f32
    %8 = vector.broadcast %cst : f32 to vector<288x128xf32>
    %9 = arith.maximumf %7, %8 : vector<288x128xf32>
    %c0_5 = arith.constant 0 : index
    %c0_6 = arith.constant 0 : index
    %c0_7 = arith.constant 0 : index
    %10 = vector.load %arg2[%c0_5, %c0_6, %c0_7] : memref<1x288x128xbf16, #tpu.memory_space<vmem>>, vector<1x288x128xbf16>
    %11 = vector.shape_cast %10 : vector<1x288x128xbf16> to vector<288x128xbf16>
    %12 = arith.extf %11 : vector<288x128xbf16> to vector<288x128xf32>
    %c0_8 = arith.constant 0 : index
    %c0_9 = arith.constant 0 : index
    %13 = vector.load %arg5[%c0_8, %c0_9] : memref<1x128xf32, #tpu.memory_space<vmem>>, vector<1x128xf32>
    %14 = vector.broadcast %13 : vector<1x128xf32> to vector<288x128xf32>
    %15 = arith.mulf %12, %14 : vector<288x128xf32>
    %c0_10 = arith.constant 0 : index
    %c0_11 = arith.constant 0 : index
    %16 = vector.load %arg6[%c0_10, %c0_11] : memref<1x128xf32, #tpu.memory_space<vmem>>, vector<1x128xf32>
    %17 = vector.broadcast %16 : vector<1x128xf32> to vector<288x128xf32>
    %18 = arith.addf %15, %17 : vector<288x128xf32>
    %cst_12 = arith.constant 0.000000e+00 : f32
    %19 = vector.broadcast %cst_12 : f32 to vector<288x128xf32>
    %20 = arith.maximumf %18, %19 : vector<288x128xf32>
    %21 = arith.addf %9, %20 : vector<288x128xf32>
    %c0_13 = arith.constant 0 : index
    %c0_14 = arith.constant 0 : index
    %c0_15 = arith.constant 0 : index
    %22 = vector.load %arg7[%c0_13, %c0_14, %c0_15] : memref<1x288x128xf32, #tpu.memory_space<vmem>>, vector<1x288x128xf32>
    %23 = vector.shape_cast %22 : vector<1x288x128xf32> to vector<288x128xf32>
    %24 = vector.shape_cast %21 : vector<288x128xf32> to vector<1x288x128xf32>
    tpu.vector_store %arg7[%c0_13, %c0_14, %c0_15], %24 {strides = array<i32>} : memref<1x288x128xf32, #tpu.memory_space<vmem>>, vector<1x288x128xf32>,
    return
  }
  func.func @transform_0(%arg0: i32) -> (i32, i32, i32) {
    %c0_i32 = arith.constant 0 : i32
    %c0_i32_0 = arith.constant 0 : i32
    %c0_i32_1 = arith.constant 0 : i32
    return %arg0, %c0_i32, %c0_i32_0 : i32, i32, i32
  }
  func.func @transform_1(%arg0: i32) -> (i32, i32, i32) {
    %c0_i32 = arith.constant 0 : i32
    %c0_i32_0 = arith.constant 0 : i32
    %c0_i32_1 = arith.constant 0 : i32
    return %arg0, %c0_i32, %c0_i32_0 : i32, i32, i32
  }
  func.func @transform_2(%arg0: i32) -> (i32, i32) {
    %c0_i32 = arith.constant 0 : i32
    %c0_i32_0 = arith.constant 0 : i32
    %c0_i32_1 = arith.constant 0 : i32
    return %c0_i32, %c0_i32_0 : i32, i32
  }
  func.func @transform_3(%arg0: i32) -> (i32, i32) {
    %c0_i32 = arith.constant 0 : i32
    %c0_i32_0 = arith.constant 0 : i32
    %c0_i32_1 = arith.constant 0 : i32
    return %c0_i32, %c0_i32_0 : i32, i32
  }
  func.func @transform_4(%arg0: i32) -> (i32, i32) {
    %c0_i32 = arith.constant 0 : i32
    %c0_i32_0 = arith.constant 0 : i32
    %c0_i32_1 = arith.constant 0 : i32
    return %c0_i32, %c0_i32_0 : i32, i32
  }
  func.func @transform_5(%arg0: i32) -> (i32, i32) {
    %c0_i32 = arith.constant 0 : i32
    %c0_i32_0 = arith.constant 0 : i32
    %c0_i32_1 = arith.constant 0 : i32
    return %c0_i32, %c0_i32_0 : i32, i32
  }
  func.func @transform_6(%arg0: i32) -> (i32, i32, i32) {
    %c0_i32 = arith.constant 0 : i32
    %c0_i32_0 = arith.constant 0 : i32
    %c0_i32_1 = arith.constant 0 : i32
    return %arg0, %c0_i32, %c0_i32_0 : i32, i32, i32
  }
}

</mosaic_0001>

<llo_original>
// kernel: residual_block_forward.5
$region0: #{residual_block_forward.5}
  #allocation0 [shape = 'u32[]', space=smem, size = 0x4, offset = 0x4, fixed_abs, tag = 'smem constant byte address 0x4 - core index']
  #allocation1 [shape = 'u32[144,128]{1,0:T(1,128)}', space=vmem, size = 0x12000, scoped, tag = 'internal scratch']
  %s0 = inlined_call_operand.vmem [shape: f32[2,328,128], index: 0, kind: input, shape index: {}]
  %s1 = inlined_call_operand.vmem [shape: bf16[2,288,128], index: 1, kind: input, shape index: {}]
  %s2 = inlined_call_operand.vmem [shape: f32[1,128], index: 2, kind: input, shape index: {}]
  %s3 = inlined_call_operand.vmem [shape: f32[1,128], index: 3, kind: input, shape index: {}]
  %s4 = inlined_call_operand.vmem [shape: f32[1,128], index: 4, kind: input, shape index: {}]
  %s5 = inlined_call_operand.vmem [shape: f32[1,128], index: 5, kind: input, shape index: {}]
  %s6 = inlined_call_operand.vmem [shape: f32[2,288,128], index: 6, kind: output, shape index: {}]
  %s7 = sld [smem:[#allocation0]]
  $region57: #{residual_block_forward.5} parent=0
    _
  %s9 = ssub.s32 1, %s7
  %s10 = scalar_select 0, %s9, %s7
  loop: start=0, step=1, limit=4
  $region2: #{residual_block_forward.5} parent=0 // loop_pre_header
    _
  $region3: #{residual_block_forward.5} parent=0 // loop_header
    %s12 = sphi 0, %s16
    %p13 = scmp.ge.s32.totalorder %s12, 4
    %s22 = sphi 0, %s24
    %s25 = sphi 0, %s22
    %s26 = sphi 0, %s25
    %s42 = sphi 0, %s26
    %s48 = sphi 0, %s50
    %s51 = sphi 0, %s48
    %s52 = sphi 0, %s51
    %s68 = sphi 0, %s52
    %s72 = sphi 0, %s72
    %s74 = sphi 0, %s72
    %s75 = sphi 0, %s74
    %s89 = sphi 0, %s75
    %s93 = sphi 0, %s93
    %s95 = sphi 0, %s93
    %s96 = sphi 0, %s95
    %s110 = sphi 0, %s96
    %s114 = sphi 0, %s114
    %s116 = sphi 0, %s114
    %s117 = sphi 0, %s116
    %s131 = sphi 0, %s117
    %s135 = sphi 0, %s135
    %s137 = sphi 0, %s135
    %s138 = sphi 0, %s137
    %s152 = sphi 0, %s138
    %s158 = sphi 0, %s160
    %s161 = sphi 0, %s158
    %s162 = sphi 0, %s161
    %s178 = sphi 0, %s162
  $region4: #{residual_block_forward.5} parent=0 // loop_header_branch
    %15 = sbr.rel (%p13) target = $region8
  $region5: #{residual_block_forward.5} parent=0 // loop_body
    %s17 = ssub.s32 %s12, 1
    %s18 = ssub.s32 %s12, 2
    %s19 = sadd.s32 %s12, 1
    %s20 = ssub.s32 %s12, %s19
    %p21 = scmp.eq.s32.totalorder %s20, 0
    %s23 = sadd.s32 %s22, 1
    %s24 = scalar_select %p21, %s22, %s23
    %p27 = pneg %p21
    %p28 = scmp.eq.s32.totalorder %s12, 1
    %p29 = por %p27, %p28
    %p30 = scmp.ne.s32.totalorder %s22, %s25
    %p31 = scmp.eq.s32.totalorder %s12, 0
    %p32 = por %p30, %p31
    %p33 = scmp.ne.s32.totalorder %s22, %s25
    %p34 = scmp.eq.s32.totalorder %s17, 1
    %p35 = por %p33, %p34
    %p36 = scmp.ne.s32.totalorder %s25, %s26
    %p37 = scmp.eq.s32.totalorder %s17, 0
    %p38 = por %p36, %p37
    %p39 = scmp.ne.s32.totalorder %s25, %s26
    %p40 = scmp.eq.s32.totalorder %s18, 1
    %p41 = por %p39, %p40
    %p43 = scmp.ne.s32.totalorder %s26, %s42
    %p44 = scmp.eq.s32.totalorder %s18, 0
    %p45 = por %p43, %p44
    %s46 = ssub.s32 %s12, %s19
    %p47 = scmp.eq.s32.totalorder %s46, 0
    %s49 = sadd.s32 %s48, 1
    %s50 = scalar_select %p47, %s48, %s49
    %p53 = pneg %p47
    %p54 = scmp.eq.s32.totalorder %s12, 1
    %p55 = por %p53, %p54
    %p56 = scmp.ne.s32.totalorder %s48, %s51
    %p57 = scmp.eq.s32.totalorder %s12, 0
    %p58 = por %p56, %p57
    %p59 = scmp.ne.s32.totalorder %s48, %s51
    %p60 = scmp.eq.s32.totalorder %s17, 1
    %p61 = por %p59, %p60
    %p62 = scmp.ne.s32.totalorder %s51, %s52
    %p63 = scmp.eq.s32.totalorder %s17, 0
    %p64 = por %p62, %p63
    %p65 = scmp.ne.s32.totalorder %s51, %s52
    %p66 = scmp.eq.s32.totalorder %s18, 1
    %p67 = por %p65, %p66
    %p69 = scmp.ne.s32.totalorder %s52, %s68
    %p70 = scmp.eq.s32.totalorder %s18, 0
    %p71 = por %p69, %p70
    %s73 = sadd.s32 %s72, 1
    %p76 = scmp.eq.s32.totalorder %s12, 1
    %p77 = scmp.ne.s32.totalorder %s72, %s74
    %p78 = scmp.eq.s32.totalorder %s12, 0
    %p79 = por %p77, %p78
    %p80 = scmp.ne.s32.totalorder %s72, %s74
    %p81 = scmp.eq.s32.totalorder %s17, 1
    %p82 = por %p80, %p81
    %p83 = scmp.ne.s32.totalorder %s74, %s75
    %p84 = scmp.eq.s32.totalorder %s17, 0
    %p85 = por %p83, %p84
    %p86 = scmp.ne.s32.totalorder %s74, %s75
    %p87 = scmp.eq.s32.totalorder %s18, 1
    %p88 = por %p86, %p87
    %p90 = scmp.ne.s32.totalorder %s75, %s89
    %p91 = scmp.eq.s32.totalorder %s18, 0
    %p92 = por %p90, %p91
    %s94 = sadd.s32 %s93, 1
    %p97 = scmp.eq.s32.totalorder %s12, 1
    %p98 = scmp.ne.s32.totalorder %s93, %s95
    %p99 = scmp.eq.s32.totalorder %s12, 0
    %p100 = por %p98, %p99
    %p101 = scmp.ne.s32.totalorder %s93, %s95
    %p102 = scmp.eq.s32.totalorder %s17, 1
    %p103 = por %p101, %p102
    %p104 = scmp.ne.s32.totalorder %s95, %s96
    %p105 = scmp.eq.s32.totalorder %s17, 0
    %p106 = por %p104, %p105
    %p107 = scmp.ne.s32.totalorder %s95, %s96
    %p108 = scmp.eq.s32.totalorder %s18, 1
    %p109 = por %p107, %p108
    %p111 = scmp.ne.s32.totalorder %s96, %s110
    %p112 = scmp.eq.s32.totalorder %s18, 0
    %p113 = por %p111, %p112
    %s115 = sadd.s32 %s114, 1
    %p118 = scmp.eq.s32.totalorder %s12, 1
    %p119 = scmp.ne.s32.totalorder %s114, %s116
    %p120 = scmp.eq.s32.totalorder %s12, 0
    %p121 = por %p119, %p120
    %p122 = scmp.ne.s32.totalorder %s114, %s116
    %p123 = scmp.eq.s32.totalorder %s17, 1
    %p124 = por %p122, %p123
    %p125 = scmp.ne.s32.totalorder %s116, %s117
    %p126 = scmp.eq.s32.totalorder %s17, 0
    %p127 = por %p125, %p126
    %p128 = scmp.ne.s32.totalorder %s116, %s117
    %p129 = scmp.eq.s32.totalorder %s18, 1
    %p130 = por %p128, %p129
    %p132 = scmp.ne.s32.totalorder %s117, %s131
    %p133 = scmp.eq.s32.totalorder %s18, 0
    %p134 = por %p132, %p133
    %s136 = sadd.s32 %s135, 1
    %p139 = scmp.eq.s32.totalorder %s12, 1
    %p140 = scmp.ne.s32.totalorder %s135, %s137
    %p141 = scmp.eq.s32.totalorder %s12, 0
    %p142 = por %p140, %p141
    %p143 = scmp.ne.s32.totalorder %s135, %s137
    %p144 = scmp.eq.s32.totalorder %s17, 1
    %p145 = por %p143, %p144
    %p146 = scmp.ne.s32.totalorder %s137, %s138
    %p147 = scmp.eq.s32.totalorder %s17, 0
    %p148 = por %p146, %p147
    %p149 = scmp.ne.s32.totalorder %s137, %s138
    %p150 = scmp.eq.s32.totalorder %s18, 1
    %p151 = por %p149, %p150
    %p153 = scmp.ne.s32.totalorder %s138, %s152
    %p154 = scmp.eq.s32.totalorder %s18, 0
    %p155 = por %p153, %p154
    %s156 = ssub.s32 %s12, %s19
    %p157 = scmp.eq.s32.totalorder %s156, 0
    %s159 = sadd.s32 %s158, 1
    %s160 = scalar_select %p157, %s158, %s159
    %p163 = pneg %p157
    %p164 = scmp.eq.s32.totalorder %s12, 1
    %p165 = por %p163, %p164
    %p166 = scmp.ne.s32.totalorder %s158, %s161
    %p167 = scmp.eq.s32.totalorder %s12, 0
    %p168 = por %p166, %p167
    %p169 = scmp.ne.s32.totalorder %s158, %s161
    %p170 = scmp.eq.s32.totalorder %s17, 1
    %p171 = por %p169, %p170
    %p172 = scmp.ne.s32.totalorder %s161, %s162
    %p173 = scmp.eq.s32.totalorder %s17, 0
    %p174 = por %p172, %p173
    %p175 = scmp.ne.s32.totalorder %s161, %s162
    %p176 = scmp.eq.s32.totalorder %s18, 1
    %p177 = por %p175, %p176
    %p179 = scmp.ne.s32.totalorder %s162, %s178
    %p180 = scmp.eq.s32.totalorder %s18, 0
    %p181 = por %p179, %p180
    %p182 = scmp.le.s32.totalorder 1, %s12
    %p183 = scmp.lt.s32.totalorder %s12, 3
    %p184 = pnand %p182, %p183
    %p185 = pneg %p184
    // Predicated region
    $region9: #{residual_block_forward.5} parent=5 // pred_check
      _
    $region10: #{residual_block_forward.5} parent=5 // pred_check_branch
      %187 = sbr.rel (%p184) target = $region12
    $region11: #{residual_block_forward.5} parent=5 // pred_region
      %s188 = ssub.s32 %s12, 1
      // Predicated region
      $region13: #{residual_block_forward.5} parent=11 // pred_check
        %p189 = pneg %p85
      $region14: #{residual_block_forward.5} parent=11 // pred_check_branch
        %191 = sbr.rel (%p189) target = $region16
      $region15: #{residual_block_forward.5} parent=11 // pred_region
        _
      $region16: #{residual_block_forward.5} parent=11 // pred_fallthru
        _
      // Predicated region
      $region17: #{residual_block_forward.5} parent=11 // pred_check
        %p192 = pneg %p106
      $region18: #{residual_block_forward.5} parent=11 // pred_check_branch
        %194 = sbr.rel (%p192) target = $region20
      $region19: #{residual_block_forward.5} parent=11 // pred_region
        _
      $region20: #{residual_block_forward.5} parent=11 // pred_fallthru
        _
      // Predicated region
      $region21: #{residual_block_forward.5} parent=11 // pred_check
        %p195 = pneg %p127
      $region22: #{residual_block_forward.5} parent=11 // pred_check_branch
        %197 = sbr.rel (%p195) target = $region24
      $region23: #{residual_block_forward.5} parent=11 // pred_region
        _
      $region24: #{residual_block_forward.5} parent=11 // pred_fallthru
        _
      // Predicated region
      $region25: #{residual_block_forward.5} parent=11 // pred_check
        %p198 = pneg %p148
      $region26: #{residual_block_forward.5} parent=11 // pred_check_branch
        %200 = sbr.rel (%p198) target = $region28
      $region27: #{residual_block_forward.5} parent=11 // pred_region
        _
      $region28: #{residual_block_forward.5} parent=11 // pred_fallthru
        _
    $region12: #{residual_block_forward.5} parent=5 // pred_fallthru
      _
    %p201 = scmp.lt.s32.totalorder %s12, 2
    // Predicated region
    $region29: #{residual_block_forward.5} parent=5 // pred_check
      %p202 = pneg %p201
    $region30: #{residual_block_forward.5} parent=5 // pred_check_branch
      %204 = sbr.rel (%p202) target = $region32
    $region31: #{residual_block_forward.5} parent=5 // pred_region
      // Predicated region
      $region33: #{residual_block_forward.5} parent=31 // pred_check
        %p205 = pneg %p32
      $region34: #{residual_block_forward.5} parent=31 // pred_check_branch
        %207 = sbr.rel (%p205) target = $region36
      $region35: #{residual_block_forward.5} parent=31 // pred_region
        %p208 = scmp.lt.s32.totalorder %s12, 1
        %s209 = scalar_select %p208, %s12, 1
        %s210 = smul.addr %s209, 41
        %s211 = smul.addr %s210, 8
        %s212 = scalar_lea.vmem %s0, %s211
      $region36: #{residual_block_forward.5} parent=31 // pred_fallthru
        _
      // Predicated region
      $region37: #{residual_block_forward.5} parent=31 // pred_check
        %p213 = pneg %p58
      $region38: #{residual_block_forward.5} parent=31 // pred_check_branch
        %215 = sbr.rel (%p213) target = $region40
      $region39: #{residual_block_forward.5} parent=31 // pred_region
        %p216 = scmp.lt.s32.totalorder %s12, 1
        %s217 = scalar_select %p216, %s12, 1
        %s218 = smul.addr %s217, 36
        %s219 = smul.addr %s218, 4
        %s220 = scalar_lea.vmem %s1, %s219
      $region40: #{residual_block_forward.5} parent=31 // pred_fallthru
        _
    $region32: #{residual_block_forward.5} parent=5 // pred_fallthru
      _
    %p221 = scmp.le.s32.totalorder 1, %s12
    %p222 = scmp.lt.s32.totalorder %s12, 3
    %p223 = pnand %p221, %p222
    %p224 = pneg %p223
    // Predicated region
    $region41: #{residual_block_forward.5} parent=5 // pred_check
      _
    $region42: #{residual_block_forward.5} parent=5 // pred_check_branch
      %226 = sbr.rel (%p223) target = $region44
    $region43: #{residual_block_forward.5} parent=5 // pred_region
      %s227 = ssub.s32 %s12, 1
      %p228 = scmp.lt.s32.totalorder %s17, 1
      %s229 = scalar_select %p228, %s17, 1
      %s230 = smul.addr %s229, 41
      %s231 = smul.addr %s230, 8
      %s232 = scalar_lea.vmem %s0, %s231
      %p233 = pneg %p38
      %p234 = pneg %p35
      %p235 = scmp.lt.s32.totalorder %s17, 1
      %s236 = scalar_select %p235, %s17, 1
      %s237 = smul.addr %s236, 36
      %s238 = smul.addr %s237, 4
      %s239 = scalar_lea.vmem %s1, %s238
      %p240 = pneg %p64
      %p241 = pneg %p61
      %p242 = pneg %p85
      %p243 = pneg %p82
      %p244 = pneg %p106
      %p245 = pneg %p103
      %p246 = pneg %p127
      %p247 = pneg %p124
      %p248 = pneg %p148
      %p249 = pneg %p145
      %p250 = pneg %p174
      %p251 = pneg %p171
      %p252 = scmp.lt.s32.totalorder %s17, 1
      %s253 = scalar_select %p252, %s17, 1
      %s254 = smul.addr %s253, 36
      %s255 = smul.addr %s254, 8
      %s256 = scalar_lea.vmem %s6, %s255
      %p257 = scmp.lt.s32.totalorder %s17, 1
      %s258 = scalar_select %p257, %s17, 1
      %s259 = smul.addr %s258, 41
      %s260 = smul.addr %s259, 8
      %s261 = scalar_lea.vmem %s0, %s260
      %p262 = scmp.lt.s32.totalorder %s17, 1
      %s263 = scalar_select %p262, %s17, 1
      %s264 = smul.addr %s263, 36
      %s265 = smul.addr %s264, 4
      %s266 = scalar_lea.vmem %s1, %s265
      %p267 = scmp.lt.s32.totalorder %s17, 1
      %s268 = scalar_select %p267, %s17, 1
      %s269 = smul.addr %s268, 36
      %s270 = smul.addr %s269, 8
      %s271 = scalar_lea.vmem %s6, %s270
      %v272 = vld [vmem:[%s261 + $0x13] sm:$0xff]
      %v273 = vld [vmem:[%s261 + $0x1b] sm:$0xff]
      %v274 = vld [vmem:[%s261 + $0x23] sm:$0xff]
      %v275 = vld [vmem:[%s261 + $0x2b] sm:$0xff]
      %v276 = vld [vmem:[%s261 + $0x33] sm:$0xff]
      %v277 = vld [vmem:[%s261 + $0x3b] sm:$0xff]
      %v278 = vld [vmem:[%s261 + $0x43] sm:$0xff]
      %v279 = vld [vmem:[%s261 + $0x4b] sm:$0xff]
      %v280 = vld [vmem:[%s261 + $0x53] sm:$0xff]
      %v281 = vld [vmem:[%s261 + $0x5b] sm:$0xff]
      %v282 = vld [vmem:[%s261 + $0x63] sm:$0xff]
      %v283 = vld [vmem:[%s261 + $0x6b] sm:$0xff]
      %v284 = vld [vmem:[%s261 + $0x73] sm:$0xff]
      %v285 = vld [vmem:[%s261 + $0x7b] sm:$0xff]
      %v286 = vld [vmem:[%s261 + $0x83] sm:$0xff]
      %v287 = vld [vmem:[%s261 + $0x8b] sm:$0xff]
      %v288 = vld [vmem:[%s261 + $0x93] sm:$0xff]
      %v289 = vld [vmem:[%s261 + $0x9b] sm:$0xff]
      %v290 = vld [vmem:[%s261 + $0xa3] sm:$0xff]
      %v291 = vld [vmem:[%s261 + $0xab] sm:$0xff]
      %v292 = vld [vmem:[%s261 + $0xb3] sm:$0xff]
      %v293 = vld [vmem:[%s261 + $0xbb] sm:$0xff]
      %v294 = vld [vmem:[%s261 + $0xc3] sm:$0xff]
      %v295 = vld [vmem:[%s261 + $0xcb] sm:$0xff]
      %v296 = vld [vmem:[%s261 + $0xd3] sm:$0xff]
      %v297 = vld [vmem:[%s261 + $0xdb] sm:$0xff]
      %v298 = vld [vmem:[%s261 + $0xe3] sm:$0xff]
      %v299 = vld [vmem:[%s261 + $0xeb] sm:$0xff]
      %v300 = vld [vmem:[%s261 + $0xf3] sm:$0xff]
      %v301 = vld [vmem:[%s261 + $0xfb] sm:$0xff]
      %v302 = vld [vmem:[%s261 + $0x103] sm:$0xff]
      %v303 = vld [vmem:[%s261 + $0x10b] sm:$0xff]
      %v304 = vld [vmem:[%s261 + $0x113] sm:$0xff]
      %v305 = vld [vmem:[%s261 + $0x11b] sm:$0xff]
      %v306 = vld [vmem:[%s261 + $0x123] sm:$0xff]
      %v307 = vld [vmem:[%s261 + $0x12b] sm:$0xff]
      %v308 = vld [vmem:[%s2] sm:$0x1]
      %v310 = vlaneseq
      %v311 = vshrl.u32 %v310, 7
      %v312 = vsub.s32 0, %v311
      %v313 = vrot.slane %v308, %v312
      %v315 = vmul.f32 %v272, %v313
      %v316 = vmul.f32 %v273, %v313
      %v317 = vmul.f32 %v274, %v313
      %v318 = vmul.f32 %v275, %v313
      %v319 = vmul.f32 %v276, %v313
      %v320 = vmul.f32 %v277, %v313
      %v321 = vmul.f32 %v278, %v313
      %v322 = vmul.f32 %v279, %v313
      %v323 = vmul.f32 %v280, %v313
      %v324 = vmul.f32 %v281, %v313
      %v325 = vmul.f32 %v282, %v313
      %v326 = vmul.f32 %v283, %v313
      %v327 = vmul.f32 %v284, %v313
      %v328 = vmul.f32 %v285, %v313
      %v329 = vmul.f32 %v286, %v313
      %v330 = vmul.f32 %v287, %v313
      %v331 = vmul.f32 %v288, %v313
      %v332 = vmul.f32 %v289, %v313
      %v333 = vmul.f32 %v290, %v313
      %v334 = vmul.f32 %v291, %v313
      %v335 = vmul.f32 %v292, %v313
      %v336 = vmul.f32 %v293, %v313
      %v337 = vmul.f32 %v294, %v313
      %v338 = vmul.f32 %v295, %v313
      %v339 = vmul.f32 %v296, %v313
      %v340 = vmul.f32 %v297, %v313
      %v341 = vmul.f32 %v298, %v313
      %v342 = vmul.f32 %v299, %v313
      %v343 = vmul.f32 %v300, %v313
      %v344 = vmul.f32 %v301, %v313
      %v345 = vmul.f32 %v302, %v313
      %v346 = vmul.f32 %v303, %v313
      %v347 = vmul.f32 %v304, %v313
      %v348 = vmul.f32 %v305, %v313
      %v349 = vmul.f32 %v306, %v313
      %v350 = vmul.f32 %v307, %v313
      %v351 = vld [vmem:[%s3] sm:$0x1]
      %v353 = vlaneseq
      %v354 = vshrl.u32 %v353, 7
      %v355 = vsub.s32 0, %v354
      %v356 = vrot.slane %v351, %v355
      %v358 = vadd.f32 %v315, %v356
      %v359 = vadd.f32 %v316, %v356
      %v360 = vadd.f32 %v317, %v356
      %v361 = vadd.f32 %v318, %v356
      %v362 = vadd.f32 %v319, %v356
      %v363 = vadd.f32 %v320, %v356
      %v364 = vadd.f32 %v321, %v356
      %v365 = vadd.f32 %v322, %v356
      %v366 = vadd.f32 %v323, %v356
      %v367 = vadd.f32 %v324, %v356
      %v368 = vadd.f32 %v325, %v356
      %v369 = vadd.f32 %v326, %v356
      %v370 = vadd.f32 %v327, %v356
      %v371 = vadd.f32 %v328, %v356
      %v372 = vadd.f32 %v329, %v356
      %v373 = vadd.f32 %v330, %v356
      %v374 = vadd.f32 %v331, %v356
      %v375 = vadd.f32 %v332, %v356
      %v376 = vadd.f32 %v333, %v356
      %v377 = vadd.f32 %v334, %v356
      %v378 = vadd.f32 %v335, %v356
      %v379 = vadd.f32 %v336, %v356
      %v380 = vadd.f32 %v337, %v356
      %v381 = vadd.f32 %v338, %v356
      %v382 = vadd.f32 %v339, %v356
      %v383 = vadd.f32 %v340, %v356
      %v384 = vadd.f32 %v341, %v356
      %v385 = vadd.f32 %v342, %v356
      %v386 = vadd.f32 %v343, %v356
      %v387 = vadd.f32 %v344, %v356
      %v388 = vadd.f32 %v345, %v356
      %v389 = vadd.f32 %v346, %v356
      %v390 = vadd.f32 %v347, %v356
      %v391 = vadd.f32 %v348, %v356
      %v392 = vadd.f32 %v349, %v356
      %v393 = vadd.f32 %v350, %v356
      %v394 = vmax.f32 %v358, 0.0
      %v395 = vmax.f32 %v359, 0.0
      %v396 = vmax.f32 %v360, 0.0
      %v397 = vmax.f32 %v361, 0.0
      %v398 = vmax.f32 %v362, 0.0
      %v399 = vmax.f32 %v363, 0.0
      %v400 = vmax.f32 %v364, 0.0
      %v401 = vmax.f32 %v365, 0.0
      %v402 = vmax.f32 %v366, 0.0
      %v403 = vmax.f32 %v367, 0.0
      %v404 = vmax.f32 %v368, 0.0
      %v405 = vmax.f32 %v369, 0.0
      %v406 = vmax.f32 %v370, 0.0
      %v407 = vmax.f32 %v371, 0.0
      %v408 = vmax.f32 %v372, 0.0
      %v409 = vmax.f32 %v373, 0.0
      %v410 = vmax.f32 %v374, 0.0
      %v411 = vmax.f32 %v375, 0.0
      %v412 = vmax.f32 %v376, 0.0
      %v413 = vmax.f32 %v377, 0.0
      %v414 = vmax.f32 %v378, 0.0
      %v415 = vmax.f32 %v379, 0.0
      %v416 = vmax.f32 %v380, 0.0
      %v417 = vmax.f32 %v381, 0.0
      %v418 = vmax.f32 %v382, 0.0
      %v419 = vmax.f32 %v383, 0.0
      %v420 = vmax.f32 %v384, 0.0
      %v421 = vmax.f32 %v385, 0.0
      %v422 = vmax.f32 %v386, 0.0
      %v423 = vmax.f32 %v387, 0.0
      %v424 = vmax.f32 %v388, 0.0
      %v425 = vmax.f32 %v389, 0.0
      %v426 = vmax.f32 %v390, 0.0
      %v427 = vmax.f32 %v391, 0.0
      %v428 = vmax.f32 %v392, 0.0
      %v429 = vmax.f32 %v393, 0.0
      %v430 = vld [vmem:[%s266] sm:$0xf]
      %v431 = vld [vmem:[%s266 + $0x4] sm:$0xf]
      %v432 = vld [vmem:[%s266 + $0x8] sm:$0xf]
      %v433 = vld [vmem:[%s266 + $0xc] sm:$0xf]
      %v434 = vld [vmem:[%s266 + $0x10] sm:$0xf]
      %v435 = vld [vmem:[%s266 + $0x14] sm:$0xf]
      %v436 = vld [vmem:[%s266 + $0x18] sm:$0xf]
      %v437 = vld [vmem:[%s266 + $0x1c] sm:$0xf]
      %v438 = vld [vmem:[%s266 + $0x20] sm:$0xf]
      %v439 = vld [vmem:[%s266 + $0x24] sm:$0xf]
      %v440 = vld [vmem:[%s266 + $0x28] sm:$0xf]
      %v441 = vld [vmem:[%s266 + $0x2c] sm:$0xf]
      %v442 = vld [vmem:[%s266 + $0x30] sm:$0xf]
      %v443 = vld [vmem:[%s266 + $0x34] sm:$0xf]
      %v444 = vld [vmem:[%s266 + $0x38] sm:$0xf]
      %v445 = vld [vmem:[%s266 + $0x3c] sm:$0xf]
      %v446 = vld [vmem:[%s266 + $0x40] sm:$0xf]
      %v447 = vld [vmem:[%s266 + $0x44] sm:$0xf]
      %v448 = vld [vmem:[%s266 + $0x48] sm:$0xf]
      %v449 = vld [vmem:[%s266 + $0x4c] sm:$0xf]
      %v450 = vld [vmem:[%s266 + $0x50] sm:$0xf]
      %v451 = vld [vmem:[%s266 + $0x54] sm:$0xf]
      %v452 = vld [vmem:[%s266 + $0x58] sm:$0xf]
      %v453 = vld [vmem:[%s266 + $0x5c] sm:$0xf]
      %v454 = vld [vmem:[%s266 + $0x60] sm:$0xf]
      %v455 = vld [vmem:[%s266 + $0x64] sm:$0xf]
      %v456 = vld [vmem:[%s266 + $0x68] sm:$0xf]
      %v457 = vld [vmem:[%s266 + $0x6c] sm:$0xf]
      %v458 = vld [vmem:[%s266 + $0x70] sm:$0xf]
      %v459 = vld [vmem:[%s266 + $0x74] sm:$0xf]
      %v460 = vld [vmem:[%s266 + $0x78] sm:$0xf]
      %v461 = vld [vmem:[%s266 + $0x7c] sm:$0xf]
      %v462 = vld [vmem:[%s266 + $0x80] sm:$0xf]
      %v463 = vld [vmem:[%s266 + $0x84] sm:$0xf]
      %v464 = vld [vmem:[%s266 + $0x88] sm:$0xf]
      %v465 = vld [vmem:[%s266 + $0x8c] sm:$0xf]
      %v466 = vunpack.c.l.bf16 %v430
      %v467 = vunpack.c.l.bf16 %v431
      %v468 = vunpack.c.l.bf16 %v432
      %v469 = vunpack.c.l.bf16 %v433
      %v470 = vunpack.c.l.bf16 %v434
      %v471 = vunpack.c.l.bf16 %v435
      %v472 = vunpack.c.l.bf16 %v436
      %v473 = vunpack.c.l.bf16 %v437
      %v474 = vunpack.c.l.bf16 %v438
      %v475 = vunpack.c.l.bf16 %v439
      %v476 = vunpack.c.l.bf16 %v440
      %v477 = vunpack.c.l.bf16 %v441
      %v478 = vunpack.c.l.bf16 %v442
      %v479 = vunpack.c.l.bf16 %v443
      %v480 = vunpack.c.l.bf16 %v444
      %v481 = vunpack.c.l.bf16 %v445
      %v482 = vunpack.c.l.bf16 %v446
      %v483 = vunpack.c.l.bf16 %v447
      %v484 = vunpack.c.l.bf16 %v448
      %v485 = vunpack.c.l.bf16 %v449
      %v486 = vunpack.c.l.bf16 %v450
      %v487 = vunpack.c.l.bf16 %v451
      %v488 = vunpack.c.l.bf16 %v452
      %v489 = vunpack.c.l.bf16 %v453
      %v490 = vunpack.c.l.bf16 %v454
      %v491 = vunpack.c.l.bf16 %v455
      %v492 = vunpack.c.l.bf16 %v456
      %v493 = vunpack.c.l.bf16 %v457
      %v494 = vunpack.c.l.bf16 %v458
      %v495 = vunpack.c.l.bf16 %v459
      %v496 = vunpack.c.l.bf16 %v460
      %v497 = vunpack.c.l.bf16 %v461
      %v498 = vunpack.c.l.bf16 %v462
      %v499 = vunpack.c.l.bf16 %v463
      %v500 = vunpack.c.l.bf16 %v464
      %v501 = vunpack.c.l.bf16 %v465
      %v502 = vld [vmem:[%s4] sm:$0x1]
      %v504 = vlaneseq
      %v505 = vshrl.u32 %v504, 7
      %v506 = vsub.s32 0, %v505
      %v507 = vrot.slane %v502, %v506
      %v509 = vmul.f32 %v466, %v507
      %v510 = vmul.f32 %v467, %v507
      %v511 = vmul.f32 %v468, %v507
      %v512 = vmul.f32 %v469, %v507
      %v513 = vmul.f32 %v470, %v507
      %v514 = vmul.f32 %v471, %v507
      %v515 = vmul.f32 %v472, %v507
      %v516 = vmul.f32 %v473, %v507
      %v517 = vmul.f32 %v474, %v507
      %v518 = vmul.f32 %v475, %v507
      %v519 = vmul.f32 %v476, %v507
      %v520 = vmul.f32 %v477, %v507
      %v521 = vmul.f32 %v478, %v507
      %v522 = vmul.f32 %v479, %v507
      %v523 = vmul.f32 %v480, %v507
      %v524 = vmul.f32 %v481, %v507
      %v525 = vmul.f32 %v482, %v507
      %v526 = vmul.f32 %v483, %v507
      %v527 = vmul.f32 %v484, %v507
      %v528 = vmul.f32 %v485, %v507
      %v529 = vmul.f32 %v486, %v507
      %v530 = vmul.f32 %v487, %v507
      %v531 = vmul.f32 %v488, %v507
      %v532 = vmul.f32 %v489, %v507
      %v533 = vmul.f32 %v490, %v507
      %v534 = vmul.f32 %v491, %v507
      %v535 = vmul.f32 %v492, %v507
      %v536 = vmul.f32 %v493, %v507
      %v537 = vmul.f32 %v494, %v507
      %v538 = vmul.f32 %v495, %v507
      %v539 = vmul.f32 %v496, %v507
      %v540 = vmul.f32 %v497, %v507
      %v541 = vmul.f32 %v498, %v507
      %v542 = vmul.f32 %v499, %v507
      %v543 = vmul.f32 %v500, %v507
      %v544 = vmul.f32 %v501, %v507
      %v545 = vld [vmem:[%s5] sm:$0x1]
      %v547 = vlaneseq
      %v548 = vshrl.u32 %v547, 7
      %v549 = vsub.s32 0, %v548
      %v550 = vrot.slane %v545, %v549
      %v552 = vadd.f32 %v509, %v550
      %v553 = vadd.f32 %v510, %v550
      %v554 = vadd.f32 %v511, %v550
      %v555 = vadd.f32 %v512, %v550
      %v556 = vadd.f32 %v513, %v550
      %v557 = vadd.f32 %v514, %v550
      %v558 = vadd.f32 %v515, %v550
      %v559 = vadd.f32 %v516, %v550
      %v560 = vadd.f32 %v517, %v550
      %v561 = vadd.f32 %v518, %v550
      %v562 = vadd.f32 %v519, %v550
      %v563 = vadd.f32 %v520, %v550
      %v564 = vadd.f32 %v521, %v550
      %v565 = vadd.f32 %v522, %v550
      %v566 = vadd.f32 %v523, %v550
      %v567 = vadd.f32 %v524, %v550
      %v568 = vadd.f32 %v525, %v550
      %v569 = vadd.f32 %v526, %v550
      %v570 = vadd.f32 %v527, %v550
      %v571 = vadd.f32 %v528, %v550
      %v572 = vadd.f32 %v529, %v550
      %v573 = vadd.f32 %v530, %v550
      %v574 = vadd.f32 %v531, %v550
      %v575 = vadd.f32 %v532, %v550
      %v576 = vadd.f32 %v533, %v550
      %v577 = vadd.f32 %v534, %v550
      %v578 = vadd.f32 %v535, %v550
      %v579 = vadd.f32 %v536, %v550
      %v580 = vadd.f32 %v537, %v550
      %v581 = vadd.f32 %v538, %v550
      %v582 = vadd.f32 %v539, %v550
      %v583 = vadd.f32 %v540, %v550
      %v584 = vadd.f32 %v541, %v550
      %v585 = vadd.f32 %v542, %v550
      %v586 = vadd.f32 %v543, %v550
      %v587 = vadd.f32 %v544, %v550
      %v588 = vmax.f32 %v552, 0.0
      %v589 = vmax.f32 %v553, 0.0
      %v590 = vmax.f32 %v554, 0.0
      %v591 = vmax.f32 %v555, 0.0
      %v592 = vmax.f32 %v556, 0.0
      %v593 = vmax.f32 %v557, 0.0
      %v594 = vmax.f32 %v558, 0.0
      %v595 = vmax.f32 %v559, 0.0
      %v596 = vmax.f32 %v560, 0.0
      %v597 = vmax.f32 %v561, 0.0
      %v598 = vmax.f32 %v562, 0.0
      %v599 = vmax.f32 %v563, 0.0
      %v600 = vmax.f32 %v564, 0.0
      %v601 = vmax.f32 %v565, 0.0
      %v602 = vmax.f32 %v566, 0.0
      %v603 = vmax.f32 %v567, 0.0
      %v604 = vmax.f32 %v568, 0.0
      %v605 = vmax.f32 %v569, 0.0
      %v606 = vmax.f32 %v570, 0.0
      %v607 = vmax.f32 %v571, 0.0
      %v608 = vmax.f32 %v572, 0.0
      %v609 = vmax.f32 %v573, 0.0
      %v610 = vmax.f32 %v574, 0.0
      %v611 = vmax.f32 %v575, 0.0
      %v612 = vmax.f32 %v576, 0.0
      %v613 = vmax.f32 %v577, 0.0
      %v614 = vmax.f32 %v578, 0.0
      %v615 = vmax.f32 %v579, 0.0
      %v616 = vmax.f32 %v580, 0.0
      %v617 = vmax.f32 %v581, 0.0
      %v618 = vmax.f32 %v582, 0.0
      %v619 = vmax.f32 %v583, 0.0
      %v620 = vmax.f32 %v584, 0.0
      %v621 = vmax.f32 %v585, 0.0
      %v622 = vmax.f32 %v586, 0.0
      %v623 = vmax.f32 %v587, 0.0
      %v624 = vadd.f32 %v394, %v588
      %v625 = vadd.f32 %v395, %v589
      %v626 = vadd.f32 %v396, %v590
      %v627 = vadd.f32 %v397, %v591
      %v628 = vadd.f32 %v398, %v592
      %v629 = vadd.f32 %v399, %v593
      %v630 = vadd.f32 %v400, %v594
      %v631 = vadd.f32 %v401, %v595
      %v632 = vadd.f32 %v402, %v596
      %v633 = vadd.f32 %v403, %v597
      %v634 = vadd.f32 %v404, %v598
      %v635 = vadd.f32 %v405, %v599
      %v636 = vadd.f32 %v406, %v600
      %v637 = vadd.f32 %v407, %v601
      %v638 = vadd.f32 %v408, %v602
      %v639 = vadd.f32 %v409, %v603
      %v640 = vadd.f32 %v410, %v604
      %v641 = vadd.f32 %v411, %v605
      %v642 = vadd.f32 %v412, %v606
      %v643 = vadd.f32 %v413, %v607
      %v644 = vadd.f32 %v414, %v608
      %v645 = vadd.f32 %v415, %v609
      %v646 = vadd.f32 %v416, %v610
      %v647 = vadd.f32 %v417, %v611
      %v648 = vadd.f32 %v418, %v612
      %v649 = vadd.f32 %v419, %v613
      %v650 = vadd.f32 %v420, %v614
      %v651 = vadd.f32 %v421, %v615
      %v652 = vadd.f32 %v422, %v616
      %v653 = vadd.f32 %v423, %v617
      %v654 = vadd.f32 %v424, %v618
      %v655 = vadd.f32 %v425, %v619
      %v656 = vadd.f32 %v426, %v620
      %v657 = vadd.f32 %v427, %v621
      %v658 = vadd.f32 %v428, %v622
      %v659 = vadd.f32 %v429, %v623
      %660 = vst [vmem:[%s271] sm:$0xff] %v624
      %661 = vst [vmem:[%s271 + $0x8] sm:$0xff] %v625
      %662 = vst [vmem:[%s271 + $0x10] sm:$0xff] %v626
      %663 = vst [vmem:[%s271 + $0x18] sm:$0xff] %v627
      %664 = vst [vmem:[%s271 + $0x20] sm:$0xff] %v628
      %665 = vst [vmem:[%s271 + $0x28] sm:$0xff] %v629
      %666 = vst [vmem:[%s271 + $0x30] sm:$0xff] %v630
      %667 = vst [vmem:[%s271 + $0x38] sm:$0xff] %v631
      %668 = vst [vmem:[%s271 + $0x40] sm:$0xff] %v632
      %669 = vst [vmem:[%s271 + $0x48] sm:$0xff] %v633
      %670 = vst [vmem:[%s271 + $0x50] sm:$0xff] %v634
      %671 = vst [vmem:[%s271 + $0x58] sm:$0xff] %v635
      %672 = vst [vmem:[%s271 + $0x60] sm:$0xff] %v636
      %673 = vst [vmem:[%s271 + $0x68] sm:$0xff] %v637
      %674 = vst [vmem:[%s271 + $0x70] sm:$0xff] %v638
      %675 = vst [vmem:[%s271 + $0x78] sm:$0xff] %v639
      %676 = vst [vmem:[%s271 + $0x80] sm:$0xff] %v640
      %677 = vst [vmem:[%s271 + $0x88] sm:$0xff] %v641
      %678 = vst [vmem:[%s271 + $0x90] sm:$0xff] %v642
      %679 = vst [vmem:[%s271 + $0x98] sm:$0xff] %v643
      %680 = vst [vmem:[%s271 + $0xa0] sm:$0xff] %v644
      %681 = vst [vmem:[%s271 + $0xa8] sm:$0xff] %v645
      %682 = vst [vmem:[%s271 + $0xb0] sm:$0xff] %v646
      %683 = vst [vmem:[%s271 + $0xb8] sm:$0xff] %v647
      %684 = vst [vmem:[%s271 + $0xc0] sm:$0xff] %v648
      %685 = vst [vmem:[%s271 + $0xc8] sm:$0xff] %v649
      %686 = vst [vmem:[%s271 + $0xd0] sm:$0xff] %v650
      %687 = vst [vmem:[%s271 + $0xd8] sm:$0xff] %v651
      %688 = vst [vmem:[%s271 + $0xe0] sm:$0xff] %v652
      %689 = vst [vmem:[%s271 + $0xe8] sm:$0xff] %v653
      %690 = vst [vmem:[%s271 + $0xf0] sm:$0xff] %v654
      %691 = vst [vmem:[%s271 + $0xf8] sm:$0xff] %v655
      %692 = vst [vmem:[%s271 + $0x100] sm:$0xff] %v656
      %693 = vst [vmem:[%s271 + $0x108] sm:$0xff] %v657
      %694 = vst [vmem:[%s271 + $0x110] sm:$0xff] %v658
      %695 = vst [vmem:[%s271 + $0x118] sm:$0xff] %v659
      %p696 = scmp.lt.s32.totalorder %s17, 1
      %s697 = scalar_select %p696, %s17, 1
      %s698 = smul.addr %s697, 36
      %s699 = smul.addr %s698, 8
      %s700 = scalar_lea.vmem %s6, %s699
      // Predicated region
      $region45: #{residual_block_forward.5} parent=43 // pred_check
        %p701 = pneg %p171
      $region46: #{residual_block_forward.5} parent=43 // pred_check_branch
        %703 = sbr.rel (%p701) target = $region48
      $region47: #{residual_block_forward.5} parent=43 // pred_region
        _
      $region48: #{residual_block_forward.5} parent=43 // pred_fallthru
        _
    $region44: #{residual_block_forward.5} parent=5 // pred_fallthru
      _
    %p704 = scmp.le.s32.totalorder 2, %s12
    // Predicated region
    $region49: #{residual_block_forward.5} parent=5 // pred_check
      %p705 = pneg %p704
    $region50: #{residual_block_forward.5} parent=5 // pred_check_branch
      %707 = sbr.rel (%p705) target = $region52
    $region51: #{residual_block_forward.5} parent=5 // pred_region
      %s708 = ssub.s32 %s12, 2
      // Predicated region
      $region53: #{residual_block_forward.5} parent=51 // pred_check
        %p709 = pneg %p177
      $region54: #{residual_block_forward.5} parent=51 // pred_check_branch
        %711 = sbr.rel (%p709) target = $region56
      $region55: #{residual_block_forward.5} parent=51 // pred_region
        %p712 = scmp.lt.s32.totalorder %s18, 1
        %s713 = scalar_select %p712, %s18, 1
        %s714 = smul.addr %s713, 36
        %s715 = smul.addr %s714, 8
        %s716 = scalar_lea.vmem %s6, %s715
      $region56: #{residual_block_forward.5} parent=51 // pred_fallthru
        _
    $region52: #{residual_block_forward.5} parent=5 // pred_fallthru
      _
  $region6: #{residual_block_forward.5} parent=0 // loop_footer
    %s16 = sadd.s32 1, %s12
  $region7: #{residual_block_forward.5} parent=0 // loop_footer_branch
    %11 = sbr.rel target = $region3
  $region8: #{residual_block_forward.5} parent=0 // loop_exit
    _

// kernel: residual_block_forward.3
$region0: #{residual_block_forward.3}
  #allocation0 [shape = 'u32[]', space=smem, size = 0x4, offset = 0x4, fixed_abs, tag = 'smem constant byte address 0x4 - core index']
  #allocation1 [shape = 'u32[144,128]{1,0:T(1,128)}', space=vmem, size = 0x12000, scoped, tag = 'internal scratch']
  %s0 = inlined_call_operand.vmem [shape: f32[2,328,4], index: 0, kind: input, shape index: {}]
  %s1 = inlined_call_operand.vmem [shape: bf16[8,4,128], index: 1, kind: input, shape index: {}]
  %s2 = inlined_call_operand.vmem [shape: bf16[4,256], index: 2, kind: input, shape index: {}]
  %s3 = inlined_call_operand.vmem [shape: f32[288,1], index: 3, kind: input, shape index: {}]
  %s4 = inlined_call_operand.vmem [shape: f32[2,328,128], index: 4, kind: output, shape index: {0}]
  %s5 = inlined_call_operand.vmem [shape: bf16[2,288,128], index: 5, kind: output, shape index: {1}]
  %s6 = inlined_call_operand.vmem [shape: f32[2,4,128], index: 6, kind: output, shape index: {2}]
  %7 = xla_tuple %s4, %s5, %s6
  %s8 = sld [smem:[#allocation0]]
  $region65: #{residual_block_forward.3} parent=0
    _
  %s10 = ssub.s32 1, %s8
  %s11 = scalar_select 0, %s10, %s8
  loop: start=0, step=1, limit=4
  $region2: #{residual_block_forward.3} parent=0 // loop_pre_header
    _
  $region3: #{residual_block_forward.3} parent=0 // loop_header
    %s13 = sphi 0, %s17
    %p14 = scmp.ge.s32.totalorder %s13, 4
    %s23 = sphi 0, %s25
    %s26 = sphi 0, %s23
    %s27 = sphi 0, %s26
    %s43 = sphi 0, %s27
    %s47 = sphi 0, %s47
    %s49 = sphi 0, %s47
    %s50 = sphi 0, %s49
    %s64 = sphi 0, %s50
    %s68 = sphi 0, %s68
    %s70 = sphi 0, %s68
    %s71 = sphi 0, %s70
    %s85 = sphi 0, %s71
    %s89 = sphi 0, %s89
    %s91 = sphi 0, %s89
    %s92 = sphi 0, %s91
    %s106 = sphi 0, %s92
    %s112 = sphi 0, %s114
    %s115 = sphi 0, %s112
    %s116 = sphi 0, %s115
    %s132 = sphi 0, %s116
    %s138 = sphi 0, %s140
    %s141 = sphi 0, %s138
    %s142 = sphi 0, %s141
    %s158 = sphi 0, %s142
    %s164 = sphi 0, %s166
    %s167 = sphi 0, %s164
    %s168 = sphi 0, %s167
    %s184 = sphi 0, %s168
  $region4: #{residual_block_forward.3} parent=0 // loop_header_branch
    %16 = sbr.rel (%p14) target = $region8
  $region5: #{residual_block_forward.3} parent=0 // loop_body
    %s18 = ssub.s32 %s13, 1
    %s19 = ssub.s32 %s13, 2
    %s20 = sadd.s32 %s13, 1
    %s21 = ssub.s32 %s13, %s20
    %p22 = scmp.eq.s32.totalorder %s21, 0
    %s24 = sadd.s32 %s23, 1
    %s25 = scalar_select %p22, %s23, %s24
    %p28 = pneg %p22
    %p29 = scmp.eq.s32.totalorder %s13, 1
    %p30 = por %p28, %p29
    %p31 = scmp.ne.s32.totalorder %s23, %s26
    %p32 = scmp.eq.s32.totalorder %s13, 0
    %p33 = por %p31, %p32
    %p34 = scmp.ne.s32.totalorder %s23, %s26
    %p35 = scmp.eq.s32.totalorder %s18, 1
    %p36 = por %p34, %p35
    %p37 = scmp.ne.s32.totalorder %s26, %s27
    %p38 = scmp.eq.s32.totalorder %s18, 0
    %p39 = por %p37, %p38
    %p40 = scmp.ne.s32.totalorder %s26, %s27
    %p41 = scmp.eq.s32.totalorder %s19, 1
    %p42 = por %p40, %p41
    %p44 = scmp.ne.s32.totalorder %s27, %s43
    %p45 = scmp.eq.s32.totalorder %s19, 0
    %p46 = por %p44, %p45
    %s48 = sadd.s32 %s47, 1
    %p51 = scmp.eq.s32.totalorder %s13, 1
    %p52 = scmp.ne.s32.totalorder %s47, %s49
    %p53 = scmp.eq.s32.totalorder %s13, 0
    %p54 = por %p52, %p53
    %p55 = scmp.ne.s32.totalorder %s47, %s49
    %p56 = scmp.eq.s32.totalorder %s18, 1
    %p57 = por %p55, %p56
    %p58 = scmp.ne.s32.totalorder %s49, %s50
    %p59 = scmp.eq.s32.totalorder %s18, 0
    %p60 = por %p58, %p59
    %p61 = scmp.ne.s32.totalorder %s49, %s50
    %p62 = scmp.eq.s32.totalorder %s19, 1
    %p63 = por %p61, %p62
    %p65 = scmp.ne.s32.totalorder %s50, %s64
    %p66 = scmp.eq.s32.totalorder %s19, 0
    %p67 = por %p65, %p66
    %s69 = sadd.s32 %s68, 1
    %p72 = scmp.eq.s32.totalorder %s13, 1
    %p73 = scmp.ne.s32.totalorder %s68, %s70
    %p74 = scmp.eq.s32.totalorder %s13, 0
    %p75 = por %p73, %p74
    %p76 = scmp.ne.s32.totalorder %s68, %s70
    %p77 = scmp.eq.s32.totalorder %s18, 1
    %p78 = por %p76, %p77
    %p79 = scmp.ne.s32.totalorder %s70, %s71
    %p80 = scmp.eq.s32.totalorder %s18, 0
    %p81 = por %p79, %p80
    %p82 = scmp.ne.s32.totalorder %s70, %s71
    %p83 = scmp.eq.s32.totalorder %s19, 1
    %p84 = por %p82, %p83
    %p86 = scmp.ne.s32.totalorder %s71, %s85
    %p87 = scmp.eq.s32.totalorder %s19, 0
    %p88 = por %p86, %p87
    %s90 = sadd.s32 %s89, 1
    %p93 = scmp.eq.s32.totalorder %s13, 1
    %p94 = scmp.ne.s32.totalorder %s89, %s91
    %p95 = scmp.eq.s32.totalorder %s13, 0
    %p96 = por %p94, %p95
    %p97 = scmp.ne.s32.totalorder %s89, %s91
    %p98 = scmp.eq.s32.totalorder %s18, 1
    %p99 = por %p97, %p98
    %p100 = scmp.ne.s32.totalorder %s91, %s92
    %p101 = scmp.eq.s32.totalorder %s18, 0
    %p102 = por %p100, %p101
    %p103 = scmp.ne.s32.totalorder %s91, %s92
    %p104 = scmp.eq.s32.totalorder %s19, 1
    %p105 = por %p103, %p104
    %p107 = scmp.ne.s32.totalorder %s92, %s106
    %p108 = scmp.eq.s32.totalorder %s19, 0
    %p109 = por %p107, %p108
    %s110 = ssub.s32 %s13, %s20
    %p111 = scmp.eq.s32.totalorder %s110, 0
    %s113 = sadd.s32 %s112, 1
    %s114 = scalar_select %p111, %s112, %s113
    %p117 = pneg %p111
    %p118 = scmp.eq.s32.totalorder %s13, 1
    %p119 = por %p117, %p118
    %p120 = scmp.ne.s32.totalorder %s112, %s115
    %p121 = scmp.eq.s32.totalorder %s13, 0
    %p122 = por %p120, %p121
    %p123 = scmp.ne.s32.totalorder %s112, %s115
    %p124 = scmp.eq.s32.totalorder %s18, 1
    %p125 = por %p123, %p124
    %p126 = scmp.ne.s32.totalorder %s115, %s116
    %p127 = scmp.eq.s32.totalorder %s18, 0
    %p128 = por %p126, %p127
    %p129 = scmp.ne.s32.totalorder %s115, %s116
    %p130 = scmp.eq.s32.totalorder %s19, 1
    %p131 = por %p129, %p130
    %p133 = scmp.ne.s32.totalorder %s116, %s132
    %p134 = scmp.eq.s32.totalorder %s19, 0
    %p135 = por %p133, %p134
    %s136 = ssub.s32 %s13, %s20
    %p137 = scmp.eq.s32.totalorder %s136, 0
    %s139 = sadd.s32 %s138, 1
    %s140 = scalar_select %p137, %s138, %s139
    %p143 = pneg %p137
    %p144 = scmp.eq.s32.totalorder %s13, 1
    %p145 = por %p143, %p144
    %p146 = scmp.ne.s32.totalorder %s138, %s141
    %p147 = scmp.eq.s32.totalorder %s13, 0
    %p148 = por %p146, %p147
    %p149 = scmp.ne.s32.totalorder %s138, %s141
    %p150 = scmp.eq.s32.totalorder %s18, 1
    %p151 = por %p149, %p150
    %p152 = scmp.ne.s32.totalorder %s141, %s142
    %p153 = scmp.eq.s32.totalorder %s18, 0
    %p154 = por %p152, %p153
    %p155 = scmp.ne.s32.totalorder %s141, %s142
    %p156 = scmp.eq.s32.totalorder %s19, 1
    %p157 = por %p155, %p156
    %p159 = scmp.ne.s32.totalorder %s142, %s158
    %p160 = scmp.eq.s32.totalorder %s19, 0
    %p161 = por %p159, %p160
    %s162 = ssub.s32 %s13, %s20
    %p163 = scmp.eq.s32.totalorder %s162, 0
    %s165 = sadd.s32 %s164, 1
    %s166 = scalar_select %p163, %s164, %s165
    %p169 = pneg %p163
    %p170 = scmp.eq.s32.totalorder %s13, 1
    %p171 = por %p169, %p170
    %p172 = scmp.ne.s32.totalorder %s164, %s167
    %p173 = scmp.eq.s32.totalorder %s13, 0
    %p174 = por %p172, %p173
    %p175 = scmp.ne.s32.totalorder %s164, %s167
    %p176 = scmp.eq.s32.totalorder %s18, 1
    %p177 = por %p175, %p176
    %p178 = scmp.ne.s32.totalorder %s167, %s168
    %p179 = scmp.eq.s32.totalorder %s18, 0
    %p180 = por %p178, %p179
    %p181 = scmp.ne.s32.totalorder %s167, %s168
    %p182 = scmp.eq.s32.totalorder %s19, 1
    %p183 = por %p181, %p182
    %p185 = scmp.ne.s32.totalorder %s168, %s184
    %p186 = scmp.eq.s32.totalorder %s19, 0
    %p187 = por %p185, %p186
    %p188 = scmp.le.s32.totalorder 1, %s13
    %p189 = scmp.lt.s32.totalorder %s13, 3
    %p190 = pnand %p188, %p189
    %p191 = pneg %p190
    // Predicated region
    $region9: #{residual_block_forward.3} parent=5 // pred_check
      _
    $region10: #{residual_block_forward.3} parent=5 // pred_check_branch
      %193 = sbr.rel (%p190) target = $region12
    $region11: #{residual_block_forward.3} parent=5 // pred_region
      %s194 = ssub.s32 %s13, 1
      // Predicated region
      $region13: #{residual_block_forward.3} parent=11 // pred_check
        %p195 = pneg %p60
      $region14: #{residual_block_forward.3} parent=11 // pred_check_branch
        %197 = sbr.rel (%p195) target = $region16
      $region15: #{residual_block_forward.3} parent=11 // pred_region
        _
      $region16: #{residual_block_forward.3} parent=11 // pred_fallthru
        _
      // Predicated region
      $region17: #{residual_block_forward.3} parent=11 // pred_check
        %p198 = pneg %p81
      $region18: #{residual_block_forward.3} parent=11 // pred_check_branch
        %200 = sbr.rel (%p198) target = $region20
      $region19: #{residual_block_forward.3} parent=11 // pred_region
        _
      $region20: #{residual_block_forward.3} parent=11 // pred_fallthru
        _
      // Predicated region
      $region21: #{residual_block_forward.3} parent=11 // pred_check
        %p201 = pneg %p102
      $region22: #{residual_block_forward.3} parent=11 // pred_check_branch
        %203 = sbr.rel (%p201) target = $region24
      $region23: #{residual_block_forward.3} parent=11 // pred_region
        _
      $region24: #{residual_block_forward.3} parent=11 // pred_fallthru
        _
    $region12: #{residual_block_forward.3} parent=5 // pred_fallthru
      _
    %p204 = scmp.lt.s32.totalorder %s13, 2
    // Predicated region
    $region25: #{residual_block_forward.3} parent=5 // pred_check
      %p205 = pneg %p204
    $region26: #{residual_block_forward.3} parent=5 // pred_check_branch
      %207 = sbr.rel (%p205) target = $region28
    $region27: #{residual_block_forward.3} parent=5 // pred_region
      // Predicated region
      $region29: #{residual_block_forward.3} parent=27 // pred_check
        %p208 = pneg %p33
      $region30: #{residual_block_forward.3} parent=27 // pred_check_branch
        %210 = sbr.rel (%p208) target = $region32
      $region31: #{residual_block_forward.3} parent=27 // pred_region
        %p211 = scmp.lt.s32.totalorder %s13, 1
        %s212 = scalar_select %p211, %s13, 1
        %s213 = smul.addr %s212, 41
        %s214 = smul.addr %s213, 8
        %s215 = scalar_lea.vmem %s0, %s214
      $region32: #{residual_block_forward.3} parent=27 // pred_fallthru
        _
    $region28: #{residual_block_forward.3} parent=5 // pred_fallthru
      _
    %p216 = scmp.le.s32.totalorder 1, %s13
    %p217 = scmp.lt.s32.totalorder %s13, 3
    %p218 = pnand %p216, %p217
    %p219 = pneg %p218
    // Predicated region
    $region33: #{residual_block_forward.3} parent=5 // pred_check
      _
    $region34: #{residual_block_forward.3} parent=5 // pred_check_branch
      %221 = sbr.rel (%p218) target = $region36
    $region35: #{residual_block_forward.3} parent=5 // pred_region
      %s222 = ssub.s32 %s13, 1
      %p223 = scmp.lt.s32.totalorder %s18, 1
      %s224 = scalar_select %p223, %s18, 1
      %s225 = smul.addr %s224, 41
      %s226 = smul.addr %s225, 8
      %s227 = scalar_lea.vmem %s0, %s226
      %p228 = pneg %p39
      %p229 = pneg %p36
      %p230 = pneg %p60
      %p231 = pneg %p57
      %p232 = pneg %p81
      %p233 = pneg %p78
      %p234 = pneg %p102
      %p235 = pneg %p99
      %p236 = pneg %p128
      %p237 = pneg %p125
      %p238 = scmp.lt.s32.totalorder %s18, 1
      %s239 = scalar_select %p238, %s18, 1
      %s240 = smul.addr %s239, 41
      %s241 = smul.addr %s240, 8
      %s242 = scalar_lea.vmem %s4, %s241
      %p243 = pneg %p154
      %p244 = pneg %p151
      %p245 = scmp.lt.s32.totalorder %s18, 1
      %s246 = scalar_select %p245, %s18, 1
      %s247 = smul.addr %s246, 36
      %s248 = smul.addr %s247, 4
      %s249 = scalar_lea.vmem %s5, %s248
      %p250 = pneg %p180
      %p251 = pneg %p177
      %p252 = scmp.lt.s32.totalorder %s18, 1
      %s253 = scalar_select %p252, %s18, 1
      %s254 = smul.addr %s253, 4
      %s255 = scalar_lea.vmem %s6, %s254
      %p256 = scmp.lt.s32.totalorder %s18, 1
      %s257 = scalar_select %p256, %s18, 1
      %s258 = smul.addr %s257, 41
      %s259 = smul.addr %s258, 8
      %s260 = scalar_lea.vmem %s0, %s259
      %p261 = scmp.lt.s32.totalorder %s18, 1
      %s262 = scalar_select %p261, %s18, 1
      %s263 = smul.addr %s262, 41
      %s264 = smul.addr %s263, 8
      %s265 = scalar_lea.vmem %s4, %s264
      %p266 = scmp.lt.s32.totalorder %s18, 1
      %s267 = scalar_select %p266, %s18, 1
      %s268 = smul.addr %s267, 36
      %s269 = smul.addr %s268, 4
      %s270 = scalar_lea.vmem %s5, %s269
      %p271 = scmp.lt.s32.totalorder %s18, 1
      %s272 = scalar_select %p271, %s18, 1
      %s273 = smul.addr %s272, 4
      %s274 = scalar_lea.vmem %s6, %s273
      %v276 = vld [vmem:[%s260] sm:$0xff]
      %v277 = vld [vmem:[%s260 + $0x8] sm:$0xff]
      %v278 = vld [vmem:[%s260 + $0x10] sm:$0xff]
      %v279 = vld [vmem:[%s260 + $0x18] sm:$0xff]
      %v280 = vld [vmem:[%s260 + $0x20] sm:$0xff]
      %v281 = vld [vmem:[%s260 + $0x28] sm:$0xff]
      %v282 = vld [vmem:[%s260 + $0x30] sm:$0xff]
      %v283 = vld [vmem:[%s260 + $0x38] sm:$0xff]
      %v284 = vld [vmem:[%s260 + $0x40] sm:$0xff]
      %v285 = vld [vmem:[%s260 + $0x48] sm:$0xff]
      %v286 = vld [vmem:[%s260 + $0x50] sm:$0xff]
      %v287 = vld [vmem:[%s260 + $0x58] sm:$0xff]
      %v288 = vld [vmem:[%s260 + $0x60] sm:$0xff]
      %v289 = vld [vmem:[%s260 + $0x68] sm:$0xff]
      %v290 = vld [vmem:[%s260 + $0x70] sm:$0xff]
      %v291 = vld [vmem:[%s260 + $0x78] sm:$0xff]
      %v292 = vld [vmem:[%s260 + $0x80] sm:$0xff]
      %v293 = vld [vmem:[%s260 + $0x88] sm:$0xff]
      %v294 = vld [vmem:[%s260 + $0x90] sm:$0xff]
      %v295 = vld [vmem:[%s260 + $0x98] sm:$0xff]
      %v296 = vld [vmem:[%s260 + $0xa0] sm:$0xff]
      %v297 = vld [vmem:[%s260 + $0xa8] sm:$0xff]
      %v298 = vld [vmem:[%s260 + $0xb0] sm:$0xff]
      %v299 = vld [vmem:[%s260 + $0xb8] sm:$0xff]
      %v300 = vld [vmem:[%s260 + $0xc0] sm:$0xff]
      %v301 = vld [vmem:[%s260 + $0xc8] sm:$0xff]
      %v302 = vld [vmem:[%s260 + $0xd0] sm:$0xff]
      %v303 = vld [vmem:[%s260 + $0xd8] sm:$0xff]
      %v304 = vld [vmem:[%s260 + $0xe0] sm:$0xff]
      %v305 = vld [vmem:[%s260 + $0xe8] sm:$0xff]
      %v306 = vld [vmem:[%s260 + $0xf0] sm:$0xff]
      %v307 = vld [vmem:[%s260 + $0xf8] sm:$0xff]
      %v308 = vld [vmem:[%s260 + $0x100] sm:$0xff]
      %v309 = vld [vmem:[%s260 + $0x108] sm:$0xff]
      %v310 = vld [vmem:[%s260 + $0x110] sm:$0xff]
      %v311 = vld [vmem:[%s260 + $0x118] sm:$0xff]
      %v312 = vpack.c.bf16 %v277, %v276
      %v313 = vpack.c.bf16 %v279, %v278
      %v314 = vpack.c.bf16 %v281, %v280
      %v315 = vpack.c.bf16 %v283, %v282
      %v316 = vpack.c.bf16 %v285, %v284
      %v317 = vpack.c.bf16 %v287, %v286
      %v318 = vpack.c.bf16 %v289, %v288
      %v319 = vpack.c.bf16 %v291, %v290
      %v320 = vpack.c.bf16 %v293, %v292
      %v321 = vpack.c.bf16 %v295, %v294
      %v322 = vpack.c.bf16 %v297, %v296
      %v323 = vpack.c.bf16 %v299, %v298
      %v324 = vpack.c.bf16 %v301, %v300
      %v325 = vpack.c.bf16 %v303, %v302
      %v326 = vpack.c.bf16 %v305, %v304
      %v327 = vpack.c.bf16 %v307, %v306
      %v328 = vpack.c.bf16 %v309, %v308
      %v329 = vpack.c.bf16 %v311, %v310
      %v330 = vld [vmem:[%s1] sm:$0x3]
      %v331 = vld [vmem:[%s260 + $0x1] sm:$0xff]
      %v332 = vld [vmem:[%s260 + $0x9] sm:$0xff]
      %v333 = vld [vmem:[%s260 + $0x11] sm:$0xff]
      %v334 = vld [vmem:[%s260 + $0x19] sm:$0xff]
      %v335 = vld [vmem:[%s260 + $0x21] sm:$0xff]
      %v336 = vld [vmem:[%s260 + $0x29] sm:$0xff]
      %v337 = vld [vmem:[%s260 + $0x31] sm:$0xff]
      %v338 = vld [vmem:[%s260 + $0x39] sm:$0xff]
      %v339 = vld [vmem:[%s260 + $0x41] sm:$0xff]
      %v340 = vld [vmem:[%s260 + $0x49] sm:$0xff]
      %v341 = vld [vmem:[%s260 + $0x51] sm:$0xff]
      %v342 = vld [vmem:[%s260 + $0x59] sm:$0xff]
      %v343 = vld [vmem:[%s260 + $0x61] sm:$0xff]
      %v344 = vld [vmem:[%s260 + $0x69] sm:$0xff]
      %v345 = vld [vmem:[%s260 + $0x71] sm:$0xff]
      %v346 = vld [vmem:[%s260 + $0x79] sm:$0xff]
      %v347 = vld [vmem:[%s260 + $0x81] sm:$0xff]
      %v348 = vld [vmem:[%s260 + $0x89] sm:$0xff]
      %v349 = vld [vmem:[%s260 + $0x91] sm:$0xff]
      %v350 = vld [vmem:[%s260 + $0x99] sm:$0xff]
      %v351 = vld [vmem:[%s260 + $0xa1] sm:$0xff]
      %v352 = vld [vmem:[%s260 + $0xa9] sm:$0xff]
      %v353 = vld [vmem:[%s260 + $0xb1] sm:$0xff]
      %v354 = vld [vmem:[%s260 + $0xb9] sm:$0xff]
      %v355 = vld [vmem:[%s260 + $0xc1] sm:$0xff]
      %v356 = vld [vmem:[%s260 + $0xc9] sm:$0xff]
      %v357 = vld [vmem:[%s260 + $0xd1] sm:$0xff]
      %v358 = vld [vmem:[%s260 + $0xd9] sm:$0xff]
      %v359 = vld [vmem:[%s260 + $0xe1] sm:$0xff]
      %v360 = vld [vmem:[%s260 + $0xe9] sm:$0xff]
      %v361 = vld [vmem:[%s260 + $0xf1] sm:$0xff]
      %v362 = vld [vmem:[%s260 + $0xf9] sm:$0xff]
      %v363 = vld [vmem:[%s260 + $0x101] sm:$0xff]
      %v364 = vld [vmem:[%s260 + $0x109] sm:$0xff]
      %v365 = vld [vmem:[%s260 + $0x111] sm:$0xff]
      %v366 = vld [vmem:[%s260 + $0x119] sm:$0xff]
      %v367 = vpack.c.bf16 %v332, %v331
      %v368 = vpack.c.bf16 %v334, %v333
      %v369 = vpack.c.bf16 %v336, %v335
      %v370 = vpack.c.bf16 %v338, %v337
      %v371 = vpack.c.bf16 %v340, %v339
      %v372 = vpack.c.bf16 %v342, %v341
      %v373 = vpack.c.bf16 %v344, %v343
      %v374 = vpack.c.bf16 %v346, %v345
      %v375 = vpack.c.bf16 %v348, %v347
      %v376 = vpack.c.bf16 %v350, %v349
      %v377 = vpack.c.bf16 %v352, %v351
      %v378 = vpack.c.bf16 %v354, %v353
      %v379 = vpack.c.bf16 %v356, %v355
      %v380 = vpack.c.bf16 %v358, %v357
      %v381 = vpack.c.bf16 %v360, %v359
      %v382 = vpack.c.bf16 %v362, %v361
      %v383 = vpack.c.bf16 %v364, %v363
      %v384 = vpack.c.bf16 %v366, %v365
      %s385 = scalar_lea.vmem %s1, 2
      %v386 = vld [vmem:[%s385] sm:$0x3]
      %vm387 = vcmask 31744
      %v389 = vsel %vm387, %v367, 0
      %v392 = vsel %vm387, %v368, 0
      %v395 = vsel %vm387, %v369, 0
      %v398 = vsel %vm387, %v370, 0
      %v401 = vsel %vm387, %v371, 0
      %v404 = vsel %vm387, %v372, 0
      %v407 = vsel %vm387, %v373, 0
      %v410 = vsel %vm387, %v374, 0
      %v413 = vsel %vm387, %v375, 0
      %v416 = vsel %vm387, %v376, 0
      %v419 = vsel %vm387, %v377, 0
      %v422 = vsel %vm387, %v378, 0
      %v425 = vsel %vm387, %v379, 0
      %v428 = vsel %vm387, %v380, 0
      %v431 = vsel %vm387, %v381, 0
      %v434 = vsel %vm387, %v382, 0
      %v437 = vsel %vm387, %v383, 0
      %v440 = vsel %vm387, %v384, 0
      %vm442 = vcmask 1041408
      %v444 = vsel %vm442, %v386, 0
      %446 = vmatprep.subr.bf16.mxu0 0
      %447 = vmatpush1.bf16.msra.mxu0 0
      %448 = vmatprep.subr.bf16.mxu0 0
      %449 = vmatpush1.bf16.msra.mxu0 0
      %450 = vmatprep.subr.bf16.mxu0 0
      %451 = vmatpush1.bf16.msra.mxu0 0
      %452 = vmatprep.subr.bf16.mxu0 0
      %453 = vmatpush1.bf16.msra.mxu0 0
      %454 = vmatprep.subr.bf16.mxu0 0
      %455 = vmatpush1.bf16.msra.mxu0 0
      %456 = vmatprep.subr.bf16.mxu0 0
      %457 = vmatpush1.bf16.msra.mxu0 0
      %458 = vmatprep.subr.bf16.mxu0 0
      %459 = vmatpush1.bf16.msra.mxu0 0
      %460 = vmatprep.subr.bf16.mxu0 0
      %461 = vmatpush1.bf16.msra.mxu0 %v444
      %462 = vmatprep.subr.bf16.mxu0 0
      %463 = vmatpush2.bf16.msra.mxu0 0
      %464 = vmatprep.subr.bf16.mxu0 0
      %465 = vmatpush2.bf16.msra.mxu0 0
      %466 = vmatprep.subr.bf16.mxu0 0
      %467 = vmatpush2.bf16.msra.mxu0 0
      %468 = vmatprep.subr.bf16.mxu0 0
      %469 = vmatpush2.bf16.msra.mxu0 0
      %470 = vmatprep.subr.bf16.mxu0 0
      %471 = vmatpush2.bf16.msra.mxu0 0
      %472 = vmatprep.subr.bf16.mxu0 0
      %473 = vmatpush2.bf16.msra.mxu0 0
      %474 = vmatprep.subr.bf16.mxu0 0
      %475 = vmatpush2.bf16.msra.mxu0 0
      %476 = vmatprep.subr.bf16.mxu0 0
      %477 = vmatpush2.bf16.msra.mxu0 0
      %478 = vmatprep.mubr.bf16.mxu0 0
      %479 = vmatmul.mubr.bf16.gmra.mxu0 %v389
      %v480 = vpop.f32.mrf.mxu0
      %v481 = vadd.f32 0.0, %v480
      %v482 = vpop.f32.mrf.mxu0
      %v483 = vpop.f32.mrf.mxu0
      %v484 = vadd.f32 0.0, %v483
      %v485 = vpop.f32.mrf.mxu0
      %486 = vmatprep.mubr.bf16.mxu0 0
      %487 = vmatmul.mubr.bf16.gmra.mxu0 %v392
      %v488 = vpop.f32.mrf.mxu0
      %v489 = vadd.f32 0.0, %v488
      %v490 = vpop.f32.mrf.mxu0
      %v491 = vpop.f32.mrf.mxu0
      %v492 = vadd.f32 0.0, %v491
      %v493 = vpop.f32.mrf.mxu0
      %494 = vmatprep.mubr.bf16.mxu0 0
      %495 = vmatmul.mubr.bf16.gmra.mxu0 %v395
      %v496 = vpop.f32.mrf.mxu0
      %v497 = vadd.f32 0.0, %v496
      %v498 = vpop.f32.mrf.mxu0
      %v499 = vpop.f32.mrf.mxu0
      %v500 = vadd.f32 0.0, %v499
      %v501 = vpop.f32.mrf.mxu0
      %502 = vmatprep.mubr.bf16.mxu0 0
      %503 = vmatmul.mubr.bf16.gmra.mxu0 %v398
      %v504 = vpop.f32.mrf.mxu0
      %v505 = vadd.f32 0.0, %v504
      %v506 = vpop.f32.mrf.mxu0
      %v507 = vpop.f32.mrf.mxu0
      %v508 = vadd.f32 0.0, %v507
      %v509 = vpop.f32.mrf.mxu0
      %510 = vmatprep.mubr.bf16.mxu0 0
      %511 = vmatmul.mubr.bf16.gmra.mxu0 %v401
      %v512 = vpop.f32.mrf.mxu0
      %v513 = vadd.f32 0.0, %v512
      %v514 = vpop.f32.mrf.mxu0
      %v515 = vpop.f32.mrf.mxu0
      %v516 = vadd.f32 0.0, %v515
      %v517 = vpop.f32.mrf.mxu0
      %518 = vmatprep.mubr.bf16.mxu0 0
      %519 = vmatmul.mubr.bf16.gmra.mxu0 %v404
      %v520 = vpop.f32.mrf.mxu0
      %v521 = vadd.f32 0.0, %v520
      %v522 = vpop.f32.mrf.mxu0
      %v523 = vpop.f32.mrf.mxu0
      %v524 = vadd.f32 0.0, %v523
      %v525 = vpop.f32.mrf.mxu0
      %526 = vmatprep.mubr.bf16.mxu0 0
      %527 = vmatmul.mubr.bf16.gmra.mxu0 %v407
      %v528 = vpop.f32.mrf.mxu0
      %v529 = vadd.f32 0.0, %v528
      %v530 = vpop.f32.mrf.mxu0
      %v531 = vpop.f32.mrf.mxu0
      %v532 = vadd.f32 0.0, %v531
      %v533 = vpop.f32.mrf.mxu0
      %534 = vmatprep.mubr.bf16.mxu0 0
      %535 = vmatmul.mubr.bf16.gmra.mxu0 %v410
      %v536 = vpop.f32.mrf.mxu0
      %v537 = vadd.f32 0.0, %v536
      %v538 = vpop.f32.mrf.mxu0
      %v539 = vpop.f32.mrf.mxu0
      %v540 = vadd.f32 0.0, %v539
      %v541 = vpop.f32.mrf.mxu0
      %542 = vmatprep.mubr.bf16.mxu0 0
      %543 = vmatmul.mubr.bf16.gmra.mxu0 %v413
      %v544 = vpop.f32.mrf.mxu0
      %v545 = vadd.f32 0.0, %v544
      %v546 = vpop.f32.mrf.mxu0
      %v547 = vpop.f32.mrf.mxu0
      %v548 = vadd.f32 0.0, %v547
      %v549 = vpop.f32.mrf.mxu0
      %550 = vmatprep.mubr.bf16.mxu0 0
      %551 = vmatmul.mubr.bf16.gmra.mxu0 %v416
      %v552 = vpop.f32.mrf.mxu0
      %v553 = vadd.f32 0.0, %v552
      %v554 = vpop.f32.mrf.mxu0
      %v555 = vpop.f32.mrf.mxu0
      %v556 = vadd.f32 0.0, %v555
      %v557 = vpop.f32.mrf.mxu0
      %558 = vmatprep.mubr.bf16.mxu0 0
      %559 = vmatmul.mubr.bf16.gmra.mxu0 %v419
      %v560 = vpop.f32.mrf.mxu0
      %v561 = vadd.f32 0.0, %v560
      %v562 = vpop.f32.mrf.mxu0
      %v563 = vpop.f32.mrf.mxu0
      %v564 = vadd.f32 0.0, %v563
      %v565 = vpop.f32.mrf.mxu0
      %566 = vmatprep.mubr.bf16.mxu0 0
      %567 = vmatmul.mubr.bf16.gmra.mxu0 %v422
      %v568 = vpop.f32.mrf.mxu0
      %v569 = vadd.f32 0.0, %v568
      %v570 = vpop.f32.mrf.mxu0
      %v571 = vpop.f32.mrf.mxu0
      %v572 = vadd.f32 0.0, %v571
      %v573 = vpop.f32.mrf.mxu0
      %574 = vmatprep.mubr.bf16.mxu0 0
      %575 = vmatmul.mubr.bf16.gmra.mxu0 %v425
      %v576 = vpop.f32.mrf.mxu0
      %v577 = vadd.f32 0.0, %v576
      %v578 = vpop.f32.mrf.mxu0
      %v579 = vpop.f32.mrf.mxu0
      %v580 = vadd.f32 0.0, %v579
      %v581 = vpop.f32.mrf.mxu0
      %582 = vmatprep.mubr.bf16.mxu0 0
      %583 = vmatmul.mubr.bf16.gmra.mxu0 %v428
      %v584 = vpop.f32.mrf.mxu0
      %v585 = vadd.f32 0.0, %v584
      %v586 = vpop.f32.mrf.mxu0
      %v587 = vpop.f32.mrf.mxu0
      %v588 = vadd.f32 0.0, %v587
      %v589 = vpop.f32.mrf.mxu0
      %590 = vmatprep.mubr.bf16.mxu0 0
      %591 = vmatmul.mubr.bf16.gmra.mxu0 %v431
      %v592 = vpop.f32.mrf.mxu0
      %v593 = vadd.f32 0.0, %v592
      %v594 = vpop.f32.mrf.mxu0
      %v595 = vpop.f32.mrf.mxu0
      %v596 = vadd.f32 0.0, %v595
      %v597 = vpop.f32.mrf.mxu0
      %598 = vmatprep.mubr.bf16.mxu0 0
      %599 = vmatmul.mubr.bf16.gmra.mxu0 %v434
      %v600 = vpop.f32.mrf.mxu0
      %v601 = vadd.f32 0.0, %v600
      %v602 = vpop.f32.mrf.mxu0
      %v603 = vpop.f32.mrf.mxu0
      %v604 = vadd.f32 0.0, %v603
      %v605 = vpop.f32.mrf.mxu0
      %606 = vmatprep.mubr.bf16.mxu0 0
      %607 = vmatmul.mubr.bf16.gmra.mxu0 %v437
      %v608 = vpop.f32.mrf.mxu0
      %v609 = vadd.f32 0.0, %v608
      %v610 = vpop.f32.mrf.mxu0
      %v611 = vpop.f32.mrf.mxu0
      %v612 = vadd.f32 0.0, %v611
      %v613 = vpop.f32.mrf.mxu0
      %614 = vmatprep.mubr.bf16.mxu0 0
      %615 = vmatmul.mubr.bf16.gmra.mxu0 %v440
      %v616 = vpop.f32.mrf.mxu0
      %v617 = vadd.f32 0.0, %v616
      %v618 = vpop.f32.mrf.mxu0
      %v619 = vpop.f32.mrf.mxu0
      %v620 = vadd.f32 0.0, %v619
      %v621 = vpop.f32.mrf.mxu0
      %622 = vdwg.mxu0
      %v624 = vsel %vm387, %v312, 0
      %v627 = vsel %vm387, %v313, 0
      %v630 = vsel %vm387, %v314, 0
      %v633 = vsel %vm387, %v315, 0
      %v636 = vsel %vm387, %v316, 0
      %v639 = vsel %vm387, %v317, 0
      %v642 = vsel %vm387, %v318, 0
      %v645 = vsel %vm387, %v319, 0
      %v648 = vsel %vm387, %v320, 0
      %v651 = vsel %vm387, %v321, 0
      %v654 = vsel %vm387, %v322, 0
      %v657 = vsel %vm387, %v323, 0
      %v660 = vsel %vm387, %v324, 0
      %v663 = vsel %vm387, %v325, 0
      %v666 = vsel %vm387, %v326, 0
      %v669 = vsel %vm387, %v327, 0
      %v672 = vsel %vm387, %v328, 0
      %v675 = vsel %vm387, %v329, 0
      %v678 = vsel %vm442, %v330, 0
      %680 = vmatprep.subr.bf16.mxu0 0
      %681 = vmatpush1.bf16.msra.mxu0 0
      %682 = vmatprep.subr.bf16.mxu0 0
      %683 = vmatpush1.bf16.msra.mxu0 0
      %684 = vmatprep.subr.bf16.mxu0 0
      %685 = vmatpush1.bf16.msra.mxu0 0
      %686 = vmatprep.subr.bf16.mxu0 0
      %687 = vmatpush1.bf16.msra.mxu0 0
      %688 = vmatprep.subr.bf16.mxu0 0
      %689 = vmatpush1.bf16.msra.mxu0 0
      %690 = vmatprep.subr.bf16.mxu0 0
      %691 = vmatpush1.bf16.msra.mxu0 0
      %692 = vmatprep.subr.bf16.mxu0 0
      %693 = vmatpush1.bf16.msra.mxu0 0
      %694 = vmatprep.subr.bf16.mxu0 0
      %695 = vmatpush1.bf16.msra.mxu0 %v678
      %696 = vmatprep.subr.bf16.mxu0 0
      %697 = vmatpush2.bf16.msra.mxu0 0
      %698 = vmatprep.subr.bf16.mxu0 0
      %699 = vmatpush2.bf16.msra.mxu0 0
      %700 = vmatprep.subr.bf16.mxu0 0
      %701 = vmatpush2.bf16.msra.mxu0 0
      %702 = vmatprep.subr.bf16.mxu0 0
      %703 = vmatpush2.bf16.msra.mxu0 0
      %704 = vmatprep.subr.bf16.mxu0 0
      %705 = vmatpush2.bf16.msra.mxu0 0
      %706 = vmatprep.subr.bf16.mxu0 0
      %707 = vmatpush2.bf16.msra.mxu0 0
      %708 = vmatprep.subr.bf16.mxu0 0
      %709 = vmatpush2.bf16.msra.mxu0 0
      %710 = vmatprep.subr.bf16.mxu0 0
      %711 = vmatpush2.bf16.msra.mxu0 0
      %712 = vmatprep.mubr.bf16.mxu0 0
      %713 = vmatmul.mubr.bf16.gmra.mxu0 %v624
      %v714 = vpop.f32.mrf.mxu0
      %v715 = vadd.f32 %v481, %v714
      %v716 = vpop.f32.mrf.mxu0
      %v717 = vpop.f32.mrf.mxu0
      %v718 = vadd.f32 %v484, %v717
      %v719 = vpop.f32.mrf.mxu0
      %720 = vmatprep.mubr.bf16.mxu0 0
      %721 = vmatmul.mubr.bf16.gmra.mxu0 %v627
      %v722 = vpop.f32.mrf.mxu0
      %v723 = vadd.f32 %v489, %v722
      %v724 = vpop.f32.mrf.mxu0
      %v725 = vpop.f32.mrf.mxu0
      %v726 = vadd.f32 %v492, %v725
      %v727 = vpop.f32.mrf.mxu0
      %728 = vmatprep.mubr.bf16.mxu0 0
      %729 = vmatmul.mubr.bf16.gmra.mxu0 %v630
      %v730 = vpop.f32.mrf.mxu0
      %v731 = vadd.f32 %v497, %v730
      %v732 = vpop.f32.mrf.mxu0
      %v733 = vpop.f32.mrf.mxu0
      %v734 = vadd.f32 %v500, %v733
      %v735 = vpop.f32.mrf.mxu0
      %736 = vmatprep.mubr.bf16.mxu0 0
      %737 = vmatmul.mubr.bf16.gmra.mxu0 %v633
      %v738 = vpop.f32.mrf.mxu0
      %v739 = vadd.f32 %v505, %v738
      %v740 = vpop.f32.mrf.mxu0
      %v741 = vpop.f32.mrf.mxu0
      %v742 = vadd.f32 %v508, %v741
      %v743 = vpop.f32.mrf.mxu0
      %744 = vmatprep.mubr.bf16.mxu0 0
      %745 = vmatmul.mubr.bf16.gmra.mxu0 %v636
      %v746 = vpop.f32.mrf.mxu0
      %v747 = vadd.f32 %v513, %v746
      %v748 = vpop.f32.mrf.mxu0
      %v749 = vpop.f32.mrf.mxu0
      %v750 = vadd.f32 %v516, %v749
      %v751 = vpop.f32.mrf.mxu0
      %752 = vmatprep.mubr.bf16.mxu0 0
      %753 = vmatmul.mubr.bf16.gmra.mxu0 %v639
      %v754 = vpop.f32.mrf.mxu0
      %v755 = vadd.f32 %v521, %v754
      %v756 = vpop.f32.mrf.mxu0
      %v757 = vpop.f32.mrf.mxu0
      %v758 = vadd.f32 %v524, %v757
      %v759 = vpop.f32.mrf.mxu0
      %760 = vmatprep.mubr.bf16.mxu0 0
      %761 = vmatmul.mubr.bf16.gmra.mxu0 %v642
      %v762 = vpop.f32.mrf.mxu0
      %v763 = vadd.f32 %v529, %v762
      %v764 = vpop.f32.mrf.mxu0
      %v765 = vpop.f32.mrf.mxu0
      %v766 = vadd.f32 %v532, %v765
      %v767 = vpop.f32.mrf.mxu0
      %768 = vmatprep.mubr.bf16.mxu0 0
      %769 = vmatmul.mubr.bf16.gmra.mxu0 %v645
      %v770 = vpop.f32.mrf.mxu0
      %v771 = vadd.f32 %v537, %v770
      %v772 = vpop.f32.mrf.mxu0
      %v773 = vpop.f32.mrf.mxu0
      %v774 = vadd.f32 %v540, %v773
      %v775 = vpop.f32.mrf.mxu0
      %776 = vmatprep.mubr.bf16.mxu0 0
      %777 = vmatmul.mubr.bf16.gmra.mxu0 %v648
      %v778 = vpop.f32.mrf.mxu0
      %v779 = vadd.f32 %v545, %v778
      %v780 = vpop.f32.mrf.mxu0
      %v781 = vpop.f32.mrf.mxu0
      %v782 = vadd.f32 %v548, %v781
      %v783 = vpop.f32.mrf.mxu0
      %784 = vmatprep.mubr.bf16.mxu0 0
      %785 = vmatmul.mubr.bf16.gmra.mxu0 %v651
      %v786 = vpop.f32.mrf.mxu0
      %v787 = vadd.f32 %v553, %v786
      %v788 = vpop.f32.mrf.mxu0
      %v789 = vpop.f32.mrf.mxu0
      %v790 = vadd.f32 %v556, %v789
      %v791 = vpop.f32.mrf.mxu0
      %792 = vmatprep.mubr.bf16.mxu0 0
      %793 = vmatmul.mubr.bf16.gmra.mxu0 %v654
      %v794 = vpop.f32.mrf.mxu0
      %v795 = vadd.f32 %v561, %v794
      %v796 = vpop.f32.mrf.mxu0
      %v797 = vpop.f32.mrf.mxu0
      %v798 = vadd.f32 %v564, %v797
      %v799 = vpop.f32.mrf.mxu0
      %800 = vmatprep.mubr.bf16.mxu0 0
      %801 = vmatmul.mubr.bf16.gmra.mxu0 %v657
      %v802 = vpop.f32.mrf.mxu0
      %v803 = vadd.f32 %v569, %v802
      %v804 = vpop.f32.mrf.mxu0
      %v805 = vpop.f32.mrf.mxu0
      %v806 = vadd.f32 %v572, %v805
      %v807 = vpop.f32.mrf.mxu0
      %808 = vmatprep.mubr.bf16.mxu0 0
      %809 = vmatmul.mubr.bf16.gmra.mxu0 %v660
      %v810 = vpop.f32.mrf.mxu0
      %v811 = vadd.f32 %v577, %v810
      %v812 = vpop.f32.mrf.mxu0
      %v813 = vpop.f32.mrf.mxu0
      %v814 = vadd.f32 %v580, %v813
      %v815 = vpop.f32.mrf.mxu0
      %816 = vmatprep.mubr.bf16.mxu0 0
      %817 = vmatmul.mubr.bf16.gmra.mxu0 %v663
      %v818 = vpop.f32.mrf.mxu0
      %v819 = vadd.f32 %v585, %v818
      %v820 = vpop.f32.mrf.mxu0
      %v821 = vpop.f32.mrf.mxu0
      %v822 = vadd.f32 %v588, %v821
      %v823 = vpop.f32.mrf.mxu0
      %824 = vmatprep.mubr.bf16.mxu0 0
      %825 = vmatmul.mubr.bf16.gmra.mxu0 %v666
      %v826 = vpop.f32.mrf.mxu0
      %v827 = vadd.f32 %v593, %v826
      %v828 = vpop.f32.mrf.mxu0
      %v829 = vpop.f32.mrf.mxu0
      %v830 = vadd.f32 %v596, %v829
      %v831 = vpop.f32.mrf.mxu0
      %832 = vmatprep.mubr.bf16.mxu0 0
      %833 = vmatmul.mubr.bf16.gmra.mxu0 %v669
      %v834 = vpop.f32.mrf.mxu0
      %v835 = vadd.f32 %v601, %v834
      %v836 = vpop.f32.mrf.mxu0
      %v837 = vpop.f32.mrf.mxu0
      %v838 = vadd.f32 %v604, %v837
      %v839 = vpop.f32.mrf.mxu0
      %840 = vmatprep.mubr.bf16.mxu0 0
      %841 = vmatmul.mubr.bf16.gmra.mxu0 %v672
      %v842 = vpop.f32.mrf.mxu0
      %v843 = vadd.f32 %v609, %v842
      %v844 = vpop.f32.mrf.mxu0
      %v845 = vpop.f32.mrf.mxu0
      %v846 = vadd.f32 %v612, %v845
      %v847 = vpop.f32.mrf.mxu0
      %848 = vmatprep.mubr.bf16.mxu0 0
      %849 = vmatmul.mubr.bf16.gmra.mxu0 %v675
      %v850 = vpop.f32.mrf.mxu0
      %v851 = vadd.f32 %v617, %v850
      %v852 = vpop.f32.mrf.mxu0
      %v853 = vpop.f32.mrf.mxu0
      %v854 = vadd.f32 %v620, %v853
      %v855 = vpop.f32.mrf.mxu0
      %856 = vdwg.mxu0
      %v857 = vld [vmem:[%s260 + $0x2] sm:$0xff]
      %v858 = vld [vmem:[%s260 + $0xa] sm:$0xff]
      %v859 = vld [vmem:[%s260 + $0x12] sm:$0xff]
      %v860 = vld [vmem:[%s260 + $0x1a] sm:$0xff]
      %v861 = vld [vmem:[%s260 + $0x22] sm:$0xff]
      %v862 = vld [vmem:[%s260 + $0x2a] sm:$0xff]
      %v863 = vld [vmem:[%s260 + $0x32] sm:$0xff]
      %v864 = vld [vmem:[%s260 + $0x3a] sm:$0xff]
      %v865 = vld [vmem:[%s260 + $0x42] sm:$0xff]
      %v866 = vld [vmem:[%s260 + $0x4a] sm:$0xff]
      %v867 = vld [vmem:[%s260 + $0x52] sm:$0xff]
      %v868 = vld [vmem:[%s260 + $0x5a] sm:$0xff]
      %v869 = vld [vmem:[%s260 + $0x62] sm:$0xff]
      %v870 = vld [vmem:[%s260 + $0x6a] sm:$0xff]
      %v871 = vld [vmem:[%s260 + $0x72] sm:$0xff]
      %v872 = vld [vmem:[%s260 + $0x7a] sm:$0xff]
      %v873 = vld [vmem:[%s260 + $0x82] sm:$0xff]
      %v874 = vld [vmem:[%s260 + $0x8a] sm:$0xff]
      %v875 = vld [vmem:[%s260 + $0x92] sm:$0xff]
      %v876 = vld [vmem:[%s260 + $0x9a] sm:$0xff]
      %v877 = vld [vmem:[%s260 + $0xa2] sm:$0xff]
      %v878 = vld [vmem:[%s260 + $0xaa] sm:$0xff]
      %v879 = vld [vmem:[%s260 + $0xb2] sm:$0xff]
      %v880 = vld [vmem:[%s260 + $0xba] sm:$0xff]
      %v881 = vld [vmem:[%s260 + $0xc2] sm:$0xff]
      %v882 = vld [vmem:[%s260 + $0xca] sm:$0xff]
      %v883 = vld [vmem:[%s260 + $0xd2] sm:$0xff]
      %v884 = vld [vmem:[%s260 + $0xda] sm:$0xff]
      %v885 = vld [vmem:[%s260 + $0xe2] sm:$0xff]
      %v886 = vld [vmem:[%s260 + $0xea] sm:$0xff]
      %v887 = vld [vmem:[%s260 + $0xf2] sm:$0xff]
      %v888 = vld [vmem:[%s260 + $0xfa] sm:$0xff]
      %v889 = vld [vmem:[%s260 + $0x102] sm:$0xff]
      %v890 = vld [vmem:[%s260 + $0x10a] sm:$0xff]
      %v891 = vld [vmem:[%s260 + $0x112] sm:$0xff]
      %v892 = vld [vmem:[%s260 + $0x11a] sm:$0xff]
      %v893 = vpack.c.bf16 %v858, %v857
      %v894 = vpack.c.bf16 %v860, %v859
      %v895 = vpack.c.bf16 %v862, %v861
      %v896 = vpack.c.bf16 %v864, %v863
      %v897 = vpack.c.bf16 %v866, %v865
      %v898 = vpack.c.bf16 %v868, %v867
      %v899 = vpack.c.bf16 %v870, %v869
      %v900 = vpack.c.bf16 %v872, %v871
      %v901 = vpack.c.bf16 %v874, %v873
      %v902 = vpack.c.bf16 %v876, %v875
      %v903 = vpack.c.bf16 %v878, %v877
      %v904 = vpack.c.bf16 %v880, %v879
      %v905 = vpack.c.bf16 %v882, %v881
      %v906 = vpack.c.bf16 %v884, %v883
      %v907 = vpack.c.bf16 %v886, %v885
      %v908 = vpack.c.bf16 %v888, %v887
      %v909 = vpack.c.bf16 %v890, %v889
      %v910 = vpack.c.bf16 %v892, %v891
      %s911 = scalar_lea.vmem %s1, 4
      %v912 = vld [vmem:[%s911] sm:$0x3]
      %v914 = vsel %vm387, %v893, 0
      %v917 = vsel %vm387, %v894, 0
      %v920 = vsel %vm387, %v895, 0
      %v923 = vsel %vm387, %v896, 0
      %v926 = vsel %vm387, %v897, 0
      %v929 = vsel %vm387, %v898, 0
      %v932 = vsel %vm387, %v899, 0
      %v935 = vsel %vm387, %v900, 0
      %v938 = vsel %vm387, %v901, 0
      %v941 = vsel %vm387, %v902, 0
      %v944 = vsel %vm387, %v903, 0
      %v947 = vsel %vm387, %v904, 0
      %v950 = vsel %vm387, %v905, 0
      %v953 = vsel %vm387, %v906, 0
      %v956 = vsel %vm387, %v907, 0
      %v959 = vsel %vm387, %v908, 0
      %v962 = vsel %vm387, %v909, 0
      %v965 = vsel %vm387, %v910, 0
      %v968 = vsel %vm442, %v912, 0
      %970 = vmatprep.subr.bf16.mxu0 0
      %971 = vmatpush1.bf16.msra.mxu0 0
      %972 = vmatprep.subr.bf16.mxu0 0
      %973 = vmatpush1.bf16.msra.mxu0 0
      %974 = vmatprep.subr.bf16.mxu0 0
      %975 = vmatpush1.bf16.msra.mxu0 0
      %976 = vmatprep.subr.bf16.mxu0 0
      %977 = vmatpush1.bf16.msra.mxu0 0
      %978 = vmatprep.subr.bf16.mxu0 0
      %979 = vmatpush1.bf16.msra.mxu0 0
      %980 = vmatprep.subr.bf16.mxu0 0
      %981 = vmatpush1.bf16.msra.mxu0 0
      %982 = vmatprep.subr.bf16.mxu0 0
      %983 = vmatpush1.bf16.msra.mxu0 0
      %984 = vmatprep.subr.bf16.mxu0 0
      %985 = vmatpush1.bf16.msra.mxu0 %v968
      %986 = vmatprep.subr.bf16.mxu0 0
      %987 = vmatpush2.bf16.msra.mxu0 0
      %988 = vmatprep.subr.bf16.mxu0 0
      %989 = vmatpush2.bf16.msra.mxu0 0
      %990 = vmatprep.subr.bf16.mxu0 0
      %991 = vmatpush2.bf16.msra.mxu0 0
      %992 = vmatprep.subr.bf16.mxu0 0
      %993 = vmatpush2.bf16.msra.mxu0 0
      %994 = vmatprep.subr.bf16.mxu0 0
      %995 = vmatpush2.bf16.msra.mxu0 0
      %996 = vmatprep.subr.bf16.mxu0 0
      %997 = vmatpush2.bf16.msra.mxu0 0
      %998 = vmatprep.subr.bf16.mxu0 0
      %999 = vmatpush2.bf16.msra.mxu0 0
      %1000 = vmatprep.subr.bf16.mxu0 0
      %1001 = vmatpush2.bf16.msra.mxu0 0
      %1002 = vmatprep.mubr.bf16.mxu0 0
      %1003 = vmatmul.mubr.bf16.gmra.mxu0 %v914
      %v1004 = vpop.f32.mrf.mxu0
      %v1005 = vadd.f32 0.0, %v1004
      %v1006 = vpop.f32.mrf.mxu0
      %v1007 = vpop.f32.mrf.mxu0
      %v1008 = vadd.f32 0.0, %v1007
      %v1009 = vpop.f32.mrf.mxu0
      %1010 = vmatprep.mubr.bf16.mxu0 0
      %1011 = vmatmul.mubr.bf16.gmra.mxu0 %v917
      %v1012 = vpop.f32.mrf.mxu0
      %v1013 = vadd.f32 0.0, %v1012
      %v1014 = vpop.f32.mrf.mxu0
      %v1015 = vpop.f32.mrf.mxu0
      %v1016 = vadd.f32 0.0, %v1015
      %v1017 = vpop.f32.mrf.mxu0
      %1018 = vmatprep.mubr.bf16.mxu0 0
      %1019 = vmatmul.mubr.bf16.gmra.mxu0 %v920
      %v1020 = vpop.f32.mrf.mxu0
      %v1021 = vadd.f32 0.0, %v1020
      %v1022 = vpop.f32.mrf.mxu0
      %v1023 = vpop.f32.mrf.mxu0
      %v1024 = vadd.f32 0.0, %v1023
      %v1025 = vpop.f32.mrf.mxu0
      %1026 = vmatprep.mubr.bf16.mxu0 0
      %1027 = vmatmul.mubr.bf16.gmra.mxu0 %v923
      %v1028 = vpop.f32.mrf.mxu0
      %v1029 = vadd.f32 0.0, %v1028
      %v1030 = vpop.f32.mrf.mxu0
      %v1031 = vpop.f32.mrf.mxu0
      %v1032 = vadd.f32 0.0, %v1031
      %v1033 = vpop.f32.mrf.mxu0
      %1034 = vmatprep.mubr.bf16.mxu0 0
      %1035 = vmatmul.mubr.bf16.gmra.mxu0 %v926
      %v1036 = vpop.f32.mrf.mxu0
      %v1037 = vadd.f32 0.0, %v1036
      %v1038 = vpop.f32.mrf.mxu0
      %v1039 = vpop.f32.mrf.mxu0
      %v1040 = vadd.f32 0.0, %v1039
      %v1041 = vpop.f32.mrf.mxu0
      %1042 = vmatprep.mubr.bf16.mxu0 0
      %1043 = vmatmul.mubr.bf16.gmra.mxu0 %v929
      %v1044 = vpop.f32.mrf.mxu0
      %v1045 = vadd.f32 0.0, %v1044
      %v1046 = vpop.f32.mrf.mxu0
      %v1047 = vpop.f32.mrf.mxu0
      %v1048 = vadd.f32 0.0, %v1047
      %v1049 = vpop.f32.mrf.mxu0
      %1050 = vmatprep.mubr.bf16.mxu0 0
      %1051 = vmatmul.mubr.bf16.gmra.mxu0 %v932
      %v1052 = vpop.f32.mrf.mxu0
      %v1053 = vadd.f32 0.0, %v1052
      %v1054 = vpop.f32.mrf.mxu0
      %v1055 = vpop.f32.mrf.mxu0
      %v1056 = vadd.f32 0.0, %v1055
      %v1057 = vpop.f32.mrf.mxu0
      %1058 = vmatprep.mubr.bf16.mxu0 0
      %1059 = vmatmul.mubr.bf16.gmra.mxu0 %v935
      %v1060 = vpop.f32.mrf.mxu0
      %v1061 = vadd.f32 0.0, %v1060
      %v1062 = vpop.f32.mrf.mxu0
      %v1063 = vpop.f32.mrf.mxu0
      %v1064 = vadd.f32 0.0, %v1063
      %v1065 = vpop.f32.mrf.mxu0
      %1066 = vmatprep.mubr.bf16.mxu0 0
      %1067 = vmatmul.mubr.bf16.gmra.mxu0 %v938
      %v1068 = vpop.f32.mrf.mxu0
      %v1069 = vadd.f32 0.0, %v1068
      %v1070 = vpop.f32.mrf.mxu0
      %v1071 = vpop.f32.mrf.mxu0
      %v1072 = vadd.f32 0.0, %v1071
      %v1073 = vpop.f32.mrf.mxu0
      %1074 = vmatprep.mubr.bf16.mxu0 0
      %1075 = vmatmul.mubr.bf16.gmra.mxu0 %v941
      %v1076 = vpop.f32.mrf.mxu0
      %v1077 = vadd.f32 0.0, %v1076
      %v1078 = vpop.f32.mrf.mxu0
      %v1079 = vpop.f32.mrf.mxu0
      %v1080 = vadd.f32 0.0, %v1079
      %v1081 = vpop.f32.mrf.mxu0
      %1082 = vmatprep.mubr.bf16.mxu0 0
      %1083 = vmatmul.mubr.bf16.gmra.mxu0 %v944
      %v1084 = vpop.f32.mrf.mxu0
      %v1085 = vadd.f32 0.0, %v1084
      %v1086 = vpop.f32.mrf.mxu0
      %v1087 = vpop.f32.mrf.mxu0
      %v1088 = vadd.f32 0.0, %v1087
      %v1089 = vpop.f32.mrf.mxu0
      %1090 = vmatprep.mubr.bf16.mxu0 0
      %1091 = vmatmul.mubr.bf16.gmra.mxu0 %v947
      %v1092 = vpop.f32.mrf.mxu0
      %v1093 = vadd.f32 0.0, %v1092
      %v1094 = vpop.f32.mrf.mxu0
      %v1095 = vpop.f32.mrf.mxu0
      %v1096 = vadd.f32 0.0, %v1095
      %v1097 = vpop.f32.mrf.mxu0
      %1098 = vmatprep.mubr.bf16.mxu0 0
      %1099 = vmatmul.mubr.bf16.gmra.mxu0 %v950
      %v1100 = vpop.f32.mrf.mxu0
      %v1101 = vadd.f32 0.0, %v1100
      %v1102 = vpop.f32.mrf.mxu0
      %v1103 = vpop.f32.mrf.mxu0
      %v1104 = vadd.f32 0.0, %v1103
      %v1105 = vpop.f32.mrf.mxu0
      %1106 = vmatprep.mubr.bf16.mxu0 0
      %1107 = vmatmul.mubr.bf16.gmra.mxu0 %v953
      %v1108 = vpop.f32.mrf.mxu0
      %v1109 = vadd.f32 0.0, %v1108
      %v1110 = vpop.f32.mrf.mxu0
      %v1111 = vpop.f32.mrf.mxu0
      %v1112 = vadd.f32 0.0, %v1111
      %v1113 = vpop.f32.mrf.mxu0
      %1114 = vmatprep.mubr.bf16.mxu0 0
      %1115 = vmatmul.mubr.bf16.gmra.mxu0 %v956
      %v1116 = vpop.f32.mrf.mxu0
      %v1117 = vadd.f32 0.0, %v1116
      %v1118 = vpop.f32.mrf.mxu0
      %v1119 = vpop.f32.mrf.mxu0
      %v1120 = vadd.f32 0.0, %v1119
      %v1121 = vpop.f32.mrf.mxu0
      %1122 = vmatprep.mubr.bf16.mxu0 0
      %1123 = vmatmul.mubr.bf16.gmra.mxu0 %v959
      %v1124 = vpop.f32.mrf.mxu0
      %v1125 = vadd.f32 0.0, %v1124
      %v1126 = vpop.f32.mrf.mxu0
      %v1127 = vpop.f32.mrf.mxu0
      %v1128 = vadd.f32 0.0, %v1127
      %v1129 = vpop.f32.mrf.mxu0
      %1130 = vmatprep.mubr.bf16.mxu0 0
      %1131 = vmatmul.mubr.bf16.gmra.mxu0 %v962
      %v1132 = vpop.f32.mrf.mxu0
      %v1133 = vadd.f32 0.0, %v1132
      %v1134 = vpop.f32.mrf.mxu0
      %v1135 = vpop.f32.mrf.mxu0
      %v1136 = vadd.f32 0.0, %v1135
      %v1137 = vpop.f32.mrf.mxu0
      %1138 = vmatprep.mubr.bf16.mxu0 0
      %1139 = vmatmul.mubr.bf16.gmra.mxu0 %v965
      %v1140 = vpop.f32.mrf.mxu0
      %v1141 = vadd.f32 0.0, %v1140
      %v1142 = vpop.f32.mrf.mxu0
      %v1143 = vpop.f32.mrf.mxu0
      %v1144 = vadd.f32 0.0, %v1143
      %v1145 = vpop.f32.mrf.mxu0
      %1146 = vdwg.mxu0
      %v1147 = vadd.f32 %v715, %v1005
      %v1148 = vadd.f32 %v718, %v1008
      %v1149 = vadd.f32 %v723, %v1013
      %v1150 = vadd.f32 %v726, %v1016
      %v1151 = vadd.f32 %v731, %v1021
      %v1152 = vadd.f32 %v734, %v1024
      %v1153 = vadd.f32 %v739, %v1029
      %v1154 = vadd.f32 %v742, %v1032
      %v1155 = vadd.f32 %v747, %v1037
      %v1156 = vadd.f32 %v750, %v1040
      %v1157 = vadd.f32 %v755, %v1045
      %v1158 = vadd.f32 %v758, %v1048
      %v1159 = vadd.f32 %v763, %v1053
      %v1160 = vadd.f32 %v766, %v1056
      %v1161 = vadd.f32 %v771, %v1061
      %v1162 = vadd.f32 %v774, %v1064
      %v1163 = vadd.f32 %v779, %v1069
      %v1164 = vadd.f32 %v782, %v1072
      %v1165 = vadd.f32 %v787, %v1077
      %v1166 = vadd.f32 %v790, %v1080
      %v1167 = vadd.f32 %v795, %v1085
      %v1168 = vadd.f32 %v798, %v1088
      %v1169 = vadd.f32 %v803, %v1093
      %v1170 = vadd.f32 %v806, %v1096
      %v1171 = vadd.f32 %v811, %v1101
      %v1172 = vadd.f32 %v814, %v1104
      %v1173 = vadd.f32 %v819, %v1109
      %v1174 = vadd.f32 %v822, %v1112
      %v1175 = vadd.f32 %v827, %v1117
      %v1176 = vadd.f32 %v830, %v1120
      %v1177 = vadd.f32 %v835, %v1125
      %v1178 = vadd.f32 %v838, %v1128
      %v1179 = vadd.f32 %v843, %v1133
      %v1180 = vadd.f32 %v846, %v1136
      %v1181 = vadd.f32 %v851, %v1141
      %v1182 = vadd.f32 %v854, %v1144
      %v1183 = vld [vmem:[%s260 + $0x12] sm:$0xff]
      %v1184 = vld [vmem:[%s260 + $0x1a] sm:$0xff]
      %v1185 = vld [vmem:[%s260 + $0x22] sm:$0xff]
      %v1186 = vld [vmem:[%s260 + $0x2a] sm:$0xff]
      %v1187 = vld [vmem:[%s260 + $0x32] sm:$0xff]
      %v1188 = vld [vmem:[%s260 + $0x3a] sm:$0xff]
      %v1189 = vld [vmem:[%s260 + $0x42] sm:$0xff]
      %v1190 = vld [vmem:[%s260 + $0x4a] sm:$0xff]
      %v1191 = vld [vmem:[%s260 + $0x52] sm:$0xff]
      %v1192 = vld [vmem:[%s260 + $0x5a] sm:$0xff]
      %v1193 = vld [vmem:[%s260 + $0x62] sm:$0xff]
      %v1194 = vld [vmem:[%s260 + $0x6a] sm:$0xff]
      %v1195 = vld [vmem:[%s260 + $0x72] sm:$0xff]
      %v1196 = vld [vmem:[%s260 + $0x7a] sm:$0xff]
      %v1197 = vld [vmem:[%s260 + $0x82] sm:$0xff]
      %v1198 = vld [vmem:[%s260 + $0x8a] sm:$0xff]
      %v1199 = vld [vmem:[%s260 + $0x92] sm:$0xff]
      %v1200 = vld [vmem:[%s260 + $0x9a] sm:$0xff]
      %v1201 = vld [vmem:[%s260 + $0xa2] sm:$0xff]
      %v1202 = vld [vmem:[%s260 + $0xaa] sm:$0xff]
      %v1203 = vld [vmem:[%s260 + $0xb2] sm:$0xff]
      %v1204 = vld [vmem:[%s260 + $0xba] sm:$0xff]
      %v1205 = vld [vmem:[%s260 + $0xc2] sm:$0xff]
      %v1206 = vld [vmem:[%s260 + $0xca] sm:$0xff]
      %v1207 = vld [vmem:[%s260 + $0xd2] sm:$0xff]
      %v1208 = vld [vmem:[%s260 + $0xda] sm:$0xff]
      %v1209 = vld [vmem:[%s260 + $0xe2] sm:$0xff]
      %v1210 = vld [vmem:[%s260 + $0xea] sm:$0xff]
      %v1211 = vld [vmem:[%s260 + $0xf2] sm:$0xff]
      %v1212 = vld [vmem:[%s260 + $0xfa] sm:$0xff]
      %v1213 = vld [vmem:[%s260 + $0x102] sm:$0xff]
      %v1214 = vld [vmem:[%s260 + $0x10a] sm:$0xff]
      %v1215 = vld [vmem:[%s260 + $0x112] sm:$0xff]
      %v1216 = vld [vmem:[%s260 + $0x11a] sm:$0xff]
      %v1217 = vld [vmem:[%s260 + $0x122] sm:$0xff]
      %v1218 = vld [vmem:[%s260 + $0x12a] sm:$0xff]
      %v1219 = vpack.c.bf16 %v1184, %v1183
      %v1220 = vpack.c.bf16 %v1186, %v1185
      %v1221 = vpack.c.bf16 %v1188, %v1187
      %v1222 = vpack.c.bf16 %v1190, %v1189
      %v1223 = vpack.c.bf16 %v1192, %v1191
      %v1224 = vpack.c.bf16 %v1194, %v1193
      %v1225 = vpack.c.bf16 %v1196, %v1195
      %v1226 = vpack.c.bf16 %v1198, %v1197
      %v1227 = vpack.c.bf16 %v1200, %v1199
      %v1228 = vpack.c.bf16 %v1202, %v1201
      %v1229 = vpack.c.bf16 %v1204, %v1203
      %v1230 = vpack.c.bf16 %v1206, %v1205
      %v1231 = vpack.c.bf16 %v1208, %v1207
      %v1232 = vpack.c.bf16 %v1210, %v1209
      %v1233 = vpack.c.bf16 %v1212, %v1211
      %v1234 = vpack.c.bf16 %v1214, %v1213
      %v1235 = vpack.c.bf16 %v1216, %v1215
      %v1236 = vpack.c.bf16 %v1218, %v1217
      %s1237 = scalar_lea.vmem %s1, 6
      %v1238 = vld [vmem:[%s1237] sm:$0x3]
      %v1240 = vsel %vm387, %v1219, 0
      %v1243 = vsel %vm387, %v1220, 0
      %v1246 = vsel %vm387, %v1221, 0
      %v1249 = vsel %vm387, %v1222, 0
      %v1252 = vsel %vm387, %v1223, 0
      %v1255 = vsel %vm387, %v1224, 0
      %v1258 = vsel %vm387, %v1225, 0
      %v1261 = vsel %vm387, %v1226, 0
      %v1264 = vsel %vm387, %v1227, 0
      %v1267 = vsel %vm387, %v1228, 0
      %v1270 = vsel %vm387, %v1229, 0
      %v1273 = vsel %vm387, %v1230, 0
      %v1276 = vsel %vm387, %v1231, 0
      %v1279 = vsel %vm387, %v1232, 0
      %v1282 = vsel %vm387, %v1233, 0
      %v1285 = vsel %vm387, %v1234, 0
      %v1288 = vsel %vm387, %v1235, 0
      %v1291 = vsel %vm387, %v1236, 0
      %v1294 = vsel %vm442, %v1238, 0
      %1296 = vmatprep.subr.bf16.mxu0 0
      %1297 = vmatpush1.bf16.msra.mxu0 0
      %1298 = vmatprep.subr.bf16.mxu0 0
      %1299 = vmatpush1.bf16.msra.mxu0 0
      %1300 = vmatprep.subr.bf16.mxu0 0
      %1301 = vmatpush1.bf16.msra.mxu0 0
      %1302 = vmatprep.subr.bf16.mxu0 0
      %1303 = vmatpush1.bf16.msra.mxu0 0
      %1304 = vmatprep.subr.bf16.mxu0 0
      %1305 = vmatpush1.bf16.msra.mxu0 0
      %1306 = vmatprep.subr.bf16.mxu0 0
      %1307 = vmatpush1.bf16.msra.mxu0 0
      %1308 = vmatprep.subr.bf16.mxu0 0
      %1309 = vmatpush1.bf16.msra.mxu0 0
      %1310 = vmatprep.subr.bf16.mxu0 0
      %1311 = vmatpush1.bf16.msra.mxu0 %v1294
      %1312 = vmatprep.subr.bf16.mxu0 0
      %1313 = vmatpush2.bf16.msra.mxu0 0
      %1314 = vmatprep.subr.bf16.mxu0 0
      %1315 = vmatpush2.bf16.msra.mxu0 0
      %1316 = vmatprep.subr.bf16.mxu0 0
      %1317 = vmatpush2.bf16.msra.mxu0 0
      %1318 = vmatprep.subr.bf16.mxu0 0
      %1319 = vmatpush2.bf16.msra.mxu0 0
      %1320 = vmatprep.subr.bf16.mxu0 0
      %1321 = vmatpush2.bf16.msra.mxu0 0
      %1322 = vmatprep.subr.bf16.mxu0 0
      %1323 = vmatpush2.bf16.msra.mxu0 0
      %1324 = vmatprep.subr.bf16.mxu0 0
      %1325 = vmatpush2.bf16.msra.mxu0 0
      %1326 = vmatprep.subr.bf16.mxu0 0
      %1327 = vmatpush2.bf16.msra.mxu0 0
      %1328 = vmatprep.mubr.bf16.mxu0 0
      %1329 = vmatmul.mubr.bf16.gmra.mxu0 %v1240
      %v1330 = vpop.f32.mrf.mxu0
      %v1331 = vadd.f32 0.0, %v1330
      %v1332 = vpop.f32.mrf.mxu0
      %v1333 = vpop.f32.mrf.mxu0
      %v1334 = vadd.f32 0.0, %v1333
      %v1335 = vpop.f32.mrf.mxu0
      %1336 = vmatprep.mubr.bf16.mxu0 0
      %1337 = vmatmul.mubr.bf16.gmra.mxu0 %v1243
      %v1338 = vpop.f32.mrf.mxu0
      %v1339 = vadd.f32 0.0, %v1338
      %v1340 = vpop.f32.mrf.mxu0
      %v1341 = vpop.f32.mrf.mxu0
      %v1342 = vadd.f32 0.0, %v1341
      %v1343 = vpop.f32.mrf.mxu0
      %1344 = vmatprep.mubr.bf16.mxu0 0
      %1345 = vmatmul.mubr.bf16.gmra.mxu0 %v1246
      %v1346 = vpop.f32.mrf.mxu0
      %v1347 = vadd.f32 0.0, %v1346
      %v1348 = vpop.f32.mrf.mxu0
      %v1349 = vpop.f32.mrf.mxu0
      %v1350 = vadd.f32 0.0, %v1349
      %v1351 = vpop.f32.mrf.mxu0
      %1352 = vmatprep.mubr.bf16.mxu0 0
      %1353 = vmatmul.mubr.bf16.gmra.mxu0 %v1249
      %v1354 = vpop.f32.mrf.mxu0
      %v1355 = vadd.f32 0.0, %v1354
      %v1356 = vpop.f32.mrf.mxu0
      %v1357 = vpop.f32.mrf.mxu0
      %v1358 = vadd.f32 0.0, %v1357
      %v1359 = vpop.f32.mrf.mxu0
      %1360 = vmatprep.mubr.bf16.mxu0 0
      %1361 = vmatmul.mubr.bf16.gmra.mxu0 %v1252
      %v1362 = vpop.f32.mrf.mxu0
      %v1363 = vadd.f32 0.0, %v1362
      %v1364 = vpop.f32.mrf.mxu0
      %v1365 = vpop.f32.mrf.mxu0
      %v1366 = vadd.f32 0.0, %v1365
      %v1367 = vpop.f32.mrf.mxu0
      %1368 = vmatprep.mubr.bf16.mxu0 0
      %1369 = vmatmul.mubr.bf16.gmra.mxu0 %v1255
      %v1370 = vpop.f32.mrf.mxu0
      %v1371 = vadd.f32 0.0, %v1370
      %v1372 = vpop.f32.mrf.mxu0
      %v1373 = vpop.f32.mrf.mxu0
      %v1374 = vadd.f32 0.0, %v1373
      %v1375 = vpop.f32.mrf.mxu0
      %1376 = vmatprep.mubr.bf16.mxu0 0
      %1377 = vmatmul.mubr.bf16.gmra.mxu0 %v1258
      %v1378 = vpop.f32.mrf.mxu0
      %v1379 = vadd.f32 0.0, %v1378
      %v1380 = vpop.f32.mrf.mxu0
      %v1381 = vpop.f32.mrf.mxu0
      %v1382 = vadd.f32 0.0, %v1381
      %v1383 = vpop.f32.mrf.mxu0
      %1384 = vmatprep.mubr.bf16.mxu0 0
      %1385 = vmatmul.mubr.bf16.gmra.mxu0 %v1261
      %v1386 = vpop.f32.mrf.mxu0
      %v1387 = vadd.f32 0.0, %v1386
      %v1388 = vpop.f32.mrf.mxu0
      %v1389 = vpop.f32.mrf.mxu0
      %v1390 = vadd.f32 0.0, %v1389
      %v1391 = vpop.f32.mrf.mxu0
      %1392 = vmatprep.mubr.bf16.mxu0 0
      %1393 = vmatmul.mubr.bf16.gmra.mxu0 %v1264
      %v1394 = vpop.f32.mrf.mxu0
      %v1395 = vadd.f32 0.0, %v1394
      %v1396 = vpop.f32.mrf.mxu0
      %v1397 = vpop.f32.mrf.mxu0
      %v1398 = vadd.f32 0.0, %v1397
      %v1399 = vpop.f32.mrf.mxu0
      %1400 = vmatprep.mubr.bf16.mxu0 0
      %1401 = vmatmul.mubr.bf16.gmra.mxu0 %v1267
      %v1402 = vpop.f32.mrf.mxu0
      %v1403 = vadd.f32 0.0, %v1402
      %v1404 = vpop.f32.mrf.mxu0
      %v1405 = vpop.f32.mrf.mxu0
      %v1406 = vadd.f32 0.0, %v1405
      %v1407 = vpop.f32.mrf.mxu0
      %1408 = vmatprep.mubr.bf16.mxu0 0
      %1409 = vmatmul.mubr.bf16.gmra.mxu0 %v1270
      %v1410 = vpop.f32.mrf.mxu0
      %v1411 = vadd.f32 0.0, %v1410
      %v1412 = vpop.f32.mrf.mxu0
      %v1413 = vpop.f32.mrf.mxu0
      %v1414 = vadd.f32 0.0, %v1413
      %v1415 = vpop.f32.mrf.mxu0
      %1416 = vmatprep.mubr.bf16.mxu0 0
      %1417 = vmatmul.mubr.bf16.gmra.mxu0 %v1273
      %v1418 = vpop.f32.mrf.mxu0
      %v1419 = vadd.f32 0.0, %v1418
      %v1420 = vpop.f32.mrf.mxu0
      %v1421 = vpop.f32.mrf.mxu0
      %v1422 = vadd.f32 0.0, %v1421
      %v1423 = vpop.f32.mrf.mxu0
      %1424 = vmatprep.mubr.bf16.mxu0 0
      %1425 = vmatmul.mubr.bf16.gmra.mxu0 %v1276
      %v1426 = vpop.f32.mrf.mxu0
      %v1427 = vadd.f32 0.0, %v1426
      %v1428 = vpop.f32.mrf.mxu0
      %v1429 = vpop.f32.mrf.mxu0
      %v1430 = vadd.f32 0.0, %v1429
      %v1431 = vpop.f32.mrf.mxu0
      %1432 = vmatprep.mubr.bf16.mxu0 0
      %1433 = vmatmul.mubr.bf16.gmra.mxu0 %v1279
      %v1434 = vpop.f32.mrf.mxu0
      %v1435 = vadd.f32 0.0, %v1434
      %v1436 = vpop.f32.mrf.mxu0
      %v1437 = vpop.f32.mrf.mxu0
      %v1438 = vadd.f32 0.0, %v1437
      %v1439 = vpop.f32.mrf.mxu0
      %1440 = vmatprep.mubr.bf16.mxu0 0
      %1441 = vmatmul.mubr.bf16.gmra.mxu0 %v1282
      %v1442 = vpop.f32.mrf.mxu0
      %v1443 = vadd.f32 0.0, %v1442
      %v1444 = vpop.f32.mrf.mxu0
      %v1445 = vpop.f32.mrf.mxu0
      %v1446 = vadd.f32 0.0, %v1445
      %v1447 = vpop.f32.mrf.mxu0
      %1448 = vmatprep.mubr.bf16.mxu0 0
      %1449 = vmatmul.mubr.bf16.gmra.mxu0 %v1285
      %v1450 = vpop.f32.mrf.mxu0
      %v1451 = vadd.f32 0.0, %v1450
      %v1452 = vpop.f32.mrf.mxu0
      %v1453 = vpop.f32.mrf.mxu0
      %v1454 = vadd.f32 0.0, %v1453
      %v1455 = vpop.f32.mrf.mxu0
      %1456 = vmatprep.mubr.bf16.mxu0 0
      %1457 = vmatmul.mubr.bf16.gmra.mxu0 %v1288
      %v1458 = vpop.f32.mrf.mxu0
      %v1459 = vadd.f32 0.0, %v1458
      %v1460 = vpop.f32.mrf.mxu0
      %v1461 = vpop.f32.mrf.mxu0
      %v1462 = vadd.f32 0.0, %v1461
      %v1463 = vpop.f32.mrf.mxu0
      %1464 = vmatprep.mubr.bf16.mxu0 0
      %1465 = vmatmul.mubr.bf16.gmra.mxu0 %v1291
      %v1466 = vpop.f32.mrf.mxu0
      %v1467 = vadd.f32 0.0, %v1466
      %v1468 = vpop.f32.mrf.mxu0
      %v1469 = vpop.f32.mrf.mxu0
      %v1470 = vadd.f32 0.0, %v1469
      %v1471 = vpop.f32.mrf.mxu0
      %1472 = vdwg.mxu0
      %v1473 = vadd.f32 %v1147, %v1331
      %v1474 = vadd.f32 %v1148, %v1334
      %v1475 = vadd.f32 %v1149, %v1339
      %v1476 = vadd.f32 %v1150, %v1342
      %v1477 = vadd.f32 %v1151, %v1347
      %v1478 = vadd.f32 %v1152, %v1350
      %v1479 = vadd.f32 %v1153, %v1355
      %v1480 = vadd.f32 %v1154, %v1358
      %v1481 = vadd.f32 %v1155, %v1363
      %v1482 = vadd.f32 %v1156, %v1366
      %v1483 = vadd.f32 %v1157, %v1371
      %v1484 = vadd.f32 %v1158, %v1374
      %v1485 = vadd.f32 %v1159, %v1379
      %v1486 = vadd.f32 %v1160, %v1382
      %v1487 = vadd.f32 %v1161, %v1387
      %v1488 = vadd.f32 %v1162, %v1390
      %v1489 = vadd.f32 %v1163, %v1395
      %v1490 = vadd.f32 %v1164, %v1398
      %v1491 = vadd.f32 %v1165, %v1403
      %v1492 = vadd.f32 %v1166, %v1406
      %v1493 = vadd.f32 %v1167, %v1411
      %v1494 = vadd.f32 %v1168, %v1414
      %v1495 = vadd.f32 %v1169, %v1419
      %v1496 = vadd.f32 %v1170, %v1422
      %v1497 = vadd.f32 %v1171, %v1427
      %v1498 = vadd.f32 %v1172, %v1430
      %v1499 = vadd.f32 %v1173, %v1435
      %v1500 = vadd.f32 %v1174, %v1438
      %v1501 = vadd.f32 %v1175, %v1443
      %v1502 = vadd.f32 %v1176, %v1446
      %v1503 = vadd.f32 %v1177, %v1451
      %v1504 = vadd.f32 %v1178, %v1454
      %v1505 = vadd.f32 %v1179, %v1459
      %v1506 = vadd.f32 %v1180, %v1462
      %v1507 = vadd.f32 %v1181, %v1467
      %v1508 = vadd.f32 %v1182, %v1470
      %v1509 = vld [vmem:[%s260 + $0x14] sm:$0xff]
      %v1510 = vld [vmem:[%s260 + $0x1c] sm:$0xff]
      %v1511 = vld [vmem:[%s260 + $0x24] sm:$0xff]
      %v1512 = vld [vmem:[%s260 + $0x2c] sm:$0xff]
      %v1513 = vld [vmem:[%s260 + $0x34] sm:$0xff]
      %v1514 = vld [vmem:[%s260 + $0x3c] sm:$0xff]
      %v1515 = vld [vmem:[%s260 + $0x44] sm:$0xff]
      %v1516 = vld [vmem:[%s260 + $0x4c] sm:$0xff]
      %v1517 = vld [vmem:[%s260 + $0x54] sm:$0xff]
      %v1518 = vld [vmem:[%s260 + $0x5c] sm:$0xff]
      %v1519 = vld [vmem:[%s260 + $0x64] sm:$0xff]
      %v1520 = vld [vmem:[%s260 + $0x6c] sm:$0xff]
      %v1521 = vld [vmem:[%s260 + $0x74] sm:$0xff]
      %v1522 = vld [vmem:[%s260 + $0x7c] sm:$0xff]
      %v1523 = vld [vmem:[%s260 + $0x84] sm:$0xff]
      %v1524 = vld [vmem:[%s260 + $0x8c] sm:$0xff]
      %v1525 = vld [vmem:[%s260 + $0x94] sm:$0xff]
      %v1526 = vld [vmem:[%s260 + $0x9c] sm:$0xff]
      %v1527 = vld [vmem:[%s260 + $0xa4] sm:$0xff]
      %v1528 = vld [vmem:[%s260 + $0xac] sm:$0xff]
      %v1529 = vld [vmem:[%s260 + $0xb4] sm:$0xff]
      %v1530 = vld [vmem:[%s260 + $0xbc] sm:$0xff]
      %v1531 = vld [vmem:[%s260 + $0xc4] sm:$0xff]
      %v1532 = vld [vmem:[%s260 + $0xcc] sm:$0xff]
      %v1533 = vld [vmem:[%s260 + $0xd4] sm:$0xff]
      %v1534 = vld [vmem:[%s260 + $0xdc] sm:$0xff]
      %v1535 = vld [vmem:[%s260 + $0xe4] sm:$0xff]
      %v1536 = vld [vmem:[%s260 + $0xec] sm:$0xff]
      %v1537 = vld [vmem:[%s260 + $0xf4] sm:$0xff]
      %v1538 = vld [vmem:[%s260 + $0xfc] sm:$0xff]
      %v1539 = vld [vmem:[%s260 + $0x104] sm:$0xff]
      %v1540 = vld [vmem:[%s260 + $0x10c] sm:$0xff]
      %v1541 = vld [vmem:[%s260 + $0x114] sm:$0xff]
      %v1542 = vld [vmem:[%s260 + $0x11c] sm:$0xff]
      %v1543 = vld [vmem:[%s260 + $0x124] sm:$0xff]
      %v1544 = vld [vmem:[%s260 + $0x12c] sm:$0xff]
      %v1545 = vpack.c.bf16 %v1510, %v1509
      %v1546 = vpack.c.bf16 %v1512, %v1511
      %v1547 = vpack.c.bf16 %v1514, %v1513
      %v1548 = vpack.c.bf16 %v1516, %v1515
      %v1549 = vpack.c.bf16 %v1518, %v1517
      %v1550 = vpack.c.bf16 %v1520, %v1519
      %v1551 = vpack.c.bf16 %v1522, %v1521
      %v1552 = vpack.c.bf16 %v1524, %v1523
      %v1553 = vpack.c.bf16 %v1526, %v1525
      %v1554 = vpack.c.bf16 %v1528, %v1527
      %v1555 = vpack.c.bf16 %v1530, %v1529
      %v1556 = vpack.c.bf16 %v1532, %v1531
      %v1557 = vpack.c.bf16 %v1534, %v1533
      %v1558 = vpack.c.bf16 %v1536, %v1535
      %v1559 = vpack.c.bf16 %v1538, %v1537
      %v1560 = vpack.c.bf16 %v1540, %v1539
      %v1561 = vpack.c.bf16 %v1542, %v1541
      %v1562 = vpack.c.bf16 %v1544, %v1543
      %s1563 = scalar_lea.vmem %s1, 8
      %v1564 = vld [vmem:[%s1563] sm:$0x3]
      %v1566 = vsel %vm387, %v1545, 0
      %v1569 = vsel %vm387, %v1546, 0
      %v1572 = vsel %vm387, %v1547, 0
      %v1575 = vsel %vm387, %v1548, 0
      %v1578 = vsel %vm387, %v1549, 0
      %v1581 = vsel %vm387, %v1550, 0
      %v1584 = vsel %vm387, %v1551, 0
      %v1587 = vsel %vm387, %v1552, 0
      %v1590 = vsel %vm387, %v1553, 0
      %v1593 = vsel %vm387, %v1554, 0
      %v1596 = vsel %vm387, %v1555, 0
      %v1599 = vsel %vm387, %v1556, 0
      %v1602 = vsel %vm387, %v1557, 0
      %v1605 = vsel %vm387, %v1558, 0
      %v1608 = vsel %vm387, %v1559, 0
      %v1611 = vsel %vm387, %v1560, 0
      %v1614 = vsel %vm387, %v1561, 0
      %v1617 = vsel %vm387, %v1562, 0
      %v1620 = vsel %vm442, %v1564, 0
      %1622 = vmatprep.subr.bf16.mxu0 0
      %1623 = vmatpush1.bf16.msra.mxu0 0
      %1624 = vmatprep.subr.bf16.mxu0 0
      %1625 = vmatpush1.bf16.msra.mxu0 0
      %1626 = vmatprep.subr.bf16.mxu0 0
      %1627 = vmatpush1.bf16.msra.mxu0 0
      %1628 = vmatprep.subr.bf16.mxu0 0
      %1629 = vmatpush1.bf16.msra.mxu0 0
      %1630 = vmatprep.subr.bf16.mxu0 0
      %1631 = vmatpush1.bf16.msra.mxu0 0
      %1632 = vmatprep.subr.bf16.mxu0 0
      %1633 = vmatpush1.bf16.msra.mxu0 0
      %1634 = vmatprep.subr.bf16.mxu0 0
      %1635 = vmatpush1.bf16.msra.mxu0 0
      %1636 = vmatprep.subr.bf16.mxu0 0
      %1637 = vmatpush1.bf16.msra.mxu0 %v1620
      %1638 = vmatprep.subr.bf16.mxu0 0
      %1639 = vmatpush2.bf16.msra.mxu0 0
      %1640 = vmatprep.subr.bf16.mxu0 0
      %1641 = vmatpush2.bf16.msra.mxu0 0
      %1642 = vmatprep.subr.bf16.mxu0 0
      %1643 = vmatpush2.bf16.msra.mxu0 0
      %1644 = vmatprep.subr.bf16.mxu0 0
      %1645 = vmatpush2.bf16.msra.mxu0 0
      %1646 = vmatprep.subr.bf16.mxu0 0
      %1647 = vmatpush2.bf16.msra.mxu0 0
      %1648 = vmatprep.subr.bf16.mxu0 0
      %1649 = vmatpush2.bf16.msra.mxu0 0
      %1650 = vmatprep.subr.bf16.mxu0 0
      %1651 = vmatpush2.bf16.msra.mxu0 0
      %1652 = vmatprep.subr.bf16.mxu0 0
      %1653 = vmatpush2.bf16.msra.mxu0 0
      %1654 = vmatprep.mubr.bf16.mxu0 0
      %1655 = vmatmul.mubr.bf16.gmra.mxu0 %v1566
      %v1656 = vpop.f32.mrf.mxu0
      %v1657 = vadd.f32 0.0, %v1656
      %v1658 = vpop.f32.mrf.mxu0
      %v1659 = vpop.f32.mrf.mxu0
      %v1660 = vadd.f32 0.0, %v1659
      %v1661 = vpop.f32.mrf.mxu0
      %1662 = vmatprep.mubr.bf16.mxu0 0
      %1663 = vmatmul.mubr.bf16.gmra.mxu0 %v1569
      %v1664 = vpop.f32.mrf.mxu0
      %v1665 = vadd.f32 0.0, %v1664
      %v1666 = vpop.f32.mrf.mxu0
      %v1667 = vpop.f32.mrf.mxu0
      %v1668 = vadd.f32 0.0, %v1667
      %v1669 = vpop.f32.mrf.mxu0
      %1670 = vmatprep.mubr.bf16.mxu0 0
      %1671 = vmatmul.mubr.bf16.gmra.mxu0 %v1572
      %v1672 = vpop.f32.mrf.mxu0
      %v1673 = vadd.f32 0.0, %v1672
      %v1674 = vpop.f32.mrf.mxu0
      %v1675 = vpop.f32.mrf.mxu0
      %v1676 = vadd.f32 0.0, %v1675
      %v1677 = vpop.f32.mrf.mxu0
      %1678 = vmatprep.mubr.bf16.mxu0 0
      %1679 = vmatmul.mubr.bf16.gmra.mxu0 %v1575
      %v1680 = vpop.f32.mrf.mxu0
      %v1681 = vadd.f32 0.0, %v1680
      %v1682 = vpop.f32.mrf.mxu0
      %v1683 = vpop.f32.mrf.mxu0
      %v1684 = vadd.f32 0.0, %v1683
      %v1685 = vpop.f32.mrf.mxu0
      %1686 = vmatprep.mubr.bf16.mxu0 0
      %1687 = vmatmul.mubr.bf16.gmra.mxu0 %v1578
      %v1688 = vpop.f32.mrf.mxu0
      %v1689 = vadd.f32 0.0, %v1688
      %v1690 = vpop.f32.mrf.mxu0
      %v1691 = vpop.f32.mrf.mxu0
      %v1692 = vadd.f32 0.0, %v1691
      %v1693 = vpop.f32.mrf.mxu0
      %1694 = vmatprep.mubr.bf16.mxu0 0
      %1695 = vmatmul.mubr.bf16.gmra.mxu0 %v1581
      %v1696 = vpop.f32.mrf.mxu0
      %v1697 = vadd.f32 0.0, %v1696
      %v1698 = vpop.f32.mrf.mxu0
      %v1699 = vpop.f32.mrf.mxu0
      %v1700 = vadd.f32 0.0, %v1699
      %v1701 = vpop.f32.mrf.mxu0
      %1702 = vmatprep.mubr.bf16.mxu0 0
      %1703 = vmatmul.mubr.bf16.gmra.mxu0 %v1584
      %v1704 = vpop.f32.mrf.mxu0
      %v1705 = vadd.f32 0.0, %v1704
      %v1706 = vpop.f32.mrf.mxu0
      %v1707 = vpop.f32.mrf.mxu0
      %v1708 = vadd.f32 0.0, %v1707
      %v1709 = vpop.f32.mrf.mxu0
      %1710 = vmatprep.mubr.bf16.mxu0 0
      %1711 = vmatmul.mubr.bf16.gmra.mxu0 %v1587
      %v1712 = vpop.f32.mrf.mxu0
      %v1713 = vadd.f32 0.0, %v1712
      %v1714 = vpop.f32.mrf.mxu0
      %v1715 = vpop.f32.mrf.mxu0
      %v1716 = vadd.f32 0.0, %v1715
      %v1717 = vpop.f32.mrf.mxu0
      %1718 = vmatprep.mubr.bf16.mxu0 0
      %1719 = vmatmul.mubr.bf16.gmra.mxu0 %v1590
      %v1720 = vpop.f32.mrf.mxu0
      %v1721 = vadd.f32 0.0, %v1720
      %v1722 = vpop.f32.mrf.mxu0
      %v1723 = vpop.f32.mrf.mxu0
      %v1724 = vadd.f32 0.0, %v1723
      %v1725 = vpop.f32.mrf.mxu0
      %1726 = vmatprep.mubr.bf16.mxu0 0
      %1727 = vmatmul.mubr.bf16.gmra.mxu0 %v1593
      %v1728 = vpop.f32.mrf.mxu0
      %v1729 = vadd.f32 0.0, %v1728
      %v1730 = vpop.f32.mrf.mxu0
      %v1731 = vpop.f32.mrf.mxu0
      %v1732 = vadd.f32 0.0, %v1731
      %v1733 = vpop.f32.mrf.mxu0
      %1734 = vmatprep.mubr.bf16.mxu0 0
      %1735 = vmatmul.mubr.bf16.gmra.mxu0 %v1596
      %v1736 = vpop.f32.mrf.mxu0
      %v1737 = vadd.f32 0.0, %v1736
      %v1738 = vpop.f32.mrf.mxu0
      %v1739 = vpop.f32.mrf.mxu0
      %v1740 = vadd.f32 0.0, %v1739
      %v1741 = vpop.f32.mrf.mxu0
      %1742 = vmatprep.mubr.bf16.mxu0 0
      %1743 = vmatmul.mubr.bf16.gmra.mxu0 %v1599
      %v1744 = vpop.f32.mrf.mxu0
      %v1745 = vadd.f32 0.0, %v1744
      %v1746 = vpop.f32.mrf.mxu0
      %v1747 = vpop.f32.mrf.mxu0
      %v1748 = vadd.f32 0.0, %v1747
      %v1749 = vpop.f32.mrf.mxu0
      %1750 = vmatprep.mubr.bf16.mxu0 0
      %1751 = vmatmul.mubr.bf16.gmra.mxu0 %v1602
      %v1752 = vpop.f32.mrf.mxu0
      %v1753 = vadd.f32 0.0, %v1752
      %v1754 = vpop.f32.mrf.mxu0
      %v1755 = vpop.f32.mrf.mxu0
      %v1756 = vadd.f32 0.0, %v1755
      %v1757 = vpop.f32.mrf.mxu0
      %1758 = vmatprep.mubr.bf16.mxu0 0
      %1759 = vmatmul.mubr.bf16.gmra.mxu0 %v1605
      %v1760 = vpop.f32.mrf.mxu0
      %v1761 = vadd.f32 0.0, %v1760
      %v1762 = vpop.f32.mrf.mxu0
      %v1763 = vpop.f32.mrf.mxu0
      %v1764 = vadd.f32 0.0, %v1763
      %v1765 = vpop.f32.mrf.mxu0
      %1766 = vmatprep.mubr.bf16.mxu0 0
      %1767 = vmatmul.mubr.bf16.gmra.mxu0 %v1608
      %v1768 = vpop.f32.mrf.mxu0
      %v1769 = vadd.f32 0.0, %v1768
      %v1770 = vpop.f32.mrf.mxu0
      %v1771 = vpop.f32.mrf.mxu0
      %v1772 = vadd.f32 0.0, %v1771
      %v1773 = vpop.f32.mrf.mxu0
      %1774 = vmatprep.mubr.bf16.mxu0 0
      %1775 = vmatmul.mubr.bf16.gmra.mxu0 %v1611
      %v1776 = vpop.f32.mrf.mxu0
      %v1777 = vadd.f32 0.0, %v1776
      %v1778 = vpop.f32.mrf.mxu0
      %v1779 = vpop.f32.mrf.mxu0
      %v1780 = vadd.f32 0.0, %v1779
      %v1781 = vpop.f32.mrf.mxu0
      %1782 = vmatprep.mubr.bf16.mxu0 0
      %1783 = vmatmul.mubr.bf16.gmra.mxu0 %v1614
      %v1784 = vpop.f32.mrf.mxu0
      %v1785 = vadd.f32 0.0, %v1784
      %v1786 = vpop.f32.mrf.mxu0
      %v1787 = vpop.f32.mrf.mxu0
      %v1788 = vadd.f32 0.0, %v1787
      %v1789 = vpop.f32.mrf.mxu0
      %1790 = vmatprep.mubr.bf16.mxu0 0
      %1791 = vmatmul.mubr.bf16.gmra.mxu0 %v1617
      %v1792 = vpop.f32.mrf.mxu0
      %v1793 = vadd.f32 0.0, %v1792
      %v1794 = vpop.f32.mrf.mxu0
      %v1795 = vpop.f32.mrf.mxu0
      %v1796 = vadd.f32 0.0, %v1795
      %v1797 = vpop.f32.mrf.mxu0
      %1798 = vdwg.mxu0
      %v1799 = vadd.f32 %v1473, %v1657
      %v1800 = vadd.f32 %v1474, %v1660
      %v1801 = vadd.f32 %v1475, %v1665
      %v1802 = vadd.f32 %v1476, %v1668
      %v1803 = vadd.f32 %v1477, %v1673
      %v1804 = vadd.f32 %v1478, %v1676
      %v1805 = vadd.f32 %v1479, %v1681
      %v1806 = vadd.f32 %v1480, %v1684
      %v1807 = vadd.f32 %v1481, %v1689
      %v1808 = vadd.f32 %v1482, %v1692
      %v1809 = vadd.f32 %v1483, %v1697
      %v1810 = vadd.f32 %v1484, %v1700
      %v1811 = vadd.f32 %v1485, %v1705
      %v1812 = vadd.f32 %v1486, %v1708
      %v1813 = vadd.f32 %v1487, %v1713
      %v1814 = vadd.f32 %v1488, %v1716
      %v1815 = vadd.f32 %v1489, %v1721
      %v1816 = vadd.f32 %v1490, %v1724
      %v1817 = vadd.f32 %v1491, %v1729
      %v1818 = vadd.f32 %v1492, %v1732
      %v1819 = vadd.f32 %v1493, %v1737
      %v1820 = vadd.f32 %v1494, %v1740
      %v1821 = vadd.f32 %v1495, %v1745
      %v1822 = vadd.f32 %v1496, %v1748
      %v1823 = vadd.f32 %v1497, %v1753
      %v1824 = vadd.f32 %v1498, %v1756
      %v1825 = vadd.f32 %v1499, %v1761
      %v1826 = vadd.f32 %v1500, %v1764
      %v1827 = vadd.f32 %v1501, %v1769
      %v1828 = vadd.f32 %v1502, %v1772
      %v1829 = vadd.f32 %v1503, %v1777
      %v1830 = vadd.f32 %v1504, %v1780
      %v1831 = vadd.f32 %v1505, %v1785
      %v1832 = vadd.f32 %v1506, %v1788
      %v1833 = vadd.f32 %v1507, %v1793
      %v1834 = vadd.f32 %v1508, %v1796
      %v1835 = vld [vmem:[%s260 + $0x24] sm:$0xff]
      %v1836 = vld [vmem:[%s260 + $0x2c] sm:$0xff]
      %v1837 = vld [vmem:[%s260 + $0x34] sm:$0xff]
      %v1838 = vld [vmem:[%s260 + $0x3c] sm:$0xff]
      %v1839 = vld [vmem:[%s260 + $0x44] sm:$0xff]
      %v1840 = vld [vmem:[%s260 + $0x4c] sm:$0xff]
      %v1841 = vld [vmem:[%s260 + $0x54] sm:$0xff]
      %v1842 = vld [vmem:[%s260 + $0x5c] sm:$0xff]
      %v1843 = vld [vmem:[%s260 + $0x64] sm:$0xff]
      %v1844 = vld [vmem:[%s260 + $0x6c] sm:$0xff]
      %v1845 = vld [vmem:[%s260 + $0x74] sm:$0xff]
      %v1846 = vld [vmem:[%s260 + $0x7c] sm:$0xff]
      %v1847 = vld [vmem:[%s260 + $0x84] sm:$0xff]
      %v1848 = vld [vmem:[%s260 + $0x8c] sm:$0xff]
      %v1849 = vld [vmem:[%s260 + $0x94] sm:$0xff]
      %v1850 = vld [vmem:[%s260 + $0x9c] sm:$0xff]
      %v1851 = vld [vmem:[%s260 + $0xa4] sm:$0xff]
      %v1852 = vld [vmem:[%s260 + $0xac] sm:$0xff]
      %v1853 = vld [vmem:[%s260 + $0xb4] sm:$0xff]
      %v1854 = vld [vmem:[%s260 + $0xbc] sm:$0xff]
      %v1855 = vld [vmem:[%s260 + $0xc4] sm:$0xff]
      %v1856 = vld [vmem:[%s260 + $0xcc] sm:$0xff]
      %v1857 = vld [vmem:[%s260 + $0xd4] sm:$0xff]
      %v1858 = vld [vmem:[%s260 + $0xdc] sm:$0xff]
      %v1859 = vld [vmem:[%s260 + $0xe4] sm:$0xff]
      %v1860 = vld [vmem:[%s260 + $0xec] sm:$0xff]
      %v1861 = vld [vmem:[%s260 + $0xf4] sm:$0xff]
      %v1862 = vld [vmem:[%s260 + $0xfc] sm:$0xff]
      %v1863 = vld [vmem:[%s260 + $0x104] sm:$0xff]
      %v1864 = vld [vmem:[%s260 + $0x10c] sm:$0xff]
      %v1865 = vld [vmem:[%s260 + $0x114] sm:$0xff]
      %v1866 = vld [vmem:[%s260 + $0x11c] sm:$0xff]
      %v1867 = vld [vmem:[%s260 + $0x124] sm:$0xff]
      %v1868 = vld [vmem:[%s260 + $0x12c] sm:$0xff]
      %v1869 = vld [vmem:[%s260 + $0x134] sm:$0xff]
      %v1870 = vld [vmem:[%s260 + $0x13c] sm:$0xff]
      %v1871 = vpack.c.bf16 %v1836, %v1835
      %v1872 = vpack.c.bf16 %v1838, %v1837
      %v1873 = vpack.c.bf16 %v1840, %v1839
      %v1874 = vpack.c.bf16 %v1842, %v1841
      %v1875 = vpack.c.bf16 %v1844, %v1843
      %v1876 = vpack.c.bf16 %v1846, %v1845
      %v1877 = vpack.c.bf16 %v1848, %v1847
      %v1878 = vpack.c.bf16 %v1850, %v1849
      %v1879 = vpack.c.bf16 %v1852, %v1851
      %v1880 = vpack.c.bf16 %v1854, %v1853
      %v1881 = vpack.c.bf16 %v1856, %v1855
      %v1882 = vpack.c.bf16 %v1858, %v1857
      %v1883 = vpack.c.bf16 %v1860, %v1859
      %v1884 = vpack.c.bf16 %v1862, %v1861
      %v1885 = vpack.c.bf16 %v1864, %v1863
      %v1886 = vpack.c.bf16 %v1866, %v1865
      %v1887 = vpack.c.bf16 %v1868, %v1867
      %v1888 = vpack.c.bf16 %v1870, %v1869
      %s1889 = scalar_lea.vmem %s1, 10
      %v1890 = vld [vmem:[%s1889] sm:$0x3]
      %v1892 = vsel %vm387, %v1871, 0
      %v1895 = vsel %vm387, %v1872, 0
      %v1898 = vsel %vm387, %v1873, 0
      %v1901 = vsel %vm387, %v1874, 0
      %v1904 = vsel %vm387, %v1875, 0
      %v1907 = vsel %vm387, %v1876, 0
      %v1910 = vsel %vm387, %v1877, 0
      %v1913 = vsel %vm387, %v1878, 0
      %v1916 = vsel %vm387, %v1879, 0
      %v1919 = vsel %vm387, %v1880, 0
      %v1922 = vsel %vm387, %v1881, 0
      %v1925 = vsel %vm387, %v1882, 0
      %v1928 = vsel %vm387, %v1883, 0
      %v1931 = vsel %vm387, %v1884, 0
      %v1934 = vsel %vm387, %v1885, 0
      %v1937 = vsel %vm387, %v1886, 0
      %v1940 = vsel %vm387, %v1887, 0
      %v1943 = vsel %vm387, %v1888, 0
      %v1946 = vsel %vm442, %v1890, 0
      %1948 = vmatprep.subr.bf16.mxu0 0
      %1949 = vmatpush1.bf16.msra.mxu0 0
      %1950 = vmatprep.subr.bf16.mxu0 0
      %1951 = vmatpush1.bf16.msra.mxu0 0
      %1952 = vmatprep.subr.bf16.mxu0 0
      %1953 = vmatpush1.bf16.msra.mxu0 0
      %1954 = vmatprep.subr.bf16.mxu0 0
      %1955 = vmatpush1.bf16.msra.mxu0 0
      %1956 = vmatprep.subr.bf16.mxu0 0
      %1957 = vmatpush1.bf16.msra.mxu0 0
      %1958 = vmatprep.subr.bf16.mxu0 0
      %1959 = vmatpush1.bf16.msra.mxu0 0
      %1960 = vmatprep.subr.bf16.mxu0 0
      %1961 = vmatpush1.bf16.msra.mxu0 0
      %1962 = vmatprep.subr.bf16.mxu0 0
      %1963 = vmatpush1.bf16.msra.mxu0 %v1946
      %1964 = vmatprep.subr.bf16.mxu0 0
      %1965 = vmatpush2.bf16.msra.mxu0 0
      %1966 = vmatprep.subr.bf16.mxu0 0
      %1967 = vmatpush2.bf16.msra.mxu0 0
      %1968 = vmatprep.subr.bf16.mxu0 0
      %1969 = vmatpush2.bf16.msra.mxu0 0
      %1970 = vmatprep.subr.bf16.mxu0 0
      %1971 = vmatpush2.bf16.msra.mxu0 0
      %1972 = vmatprep.subr.bf16.mxu0 0
      %1973 = vmatpush2.bf16.msra.mxu0 0
      %1974 = vmatprep.subr.bf16.mxu0 0
      %1975 = vmatpush2.bf16.msra.mxu0 0
      %1976 = vmatprep.subr.bf16.mxu0 0
      %1977 = vmatpush2.bf16.msra.mxu0 0
      %1978 = vmatprep.subr.bf16.mxu0 0
      %1979 = vmatpush2.bf16.msra.mxu0 0
      %1980 = vmatprep.mubr.bf16.mxu0 0
      %1981 = vmatmul.mubr.bf16.gmra.mxu0 %v1892
      %v1982 = vpop.f32.mrf.mxu0
      %v1983 = vadd.f32 0.0, %v1982
      %v1984 = vpop.f32.mrf.mxu0
      %v1985 = vpop.f32.mrf.mxu0
      %v1986 = vadd.f32 0.0, %v1985
      %v1987 = vpop.f32.mrf.mxu0
      %1988 = vmatprep.mubr.bf16.mxu0 0
      %1989 = vmatmul.mubr.bf16.gmra.mxu0 %v1895
      %v1990 = vpop.f32.mrf.mxu0
      %v1991 = vadd.f32 0.0, %v1990
      %v1992 = vpop.f32.mrf.mxu0
      %v1993 = vpop.f32.mrf.mxu0
      %v1994 = vadd.f32 0.0, %v1993
      %v1995 = vpop.f32.mrf.mxu0
      %1996 = vmatprep.mubr.bf16.mxu0 0
      %1997 = vmatmul.mubr.bf16.gmra.mxu0 %v1898
      %v1998 = vpop.f32.mrf.mxu0
      %v1999 = vadd.f32 0.0, %v1998
      %v2000 = vpop.f32.mrf.mxu0
      %v2001 = vpop.f32.mrf.mxu0
      %v2002 = vadd.f32 0.0, %v2001
      %v2003 = vpop.f32.mrf.mxu0
      %2004 = vmatprep.mubr.bf16.mxu0 0
      %2005 = vmatmul.mubr.bf16.gmra.mxu0 %v1901
      %v2006 = vpop.f32.mrf.mxu0
      %v2007 = vadd.f32 0.0, %v2006
      %v2008 = vpop.f32.mrf.mxu0
      %v2009 = vpop.f32.mrf.mxu0
      %v2010 = vadd.f32 0.0, %v2009
      %v2011 = vpop.f32.mrf.mxu0
      %2012 = vmatprep.mubr.bf16.mxu0 0
      %2013 = vmatmul.mubr.bf16.gmra.mxu0 %v1904
      %v2014 = vpop.f32.mrf.mxu0
      %v2015 = vadd.f32 0.0, %v2014
      %v2016 = vpop.f32.mrf.mxu0
      %v2017 = vpop.f32.mrf.mxu0
      %v2018 = vadd.f32 0.0, %v2017
      %v2019 = vpop.f32.mrf.mxu0
      %2020 = vmatprep.mubr.bf16.mxu0 0
      %2021 = vmatmul.mubr.bf16.gmra.mxu0 %v1907
      %v2022 = vpop.f32.mrf.mxu0
      %v2023 = vadd.f32 0.0, %v2022
      %v2024 = vpop.f32.mrf.mxu0
      %v2025 = vpop.f32.mrf.mxu0
      %v2026 = vadd.f32 0.0, %v2025
      %v2027 = vpop.f32.mrf.mxu0
      %2028 = vmatprep.mubr.bf16.mxu0 0
      %2029 = vmatmul.mubr.bf16.gmra.mxu0 %v1910
      %v2030 = vpop.f32.mrf.mxu0
      %v2031 = vadd.f32 0.0, %v2030
      %v2032 = vpop.f32.mrf.mxu0
      %v2033 = vpop.f32.mrf.mxu0
      %v2034 = vadd.f32 0.0, %v2033
      %v2035 = vpop.f32.mrf.mxu0
      %2036 = vmatprep.mubr.bf16.mxu0 0
      %2037 = vmatmul.mubr.bf16.gmra.mxu0 %v1913
      %v2038 = vpop.f32.mrf.mxu0
      %v2039 = vadd.f32 0.0, %v2038
      %v2040 = vpop.f32.mrf.mxu0
      %v2041 = vpop.f32.mrf.mxu0
      %v2042 = vadd.f32 0.0, %v2041
      %v2043 = vpop.f32.mrf.mxu0
      %2044 = vmatprep.mubr.bf16.mxu0 0
      %2045 = vmatmul.mubr.bf16.gmra.mxu0 %v1916
      %v2046 = vpop.f32.mrf.mxu0
      %v2047 = vadd.f32 0.0, %v2046
      %v2048 = vpop.f32.mrf.mxu0
      %v2049 = vpop.f32.mrf.mxu0
      %v2050 = vadd.f32 0.0, %v2049
      %v2051 = vpop.f32.mrf.mxu0
      %2052 = vmatprep.mubr.bf16.mxu0 0
      %2053 = vmatmul.mubr.bf16.gmra.mxu0 %v1919
      %v2054 = vpop.f32.mrf.mxu0
      %v2055 = vadd.f32 0.0, %v2054
      %v2056 = vpop.f32.mrf.mxu0
      %v2057 = vpop.f32.mrf.mxu0
      %v2058 = vadd.f32 0.0, %v2057
      %v2059 = vpop.f32.mrf.mxu0
      %2060 = vmatprep.mubr.bf16.mxu0 0
      %2061 = vmatmul.mubr.bf16.gmra.mxu0 %v1922
      %v2062 = vpop.f32.mrf.mxu0
      %v2063 = vadd.f32 0.0, %v2062
      %v2064 = vpop.f32.mrf.mxu0
      %v2065 = vpop.f32.mrf.mxu0
      %v2066 = vadd.f32 0.0, %v2065
      %v2067 = vpop.f32.mrf.mxu0
      %2068 = vmatprep.mubr.bf16.mxu0 0
      %2069 = vmatmul.mubr.bf16.gmra.mxu0 %v1925
      %v2070 = vpop.f32.mrf.mxu0
      %v2071 = vadd.f32 0.0, %v2070
      %v2072 = vpop.f32.mrf.mxu0
      %v2073 = vpop.f32.mrf.mxu0
      %v2074 = vadd.f32 0.0, %v2073
      %v2075 = vpop.f32.mrf.mxu0
      %2076 = vmatprep.mubr.bf16.mxu0 0
      %2077 = vmatmul.mubr.bf16.gmra.mxu0 %v1928
      %v2078 = vpop.f32.mrf.mxu0
      %v2079 = vadd.f32 0.0, %v2078
      %v2080 = vpop.f32.mrf.mxu0
      %v2081 = vpop.f32.mrf.mxu0
      %v2082 = vadd.f32 0.0, %v2081
      %v2083 = vpop.f32.mrf.mxu0
      %2084 = vmatprep.mubr.bf16.mxu0 0
      %2085 = vmatmul.mubr.bf16.gmra.mxu0 %v1931
      %v2086 = vpop.f32.mrf.mxu0
      %v2087 = vadd.f32 0.0, %v2086
      %v2088 = vpop.f32.mrf.mxu0
      %v2089 = vpop.f32.mrf.mxu0
      %v2090 = vadd.f32 0.0, %v2089
      %v2091 = vpop.f32.mrf.mxu0
      %2092 = vmatprep.mubr.bf16.mxu0 0
      %2093 = vmatmul.mubr.bf16.gmra.mxu0 %v1934
      %v2094 = vpop.f32.mrf.mxu0
      %v2095 = vadd.f32 0.0, %v2094
      %v2096 = vpop.f32.mrf.mxu0
      %v2097 = vpop.f32.mrf.mxu0
      %v2098 = vadd.f32 0.0, %v2097
      %v2099 = vpop.f32.mrf.mxu0
      %2100 = vmatprep.mubr.bf16.mxu0 0
      %2101 = vmatmul.mubr.bf16.gmra.mxu0 %v1937
      %v2102 = vpop.f32.mrf.mxu0
      %v2103 = vadd.f32 0.0, %v2102
      %v2104 = vpop.f32.mrf.mxu0
      %v2105 = vpop.f32.mrf.mxu0
      %v2106 = vadd.f32 0.0, %v2105
      %v2107 = vpop.f32.mrf.mxu0
      %2108 = vmatprep.mubr.bf16.mxu0 0
      %2109 = vmatmul.mubr.bf16.gmra.mxu0 %v1940
      %v2110 = vpop.f32.mrf.mxu0
      %v2111 = vadd.f32 0.0, %v2110
      %v2112 = vpop.f32.mrf.mxu0
      %v2113 = vpop.f32.mrf.mxu0
      %v2114 = vadd.f32 0.0, %v2113
      %v2115 = vpop.f32.mrf.mxu0
      %2116 = vmatprep.mubr.bf16.mxu0 0
      %2117 = vmatmul.mubr.bf16.gmra.mxu0 %v1943
      %v2118 = vpop.f32.mrf.mxu0
      %v2119 = vadd.f32 0.0, %v2118
      %v2120 = vpop.f32.mrf.mxu0
      %v2121 = vpop.f32.mrf.mxu0
      %v2122 = vadd.f32 0.0, %v2121
      %v2123 = vpop.f32.mrf.mxu0
      %2124 = vdwg.mxu0
      %v2125 = vadd.f32 %v1799, %v1983
      %v2126 = vadd.f32 %v1800, %v1986
      %v2127 = vadd.f32 %v1801, %v1991
      %v2128 = vadd.f32 %v1802, %v1994
      %v2129 = vadd.f32 %v1803, %v1999
      %v2130 = vadd.f32 %v1804, %v2002
      %v2131 = vadd.f32 %v1805, %v2007
      %v2132 = vadd.f32 %v1806, %v2010
      %v2133 = vadd.f32 %v1807, %v2015
      %v2134 = vadd.f32 %v1808, %v2018
      %v2135 = vadd.f32 %v1809, %v2023
      %v2136 = vadd.f32 %v1810, %v2026
      %v2137 = vadd.f32 %v1811, %v2031
      %v2138 = vadd.f32 %v1812, %v2034
      %v2139 = vadd.f32 %v1813, %v2039
      %v2140 = vadd.f32 %v1814, %v2042
      %v2141 = vadd.f32 %v1815, %v2047
      %v2142 = vadd.f32 %v1816, %v2050
      %v2143 = vadd.f32 %v1817, %v2055
      %v2144 = vadd.f32 %v1818, %v2058
      %v2145 = vadd.f32 %v1819, %v2063
      %v2146 = vadd.f32 %v1820, %v2066
      %v2147 = vadd.f32 %v1821, %v2071
      %v2148 = vadd.f32 %v1822, %v2074
      %v2149 = vadd.f32 %v1823, %v2079
      %v2150 = vadd.f32 %v1824, %v2082
      %v2151 = vadd.f32 %v1825, %v2087
      %v2152 = vadd.f32 %v1826, %v2090
      %v2153 = vadd.f32 %v1827, %v2095
      %v2154 = vadd.f32 %v1828, %v2098
      %v2155 = vadd.f32 %v1829, %v2103
      %v2156 = vadd.f32 %v1830, %v2106
      %v2157 = vadd.f32 %v1831, %v2111
      %v2158 = vadd.f32 %v1832, %v2114
      %v2159 = vadd.f32 %v1833, %v2119
      %v2160 = vadd.f32 %v1834, %v2122
      %v2161 = vld [vmem:[%s260 + $0x25] sm:$0xff]
      %v2162 = vld [vmem:[%s260 + $0x2d] sm:$0xff]
      %v2163 = vld [vmem:[%s260 + $0x35] sm:$0xff]
      %v2164 = vld [vmem:[%s260 + $0x3d] sm:$0xff]
      %v2165 = vld [vmem:[%s260 + $0x45] sm:$0xff]
      %v2166 = vld [vmem:[%s260 + $0x4d] sm:$0xff]
      %v2167 = vld [vmem:[%s260 + $0x55] sm:$0xff]
      %v2168 = vld [vmem:[%s260 + $0x5d] sm:$0xff]
      %v2169 = vld [vmem:[%s260 + $0x65] sm:$0xff]
      %v2170 = vld [vmem:[%s260 + $0x6d] sm:$0xff]
      %v2171 = vld [vmem:[%s260 + $0x75] sm:$0xff]
      %v2172 = vld [vmem:[%s260 + $0x7d] sm:$0xff]
      %v2173 = vld [vmem:[%s260 + $0x85] sm:$0xff]
      %v2174 = vld [vmem:[%s260 + $0x8d] sm:$0xff]
      %v2175 = vld [vmem:[%s260 + $0x95] sm:$0xff]
      %v2176 = vld [vmem:[%s260 + $0x9d] sm:$0xff]
      %v2177 = vld [vmem:[%s260 + $0xa5] sm:$0xff]
      %v2178 = vld [vmem:[%s260 + $0xad] sm:$0xff]
      %v2179 = vld [vmem:[%s260 + $0xb5] sm:$0xff]
      %v2180 = vld [vmem:[%s260 + $0xbd] sm:$0xff]
      %v2181 = vld [vmem:[%s260 + $0xc5] sm:$0xff]
      %v2182 = vld [vmem:[%s260 + $0xcd] sm:$0xff]
      %v2183 = vld [vmem:[%s260 + $0xd5] sm:$0xff]
      %v2184 = vld [vmem:[%s260 + $0xdd] sm:$0xff]
      %v2185 = vld [vmem:[%s260 + $0xe5] sm:$0xff]
      %v2186 = vld [vmem:[%s260 + $0xed] sm:$0xff]
      %v2187 = vld [vmem:[%s260 + $0xf5] sm:$0xff]
      %v2188 = vld [vmem:[%s260 + $0xfd] sm:$0xff]
      %v2189 = vld [vmem:[%s260 + $0x105] sm:$0xff]
      %v2190 = vld [vmem:[%s260 + $0x10d] sm:$0xff]
      %v2191 = vld [vmem:[%s260 + $0x115] sm:$0xff]
      %v2192 = vld [vmem:[%s260 + $0x11d] sm:$0xff]
      %v2193 = vld [vmem:[%s260 + $0x125] sm:$0xff]
      %v2194 = vld [vmem:[%s260 + $0x12d] sm:$0xff]
      %v2195 = vld [vmem:[%s260 + $0x135] sm:$0xff]
      %v2196 = vld [vmem:[%s260 + $0x13d] sm:$0xff]
      %v2197 = vpack.c.bf16 %v2162, %v2161
      %v2198 = vpack.c.bf16 %v2164, %v2163
      %v2199 = vpack.c.bf16 %v2166, %v2165
      %v2200 = vpack.c.bf16 %v2168, %v2167
      %v2201 = vpack.c.bf16 %v2170, %v2169
      %v2202 = vpack.c.bf16 %v2172, %v2171
      %v2203 = vpack.c.bf16 %v2174, %v2173
      %v2204 = vpack.c.bf16 %v2176, %v2175
      %v2205 = vpack.c.bf16 %v2178, %v2177
      %v2206 = vpack.c.bf16 %v2180, %v2179
      %v2207 = vpack.c.bf16 %v2182, %v2181
      %v2208 = vpack.c.bf16 %v2184, %v2183
      %v2209 = vpack.c.bf16 %v2186, %v2185
      %v2210 = vpack.c.bf16 %v2188, %v2187
      %v2211 = vpack.c.bf16 %v2190, %v2189
      %v2212 = vpack.c.bf16 %v2192, %v2191
      %v2213 = vpack.c.bf16 %v2194, %v2193
      %v2214 = vpack.c.bf16 %v2196, %v2195
      %s2215 = scalar_lea.vmem %s1, 12
      %v2216 = vld [vmem:[%s2215] sm:$0x3]
      %v2218 = vsel %vm387, %v2197, 0
      %v2221 = vsel %vm387, %v2198, 0
      %v2224 = vsel %vm387, %v2199, 0
      %v2227 = vsel %vm387, %v2200, 0
      %v2230 = vsel %vm387, %v2201, 0
      %v2233 = vsel %vm387, %v2202, 0
      %v2236 = vsel %vm387, %v2203, 0
      %v2239 = vsel %vm387, %v2204, 0
      %v2242 = vsel %vm387, %v2205, 0
      %v2245 = vsel %vm387, %v2206, 0
      %v2248 = vsel %vm387, %v2207, 0
      %v2251 = vsel %vm387, %v2208, 0
      %v2254 = vsel %vm387, %v2209, 0
      %v2257 = vsel %vm387, %v2210, 0
      %v2260 = vsel %vm387, %v2211, 0
      %v2263 = vsel %vm387, %v2212, 0
      %v2266 = vsel %vm387, %v2213, 0
      %v2269 = vsel %vm387, %v2214, 0
      %v2272 = vsel %vm442, %v2216, 0
      %2274 = vmatprep.subr.bf16.mxu0 0
      %2275 = vmatpush1.bf16.msra.mxu0 0
      %2276 = vmatprep.subr.bf16.mxu0 0
      %2277 = vmatpush1.bf16.msra.mxu0 0
      %2278 = vmatprep.subr.bf16.mxu0 0
      %2279 = vmatpush1.bf16.msra.mxu0 0
      %2280 = vmatprep.subr.bf16.mxu0 0
      %2281 = vmatpush1.bf16.msra.mxu0 0
      %2282 = vmatprep.subr.bf16.mxu0 0
      %2283 = vmatpush1.bf16.msra.mxu0 0
      %2284 = vmatprep.subr.bf16.mxu0 0
      %2285 = vmatpush1.bf16.msra.mxu0 0
      %2286 = vmatprep.subr.bf16.mxu0 0
      %2287 = vmatpush1.bf16.msra.mxu0 0
      %2288 = vmatprep.subr.bf16.mxu0 0
      %2289 = vmatpush1.bf16.msra.mxu0 %v2272
      %2290 = vmatprep.subr.bf16.mxu0 0
      %2291 = vmatpush2.bf16.msra.mxu0 0
      %2292 = vmatprep.subr.bf16.mxu0 0
      %2293 = vmatpush2.bf16.msra.mxu0 0
      %2294 = vmatprep.subr.bf16.mxu0 0
      %2295 = vmatpush2.bf16.msra.mxu0 0
      %2296 = vmatprep.subr.bf16.mxu0 0
      %2297 = vmatpush2.bf16.msra.mxu0 0
      %2298 = vmatprep.subr.bf16.mxu0 0
      %2299 = vmatpush2.bf16.msra.mxu0 0
      %2300 = vmatprep.subr.bf16.mxu0 0
      %2301 = vmatpush2.bf16.msra.mxu0 0
      %2302 = vmatprep.subr.bf16.mxu0 0
      %2303 = vmatpush2.bf16.msra.mxu0 0
      %2304 = vmatprep.subr.bf16.mxu0 0
      %2305 = vmatpush2.bf16.msra.mxu0 0
      %2306 = vmatprep.mubr.bf16.mxu0 0
      %2307 = vmatmul.mubr.bf16.gmra.mxu0 %v2218
      %v2308 = vpop.f32.mrf.mxu0
      %v2309 = vadd.f32 0.0, %v2308
      %v2310 = vpop.f32.mrf.mxu0
      %v2311 = vpop.f32.mrf.mxu0
      %v2312 = vadd.f32 0.0, %v2311
      %v2313 = vpop.f32.mrf.mxu0
      %2314 = vmatprep.mubr.bf16.mxu0 0
      %2315 = vmatmul.mubr.bf16.gmra.mxu0 %v2221
      %v2316 = vpop.f32.mrf.mxu0
      %v2317 = vadd.f32 0.0, %v2316
      %v2318 = vpop.f32.mrf.mxu0
      %v2319 = vpop.f32.mrf.mxu0
      %v2320 = vadd.f32 0.0, %v2319
      %v2321 = vpop.f32.mrf.mxu0
      %2322 = vmatprep.mubr.bf16.mxu0 0
      %2323 = vmatmul.mubr.bf16.gmra.mxu0 %v2224
      %v2324 = vpop.f32.mrf.mxu0
      %v2325 = vadd.f32 0.0, %v2324
      %v2326 = vpop.f32.mrf.mxu0
      %v2327 = vpop.f32.mrf.mxu0
      %v2328 = vadd.f32 0.0, %v2327
      %v2329 = vpop.f32.mrf.mxu0
      %2330 = vmatprep.mubr.bf16.mxu0 0
      %2331 = vmatmul.mubr.bf16.gmra.mxu0 %v2227
      %v2332 = vpop.f32.mrf.mxu0
      %v2333 = vadd.f32 0.0, %v2332
      %v2334 = vpop.f32.mrf.mxu0
      %v2335 = vpop.f32.mrf.mxu0
      %v2336 = vadd.f32 0.0, %v2335
      %v2337 = vpop.f32.mrf.mxu0
      %2338 = vmatprep.mubr.bf16.mxu0 0
      %2339 = vmatmul.mubr.bf16.gmra.mxu0 %v2230
      %v2340 = vpop.f32.mrf.mxu0
      %v2341 = vadd.f32 0.0, %v2340
      %v2342 = vpop.f32.mrf.mxu0
      %v2343 = vpop.f32.mrf.mxu0
      %v2344 = vadd.f32 0.0, %v2343
      %v2345 = vpop.f32.mrf.mxu0
      %2346 = vmatprep.mubr.bf16.mxu0 0
      %2347 = vmatmul.mubr.bf16.gmra.mxu0 %v2233
      %v2348 = vpop.f32.mrf.mxu0
      %v2349 = vadd.f32 0.0, %v2348
      %v2350 = vpop.f32.mrf.mxu0
      %v2351 = vpop.f32.mrf.mxu0
      %v2352 = vadd.f32 0.0, %v2351
      %v2353 = vpop.f32.mrf.mxu0
      %2354 = vmatprep.mubr.bf16.mxu0 0
      %2355 = vmatmul.mubr.bf16.gmra.mxu0 %v2236
      %v2356 = vpop.f32.mrf.mxu0
      %v2357 = vadd.f32 0.0, %v2356
      %v2358 = vpop.f32.mrf.mxu0
      %v2359 = vpop.f32.mrf.mxu0
      %v2360 = vadd.f32 0.0, %v2359
      %v2361 = vpop.f32.mrf.mxu0
      %2362 = vmatprep.mubr.bf16.mxu0 0
      %2363 = vmatmul.mubr.bf16.gmra.mxu0 %v2239
      %v2364 = vpop.f32.mrf.mxu0
      %v2365 = vadd.f32 0.0, %v2364
      %v2366 = vpop.f32.mrf.mxu0
      %v2367 = vpop.f32.mrf.mxu0
      %v2368 = vadd.f32 0.0, %v2367
      %v2369 = vpop.f32.mrf.mxu0
      %2370 = vmatprep.mubr.bf16.mxu0 0
      %2371 = vmatmul.mubr.bf16.gmra.mxu0 %v2242
      %v2372 = vpop.f32.mrf.mxu0
      %v2373 = vadd.f32 0.0, %v2372
      %v2374 = vpop.f32.mrf.mxu0
      %v2375 = vpop.f32.mrf.mxu0
      %v2376 = vadd.f32 0.0, %v2375
      %v2377 = vpop.f32.mrf.mxu0
      %2378 = vmatprep.mubr.bf16.mxu0 0
      %2379 = vmatmul.mubr.bf16.gmra.mxu0 %v2245
      %v2380 = vpop.f32.mrf.mxu0
      %v2381 = vadd.f32 0.0, %v2380
      %v2382 = vpop.f32.mrf.mxu0
      %v2383 = vpop.f32.mrf.mxu0
      %v2384 = vadd.f32 0.0, %v2383
      %v2385 = vpop.f32.mrf.mxu0
      %2386 = vmatprep.mubr.bf16.mxu0 0
      %2387 = vmatmul.mubr.bf16.gmra.mxu0 %v2248
      %v2388 = vpop.f32.mrf.mxu0
      %v2389 = vadd.f32 0.0, %v2388
      %v2390 = vpop.f32.mrf.mxu0
      %v2391 = vpop.f32.mrf.mxu0
      %v2392 = vadd.f32 0.0, %v2391
      %v2393 = vpop.f32.mrf.mxu0
      %2394 = vmatprep.mubr.bf16.mxu0 0
      %2395 = vmatmul.mubr.bf16.gmra.mxu0 %v2251
      %v2396 = vpop.f32.mrf.mxu0
      %v2397 = vadd.f32 0.0, %v2396
      %v2398 = vpop.f32.mrf.mxu0
      %v2399 = vpop.f32.mrf.mxu0
      %v2400 = vadd.f32 0.0, %v2399
      %v2401 = vpop.f32.mrf.mxu0
      %2402 = vmatprep.mubr.bf16.mxu0 0
      %2403 = vmatmul.mubr.bf16.gmra.mxu0 %v2254
      %v2404 = vpop.f32.mrf.mxu0
      %v2405 = vadd.f32 0.0, %v2404
      %v2406 = vpop.f32.mrf.mxu0
      %v2407 = vpop.f32.mrf.mxu0
      %v2408 = vadd.f32 0.0, %v2407
      %v2409 = vpop.f32.mrf.mxu0
      %2410 = vmatprep.mubr.bf16.mxu0 0
      %2411 = vmatmul.mubr.bf16.gmra.mxu0 %v2257
      %v2412 = vpop.f32.mrf.mxu0
      %v2413 = vadd.f32 0.0, %v2412
      %v2414 = vpop.f32.mrf.mxu0
      %v2415 = vpop.f32.mrf.mxu0
      %v2416 = vadd.f32 0.0, %v2415
      %v2417 = vpop.f32.mrf.mxu0
      %2418 = vmatprep.mubr.bf16.mxu0 0
      %2419 = vmatmul.mubr.bf16.gmra.mxu0 %v2260
      %v2420 = vpop.f32.mrf.mxu0
      %v2421 = vadd.f32 0.0, %v2420
      %v2422 = vpop.f32.mrf.mxu0
      %v2423 = vpop.f32.mrf.mxu0
      %v2424 = vadd.f32 0.0, %v2423
      %v2425 = vpop.f32.mrf.mxu0
      %2426 = vmatprep.mubr.bf16.mxu0 0
      %2427 = vmatmul.mubr.bf16.gmra.mxu0 %v2263
      %v2428 = vpop.f32.mrf.mxu0
      %v2429 = vadd.f32 0.0, %v2428
      %v2430 = vpop.f32.mrf.mxu0
      %v2431 = vpop.f32.mrf.mxu0
      %v2432 = vadd.f32 0.0, %v2431
      %v2433 = vpop.f32.mrf.mxu0
      %2434 = vmatprep.mubr.bf16.mxu0 0
      %2435 = vmatmul.mubr.bf16.gmra.mxu0 %v2266
      %v2436 = vpop.f32.mrf.mxu0
      %v2437 = vadd.f32 0.0, %v2436
      %v2438 = vpop.f32.mrf.mxu0
      %v2439 = vpop.f32.mrf.mxu0
      %v2440 = vadd.f32 0.0, %v2439
      %v2441 = vpop.f32.mrf.mxu0
      %2442 = vmatprep.mubr.bf16.mxu0 0
      %2443 = vmatmul.mubr.bf16.gmra.mxu0 %v2269
      %v2444 = vpop.f32.mrf.mxu0
      %v2445 = vadd.f32 0.0, %v2444
      %v2446 = vpop.f32.mrf.mxu0
      %v2447 = vpop.f32.mrf.mxu0
      %v2448 = vadd.f32 0.0, %v2447
      %v2449 = vpop.f32.mrf.mxu0
      %2450 = vdwg.mxu0
      %v2451 = vadd.f32 %v2125, %v2309
      %v2452 = vadd.f32 %v2126, %v2312
      %v2453 = vadd.f32 %v2127, %v2317
      %v2454 = vadd.f32 %v2128, %v2320
      %v2455 = vadd.f32 %v2129, %v2325
      %v2456 = vadd.f32 %v2130, %v2328
      %v2457 = vadd.f32 %v2131, %v2333
      %v2458 = vadd.f32 %v2132, %v2336
      %v2459 = vadd.f32 %v2133, %v2341
      %v2460 = vadd.f32 %v2134, %v2344
      %v2461 = vadd.f32 %v2135, %v2349
      %v2462 = vadd.f32 %v2136, %v2352
      %v2463 = vadd.f32 %v2137, %v2357
      %v2464 = vadd.f32 %v2138, %v2360
      %v2465 = vadd.f32 %v2139, %v2365
      %v2466 = vadd.f32 %v2140, %v2368
      %v2467 = vadd.f32 %v2141, %v2373
      %v2468 = vadd.f32 %v2142, %v2376
      %v2469 = vadd.f32 %v2143, %v2381
      %v2470 = vadd.f32 %v2144, %v2384
      %v2471 = vadd.f32 %v2145, %v2389
      %v2472 = vadd.f32 %v2146, %v2392
      %v2473 = vadd.f32 %v2147, %v2397
      %v2474 = vadd.f32 %v2148, %v2400
      %v2475 = vadd.f32 %v2149, %v2405
      %v2476 = vadd.f32 %v2150, %v2408
      %v2477 = vadd.f32 %v2151, %v2413
      %v2478 = vadd.f32 %v2152, %v2416
      %v2479 = vadd.f32 %v2153, %v2421
      %v2480 = vadd.f32 %v2154, %v2424
      %v2481 = vadd.f32 %v2155, %v2429
      %v2482 = vadd.f32 %v2156, %v2432
      %v2483 = vadd.f32 %v2157, %v2437
      %v2484 = vadd.f32 %v2158, %v2440
      %v2485 = vadd.f32 %v2159, %v2445
      %v2486 = vadd.f32 %v2160, %v2448
      %v2487 = vld [vmem:[%s260 + $0x26] sm:$0xff]
      %v2488 = vld [vmem:[%s260 + $0x2e] sm:$0xff]
      %v2489 = vld [vmem:[%s260 + $0x36] sm:$0xff]
      %v2490 = vld [vmem:[%s260 + $0x3e] sm:$0xff]
      %v2491 = vld [vmem:[%s260 + $0x46] sm:$0xff]
      %v2492 = vld [vmem:[%s260 + $0x4e] sm:$0xff]
      %v2493 = vld [vmem:[%s260 + $0x56] sm:$0xff]
      %v2494 = vld [vmem:[%s260 + $0x5e] sm:$0xff]
      %v2495 = vld [vmem:[%s260 + $0x66] sm:$0xff]
      %v2496 = vld [vmem:[%s260 + $0x6e] sm:$0xff]
      %v2497 = vld [vmem:[%s260 + $0x76] sm:$0xff]
      %v2498 = vld [vmem:[%s260 + $0x7e] sm:$0xff]
      %v2499 = vld [vmem:[%s260 + $0x86] sm:$0xff]
      %v2500 = vld [vmem:[%s260 + $0x8e] sm:$0xff]
      %v2501 = vld [vmem:[%s260 + $0x96] sm:$0xff]
      %v2502 = vld [vmem:[%s260 + $0x9e] sm:$0xff]
      %v2503 = vld [vmem:[%s260 + $0xa6] sm:$0xff]
      %v2504 = vld [vmem:[%s260 + $0xae] sm:$0xff]
      %v2505 = vld [vmem:[%s260 + $0xb6] sm:$0xff]
      %v2506 = vld [vmem:[%s260 + $0xbe] sm:$0xff]
      %v2507 = vld [vmem:[%s260 + $0xc6] sm:$0xff]
      %v2508 = vld [vmem:[%s260 + $0xce] sm:$0xff]
      %v2509 = vld [vmem:[%s260 + $0xd6] sm:$0xff]
      %v2510 = vld [vmem:[%s260 + $0xde] sm:$0xff]
      %v2511 = vld [vmem:[%s260 + $0xe6] sm:$0xff]
      %v2512 = vld [vmem:[%s260 + $0xee] sm:$0xff]
      %v2513 = vld [vmem:[%s260 + $0xf6] sm:$0xff]
      %v2514 = vld [vmem:[%s260 + $0xfe] sm:$0xff]
      %v2515 = vld [vmem:[%s260 + $0x106] sm:$0xff]
      %v2516 = vld [vmem:[%s260 + $0x10e] sm:$0xff]
      %v2517 = vld [vmem:[%s260 + $0x116] sm:$0xff]
      %v2518 = vld [vmem:[%s260 + $0x11e] sm:$0xff]
      %v2519 = vld [vmem:[%s260 + $0x126] sm:$0xff]
      %v2520 = vld [vmem:[%s260 + $0x12e] sm:$0xff]
      %v2521 = vld [vmem:[%s260 + $0x136] sm:$0xff]
      %v2522 = vld [vmem:[%s260 + $0x13e] sm:$0xff]
      %v2523 = vpack.c.bf16 %v2488, %v2487
      %v2524 = vpack.c.bf16 %v2490, %v2489
      %v2525 = vpack.c.bf16 %v2492, %v2491
      %v2526 = vpack.c.bf16 %v2494, %v2493
      %v2527 = vpack.c.bf16 %v2496, %v2495
      %v2528 = vpack.c.bf16 %v2498, %v2497
      %v2529 = vpack.c.bf16 %v2500, %v2499
      %v2530 = vpack.c.bf16 %v2502, %v2501
      %v2531 = vpack.c.bf16 %v2504, %v2503
      %v2532 = vpack.c.bf16 %v2506, %v2505
      %v2533 = vpack.c.bf16 %v2508, %v2507
      %v2534 = vpack.c.bf16 %v2510, %v2509
      %v2535 = vpack.c.bf16 %v2512, %v2511
      %v2536 = vpack.c.bf16 %v2514, %v2513
      %v2537 = vpack.c.bf16 %v2516, %v2515
      %v2538 = vpack.c.bf16 %v2518, %v2517
      %v2539 = vpack.c.bf16 %v2520, %v2519
      %v2540 = vpack.c.bf16 %v2522, %v2521
      %s2541 = scalar_lea.vmem %s1, 14
      %v2542 = vld [vmem:[%s2541] sm:$0x3]
      %v2544 = vsel %vm387, %v2523, 0
      %v2547 = vsel %vm387, %v2524, 0
      %v2550 = vsel %vm387, %v2525, 0
      %v2553 = vsel %vm387, %v2526, 0
      %v2556 = vsel %vm387, %v2527, 0
      %v2559 = vsel %vm387, %v2528, 0
      %v2562 = vsel %vm387, %v2529, 0
      %v2565 = vsel %vm387, %v2530, 0
      %v2568 = vsel %vm387, %v2531, 0
      %v2571 = vsel %vm387, %v2532, 0
      %v2574 = vsel %vm387, %v2533, 0
      %v2577 = vsel %vm387, %v2534, 0
      %v2580 = vsel %vm387, %v2535, 0
      %v2583 = vsel %vm387, %v2536, 0
      %v2586 = vsel %vm387, %v2537, 0
      %v2589 = vsel %vm387, %v2538, 0
      %v2592 = vsel %vm387, %v2539, 0
      %v2595 = vsel %vm387, %v2540, 0
      %v2598 = vsel %vm442, %v2542, 0
      %2600 = vmatprep.subr.bf16.mxu0 0
      %2601 = vmatpush1.bf16.msra.mxu0 0
      %2602 = vmatprep.subr.bf16.mxu0 0
      %2603 = vmatpush1.bf16.msra.mxu0 0
      %2604 = vmatprep.subr.bf16.mxu0 0
      %2605 = vmatpush1.bf16.msra.mxu0 0
      %2606 = vmatprep.subr.bf16.mxu0 0
      %2607 = vmatpush1.bf16.msra.mxu0 0
      %2608 = vmatprep.subr.bf16.mxu0 0
      %2609 = vmatpush1.bf16.msra.mxu0 0
      %2610 = vmatprep.subr.bf16.mxu0 0
      %2611 = vmatpush1.bf16.msra.mxu0 0
      %2612 = vmatprep.subr.bf16.mxu0 0
      %2613 = vmatpush1.bf16.msra.mxu0 0
      %2614 = vmatprep.subr.bf16.mxu0 0
      %2615 = vmatpush1.bf16.msra.mxu0 %v2598
      %2616 = vmatprep.subr.bf16.mxu0 0
      %2617 = vmatpush2.bf16.msra.mxu0 0
      %2618 = vmatprep.subr.bf16.mxu0 0
      %2619 = vmatpush2.bf16.msra.mxu0 0
      %2620 = vmatprep.subr.bf16.mxu0 0
      %2621 = vmatpush2.bf16.msra.mxu0 0
      %2622 = vmatprep.subr.bf16.mxu0 0
      %2623 = vmatpush2.bf16.msra.mxu0 0
      %2624 = vmatprep.subr.bf16.mxu0 0
      %2625 = vmatpush2.bf16.msra.mxu0 0
      %2626 = vmatprep.subr.bf16.mxu0 0
      %2627 = vmatpush2.bf16.msra.mxu0 0
      %2628 = vmatprep.subr.bf16.mxu0 0
      %2629 = vmatpush2.bf16.msra.mxu0 0
      %2630 = vmatprep.subr.bf16.mxu0 0
      %2631 = vmatpush2.bf16.msra.mxu0 0
      %2632 = vmatprep.mubr.bf16.mxu0 0
      %2633 = vmatmul.mubr.bf16.gmra.mxu0 %v2544
      %v2634 = vpop.f32.mrf.mxu0
      %v2635 = vadd.f32 0.0, %v2634
      %v2636 = vpop.f32.mrf.mxu0
      %v2637 = vpop.f32.mrf.mxu0
      %v2638 = vadd.f32 0.0, %v2637
      %v2639 = vpop.f32.mrf.mxu0
      %2640 = vmatprep.mubr.bf16.mxu0 0
      %2641 = vmatmul.mubr.bf16.gmra.mxu0 %v2547
      %v2642 = vpop.f32.mrf.mxu0
      %v2643 = vadd.f32 0.0, %v2642
      %v2644 = vpop.f32.mrf.mxu0
      %v2645 = vpop.f32.mrf.mxu0
      %v2646 = vadd.f32 0.0, %v2645
      %v2647 = vpop.f32.mrf.mxu0
      %2648 = vmatprep.mubr.bf16.mxu0 0
      %2649 = vmatmul.mubr.bf16.gmra.mxu0 %v2550
      %v2650 = vpop.f32.mrf.mxu0
      %v2651 = vadd.f32 0.0, %v2650
      %v2652 = vpop.f32.mrf.mxu0
      %v2653 = vpop.f32.mrf.mxu0
      %v2654 = vadd.f32 0.0, %v2653
      %v2655 = vpop.f32.mrf.mxu0
      %2656 = vmatprep.mubr.bf16.mxu0 0
      %2657 = vmatmul.mubr.bf16.gmra.mxu0 %v2553
      %v2658 = vpop.f32.mrf.mxu0
      %v2659 = vadd.f32 0.0, %v2658
      %v2660 = vpop.f32.mrf.mxu0
      %v2661 = vpop.f32.mrf.mxu0
      %v2662 = vadd.f32 0.0, %v2661
      %v2663 = vpop.f32.mrf.mxu0
      %2664 = vmatprep.mubr.bf16.mxu0 0
      %2665 = vmatmul.mubr.bf16.gmra.mxu0 %v2556
      %v2666 = vpop.f32.mrf.mxu0
      %v2667 = vadd.f32 0.0, %v2666
      %v2668 = vpop.f32.mrf.mxu0
      %v2669 = vpop.f32.mrf.mxu0
      %v2670 = vadd.f32 0.0, %v2669
      %v2671 = vpop.f32.mrf.mxu0
      %2672 = vmatprep.mubr.bf16.mxu0 0
      %2673 = vmatmul.mubr.bf16.gmra.mxu0 %v2559
      %v2674 = vpop.f32.mrf.mxu0
      %v2675 = vadd.f32 0.0, %v2674
      %v2676 = vpop.f32.mrf.mxu0
      %v2677 = vpop.f32.mrf.mxu0
      %v2678 = vadd.f32 0.0, %v2677
      %v2679 = vpop.f32.mrf.mxu0
      %2680 = vmatprep.mubr.bf16.mxu0 0
      %2681 = vmatmul.mubr.bf16.gmra.mxu0 %v2562
      %v2682 = vpop.f32.mrf.mxu0
      %v2683 = vadd.f32 0.0, %v2682
      %v2684 = vpop.f32.mrf.mxu0
      %v2685 = vpop.f32.mrf.mxu0
      %v2686 = vadd.f32 0.0, %v2685
      %v2687 = vpop.f32.mrf.mxu0
      %2688 = vmatprep.mubr.bf16.mxu0 0
      %2689 = vmatmul.mubr.bf16.gmra.mxu0 %v2565
      %v2690 = vpop.f32.mrf.mxu0
      %v2691 = vadd.f32 0.0, %v2690
      %v2692 = vpop.f32.mrf.mxu0
      %v2693 = vpop.f32.mrf.mxu0
      %v2694 = vadd.f32 0.0, %v2693
      %v2695 = vpop.f32.mrf.mxu0
      %2696 = vmatprep.mubr.bf16.mxu0 0
      %2697 = vmatmul.mubr.bf16.gmra.mxu0 %v2568
      %v2698 = vpop.f32.mrf.mxu0
      %v2699 = vadd.f32 0.0, %v2698
      %v2700 = vpop.f32.mrf.mxu0
      %v2701 = vpop.f32.mrf.mxu0
      %v2702 = vadd.f32 0.0, %v2701
      %v2703 = vpop.f32.mrf.mxu0
      %2704 = vmatprep.mubr.bf16.mxu0 0
      %2705 = vmatmul.mubr.bf16.gmra.mxu0 %v2571
      %v2706 = vpop.f32.mrf.mxu0
      %v2707 = vadd.f32 0.0, %v2706
      %v2708 = vpop.f32.mrf.mxu0
      %v2709 = vpop.f32.mrf.mxu0
      %v2710 = vadd.f32 0.0, %v2709
      %v2711 = vpop.f32.mrf.mxu0
      %2712 = vmatprep.mubr.bf16.mxu0 0
      %2713 = vmatmul.mubr.bf16.gmra.mxu0 %v2574
      %v2714 = vpop.f32.mrf.mxu0
      %v2715 = vadd.f32 0.0, %v2714
      %v2716 = vpop.f32.mrf.mxu0
      %v2717 = vpop.f32.mrf.mxu0
      %v2718 = vadd.f32 0.0, %v2717
      %v2719 = vpop.f32.mrf.mxu0
      %2720 = vmatprep.mubr.bf16.mxu0 0
      %2721 = vmatmul.mubr.bf16.gmra.mxu0 %v2577
      %v2722 = vpop.f32.mrf.mxu0
      %v2723 = vadd.f32 0.0, %v2722
      %v2724 = vpop.f32.mrf.mxu0
      %v2725 = vpop.f32.mrf.mxu0
      %v2726 = vadd.f32 0.0, %v2725
      %v2727 = vpop.f32.mrf.mxu0
      %2728 = vmatprep.mubr.bf16.mxu0 0
      %2729 = vmatmul.mubr.bf16.gmra.mxu0 %v2580
      %v2730 = vpop.f32.mrf.mxu0
      %v2731 = vadd.f32 0.0, %v2730
      %v2732 = vpop.f32.mrf.mxu0
      %v2733 = vpop.f32.mrf.mxu0
      %v2734 = vadd.f32 0.0, %v2733
      %v2735 = vpop.f32.mrf.mxu0
      %2736 = vmatprep.mubr.bf16.mxu0 0
      %2737 = vmatmul.mubr.bf16.gmra.mxu0 %v2583
      %v2738 = vpop.f32.mrf.mxu0
      %v2739 = vadd.f32 0.0, %v2738
      %v2740 = vpop.f32.mrf.mxu0
      %v2741 = vpop.f32.mrf.mxu0
      %v2742 = vadd.f32 0.0, %v2741
      %v2743 = vpop.f32.mrf.mxu0
      %2744 = vmatprep.mubr.bf16.mxu0 0
      %2745 = vmatmul.mubr.bf16.gmra.mxu0 %v2586
      %v2746 = vpop.f32.mrf.mxu0
      %v2747 = vadd.f32 0.0, %v2746
      %v2748 = vpop.f32.mrf.mxu0
      %v2749 = vpop.f32.mrf.mxu0
      %v2750 = vadd.f32 0.0, %v2749
      %v2751 = vpop.f32.mrf.mxu0
      %2752 = vmatprep.mubr.bf16.mxu0 0
      %2753 = vmatmul.mubr.bf16.gmra.mxu0 %v2589
      %v2754 = vpop.f32.mrf.mxu0
      %v2755 = vadd.f32 0.0, %v2754
      %v2756 = vpop.f32.mrf.mxu0
      %v2757 = vpop.f32.mrf.mxu0
      %v2758 = vadd.f32 0.0, %v2757
      %v2759 = vpop.f32.mrf.mxu0
      %2760 = vmatprep.mubr.bf16.mxu0 0
      %2761 = vmatmul.mubr.bf16.gmra.mxu0 %v2592
      %v2762 = vpop.f32.mrf.mxu0
      %v2763 = vadd.f32 0.0, %v2762
      %v2764 = vpop.f32.mrf.mxu0
      %v2765 = vpop.f32.mrf.mxu0
      %v2766 = vadd.f32 0.0, %v2765
      %v2767 = vpop.f32.mrf.mxu0
      %2768 = vmatprep.mubr.bf16.mxu0 0
      %2769 = vmatmul.mubr.bf16.gmra.mxu0 %v2595
      %v2770 = vpop.f32.mrf.mxu0
      %v2771 = vadd.f32 0.0, %v2770
      %v2772 = vpop.f32.mrf.mxu0
      %v2773 = vpop.f32.mrf.mxu0
      %v2774 = vadd.f32 0.0, %v2773
      %v2775 = vpop.f32.mrf.mxu0
      %2776 = vdwg.mxu0
      %v2777 = vadd.f32 %v2451, %v2635
      %v2778 = vadd.f32 %v2452, %v2638
      %v2779 = vadd.f32 %v2453, %v2643
      %v2780 = vadd.f32 %v2454, %v2646
      %v2781 = vadd.f32 %v2455, %v2651
      %v2782 = vadd.f32 %v2456, %v2654
      %v2783 = vadd.f32 %v2457, %v2659
      %v2784 = vadd.f32 %v2458, %v2662
      %v2785 = vadd.f32 %v2459, %v2667
      %v2786 = vadd.f32 %v2460, %v2670
      %v2787 = vadd.f32 %v2461, %v2675
      %v2788 = vadd.f32 %v2462, %v2678
      %v2789 = vadd.f32 %v2463, %v2683
      %v2790 = vadd.f32 %v2464, %v2686
      %v2791 = vadd.f32 %v2465, %v2691
      %v2792 = vadd.f32 %v2466, %v2694
      %v2793 = vadd.f32 %v2467, %v2699
      %v2794 = vadd.f32 %v2468, %v2702
      %v2795 = vadd.f32 %v2469, %v2707
      %v2796 = vadd.f32 %v2470, %v2710
      %v2797 = vadd.f32 %v2471, %v2715
      %v2798 = vadd.f32 %v2472, %v2718
      %v2799 = vadd.f32 %v2473, %v2723
      %v2800 = vadd.f32 %v2474, %v2726
      %v2801 = vadd.f32 %v2475, %v2731
      %v2802 = vadd.f32 %v2476, %v2734
      %v2803 = vadd.f32 %v2477, %v2739
      %v2804 = vadd.f32 %v2478, %v2742
      %v2805 = vadd.f32 %v2479, %v2747
      %v2806 = vadd.f32 %v2480, %v2750
      %v2807 = vadd.f32 %v2481, %v2755
      %v2808 = vadd.f32 %v2482, %v2758
      %v2809 = vadd.f32 %v2483, %v2763
      %v2810 = vadd.f32 %v2484, %v2766
      %v2811 = vadd.f32 %v2485, %v2771
      %v2812 = vadd.f32 %v2486, %v2774
      %v2813 = vld [vmem:[%s260 + $0x13] sm:$0xff]
      %v2814 = vld [vmem:[%s260 + $0x1b] sm:$0xff]
      %v2815 = vld [vmem:[%s260 + $0x23] sm:$0xff]
      %v2816 = vld [vmem:[%s260 + $0x2b] sm:$0xff]
      %v2817 = vld [vmem:[%s260 + $0x33] sm:$0xff]
      %v2818 = vld [vmem:[%s260 + $0x3b] sm:$0xff]
      %v2819 = vld [vmem:[%s260 + $0x43] sm:$0xff]
      %v2820 = vld [vmem:[%s260 + $0x4b] sm:$0xff]
      %v2821 = vld [vmem:[%s260 + $0x53] sm:$0xff]
      %v2822 = vld [vmem:[%s260 + $0x5b] sm:$0xff]
      %v2823 = vld [vmem:[%s260 + $0x63] sm:$0xff]
      %v2824 = vld [vmem:[%s260 + $0x6b] sm:$0xff]
      %v2825 = vld [vmem:[%s260 + $0x73] sm:$0xff]
      %v2826 = vld [vmem:[%s260 + $0x7b] sm:$0xff]
      %v2827 = vld [vmem:[%s260 + $0x83] sm:$0xff]
      %v2828 = vld [vmem:[%s260 + $0x8b] sm:$0xff]
      %v2829 = vld [vmem:[%s260 + $0x93] sm:$0xff]
      %v2830 = vld [vmem:[%s260 + $0x9b] sm:$0xff]
      %v2831 = vld [vmem:[%s260 + $0xa3] sm:$0xff]
      %v2832 = vld [vmem:[%s260 + $0xab] sm:$0xff]
      %v2833 = vld [vmem:[%s260 + $0xb3] sm:$0xff]
      %v2834 = vld [vmem:[%s260 + $0xbb] sm:$0xff]
      %v2835 = vld [vmem:[%s260 + $0xc3] sm:$0xff]
      %v2836 = vld [vmem:[%s260 + $0xcb] sm:$0xff]
      %v2837 = vld [vmem:[%s260 + $0xd3] sm:$0xff]
      %v2838 = vld [vmem:[%s260 + $0xdb] sm:$0xff]
      %v2839 = vld [vmem:[%s260 + $0xe3] sm:$0xff]
      %v2840 = vld [vmem:[%s260 + $0xeb] sm:$0xff]
      %v2841 = vld [vmem:[%s260 + $0xf3] sm:$0xff]
      %v2842 = vld [vmem:[%s260 + $0xfb] sm:$0xff]
      %v2843 = vld [vmem:[%s260 + $0x103] sm:$0xff]
      %v2844 = vld [vmem:[%s260 + $0x10b] sm:$0xff]
      %v2845 = vld [vmem:[%s260 + $0x113] sm:$0xff]
      %v2846 = vld [vmem:[%s260 + $0x11b] sm:$0xff]
      %v2847 = vld [vmem:[%s260 + $0x123] sm:$0xff]
      %v2848 = vld [vmem:[%s260 + $0x12b] sm:$0xff]
      %v2849 = vpack.c.bf16 %v2814, %v2813
      %v2850 = vpack.c.bf16 %v2816, %v2815
      %v2851 = vpack.c.bf16 %v2818, %v2817
      %v2852 = vpack.c.bf16 %v2820, %v2819
      %v2853 = vpack.c.bf16 %v2822, %v2821
      %v2854 = vpack.c.bf16 %v2824, %v2823
      %v2855 = vpack.c.bf16 %v2826, %v2825
      %v2856 = vpack.c.bf16 %v2828, %v2827
      %v2857 = vpack.c.bf16 %v2830, %v2829
      %v2858 = vpack.c.bf16 %v2832, %v2831
      %v2859 = vpack.c.bf16 %v2834, %v2833
      %v2860 = vpack.c.bf16 %v2836, %v2835
      %v2861 = vpack.c.bf16 %v2838, %v2837
      %v2862 = vpack.c.bf16 %v2840, %v2839
      %v2863 = vpack.c.bf16 %v2842, %v2841
      %v2864 = vpack.c.bf16 %v2844, %v2843
      %v2865 = vpack.c.bf16 %v2846, %v2845
      %v2866 = vpack.c.bf16 %v2848, %v2847
      %v2867 = vld [vmem:[%s2] sm:$0xf]
      %v2870 = vunpack.c.l.s4 1983009808
      %v2871 = vunpack.c.0.s8 %v2870
      %v2872 = vlaneseq
      %v2873 = vshrl.u32 %v2872, 7
      %v2874 = vsub.s32 %v2871, %v2873
      %v2875 = vrot.slane %v2867, %v2874
      %v2876 = vcombine.high %v2875, %v2875
      %v2878 = vsel %vm387, %v2849, 0
      %v2881 = vsel %vm387, %v2850, 0
      %v2884 = vsel %vm387, %v2851, 0
      %v2887 = vsel %vm387, %v2852, 0
      %v2890 = vsel %vm387, %v2853, 0
      %v2893 = vsel %vm387, %v2854, 0
      %v2896 = vsel %vm387, %v2855, 0
      %v2899 = vsel %vm387, %v2856, 0
      %v2902 = vsel %vm387, %v2857, 0
      %v2905 = vsel %vm387, %v2858, 0
      %v2908 = vsel %vm387, %v2859, 0
      %v2911 = vsel %vm387, %v2860, 0
      %v2914 = vsel %vm387, %v2861, 0
      %v2917 = vsel %vm387, %v2862, 0
      %v2920 = vsel %vm387, %v2863, 0
      %v2923 = vsel %vm387, %v2864, 0
      %v2926 = vsel %vm387, %v2865, 0
      %v2929 = vsel %vm387, %v2866, 0
      %v2932 = vsel %vm442, %v2875, 0
      %v2935 = vsel %vm442, %v2876, 0
      %2937 = vmatprep.subr.bf16.mxu0 0
      %2938 = vmatpush1.bf16.msra.mxu0 0
      %2939 = vmatprep.subr.bf16.mxu0 0
      %2940 = vmatpush1.bf16.msra.mxu0 0
      %2941 = vmatprep.subr.bf16.mxu0 0
      %2942 = vmatpush1.bf16.msra.mxu0 0
      %2943 = vmatprep.subr.bf16.mxu0 0
      %2944 = vmatpush1.bf16.msra.mxu0 0
      %2945 = vmatprep.subr.bf16.mxu0 0
      %2946 = vmatpush1.bf16.msra.mxu0 0
      %2947 = vmatprep.subr.bf16.mxu0 0
      %2948 = vmatpush1.bf16.msra.mxu0 0
      %2949 = vmatprep.subr.bf16.mxu0 0
      %2950 = vmatpush1.bf16.msra.mxu0 0
      %2951 = vmatprep.subr.bf16.mxu0 %v2935
      %2952 = vmatpush1.bf16.msra.mxu0 %v2932
      %2953 = vmatprep.subr.bf16.mxu0 0
      %2954 = vmatpush2.bf16.msra.mxu0 0
      %2955 = vmatprep.subr.bf16.mxu0 0
      %2956 = vmatpush2.bf16.msra.mxu0 0
      %2957 = vmatprep.subr.bf16.mxu0 0
      %2958 = vmatpush2.bf16.msra.mxu0 0
      %2959 = vmatprep.subr.bf16.mxu0 0
      %2960 = vmatpush2.bf16.msra.mxu0 0
      %2961 = vmatprep.subr.bf16.mxu0 0
      %2962 = vmatpush2.bf16.msra.mxu0 0
      %2963 = vmatprep.subr.bf16.mxu0 0
      %2964 = vmatpush2.bf16.msra.mxu0 0
      %2965 = vmatprep.subr.bf16.mxu0 0
      %2966 = vmatpush2.bf16.msra.mxu0 0
      %2967 = vmatprep.subr.bf16.mxu0 0
      %2968 = vmatpush2.bf16.msra.mxu0 0
      %2969 = vmatprep.mubr.bf16.mxu0 0
      %2970 = vmatmul.mubr.bf16.gmra.mxu0 %v2878
      %v2971 = vpop.f32.mrf.mxu0
      %v2972 = vadd.f32 0.0, %v2971
      %v2973 = vpop.f32.mrf.mxu0
      %v2974 = vadd.f32 0.0, %v2973
      %v2975 = vpop.f32.mrf.mxu0
      %v2976 = vadd.f32 0.0, %v2975
      %v2977 = vpop.f32.mrf.mxu0
      %v2978 = vadd.f32 0.0, %v2977
      %2979 = vmatprep.mubr.bf16.mxu0 0
      %2980 = vmatmul.mubr.bf16.gmra.mxu0 %v2881
      %v2981 = vpop.f32.mrf.mxu0
      %v2982 = vadd.f32 0.0, %v2981
      %v2983 = vpop.f32.mrf.mxu0
      %v2984 = vadd.f32 0.0, %v2983
      %v2985 = vpop.f32.mrf.mxu0
      %v2986 = vadd.f32 0.0, %v2985
      %v2987 = vpop.f32.mrf.mxu0
      %v2988 = vadd.f32 0.0, %v2987
      %2989 = vmatprep.mubr.bf16.mxu0 0
      %2990 = vmatmul.mubr.bf16.gmra.mxu0 %v2884
      %v2991 = vpop.f32.mrf.mxu0
      %v2992 = vadd.f32 0.0, %v2991
      %v2993 = vpop.f32.mrf.mxu0
      %v2994 = vadd.f32 0.0, %v2993
      %v2995 = vpop.f32.mrf.mxu0
      %v2996 = vadd.f32 0.0, %v2995
      %v2997 = vpop.f32.mrf.mxu0
      %v2998 = vadd.f32 0.0, %v2997
      %2999 = vmatprep.mubr.bf16.mxu0 0
      %3000 = vmatmul.mubr.bf16.gmra.mxu0 %v2887
      %v3001 = vpop.f32.mrf.mxu0
      %v3002 = vadd.f32 0.0, %v3001
      %v3003 = vpop.f32.mrf.mxu0
      %v3004 = vadd.f32 0.0, %v3003
      %v3005 = vpop.f32.mrf.mxu0
      %v3006 = vadd.f32 0.0, %v3005
      %v3007 = vpop.f32.mrf.mxu0
      %v3008 = vadd.f32 0.0, %v3007
      %3009 = vmatprep.mubr.bf16.mxu0 0
      %3010 = vmatmul.mubr.bf16.gmra.mxu0 %v2890
      %v3011 = vpop.f32.mrf.mxu0
      %v3012 = vadd.f32 0.0, %v3011
      %v3013 = vpop.f32.mrf.mxu0
      %v3014 = vadd.f32 0.0, %v3013
      %v3015 = vpop.f32.mrf.mxu0
      %v3016 = vadd.f32 0.0, %v3015
      %v3017 = vpop.f32.mrf.mxu0
      %v3018 = vadd.f32 0.0, %v3017
      %3019 = vmatprep.mubr.bf16.mxu0 0
      %3020 = vmatmul.mubr.bf16.gmra.mxu0 %v2893
      %v3021 = vpop.f32.mrf.mxu0
      %v3022 = vadd.f32 0.0, %v3021
      %v3023 = vpop.f32.mrf.mxu0
      %v3024 = vadd.f32 0.0, %v3023
      %v3025 = vpop.f32.mrf.mxu0
      %v3026 = vadd.f32 0.0, %v3025
      %v3027 = vpop.f32.mrf.mxu0
      %v3028 = vadd.f32 0.0, %v3027
      %3029 = vmatprep.mubr.bf16.mxu0 0
      %3030 = vmatmul.mubr.bf16.gmra.mxu0 %v2896
      %v3031 = vpop.f32.mrf.mxu0
      %v3032 = vadd.f32 0.0, %v3031
      %v3033 = vpop.f32.mrf.mxu0
      %v3034 = vadd.f32 0.0, %v3033
      %v3035 = vpop.f32.mrf.mxu0
      %v3036 = vadd.f32 0.0, %v3035
      %v3037 = vpop.f32.mrf.mxu0
      %v3038 = vadd.f32 0.0, %v3037
      %3039 = vmatprep.mubr.bf16.mxu0 0
      %3040 = vmatmul.mubr.bf16.gmra.mxu0 %v2899
      %v3041 = vpop.f32.mrf.mxu0
      %v3042 = vadd.f32 0.0, %v3041
      %v3043 = vpop.f32.mrf.mxu0
      %v3044 = vadd.f32 0.0, %v3043
      %v3045 = vpop.f32.mrf.mxu0
      %v3046 = vadd.f32 0.0, %v3045
      %v3047 = vpop.f32.mrf.mxu0
      %v3048 = vadd.f32 0.0, %v3047
      %3049 = vmatprep.mubr.bf16.mxu0 0
      %3050 = vmatmul.mubr.bf16.gmra.mxu0 %v2902
      %v3051 = vpop.f32.mrf.mxu0
      %v3052 = vadd.f32 0.0, %v3051
      %v3053 = vpop.f32.mrf.mxu0
      %v3054 = vadd.f32 0.0, %v3053
      %v3055 = vpop.f32.mrf.mxu0
      %v3056 = vadd.f32 0.0, %v3055
      %v3057 = vpop.f32.mrf.mxu0
      %v3058 = vadd.f32 0.0, %v3057
      %3059 = vmatprep.mubr.bf16.mxu0 0
      %3060 = vmatmul.mubr.bf16.gmra.mxu0 %v2905
      %v3061 = vpop.f32.mrf.mxu0
      %v3062 = vadd.f32 0.0, %v3061
      %v3063 = vpop.f32.mrf.mxu0
      %v3064 = vadd.f32 0.0, %v3063
      %v3065 = vpop.f32.mrf.mxu0
      %v3066 = vadd.f32 0.0, %v3065
      %v3067 = vpop.f32.mrf.mxu0
      %v3068 = vadd.f32 0.0, %v3067
      %3069 = vmatprep.mubr.bf16.mxu0 0
      %3070 = vmatmul.mubr.bf16.gmra.mxu0 %v2908
      %v3071 = vpop.f32.mrf.mxu0
      %v3072 = vadd.f32 0.0, %v3071
      %v3073 = vpop.f32.mrf.mxu0
      %v3074 = vadd.f32 0.0, %v3073
      %v3075 = vpop.f32.mrf.mxu0
      %v3076 = vadd.f32 0.0, %v3075
      %v3077 = vpop.f32.mrf.mxu0
      %v3078 = vadd.f32 0.0, %v3077
      %3079 = vmatprep.mubr.bf16.mxu0 0
      %3080 = vmatmul.mubr.bf16.gmra.mxu0 %v2911
      %v3081 = vpop.f32.mrf.mxu0
      %v3082 = vadd.f32 0.0, %v3081
      %v3083 = vpop.f32.mrf.mxu0
      %v3084 = vadd.f32 0.0, %v3083
      %v3085 = vpop.f32.mrf.mxu0
      %v3086 = vadd.f32 0.0, %v3085
      %v3087 = vpop.f32.mrf.mxu0
      %v3088 = vadd.f32 0.0, %v3087
      %3089 = vmatprep.mubr.bf16.mxu0 0
      %3090 = vmatmul.mubr.bf16.gmra.mxu0 %v2914
      %v3091 = vpop.f32.mrf.mxu0
      %v3092 = vadd.f32 0.0, %v3091
      %v3093 = vpop.f32.mrf.mxu0
      %v3094 = vadd.f32 0.0, %v3093
      %v3095 = vpop.f32.mrf.mxu0
      %v3096 = vadd.f32 0.0, %v3095
      %v3097 = vpop.f32.mrf.mxu0
      %v3098 = vadd.f32 0.0, %v3097
      %3099 = vmatprep.mubr.bf16.mxu0 0
      %3100 = vmatmul.mubr.bf16.gmra.mxu0 %v2917
      %v3101 = vpop.f32.mrf.mxu0
      %v3102 = vadd.f32 0.0, %v3101
      %v3103 = vpop.f32.mrf.mxu0
      %v3104 = vadd.f32 0.0, %v3103
      %v3105 = vpop.f32.mrf.mxu0
      %v3106 = vadd.f32 0.0, %v3105
      %v3107 = vpop.f32.mrf.mxu0
      %v3108 = vadd.f32 0.0, %v3107
      %3109 = vmatprep.mubr.bf16.mxu0 0
      %3110 = vmatmul.mubr.bf16.gmra.mxu0 %v2920
      %v3111 = vpop.f32.mrf.mxu0
      %v3112 = vadd.f32 0.0, %v3111
      %v3113 = vpop.f32.mrf.mxu0
      %v3114 = vadd.f32 0.0, %v3113
      %v3115 = vpop.f32.mrf.mxu0
      %v3116 = vadd.f32 0.0, %v3115
      %v3117 = vpop.f32.mrf.mxu0
      %v3118 = vadd.f32 0.0, %v3117
      %3119 = vmatprep.mubr.bf16.mxu0 0
      %3120 = vmatmul.mubr.bf16.gmra.mxu0 %v2923
      %v3121 = vpop.f32.mrf.mxu0
      %v3122 = vadd.f32 0.0, %v3121
      %v3123 = vpop.f32.mrf.mxu0
      %v3124 = vadd.f32 0.0, %v3123
      %v3125 = vpop.f32.mrf.mxu0
      %v3126 = vadd.f32 0.0, %v3125
      %v3127 = vpop.f32.mrf.mxu0
      %v3128 = vadd.f32 0.0, %v3127
      %3129 = vmatprep.mubr.bf16.mxu0 0
      %3130 = vmatmul.mubr.bf16.gmra.mxu0 %v2926
      %v3131 = vpop.f32.mrf.mxu0
      %v3132 = vadd.f32 0.0, %v3131
      %v3133 = vpop.f32.mrf.mxu0
      %v3134 = vadd.f32 0.0, %v3133
      %v3135 = vpop.f32.mrf.mxu0
      %v3136 = vadd.f32 0.0, %v3135
      %v3137 = vpop.f32.mrf.mxu0
      %v3138 = vadd.f32 0.0, %v3137
      %3139 = vmatprep.mubr.bf16.mxu0 0
      %3140 = vmatmul.mubr.bf16.gmra.mxu0 %v2929
      %v3141 = vpop.f32.mrf.mxu0
      %v3142 = vadd.f32 0.0, %v3141
      %v3143 = vpop.f32.mrf.mxu0
      %v3144 = vadd.f32 0.0, %v3143
      %v3145 = vpop.f32.mrf.mxu0
      %v3146 = vadd.f32 0.0, %v3145
      %v3147 = vpop.f32.mrf.mxu0
      %v3148 = vadd.f32 0.0, %v3147
      %3149 = vdwg.mxu0
      %v3150 = vadd.f32 %v2777, %v2972
      %v3151 = vadd.f32 %v2778, %v2976
      %v3152 = vadd.f32 %v2779, %v2982
      %v3153 = vadd.f32 %v2780, %v2986
      %v3154 = vadd.f32 %v2781, %v2992
      %v3155 = vadd.f32 %v2782, %v2996
      %v3156 = vadd.f32 %v2783, %v3002
      %v3157 = vadd.f32 %v2784, %v3006
      %v3158 = vadd.f32 %v2785, %v3012
      %v3159 = vadd.f32 %v2786, %v3016
      %v3160 = vadd.f32 %v2787, %v3022
      %v3161 = vadd.f32 %v2788, %v3026
      %v3162 = vadd.f32 %v2789, %v3032
      %v3163 = vadd.f32 %v2790, %v3036
      %v3164 = vadd.f32 %v2791, %v3042
      %v3165 = vadd.f32 %v2792, %v3046
      %v3166 = vadd.f32 %v2793, %v3052
      %v3167 = vadd.f32 %v2794, %v3056
      %v3168 = vadd.f32 %v2795, %v3062
      %v3169 = vadd.f32 %v2796, %v3066
      %v3170 = vadd.f32 %v2797, %v3072
      %v3171 = vadd.f32 %v2798, %v3076
      %v3172 = vadd.f32 %v2799, %v3082
      %v3173 = vadd.f32 %v2800, %v3086
      %v3174 = vadd.f32 %v2801, %v3092
      %v3175 = vadd.f32 %v2802, %v3096
      %v3176 = vadd.f32 %v2803, %v3102
      %v3177 = vadd.f32 %v2804, %v3106
      %v3178 = vadd.f32 %v2805, %v3112
      %v3179 = vadd.f32 %v2806, %v3116
      %v3180 = vadd.f32 %v2807, %v3122
      %v3181 = vadd.f32 %v2808, %v3126
      %v3182 = vadd.f32 %v2809, %v3132
      %v3183 = vadd.f32 %v2810, %v3136
      %v3184 = vadd.f32 %v2811, %v3142
      %v3185 = vadd.f32 %v2812, %v3146
      %v3186 = vld [vmem:[%s3] sm:$0xff]
      %v3187 = vld [vmem:[%s3 + $0x8] sm:$0xff]
      %v3188 = vld [vmem:[%s3 + $0x10] sm:$0xff]
      %v3189 = vld [vmem:[%s3 + $0x18] sm:$0xff]
      %v3190 = vld [vmem:[%s3 + $0x20] sm:$0xff]
      %v3191 = vld [vmem:[%s3 + $0x28] sm:$0xff]
      %v3192 = vld [vmem:[%s3 + $0x30] sm:$0xff]
      %v3193 = vld [vmem:[%s3 + $0x38] sm:$0xff]
      %v3194 = vld [vmem:[%s3 + $0x40] sm:$0xff]
      %v3195 = vld [vmem:[%s3 + $0x48] sm:$0xff]
      %v3196 = vld [vmem:[%s3 + $0x50] sm:$0xff]
      %v3197 = vld [vmem:[%s3 + $0x58] sm:$0xff]
      %v3198 = vld [vmem:[%s3 + $0x60] sm:$0xff]
      %v3199 = vld [vmem:[%s3 + $0x68] sm:$0xff]
      %v3200 = vld [vmem:[%s3 + $0x70] sm:$0xff]
      %v3201 = vld [vmem:[%s3 + $0x78] sm:$0xff]
      %v3202 = vld [vmem:[%s3 + $0x80] sm:$0xff]
      %v3203 = vld [vmem:[%s3 + $0x88] sm:$0xff]
      %v3204 = vld [vmem:[%s3 + $0x90] sm:$0xff]
      %v3205 = vld [vmem:[%s3 + $0x98] sm:$0xff]
      %v3206 = vld [vmem:[%s3 + $0xa0] sm:$0xff]
      %v3207 = vld [vmem:[%s3 + $0xa8] sm:$0xff]
      %v3208 = vld [vmem:[%s3 + $0xb0] sm:$0xff]
      %v3209 = vld [vmem:[%s3 + $0xb8] sm:$0xff]
      %v3210 = vld [vmem:[%s3 + $0xc0] sm:$0xff]
      %v3211 = vld [vmem:[%s3 + $0xc8] sm:$0xff]
      %v3212 = vld [vmem:[%s3 + $0xd0] sm:$0xff]
      %v3213 = vld [vmem:[%s3 + $0xd8] sm:$0xff]
      %v3214 = vld [vmem:[%s3 + $0xe0] sm:$0xff]
      %v3215 = vld [vmem:[%s3 + $0xe8] sm:$0xff]
      %v3216 = vld [vmem:[%s3 + $0xf0] sm:$0xff]
      %v3217 = vld [vmem:[%s3 + $0xf8] sm:$0xff]
      %v3218 = vld [vmem:[%s3 + $0x100] sm:$0xff]
      %v3219 = vld [vmem:[%s3 + $0x108] sm:$0xff]
      %v3220 = vld [vmem:[%s3 + $0x110] sm:$0xff]
      %v3221 = vld [vmem:[%s3 + $0x118] sm:$0xff]
      %3223 = vset.pattern.permute.xlu0 0
      %3224 = vperm.xlu0 %3223, %v3186
      %v3225 = vpop.permute.xlu0 %3224
      %3228 = vset.pattern.permute.xlu0 0
      %3229 = vperm.xlu0 %3228, %v3187
      %v3230 = vpop.permute.xlu0 %3229
      %3233 = vset.pattern.permute.xlu0 0
      %3234 = vperm.xlu0 %3233, %v3188
      %v3235 = vpop.permute.xlu0 %3234
      %3238 = vset.pattern.permute.xlu0 0
      %3239 = vperm.xlu0 %3238, %v3189
      %v3240 = vpop.permute.xlu0 %3239
      %3243 = vset.pattern.permute.xlu0 0
      %3244 = vperm.xlu0 %3243, %v3190
      %v3245 = vpop.permute.xlu0 %3244
      %3248 = vset.pattern.permute.xlu0 0
      %3249 = vperm.xlu0 %3248, %v3191
      %v3250 = vpop.permute.xlu0 %3249
      %3253 = vset.pattern.permute.xlu0 0
      %3254 = vperm.xlu0 %3253, %v3192
      %v3255 = vpop.permute.xlu0 %3254
      %3258 = vset.pattern.permute.xlu0 0
      %3259 = vperm.xlu0 %3258, %v3193
      %v3260 = vpop.permute.xlu0 %3259
      %3263 = vset.pattern.permute.xlu0 0
      %3264 = vperm.xlu0 %3263, %v3194
      %v3265 = vpop.permute.xlu0 %3264
      %3268 = vset.pattern.permute.xlu0 0
      %3269 = vperm.xlu0 %3268, %v3195
      %v3270 = vpop.permute.xlu0 %3269
      %3273 = vset.pattern.permute.xlu0 0
      %3274 = vperm.xlu0 %3273, %v3196
      %v3275 = vpop.permute.xlu0 %3274
      %3278 = vset.pattern.permute.xlu0 0
      %3279 = vperm.xlu0 %3278, %v3197
      %v3280 = vpop.permute.xlu0 %3279
      %3283 = vset.pattern.permute.xlu0 0
      %3284 = vperm.xlu0 %3283, %v3198
      %v3285 = vpop.permute.xlu0 %3284
      %3288 = vset.pattern.permute.xlu0 0
      %3289 = vperm.xlu0 %3288, %v3199
      %v3290 = vpop.permute.xlu0 %3289
      %3293 = vset.pattern.permute.xlu0 0
      %3294 = vperm.xlu0 %3293, %v3200
      %v3295 = vpop.permute.xlu0 %3294
      %3298 = vset.pattern.permute.xlu0 0
      %3299 = vperm.xlu0 %3298, %v3201
      %v3300 = vpop.permute.xlu0 %3299
      %3303 = vset.pattern.permute.xlu0 0
      %3304 = vperm.xlu0 %3303, %v3202
      %v3305 = vpop.permute.xlu0 %3304
      %3308 = vset.pattern.permute.xlu0 0
      %3309 = vperm.xlu0 %3308, %v3203
      %v3310 = vpop.permute.xlu0 %3309
      %3313 = vset.pattern.permute.xlu0 0
      %3314 = vperm.xlu0 %3313, %v3204
      %v3315 = vpop.permute.xlu0 %3314
      %3318 = vset.pattern.permute.xlu0 0
      %3319 = vperm.xlu0 %3318, %v3205
      %v3320 = vpop.permute.xlu0 %3319
      %3323 = vset.pattern.permute.xlu0 0
      %3324 = vperm.xlu0 %3323, %v3206
      %v3325 = vpop.permute.xlu0 %3324
      %3328 = vset.pattern.permute.xlu0 0
      %3329 = vperm.xlu0 %3328, %v3207
      %v3330 = vpop.permute.xlu0 %3329
      %3333 = vset.pattern.permute.xlu0 0
      %3334 = vperm.xlu0 %3333, %v3208
      %v3335 = vpop.permute.xlu0 %3334
      %3338 = vset.pattern.permute.xlu0 0
      %3339 = vperm.xlu0 %3338, %v3209
      %v3340 = vpop.permute.xlu0 %3339
      %3343 = vset.pattern.permute.xlu0 0
      %3344 = vperm.xlu0 %3343, %v3210
      %v3345 = vpop.permute.xlu0 %3344
      %3348 = vset.pattern.permute.xlu0 0
      %3349 = vperm.xlu0 %3348, %v3211
      %v3350 = vpop.permute.xlu0 %3349
      %3353 = vset.pattern.permute.xlu0 0
      %3354 = vperm.xlu0 %3353, %v3212
      %v3355 = vpop.permute.xlu0 %3354
      %3358 = vset.pattern.permute.xlu0 0
      %3359 = vperm.xlu0 %3358, %v3213
      %v3360 = vpop.permute.xlu0 %3359
      %3363 = vset.pattern.permute.xlu0 0
      %3364 = vperm.xlu0 %3363, %v3214
      %v3365 = vpop.permute.xlu0 %3364
      %3368 = vset.pattern.permute.xlu0 0
      %3369 = vperm.xlu0 %3368, %v3215
      %v3370 = vpop.permute.xlu0 %3369
      %3373 = vset.pattern.permute.xlu0 0
      %3374 = vperm.xlu0 %3373, %v3216
      %v3375 = vpop.permute.xlu0 %3374
      %3378 = vset.pattern.permute.xlu0 0
      %3379 = vperm.xlu0 %3378, %v3217
      %v3380 = vpop.permute.xlu0 %3379
      %3383 = vset.pattern.permute.xlu0 0
      %3384 = vperm.xlu0 %3383, %v3218
      %v3385 = vpop.permute.xlu0 %3384
      %3388 = vset.pattern.permute.xlu0 0
      %3389 = vperm.xlu0 %3388, %v3219
      %v3390 = vpop.permute.xlu0 %3389
      %3393 = vset.pattern.permute.xlu0 0
      %3394 = vperm.xlu0 %3393, %v3220
      %v3395 = vpop.permute.xlu0 %3394
      %3398 = vset.pattern.permute.xlu0 0
      %3399 = vperm.xlu0 %3398, %v3221
      %v3400 = vpop.permute.xlu0 %3399
      %v3402 = vmul.f32 %v3150, %v3225
      %v3403 = vmul.f32 %v3151, %v3230
      %v3404 = vmul.f32 %v3152, %v3235
      %v3405 = vmul.f32 %v3153, %v3240
      %v3406 = vmul.f32 %v3154, %v3245
      %v3407 = vmul.f32 %v3155, %v3250
      %v3408 = vmul.f32 %v3156, %v3255
      %v3409 = vmul.f32 %v3157, %v3260
      %v3410 = vmul.f32 %v3158, %v3265
      %v3411 = vmul.f32 %v3159, %v3270
      %v3412 = vmul.f32 %v3160, %v3275
      %v3413 = vmul.f32 %v3161, %v3280
      %v3414 = vmul.f32 %v3162, %v3285
      %v3415 = vmul.f32 %v3163, %v3290
      %v3416 = vmul.f32 %v3164, %v3295
      %v3417 = vmul.f32 %v3165, %v3300
      %v3418 = vmul.f32 %v3166, %v3305
      %v3419 = vmul.f32 %v3167, %v3310
      %v3420 = vmul.f32 %v3168, %v3315
      %v3421 = vmul.f32 %v3169, %v3320
      %v3422 = vmul.f32 %v3170, %v3325
      %v3423 = vmul.f32 %v3171, %v3330
      %v3424 = vmul.f32 %v3172, %v3335
      %v3425 = vmul.f32 %v3173, %v3340
      %v3426 = vmul.f32 %v3174, %v3345
      %v3427 = vmul.f32 %v3175, %v3350
      %v3428 = vmul.f32 %v3176, %v3355
      %v3429 = vmul.f32 %v3177, %v3360
      %v3430 = vmul.f32 %v3178, %v3365
      %v3431 = vmul.f32 %v3179, %v3370
      %v3432 = vmul.f32 %v3180, %v3375
      %v3433 = vmul.f32 %v3181, %v3380
      %v3434 = vmul.f32 %v3182, %v3385
      %v3435 = vmul.f32 %v3183, %v3390
      %v3436 = vmul.f32 %v3184, %v3395
      %v3437 = vmul.f32 %v3185, %v3400
      %v3438 = vmul.f32 %v2974, %v3225
      %v3439 = vmul.f32 %v2978, %v3230
      %v3440 = vmul.f32 %v2984, %v3235
      %v3441 = vmul.f32 %v2988, %v3240
      %v3442 = vmul.f32 %v2994, %v3245
      %v3443 = vmul.f32 %v2998, %v3250
      %v3444 = vmul.f32 %v3004, %v3255
      %v3445 = vmul.f32 %v3008, %v3260
      %v3446 = vmul.f32 %v3014, %v3265
      %v3447 = vmul.f32 %v3018, %v3270
      %v3448 = vmul.f32 %v3024, %v3275
      %v3449 = vmul.f32 %v3028, %v3280
      %v3450 = vmul.f32 %v3034, %v3285
      %v3451 = vmul.f32 %v3038, %v3290
      %v3452 = vmul.f32 %v3044, %v3295
      %v3453 = vmul.f32 %v3048, %v3300
      %v3454 = vmul.f32 %v3054, %v3305
      %v3455 = vmul.f32 %v3058, %v3310
      %v3456 = vmul.f32 %v3064, %v3315
      %v3457 = vmul.f32 %v3068, %v3320
      %v3458 = vmul.f32 %v3074, %v3325
      %v3459 = vmul.f32 %v3078, %v3330
      %v3460 = vmul.f32 %v3084, %v3335
      %v3461 = vmul.f32 %v3088, %v3340
      %v3462 = vmul.f32 %v3094, %v3345
      %v3463 = vmul.f32 %v3098, %v3350
      %v3464 = vmul.f32 %v3104, %v3355
      %v3465 = vmul.f32 %v3108, %v3360
      %v3466 = vmul.f32 %v3114, %v3365
      %v3467 = vmul.f32 %v3118, %v3370
      %v3468 = vmul.f32 %v3124, %v3375
      %v3469 = vmul.f32 %v3128, %v3380
      %v3470 = vmul.f32 %v3134, %v3385
      %v3471 = vmul.f32 %v3138, %v3390
      %v3472 = vmul.f32 %v3144, %v3395
      %v3473 = vmul.f32 %v3148, %v3400
      %v3474 = vadd.f32 %v3402, %v3403
      %v3475 = vadd.f32 %v3474, %v3404
      %v3476 = vadd.f32 %v3475, %v3405
      %v3477 = vadd.f32 %v3476, %v3406
      %v3478 = vadd.f32 %v3477, %v3407
      %v3479 = vadd.f32 %v3478, %v3408
      %v3480 = vadd.f32 %v3479, %v3409
      %v3481 = vadd.f32 %v3480, %v3410
      %v3482 = vadd.f32 %v3481, %v3411
      %v3483 = vadd.f32 %v3482, %v3412
      %v3484 = vadd.f32 %v3483, %v3413
      %v3485 = vadd.f32 %v3484, %v3414
      %v3486 = vadd.f32 %v3485, %v3415
      %v3487 = vadd.f32 %v3486, %v3416
      %v3488 = vadd.f32 %v3487, %v3417
      %v3489 = vadd.f32 %v3488, %v3418
      %v3490 = vadd.f32 %v3489, %v3419
      %v3491 = vadd.f32 %v3490, %v3420
      %v3492 = vadd.f32 %v3491, %v3421
      %v3493 = vadd.f32 %v3492, %v3422
      %v3494 = vadd.f32 %v3493, %v3423
      %v3495 = vadd.f32 %v3494, %v3424
      %v3496 = vadd.f32 %v3495, %v3425
      %v3497 = vadd.f32 %v3496, %v3426
      %v3498 = vadd.f32 %v3497, %v3427
      %v3499 = vadd.f32 %v3498, %v3428
      %v3500 = vadd.f32 %v3499, %v3429
      %v3501 = vadd.f32 %v3500, %v3430
      %v3502 = vadd.f32 %v3501, %v3431
      %v3503 = vadd.f32 %v3502, %v3432
      %v3504 = vadd.f32 %v3503, %v3433
      %v3505 = vadd.f32 %v3504, %v3434
      %v3506 = vadd.f32 %v3505, %v3435
      %v3507 = vadd.f32 %v3506, %v3436
      %v3508 = vadd.f32 %v3507, %v3437
      %v3509 = vrot.slane %v3508, 4
      %v3510 = vadd.f32 %v3508, %v3509
      %v3511 = vrot.slane %v3510, 2
      %v3512 = vadd.f32 %v3510, %v3511
      %v3513 = vrot.slane %v3512, 1
      %v3514 = vadd.f32 %v3512, %v3513
      %3515 = vst [vmem:[%s274] sm:$0x1] %v3514
      %v3516 = vmul.f32 %v3402, %v3402
      %v3517 = vmul.f32 %v3403, %v3403
      %v3518 = vmul.f32 %v3404, %v3404
      %v3519 = vmul.f32 %v3405, %v3405
      %v3520 = vmul.f32 %v3406, %v3406
      %v3521 = vmul.f32 %v3407, %v3407
      %v3522 = vmul.f32 %v3408, %v3408
      %v3523 = vmul.f32 %v3409, %v3409
      %v3524 = vmul.f32 %v3410, %v3410
      %v3525 = vmul.f32 %v3411, %v3411
      %v3526 = vmul.f32 %v3412, %v3412
      %v3527 = vmul.f32 %v3413, %v3413
      %v3528 = vmul.f32 %v3414, %v3414
      %v3529 = vmul.f32 %v3415, %v3415
      %v3530 = vmul.f32 %v3416, %v3416
      %v3531 = vmul.f32 %v3417, %v3417
      %v3532 = vmul.f32 %v3418, %v3418
      %v3533 = vmul.f32 %v3419, %v3419
      %v3534 = vmul.f32 %v3420, %v3420
      %v3535 = vmul.f32 %v3421, %v3421
      %v3536 = vmul.f32 %v3422, %v3422
      %v3537 = vmul.f32 %v3423, %v3423
      %v3538 = vmul.f32 %v3424, %v3424
      %v3539 = vmul.f32 %v3425, %v3425
      %v3540 = vmul.f32 %v3426, %v3426
      %v3541 = vmul.f32 %v3427, %v3427
      %v3542 = vmul.f32 %v3428, %v3428
      %v3543 = vmul.f32 %v3429, %v3429
      %v3544 = vmul.f32 %v3430, %v3430
      %v3545 = vmul.f32 %v3431, %v3431
      %v3546 = vmul.f32 %v3432, %v3432
      %v3547 = vmul.f32 %v3433, %v3433
      %v3548 = vmul.f32 %v3434, %v3434
      %v3549 = vmul.f32 %v3435, %v3435
      %v3550 = vmul.f32 %v3436, %v3436
      %v3551 = vmul.f32 %v3437, %v3437
      %v3552 = vadd.f32 %v3516, %v3517
      %v3553 = vadd.f32 %v3552, %v3518
      %v3554 = vadd.f32 %v3553, %v3519
      %v3555 = vadd.f32 %v3554, %v3520
      %v3556 = vadd.f32 %v3555, %v3521
      %v3557 = vadd.f32 %v3556, %v3522
      %v3558 = vadd.f32 %v3557, %v3523
      %v3559 = vadd.f32 %v3558, %v3524
      %v3560 = vadd.f32 %v3559, %v3525
      %v3561 = vadd.f32 %v3560, %v3526
      %v3562 = vadd.f32 %v3561, %v3527
      %v3563 = vadd.f32 %v3562, %v3528
      %v3564 = vadd.f32 %v3563, %v3529
      %v3565 = vadd.f32 %v3564, %v3530
      %v3566 = vadd.f32 %v3565, %v3531
      %v3567 = vadd.f32 %v3566, %v3532
      %v3568 = vadd.f32 %v3567, %v3533
      %v3569 = vadd.f32 %v3568, %v3534
      %v3570 = vadd.f32 %v3569, %v3535
      %v3571 = vadd.f32 %v3570, %v3536
      %v3572 = vadd.f32 %v3571, %v3537
      %v3573 = vadd.f32 %v3572, %v3538
      %v3574 = vadd.f32 %v3573, %v3539
      %v3575 = vadd.f32 %v3574, %v3540
      %v3576 = vadd.f32 %v3575, %v3541
      %v3577 = vadd.f32 %v3576, %v3542
      %v3578 = vadd.f32 %v3577, %v3543
      %v3579 = vadd.f32 %v3578, %v3544
      %v3580 = vadd.f32 %v3579, %v3545
      %v3581 = vadd.f32 %v3580, %v3546
      %v3582 = vadd.f32 %v3581, %v3547
      %v3583 = vadd.f32 %v3582, %v3548
      %v3584 = vadd.f32 %v3583, %v3549
      %v3585 = vadd.f32 %v3584, %v3550
      %v3586 = vadd.f32 %v3585, %v3551
      %v3587 = vrot.slane %v3586, 4
      %v3588 = vadd.f32 %v3586, %v3587
      %v3589 = vrot.slane %v3588, 2
      %v3590 = vadd.f32 %v3588, %v3589
      %v3591 = vrot.slane %v3590, 1
      %v3592 = vadd.f32 %v3590, %v3591
      %3593 = vst [vmem:[%s274 + $0x1] sm:$0x1] %v3592
      %v3594 = vadd.f32 %v3438, %v3439
      %v3595 = vadd.f32 %v3594, %v3440
      %v3596 = vadd.f32 %v3595, %v3441
      %v3597 = vadd.f32 %v3596, %v3442
      %v3598 = vadd.f32 %v3597, %v3443
      %v3599 = vadd.f32 %v3598, %v3444
      %v3600 = vadd.f32 %v3599, %v3445
      %v3601 = vadd.f32 %v3600, %v3446
      %v3602 = vadd.f32 %v3601, %v3447
      %v3603 = vadd.f32 %v3602, %v3448
      %v3604 = vadd.f32 %v3603, %v3449
      %v3605 = vadd.f32 %v3604, %v3450
      %v3606 = vadd.f32 %v3605, %v3451
      %v3607 = vadd.f32 %v3606, %v3452
      %v3608 = vadd.f32 %v3607, %v3453
      %v3609 = vadd.f32 %v3608, %v3454
      %v3610 = vadd.f32 %v3609, %v3455
      %v3611 = vadd.f32 %v3610, %v3456
      %v3612 = vadd.f32 %v3611, %v3457
      %v3613 = vadd.f32 %v3612, %v3458
      %v3614 = vadd.f32 %v3613, %v3459
      %v3615 = vadd.f32 %v3614, %v3460
      %v3616 = vadd.f32 %v3615, %v3461
      %v3617 = vadd.f32 %v3616, %v3462
      %v3618 = vadd.f32 %v3617, %v3463
      %v3619 = vadd.f32 %v3618, %v3464
      %v3620 = vadd.f32 %v3619, %v3465
      %v3621 = vadd.f32 %v3620, %v3466
      %v3622 = vadd.f32 %v3621, %v3467
      %v3623 = vadd.f32 %v3622, %v3468
      %v3624 = vadd.f32 %v3623, %v3469
      %v3625 = vadd.f32 %v3624, %v3470
      %v3626 = vadd.f32 %v3625, %v3471
      %v3627 = vadd.f32 %v3626, %v3472
      %v3628 = vadd.f32 %v3627, %v3473
      %v3629 = vrot.slane %v3628, 4
      %v3630 = vadd.f32 %v3628, %v3629
      %v3631 = vrot.slane %v3630, 2
      %v3632 = vadd.f32 %v3630, %v3631
      %v3633 = vrot.slane %v3632, 1
      %v3634 = vadd.f32 %v3632, %v3633
      %3635 = vst [vmem:[%s274 + $0x2] sm:$0x1] %v3634
      %v3636 = vmul.f32 %v3438, %v3438
      %v3637 = vmul.f32 %v3439, %v3439
      %v3638 = vmul.f32 %v3440, %v3440
      %v3639 = vmul.f32 %v3441, %v3441
      %v3640 = vmul.f32 %v3442, %v3442
      %v3641 = vmul.f32 %v3443, %v3443
      %v3642 = vmul.f32 %v3444, %v3444
      %v3643 = vmul.f32 %v3445, %v3445
      %v3644 = vmul.f32 %v3446, %v3446
      %v3645 = vmul.f32 %v3447, %v3447
      %v3646 = vmul.f32 %v3448, %v3448
      %v3647 = vmul.f32 %v3449, %v3449
      %v3648 = vmul.f32 %v3450, %v3450
      %v3649 = vmul.f32 %v3451, %v3451
      %v3650 = vmul.f32 %v3452, %v3452
      %v3651 = vmul.f32 %v3453, %v3453
      %v3652 = vmul.f32 %v3454, %v3454
      %v3653 = vmul.f32 %v3455, %v3455
      %v3654 = vmul.f32 %v3456, %v3456
      %v3655 = vmul.f32 %v3457, %v3457
      %v3656 = vmul.f32 %v3458, %v3458
      %v3657 = vmul.f32 %v3459, %v3459
      %v3658 = vmul.f32 %v3460, %v3460
      %v3659 = vmul.f32 %v3461, %v3461
      %v3660 = vmul.f32 %v3462, %v3462
      %v3661 = vmul.f32 %v3463, %v3463
      %v3662 = vmul.f32 %v3464, %v3464
      %v3663 = vmul.f32 %v3465, %v3465
      %v3664 = vmul.f32 %v3466, %v3466
      %v3665 = vmul.f32 %v3467, %v3467
      %v3666 = vmul.f32 %v3468, %v3468
      %v3667 = vmul.f32 %v3469, %v3469
      %v3668 = vmul.f32 %v3470, %v3470
      %v3669 = vmul.f32 %v3471, %v3471
      %v3670 = vmul.f32 %v3472, %v3472
      %v3671 = vmul.f32 %v3473, %v3473
      %v3672 = vadd.f32 %v3636, %v3637
      %v3673 = vadd.f32 %v3672, %v3638
      %v3674 = vadd.f32 %v3673, %v3639
      %v3675 = vadd.f32 %v3674, %v3640
      %v3676 = vadd.f32 %v3675, %v3641
      %v3677 = vadd.f32 %v3676, %v3642
      %v3678 = vadd.f32 %v3677, %v3643
      %v3679 = vadd.f32 %v3678, %v3644
      %v3680 = vadd.f32 %v3679, %v3645
      %v3681 = vadd.f32 %v3680, %v3646
      %v3682 = vadd.f32 %v3681, %v3647
      %v3683 = vadd.f32 %v3682, %v3648
      %v3684 = vadd.f32 %v3683, %v3649
      %v3685 = vadd.f32 %v3684, %v3650
      %v3686 = vadd.f32 %v3685, %v3651
      %v3687 = vadd.f32 %v3686, %v3652
      %v3688 = vadd.f32 %v3687, %v3653
      %v3689 = vadd.f32 %v3688, %v3654
      %v3690 = vadd.f32 %v3689, %v3655
      %v3691 = vadd.f32 %v3690, %v3656
      %v3692 = vadd.f32 %v3691, %v3657
      %v3693 = vadd.f32 %v3692, %v3658
      %v3694 = vadd.f32 %v3693, %v3659
      %v3695 = vadd.f32 %v3694, %v3660
      %v3696 = vadd.f32 %v3695, %v3661
      %v3697 = vadd.f32 %v3696, %v3662
      %v3698 = vadd.f32 %v3697, %v3663
      %v3699 = vadd.f32 %v3698, %v3664
      %v3700 = vadd.f32 %v3699, %v3665
      %v3701 = vadd.f32 %v3700, %v3666
      %v3702 = vadd.f32 %v3701, %v3667
      %v3703 = vadd.f32 %v3702, %v3668
      %v3704 = vadd.f32 %v3703, %v3669
      %v3705 = vadd.f32 %v3704, %v3670
      %v3706 = vadd.f32 %v3705, %v3671
      %v3707 = vrot.slane %v3706, 4
      %v3708 = vadd.f32 %v3706, %v3707
      %v3709 = vrot.slane %v3708, 2
      %v3710 = vadd.f32 %v3708, %v3709
      %v3711 = vrot.slane %v3710, 1
      %v3712 = vadd.f32 %v3710, %v3711
      %3713 = vst [vmem:[%s274 + $0x3] sm:$0x1] %v3712
      %3714 = vst [vmem:[%s265] sm:$0xff] 0.0
      %3715 = vst [vmem:[%s265 + $0x8] sm:$0xff] 0.0
      %3716 = vst [vmem:[%s265 + $0x10] sm:$0x7] 0.0
      %3717 = vst [vmem:[%s265 + $0x13] sm:$0xff] %v3402
      %3718 = vst [vmem:[%s265 + $0x1b] sm:$0xff] %v3403
      %3719 = vst [vmem:[%s265 + $0x23] sm:$0xff] %v3404
      %3720 = vst [vmem:[%s265 + $0x2b] sm:$0xff] %v3405
      %3721 = vst [vmem:[%s265 + $0x33] sm:$0xff] %v3406
      %3722 = vst [vmem:[%s265 + $0x3b] sm:$0xff] %v3407
      %3723 = vst [vmem:[%s265 + $0x43] sm:$0xff] %v3408
      %3724 = vst [vmem:[%s265 + $0x4b] sm:$0xff] %v3409
      %3725 = vst [vmem:[%s265 + $0x53] sm:$0xff] %v3410
      %3726 = vst [vmem:[%s265 + $0x5b] sm:$0xff] %v3411
      %3727 = vst [vmem:[%s265 + $0x63] sm:$0xff] %v3412
      %3728 = vst [vmem:[%s265 + $0x6b] sm:$0xff] %v3413
      %3729 = vst [vmem:[%s265 + $0x73] sm:$0xff] %v3414
      %3730 = vst [vmem:[%s265 + $0x7b] sm:$0xff] %v3415
      %3731 = vst [vmem:[%s265 + $0x83] sm:$0xff] %v3416
      %3732 = vst [vmem:[%s265 + $0x8b] sm:$0xff] %v3417
      %3733 = vst [vmem:[%s265 + $0x93] sm:$0xff] %v3418
      %3734 = vst [vmem:[%s265 + $0x9b] sm:$0xff] %v3419
      %3735 = vst [vmem:[%s265 + $0xa3] sm:$0xff] %v3420
      %3736 = vst [vmem:[%s265 + $0xab] sm:$0xff] %v3421
      %3737 = vst [vmem:[%s265 + $0xb3] sm:$0xff] %v3422
      %3738 = vst [vmem:[%s265 + $0xbb] sm:$0xff] %v3423
      %3739 = vst [vmem:[%s265 + $0xc3] sm:$0xff] %v3424
      %3740 = vst [vmem:[%s265 + $0xcb] sm:$0xff] %v3425
      %3741 = vst [vmem:[%s265 + $0xd3] sm:$0xff] %v3426
      %3742 = vst [vmem:[%s265 + $0xdb] sm:$0xff] %v3427
      %3743 = vst [vmem:[%s265 + $0xe3] sm:$0xff] %v3428
      %3744 = vst [vmem:[%s265 + $0xeb] sm:$0xff] %v3429
      %3745 = vst [vmem:[%s265 + $0xf3] sm:$0xff] %v3430
      %3746 = vst [vmem:[%s265 + $0xfb] sm:$0xff] %v3431
      %3747 = vst [vmem:[%s265 + $0x103] sm:$0xff] %v3432
      %3748 = vst [vmem:[%s265 + $0x10b] sm:$0xff] %v3433
      %3749 = vst [vmem:[%s265 + $0x113] sm:$0xff] %v3434
      %3750 = vst [vmem:[%s265 + $0x11b] sm:$0xff] %v3435
      %3751 = vst [vmem:[%s265 + $0x123] sm:$0xff] %v3436
      %3752 = vst [vmem:[%s265 + $0x12b] sm:$0xff] %v3437
      %3753 = vst [vmem:[%s265 + $0x133] sm:$0xff] 0.0
      %3754 = vst [vmem:[%s265 + $0x13b] sm:$0xff] 0.0
      %3755 = vst [vmem:[%s265 + $0x143] sm:$0x1f] 0.0
      %v3756 = vpack.c.bf16 %v3439, %v3438
      %v3757 = vpack.c.bf16 %v3441, %v3440
      %v3758 = vpack.c.bf16 %v3443, %v3442
      %v3759 = vpack.c.bf16 %v3445, %v3444
      %v3760 = vpack.c.bf16 %v3447, %v3446
      %v3761 = vpack.c.bf16 %v3449, %v3448
      %v3762 = vpack.c.bf16 %v3451, %v3450
      %v3763 = vpack.c.bf16 %v3453, %v3452
      %v3764 = vpack.c.bf16 %v3455, %v3454
      %v3765 = vpack.c.bf16 %v3457, %v3456
      %v3766 = vpack.c.bf16 %v3459, %v3458
      %v3767 = vpack.c.bf16 %v3461, %v3460
      %v3768 = vpack.c.bf16 %v3463, %v3462
      %v3769 = vpack.c.bf16 %v3465, %v3464
      %v3770 = vpack.c.bf16 %v3467, %v3466
      %v3771 = vpack.c.bf16 %v3469, %v3468
      %v3772 = vpack.c.bf16 %v3471, %v3470
      %v3773 = vpack.c.bf16 %v3473, %v3472
      %v3792 = vunpack.c.l.b16 %v3756
      %v3793 = vunpack.c.h.b16 %v3756
      %v3794 = vunpack.c.l.b16 %v3757
      %v3795 = vunpack.c.h.b16 %v3757
      %v3796 = vunpack.c.l.b16 %v3758
      %v3797 = vunpack.c.h.b16 %v3758
      %v3798 = vunpack.c.l.b16 %v3759
      %v3799 = vunpack.c.h.b16 %v3759
      %v3800 = vunpack.c.l.b16 %v3760
      %v3801 = vunpack.c.h.b16 %v3760
      %v3802 = vunpack.c.l.b16 %v3761
      %v3803 = vunpack.c.h.b16 %v3761
      %v3804 = vunpack.c.l.b16 %v3762
      %v3805 = vunpack.c.h.b16 %v3762
      %v3806 = vunpack.c.l.b16 %v3763
      %v3807 = vunpack.c.h.b16 %v3763
      %v3808 = vunpack.c.l.b16 %v3764
      %v3809 = vunpack.c.h.b16 %v3764
      %v3810 = vunpack.c.l.b16 %v3765
      %v3811 = vunpack.c.h.b16 %v3765
      %v3812 = vunpack.c.l.b16 %v3766
      %v3813 = vunpack.c.h.b16 %v3766
      %v3814 = vunpack.c.l.b16 %v3767
      %v3815 = vunpack.c.h.b16 %v3767
      %v3816 = vunpack.c.l.b16 %v3768
      %v3817 = vunpack.c.h.b16 %v3768
      %v3818 = vunpack.c.l.b16 %v3769
      %v3819 = vunpack.c.h.b16 %v3769
      %v3820 = vunpack.c.l.b16 %v3770
      %v3821 = vunpack.c.h.b16 %v3770
      %v3822 = vunpack.c.l.b16 %v3771
      %v3823 = vunpack.c.h.b16 %v3771
      %v3824 = vunpack.c.l.b16 %v3772
      %v3825 = vunpack.c.h.b16 %v3772
      %v3826 = vunpack.c.l.b16 %v3773
      %v3827 = vunpack.c.h.b16 %v3773
      %v3828 = vpack.c.b16 %v3792, %v3792
      %v3829 = vpack.c.b16 %v3793, %v3793
      %v3830 = vpack.c.b16 %v3794, %v3794
      %v3831 = vpack.c.b16 %v3795, %v3795
      %v3832 = vpack.c.b16 %v3796, %v3796
      %v3833 = vpack.c.b16 %v3797, %v3797
      %v3834 = vpack.c.b16 %v3798, %v3798
      %v3835 = vpack.c.b16 %v3799, %v3799
      %v3836 = vpack.c.b16 %v3800, %v3800
      %v3837 = vpack.c.b16 %v3801, %v3801
      %v3838 = vpack.c.b16 %v3802, %v3802
      %v3839 = vpack.c.b16 %v3803, %v3803
      %v3840 = vpack.c.b16 %v3804, %v3804
      %v3841 = vpack.c.b16 %v3805, %v3805
      %v3842 = vpack.c.b16 %v3806, %v3806
      %v3843 = vpack.c.b16 %v3807, %v3807
      %v3844 = vpack.c.b16 %v3808, %v3808
      %v3845 = vpack.c.b16 %v3809, %v3809
      %v3846 = vpack.c.b16 %v3810, %v3810
      %v3847 = vpack.c.b16 %v3811, %v3811
      %v3848 = vpack.c.b16 %v3812, %v3812
      %v3849 = vpack.c.b16 %v3813, %v3813
      %v3850 = vpack.c.b16 %v3814, %v3814
      %v3851 = vpack.c.b16 %v3815, %v3815
      %v3852 = vpack.c.b16 %v3816, %v3816
      %v3853 = vpack.c.b16 %v3817, %v3817
      %v3854 = vpack.c.b16 %v3818, %v3818
      %v3855 = vpack.c.b16 %v3819, %v3819
      %v3856 = vpack.c.b16 %v3820, %v3820
      %v3857 = vpack.c.b16 %v3821, %v3821
      %v3858 = vpack.c.b16 %v3822, %v3822
      %v3859 = vpack.c.b16 %v3823, %v3823
      %v3860 = vpack.c.b16 %v3824, %v3824
      %v3861 = vpack.c.b16 %v3825, %v3825
      %v3862 = vpack.c.b16 %v3826, %v3826
      %v3863 = vpack.c.b16 %v3827, %v3827
      %3900 = vst [vmem:[%s270] sm:$0xf] %v3828
      %3901 = vst [vmem:[%s270 + $0x4] sm:$0xf] %v3829
      %3902 = vst [vmem:[%s270 + $0x8] sm:$0xf] %v3830
      %3903 = vst [vmem:[%s270 + $0xc] sm:$0xf] %v3831
      %3904 = vst [vmem:[%s270 + $0x10] sm:$0xf] %v3832
      %3905 = vst [vmem:[%s270 + $0x14] sm:$0xf] %v3833
      %3906 = vst [vmem:[%s270 + $0x18] sm:$0xf] %v3834
      %3907 = vst [vmem:[%s270 + $0x1c] sm:$0xf] %v3835
      %3908 = vst [vmem:[%s270 + $0x20] sm:$0xf] %v3836
      %3909 = vst [vmem:[%s270 + $0x24] sm:$0xf] %v3837
      %3910 = vst [vmem:[%s270 + $0x28] sm:$0xf] %v3838
      %3911 = vst [vmem:[%s270 + $0x2c] sm:$0xf] %v3839
      %3912 = vst [vmem:[%s270 + $0x30] sm:$0xf] %v3840
      %3913 = vst [vmem:[%s270 + $0x34] sm:$0xf] %v3841
      %3914 = vst [vmem:[%s270 + $0x38] sm:$0xf] %v3842
      %3915 = vst [vmem:[%s270 + $0x3c] sm:$0xf] %v3843
      %3916 = vst [vmem:[%s270 + $0x40] sm:$0xf] %v3844
      %3917 = vst [vmem:[%s270 + $0x44] sm:$0xf] %v3845
      %3918 = vst [vmem:[%s270 + $0x48] sm:$0xf] %v3846
      %3919 = vst [vmem:[%s270 + $0x4c] sm:$0xf] %v3847
      %3920 = vst [vmem:[%s270 + $0x50] sm:$0xf] %v3848
      %3921 = vst [vmem:[%s270 + $0x54] sm:$0xf] %v3849
      %3922 = vst [vmem:[%s270 + $0x58] sm:$0xf] %v3850
      %3923 = vst [vmem:[%s270 + $0x5c] sm:$0xf] %v3851
      %3924 = vst [vmem:[%s270 + $0x60] sm:$0xf] %v3852
      %3925 = vst [vmem:[%s270 + $0x64] sm:$0xf] %v3853
      %3926 = vst [vmem:[%s270 + $0x68] sm:$0xf] %v3854
      %3927 = vst [vmem:[%s270 + $0x6c] sm:$0xf] %v3855
      %3928 = vst [vmem:[%s270 + $0x70] sm:$0xf] %v3856
      %3929 = vst [vmem:[%s270 + $0x74] sm:$0xf] %v3857
      %3930 = vst [vmem:[%s270 + $0x78] sm:$0xf] %v3858
      %3931 = vst [vmem:[%s270 + $0x7c] sm:$0xf] %v3859
      %3932 = vst [vmem:[%s270 + $0x80] sm:$0xf] %v3860
      %3933 = vst [vmem:[%s270 + $0x84] sm:$0xf] %v3861
      %3934 = vst [vmem:[%s270 + $0x88] sm:$0xf] %v3862
      %3935 = vst [vmem:[%s270 + $0x8c] sm:$0xf] %v3863
      %p3936 = scmp.lt.s32.totalorder %s18, 1
      %s3937 = scalar_select %p3936, %s18, 1
      %s3938 = smul.addr %s3937, 41
      %s3939 = smul.addr %s3938, 8
      %s3940 = scalar_lea.vmem %s4, %s3939
      %p3941 = scmp.lt.s32.totalorder %s18, 1
      %s3942 = scalar_select %p3941, %s18, 1
      %s3943 = smul.addr %s3942, 36
      %s3944 = smul.addr %s3943, 4
      %s3945 = scalar_lea.vmem %s5, %s3944
      %p3946 = scmp.lt.s32.totalorder %s18, 1
      %s3947 = scalar_select %p3946, %s18, 1
      %s3948 = smul.addr %s3947, 4
      %s3949 = scalar_lea.vmem %s6, %s3948
      // Predicated region
      $region37: #{residual_block_forward.3} parent=35 // pred_check
        %p3950 = pneg %p125
      $region38: #{residual_block_forward.3} parent=35 // pred_check_branch
        %3952 = sbr.rel (%p3950) target = $region40
      $region39: #{residual_block_forward.3} parent=35 // pred_region
        _
      $region40: #{residual_block_forward.3} parent=35 // pred_fallthru
        _
      // Predicated region
      $region41: #{residual_block_forward.3} parent=35 // pred_check
        %p3953 = pneg %p151
      $region42: #{residual_block_forward.3} parent=35 // pred_check_branch
        %3955 = sbr.rel (%p3953) target = $region44
      $region43: #{residual_block_forward.3} parent=35 // pred_region
        _
      $region44: #{residual_block_forward.3} parent=35 // pred_fallthru
        _
      // Predicated region
      $region45: #{residual_block_forward.3} parent=35 // pred_check
        %p3956 = pneg %p177
      $region46: #{residual_block_forward.3} parent=35 // pred_check_branch
        %3958 = sbr.rel (%p3956) target = $region48
      $region47: #{residual_block_forward.3} parent=35 // pred_region
        _
      $region48: #{residual_block_forward.3} parent=35 // pred_fallthru
        _
    $region36: #{residual_block_forward.3} parent=5 // pred_fallthru
      _
    %p3959 = scmp.le.s32.totalorder 2, %s13
    // Predicated region
    $region49: #{residual_block_forward.3} parent=5 // pred_check
      %p3960 = pneg %p3959
    $region50: #{residual_block_forward.3} parent=5 // pred_check_branch
      %3962 = sbr.rel (%p3960) target = $region52
    $region51: #{residual_block_forward.3} parent=5 // pred_region
      %s3963 = ssub.s32 %s13, 2
      // Predicated region
      $region53: #{residual_block_forward.3} parent=51 // pred_check
        %p3964 = pneg %p131
      $region54: #{residual_block_forward.3} parent=51 // pred_check_branch
        %3966 = sbr.rel (%p3964) target = $region56
      $region55: #{residual_block_forward.3} parent=51 // pred_region
        %p3967 = scmp.lt.s32.totalorder %s19, 1
        %s3968 = scalar_select %p3967, %s19, 1
        %s3969 = smul.addr %s3968, 41
        %s3970 = smul.addr %s3969, 8
        %s3971 = scalar_lea.vmem %s4, %s3970
      $region56: #{residual_block_forward.3} parent=51 // pred_fallthru
        _
      // Predicated region
      $region57: #{residual_block_forward.3} parent=51 // pred_check
        %p3972 = pneg %p157
      $region58: #{residual_block_forward.3} parent=51 // pred_check_branch
        %3974 = sbr.rel (%p3972) target = $region60
      $region59: #{residual_block_forward.3} parent=51 // pred_region
        %p3975 = scmp.lt.s32.totalorder %s19, 1
        %s3976 = scalar_select %p3975, %s19, 1
        %s3977 = smul.addr %s3976, 36
        %s3978 = smul.addr %s3977, 4
        %s3979 = scalar_lea.vmem %s5, %s3978
      $region60: #{residual_block_forward.3} parent=51 // pred_fallthru
        _
      // Predicated region
      $region61: #{residual_block_forward.3} parent=51 // pred_check
        %p3980 = pneg %p183
      $region62: #{residual_block_forward.3} parent=51 // pred_check_branch
        %3982 = sbr.rel (%p3980) target = $region64
      $region63: #{residual_block_forward.3} parent=51 // pred_region
        %p3983 = scmp.lt.s32.totalorder %s19, 1
        %s3984 = scalar_select %p3983, %s19, 1
        %s3985 = smul.addr %s3984, 4
        %s3986 = scalar_lea.vmem %s6, %s3985
      $region64: #{residual_block_forward.3} parent=51 // pred_fallthru
        _
    $region52: #{residual_block_forward.3} parent=5 // pred_fallthru
      _
  $region6: #{residual_block_forward.3} parent=0 // loop_footer
    %s17 = sadd.s32 1, %s13
  $region7: #{residual_block_forward.3} parent=0 // loop_footer_branch
    %12 = sbr.rel target = $region3
  $region8: #{residual_block_forward.3} parent=0 // loop_exit
    _

// kernel: residual_block_forward.4
$region0: #{residual_block_forward.4}
  #allocation0 [shape = 'u32[]', space=smem, size = 0x4, offset = 0x4, fixed_abs, tag = 'smem constant byte address 0x4 - core index']
  #allocation1 [shape = 'u32[144,128]{1,0:T(1,128)}', space=vmem, size = 0x12000, scoped, tag = 'internal scratch']
  #allocation2 [shape = 'f32[328,128]{1,0:T(8,128)}', space=vmem, size = 0x29000, scoped, tag = 'scratch operand']
  %s0 = inlined_call_operand.vmem [shape: f32[2,328,128], index: 0, kind: input, shape index: {}]
  %s1 = inlined_call_operand.vmem [shape: f32[1,128], index: 1, kind: input, shape index: {}]
  %s2 = inlined_call_operand.vmem [shape: f32[1,128], index: 2, kind: input, shape index: {}]
  %s3 = inlined_call_operand.vmem [shape: bf16[9,128,128], index: 3, kind: input, shape index: {}]
  %s4 = inlined_call_operand.vmem [shape: f32[328,1], index: 4, kind: input, shape index: {}]
  %s5 = inlined_call_operand.vmem [shape: f32[288,1], index: 5, kind: input, shape index: {}]
  %s6 = inlined_call_operand.vmem [shape: f32[2,328,128], index: 6, kind: output, shape index: {0}]
  %s7 = inlined_call_operand.vmem [shape: f32[2,2,128], index: 7, kind: output, shape index: {1}]
  %8 = xla_tuple %s6, %s7
  %s9 = sld [smem:[#allocation0]]
  $region65: #{residual_block_forward.4} parent=0
    _
  %s11 = ssub.s32 1, %s9
  %s12 = scalar_select 0, %s11, %s9
  loop: start=0, step=1, limit=4
  $region2: #{residual_block_forward.4} parent=0 // loop_pre_header
    _
  $region3: #{residual_block_forward.4} parent=0 // loop_header
    %s14 = sphi 0, %s18
    %p15 = scmp.ge.s32.totalorder %s14, 4
    %s24 = sphi 0, %s26
    %s27 = sphi 0, %s24
    %s28 = sphi 0, %s27
    %s44 = sphi 0, %s28
    %s48 = sphi 0, %s48
    %s50 = sphi 0, %s48
    %s51 = sphi 0, %s50
    %s65 = sphi 0, %s51
    %s69 = sphi 0, %s69
    %s71 = sphi 0, %s69
    %s72 = sphi 0, %s71
    %s86 = sphi 0, %s72
    %s90 = sphi 0, %s90
    %s92 = sphi 0, %s90
    %s93 = sphi 0, %s92
    %s107 = sphi 0, %s93
    %s111 = sphi 0, %s111
    %s113 = sphi 0, %s111
    %s114 = sphi 0, %s113
    %s128 = sphi 0, %s114
    %s132 = sphi 0, %s132
    %s134 = sphi 0, %s132
    %s135 = sphi 0, %s134
    %s149 = sphi 0, %s135
    %s155 = sphi 0, %s157
    %s158 = sphi 0, %s155
    %s159 = sphi 0, %s158
    %s175 = sphi 0, %s159
    %s181 = sphi 0, %s183
    %s184 = sphi 0, %s181
    %s185 = sphi 0, %s184
    %s201 = sphi 0, %s185
  $region4: #{residual_block_forward.4} parent=0 // loop_header_branch
    %17 = sbr.rel (%p15) target = $region8
  $region5: #{residual_block_forward.4} parent=0 // loop_body
    %s19 = ssub.s32 %s14, 1
    %s20 = ssub.s32 %s14, 2
    %s21 = sadd.s32 %s14, 1
    %s22 = ssub.s32 %s14, %s21
    %p23 = scmp.eq.s32.totalorder %s22, 0
    %s25 = sadd.s32 %s24, 1
    %s26 = scalar_select %p23, %s24, %s25
    %p29 = pneg %p23
    %p30 = scmp.eq.s32.totalorder %s14, 1
    %p31 = por %p29, %p30
    %p32 = scmp.ne.s32.totalorder %s24, %s27
    %p33 = scmp.eq.s32.totalorder %s14, 0
    %p34 = por %p32, %p33
    %p35 = scmp.ne.s32.totalorder %s24, %s27
    %p36 = scmp.eq.s32.totalorder %s19, 1
    %p37 = por %p35, %p36
    %p38 = scmp.ne.s32.totalorder %s27, %s28
    %p39 = scmp.eq.s32.totalorder %s19, 0
    %p40 = por %p38, %p39
    %p41 = scmp.ne.s32.totalorder %s27, %s28
    %p42 = scmp.eq.s32.totalorder %s20, 1
    %p43 = por %p41, %p42
    %p45 = scmp.ne.s32.totalorder %s28, %s44
    %p46 = scmp.eq.s32.totalorder %s20, 0
    %p47 = por %p45, %p46
    %s49 = sadd.s32 %s48, 1
    %p52 = scmp.eq.s32.totalorder %s14, 1
    %p53 = scmp.ne.s32.totalorder %s48, %s50
    %p54 = scmp.eq.s32.totalorder %s14, 0
    %p55 = por %p53, %p54
    %p56 = scmp.ne.s32.totalorder %s48, %s50
    %p57 = scmp.eq.s32.totalorder %s19, 1
    %p58 = por %p56, %p57
    %p59 = scmp.ne.s32.totalorder %s50, %s51
    %p60 = scmp.eq.s32.totalorder %s19, 0
    %p61 = por %p59, %p60
    %p62 = scmp.ne.s32.totalorder %s50, %s51
    %p63 = scmp.eq.s32.totalorder %s20, 1
    %p64 = por %p62, %p63
    %p66 = scmp.ne.s32.totalorder %s51, %s65
    %p67 = scmp.eq.s32.totalorder %s20, 0
    %p68 = por %p66, %p67
    %s70 = sadd.s32 %s69, 1
    %p73 = scmp.eq.s32.totalorder %s14, 1
    %p74 = scmp.ne.s32.totalorder %s69, %s71
    %p75 = scmp.eq.s32.totalorder %s14, 0
    %p76 = por %p74, %p75
    %p77 = scmp.ne.s32.totalorder %s69, %s71
    %p78 = scmp.eq.s32.totalorder %s19, 1
    %p79 = por %p77, %p78
    %p80 = scmp.ne.s32.totalorder %s71, %s72
    %p81 = scmp.eq.s32.totalorder %s19, 0
    %p82 = por %p80, %p81
    %p83 = scmp.ne.s32.totalorder %s71, %s72
    %p84 = scmp.eq.s32.totalorder %s20, 1
    %p85 = por %p83, %p84
    %p87 = scmp.ne.s32.totalorder %s72, %s86
    %p88 = scmp.eq.s32.totalorder %s20, 0
    %p89 = por %p87, %p88
    %s91 = sadd.s32 %s90, 1
    %p94 = scmp.eq.s32.totalorder %s14, 1
    %p95 = scmp.ne.s32.totalorder %s90, %s92
    %p96 = scmp.eq.s32.totalorder %s14, 0
    %p97 = por %p95, %p96
    %p98 = scmp.ne.s32.totalorder %s90, %s92
    %p99 = scmp.eq.s32.totalorder %s19, 1
    %p100 = por %p98, %p99
    %p101 = scmp.ne.s32.totalorder %s92, %s93
    %p102 = scmp.eq.s32.totalorder %s19, 0
    %p103 = por %p101, %p102
    %p104 = scmp.ne.s32.totalorder %s92, %s93
    %p105 = scmp.eq.s32.totalorder %s20, 1
    %p106 = por %p104, %p105
    %p108 = scmp.ne.s32.totalorder %s93, %s107
    %p109 = scmp.eq.s32.totalorder %s20, 0
    %p110 = por %p108, %p109
    %s112 = sadd.s32 %s111, 1
    %p115 = scmp.eq.s32.totalorder %s14, 1
    %p116 = scmp.ne.s32.totalorder %s111, %s113
    %p117 = scmp.eq.s32.totalorder %s14, 0
    %p118 = por %p116, %p117
    %p119 = scmp.ne.s32.totalorder %s111, %s113
    %p120 = scmp.eq.s32.totalorder %s19, 1
    %p121 = por %p119, %p120
    %p122 = scmp.ne.s32.totalorder %s113, %s114
    %p123 = scmp.eq.s32.totalorder %s19, 0
    %p124 = por %p122, %p123
    %p125 = scmp.ne.s32.totalorder %s113, %s114
    %p126 = scmp.eq.s32.totalorder %s20, 1
    %p127 = por %p125, %p126
    %p129 = scmp.ne.s32.totalorder %s114, %s128
    %p130 = scmp.eq.s32.totalorder %s20, 0
    %p131 = por %p129, %p130
    %s133 = sadd.s32 %s132, 1
    %p136 = scmp.eq.s32.totalorder %s14, 1
    %p137 = scmp.ne.s32.totalorder %s132, %s134
    %p138 = scmp.eq.s32.totalorder %s14, 0
    %p139 = por %p137, %p138
    %p140 = scmp.ne.s32.totalorder %s132, %s134
    %p141 = scmp.eq.s32.totalorder %s19, 1
    %p142 = por %p140, %p141
    %p143 = scmp.ne.s32.totalorder %s134, %s135
    %p144 = scmp.eq.s32.totalorder %s19, 0
    %p145 = por %p143, %p144
    %p146 = scmp.ne.s32.totalorder %s134, %s135
    %p147 = scmp.eq.s32.totalorder %s20, 1
    %p148 = por %p146, %p147
    %p150 = scmp.ne.s32.totalorder %s135, %s149
    %p151 = scmp.eq.s32.totalorder %s20, 0
    %p152 = por %p150, %p151
    %s153 = ssub.s32 %s14, %s21
    %p154 = scmp.eq.s32.totalorder %s153, 0
    %s156 = sadd.s32 %s155, 1
    %s157 = scalar_select %p154, %s155, %s156
    %p160 = pneg %p154
    %p161 = scmp.eq.s32.totalorder %s14, 1
    %p162 = por %p160, %p161
    %p163 = scmp.ne.s32.totalorder %s155, %s158
    %p164 = scmp.eq.s32.totalorder %s14, 0
    %p165 = por %p163, %p164
    %p166 = scmp.ne.s32.totalorder %s155, %s158
    %p167 = scmp.eq.s32.totalorder %s19, 1
    %p168 = por %p166, %p167
    %p169 = scmp.ne.s32.totalorder %s158, %s159
    %p170 = scmp.eq.s32.totalorder %s19, 0
    %p171 = por %p169, %p170
    %p172 = scmp.ne.s32.totalorder %s158, %s159
    %p173 = scmp.eq.s32.totalorder %s20, 1
    %p174 = por %p172, %p173
    %p176 = scmp.ne.s32.totalorder %s159, %s175
    %p177 = scmp.eq.s32.totalorder %s20, 0
    %p178 = por %p176, %p177
    %s179 = ssub.s32 %s14, %s21
    %p180 = scmp.eq.s32.totalorder %s179, 0
    %s182 = sadd.s32 %s181, 1
    %s183 = scalar_select %p180, %s181, %s182
    %p186 = pneg %p180
    %p187 = scmp.eq.s32.totalorder %s14, 1
    %p188 = por %p186, %p187
    %p189 = scmp.ne.s32.totalorder %s181, %s184
    %p190 = scmp.eq.s32.totalorder %s14, 0
    %p191 = por %p189, %p190
    %p192 = scmp.ne.s32.totalorder %s181, %s184
    %p193 = scmp.eq.s32.totalorder %s19, 1
    %p194 = por %p192, %p193
    %p195 = scmp.ne.s32.totalorder %s184, %s185
    %p196 = scmp.eq.s32.totalorder %s19, 0
    %p197 = por %p195, %p196
    %p198 = scmp.ne.s32.totalorder %s184, %s185
    %p199 = scmp.eq.s32.totalorder %s20, 1
    %p200 = por %p198, %p199
    %p202 = scmp.ne.s32.totalorder %s185, %s201
    %p203 = scmp.eq.s32.totalorder %s20, 0
    %p204 = por %p202, %p203
    %p205 = scmp.le.s32.totalorder 1, %s14
    %p206 = scmp.lt.s32.totalorder %s14, 3
    %p207 = pnand %p205, %p206
    %p208 = pneg %p207
    // Predicated region
    $region9: #{residual_block_forward.4} parent=5 // pred_check
      _
    $region10: #{residual_block_forward.4} parent=5 // pred_check_branch
      %210 = sbr.rel (%p207) target = $region12
    $region11: #{residual_block_forward.4} parent=5 // pred_region
      %s211 = ssub.s32 %s14, 1
      // Predicated region
      $region13: #{residual_block_forward.4} parent=11 // pred_check
        %p212 = pneg %p61
      $region14: #{residual_block_forward.4} parent=11 // pred_check_branch
        %214 = sbr.rel (%p212) target = $region16
      $region15: #{residual_block_forward.4} parent=11 // pred_region
        _
      $region16: #{residual_block_forward.4} parent=11 // pred_fallthru
        _
      // Predicated region
      $region17: #{residual_block_forward.4} parent=11 // pred_check
        %p215 = pneg %p82
      $region18: #{residual_block_forward.4} parent=11 // pred_check_branch
        %217 = sbr.rel (%p215) target = $region20
      $region19: #{residual_block_forward.4} parent=11 // pred_region
        _
      $region20: #{residual_block_forward.4} parent=11 // pred_fallthru
        _
      // Predicated region
      $region21: #{residual_block_forward.4} parent=11 // pred_check
        %p218 = pneg %p103
      $region22: #{residual_block_forward.4} parent=11 // pred_check_branch
        %220 = sbr.rel (%p218) target = $region24
      $region23: #{residual_block_forward.4} parent=11 // pred_region
        _
      $region24: #{residual_block_forward.4} parent=11 // pred_fallthru
        _
      // Predicated region
      $region25: #{residual_block_forward.4} parent=11 // pred_check
        %p221 = pneg %p124
      $region26: #{residual_block_forward.4} parent=11 // pred_check_branch
        %223 = sbr.rel (%p221) target = $region28
      $region27: #{residual_block_forward.4} parent=11 // pred_region
        _
      $region28: #{residual_block_forward.4} parent=11 // pred_fallthru
        _
      // Predicated region
      $region29: #{residual_block_forward.4} parent=11 // pred_check
        %p224 = pneg %p145
      $region30: #{residual_block_forward.4} parent=11 // pred_check_branch
        %226 = sbr.rel (%p224) target = $region32
      $region31: #{residual_block_forward.4} parent=11 // pred_region
        _
      $region32: #{residual_block_forward.4} parent=11 // pred_fallthru
        _
    $region12: #{residual_block_forward.4} parent=5 // pred_fallthru
      _
    %p227 = scmp.lt.s32.totalorder %s14, 2
    // Predicated region
    $region33: #{residual_block_forward.4} parent=5 // pred_check
      %p228 = pneg %p227
    $region34: #{residual_block_forward.4} parent=5 // pred_check_branch
      %230 = sbr.rel (%p228) target = $region36
    $region35: #{residual_block_forward.4} parent=5 // pred_region
      // Predicated region
      $region37: #{residual_block_forward.4} parent=35 // pred_check
        %p231 = pneg %p34
      $region38: #{residual_block_forward.4} parent=35 // pred_check_branch
        %233 = sbr.rel (%p231) target = $region40
      $region39: #{residual_block_forward.4} parent=35 // pred_region
        %p234 = scmp.lt.s32.totalorder %s14, 1
        %s235 = scalar_select %p234, %s14, 1
        %s236 = smul.addr %s235, 41
        %s237 = smul.addr %s236, 8
        %s238 = scalar_lea.vmem %s0, %s237
      $region40: #{residual_block_forward.4} parent=35 // pred_fallthru
        _
    $region36: #{residual_block_forward.4} parent=5 // pred_fallthru
      _
    %p239 = scmp.le.s32.totalorder 1, %s14
    %p240 = scmp.lt.s32.totalorder %s14, 3
    %p241 = pnand %p239, %p240
    %p242 = pneg %p241
    // Predicated region
    $region41: #{residual_block_forward.4} parent=5 // pred_check
      _
    $region42: #{residual_block_forward.4} parent=5 // pred_check_branch
      %244 = sbr.rel (%p241) target = $region44
    $region43: #{residual_block_forward.4} parent=5 // pred_region
      %s245 = ssub.s32 %s14, 1
      %p246 = scmp.lt.s32.totalorder %s19, 1
      %s247 = scalar_select %p246, %s19, 1
      %s248 = smul.addr %s247, 41
      %s249 = smul.addr %s248, 8
      %s250 = scalar_lea.vmem %s0, %s249
      %p251 = pneg %p40
      %p252 = pneg %p37
      %p253 = pneg %p61
      %p254 = pneg %p58
      %p255 = pneg %p82
      %p256 = pneg %p79
      %p257 = pneg %p103
      %p258 = pneg %p100
      %p259 = pneg %p124
      %p260 = pneg %p121
      %p261 = pneg %p145
      %p262 = pneg %p142
      %p263 = pneg %p171
      %p264 = pneg %p168
      %p265 = scmp.lt.s32.totalorder %s19, 1
      %s266 = scalar_select %p265, %s19, 1
      %s267 = smul.addr %s266, 41
      %s268 = smul.addr %s267, 8
      %s269 = scalar_lea.vmem %s6, %s268
      %p270 = pneg %p197
      %p271 = pneg %p194
      %p272 = scmp.lt.s32.totalorder %s19, 1
      %s273 = scalar_select %p272, %s19, 1
      %s274 = smul.addr %s273, 2
      %s275 = scalar_lea.vmem %s7, %s274
      %p276 = scmp.lt.s32.totalorder %s19, 1
      %s277 = scalar_select %p276, %s19, 1
      %s278 = smul.addr %s277, 41
      %s279 = smul.addr %s278, 8
      %s280 = scalar_lea.vmem %s0, %s279
      %p281 = scmp.lt.s32.totalorder %s19, 1
      %s282 = scalar_select %p281, %s19, 1
      %s283 = smul.addr %s282, 41
      %s284 = smul.addr %s283, 8
      %s285 = scalar_lea.vmem %s6, %s284
      %p286 = scmp.lt.s32.totalorder %s19, 1
      %s287 = scalar_select %p286, %s19, 1
      %s288 = smul.addr %s287, 2
      %s289 = scalar_lea.vmem %s7, %s288
      %v291 = vld [vmem:[%s280] sm:$0xff]
      %v292 = vld [vmem:[%s280 + $0x8] sm:$0xff]
      %v293 = vld [vmem:[%s280 + $0x10] sm:$0xff]
      %v294 = vld [vmem:[%s280 + $0x18] sm:$0xff]
      %v295 = vld [vmem:[%s280 + $0x20] sm:$0xff]
      %v296 = vld [vmem:[%s280 + $0x28] sm:$0xff]
      %v297 = vld [vmem:[%s280 + $0x30] sm:$0xff]
      %v298 = vld [vmem:[%s280 + $0x38] sm:$0xff]
      %v299 = vld [vmem:[%s280 + $0x40] sm:$0xff]
      %v300 = vld [vmem:[%s280 + $0x48] sm:$0xff]
      %v301 = vld [vmem:[%s280 + $0x50] sm:$0xff]
      %v302 = vld [vmem:[%s280 + $0x58] sm:$0xff]
      %v303 = vld [vmem:[%s280 + $0x60] sm:$0xff]
      %v304 = vld [vmem:[%s280 + $0x68] sm:$0xff]
      %v305 = vld [vmem:[%s280 + $0x70] sm:$0xff]
      %v306 = vld [vmem:[%s280 + $0x78] sm:$0xff]
      %v307 = vld [vmem:[%s280 + $0x80] sm:$0xff]
      %v308 = vld [vmem:[%s280 + $0x88] sm:$0xff]
      %v309 = vld [vmem:[%s280 + $0x90] sm:$0xff]
      %v310 = vld [vmem:[%s280 + $0x98] sm:$0xff]
      %v311 = vld [vmem:[%s280 + $0xa0] sm:$0xff]
      %v312 = vld [vmem:[%s280 + $0xa8] sm:$0xff]
      %v313 = vld [vmem:[%s280 + $0xb0] sm:$0xff]
      %v314 = vld [vmem:[%s280 + $0xb8] sm:$0xff]
      %v315 = vld [vmem:[%s280 + $0xc0] sm:$0xff]
      %v316 = vld [vmem:[%s280 + $0xc8] sm:$0xff]
      %v317 = vld [vmem:[%s280 + $0xd0] sm:$0xff]
      %v318 = vld [vmem:[%s280 + $0xd8] sm:$0xff]
      %v319 = vld [vmem:[%s280 + $0xe0] sm:$0xff]
      %v320 = vld [vmem:[%s280 + $0xe8] sm:$0xff]
      %v321 = vld [vmem:[%s280 + $0xf0] sm:$0xff]
      %v322 = vld [vmem:[%s280 + $0xf8] sm:$0xff]
      %v323 = vld [vmem:[%s280 + $0x100] sm:$0xff]
      %v324 = vld [vmem:[%s280 + $0x108] sm:$0xff]
      %v325 = vld [vmem:[%s280 + $0x110] sm:$0xff]
      %v326 = vld [vmem:[%s280 + $0x118] sm:$0xff]
      %v327 = vld [vmem:[%s280 + $0x120] sm:$0xff]
      %v328 = vld [vmem:[%s280 + $0x128] sm:$0xff]
      %v329 = vld [vmem:[%s280 + $0x130] sm:$0xff]
      %v330 = vld [vmem:[%s280 + $0x138] sm:$0xff]
      %v331 = vld [vmem:[%s280 + $0x140] sm:$0xff]
      %v332 = vld [vmem:[%s1] sm:$0x1]
      %v334 = vlaneseq
      %v335 = vshrl.u32 %v334, 7
      %v336 = vsub.s32 0, %v335
      %v337 = vrot.slane %v332, %v336
      %v339 = vmul.f32 %v291, %v337
      %v340 = vmul.f32 %v292, %v337
      %v341 = vmul.f32 %v293, %v337
      %v342 = vmul.f32 %v294, %v337
      %v343 = vmul.f32 %v295, %v337
      %v344 = vmul.f32 %v296, %v337
      %v345 = vmul.f32 %v297, %v337
      %v346 = vmul.f32 %v298, %v337
      %v347 = vmul.f32 %v299, %v337
      %v348 = vmul.f32 %v300, %v337
      %v349 = vmul.f32 %v301, %v337
      %v350 = vmul.f32 %v302, %v337
      %v351 = vmul.f32 %v303, %v337
      %v352 = vmul.f32 %v304, %v337
      %v353 = vmul.f32 %v305, %v337
      %v354 = vmul.f32 %v306, %v337
      %v355 = vmul.f32 %v307, %v337
      %v356 = vmul.f32 %v308, %v337
      %v357 = vmul.f32 %v309, %v337
      %v358 = vmul.f32 %v310, %v337
      %v359 = vmul.f32 %v311, %v337
      %v360 = vmul.f32 %v312, %v337
      %v361 = vmul.f32 %v313, %v337
      %v362 = vmul.f32 %v314, %v337
      %v363 = vmul.f32 %v315, %v337
      %v364 = vmul.f32 %v316, %v337
      %v365 = vmul.f32 %v317, %v337
      %v366 = vmul.f32 %v318, %v337
      %v367 = vmul.f32 %v319, %v337
      %v368 = vmul.f32 %v320, %v337
      %v369 = vmul.f32 %v321, %v337
      %v370 = vmul.f32 %v322, %v337
      %v371 = vmul.f32 %v323, %v337
      %v372 = vmul.f32 %v324, %v337
      %v373 = vmul.f32 %v325, %v337
      %v374 = vmul.f32 %v326, %v337
      %v375 = vmul.f32 %v327, %v337
      %v376 = vmul.f32 %v328, %v337
      %v377 = vmul.f32 %v329, %v337
      %v378 = vmul.f32 %v330, %v337
      %v379 = vmul.f32 %v331, %v337
      %v380 = vld [vmem:[%s2] sm:$0x1]
      %v382 = vlaneseq
      %v383 = vshrl.u32 %v382, 7
      %v384 = vsub.s32 0, %v383
      %v385 = vrot.slane %v380, %v384
      %v387 = vadd.f32 %v339, %v385
      %v388 = vadd.f32 %v340, %v385
      %v389 = vadd.f32 %v341, %v385
      %v390 = vadd.f32 %v342, %v385
      %v391 = vadd.f32 %v343, %v385
      %v392 = vadd.f32 %v344, %v385
      %v393 = vadd.f32 %v345, %v385
      %v394 = vadd.f32 %v346, %v385
      %v395 = vadd.f32 %v347, %v385
      %v396 = vadd.f32 %v348, %v385
      %v397 = vadd.f32 %v349, %v385
      %v398 = vadd.f32 %v350, %v385
      %v399 = vadd.f32 %v351, %v385
      %v400 = vadd.f32 %v352, %v385
      %v401 = vadd.f32 %v353, %v385
      %v402 = vadd.f32 %v354, %v385
      %v403 = vadd.f32 %v355, %v385
      %v404 = vadd.f32 %v356, %v385
      %v405 = vadd.f32 %v357, %v385
      %v406 = vadd.f32 %v358, %v385
      %v407 = vadd.f32 %v359, %v385
      %v408 = vadd.f32 %v360, %v385
      %v409 = vadd.f32 %v361, %v385
      %v410 = vadd.f32 %v362, %v385
      %v411 = vadd.f32 %v363, %v385
      %v412 = vadd.f32 %v364, %v385
      %v413 = vadd.f32 %v365, %v385
      %v414 = vadd.f32 %v366, %v385
      %v415 = vadd.f32 %v367, %v385
      %v416 = vadd.f32 %v368, %v385
      %v417 = vadd.f32 %v369, %v385
      %v418 = vadd.f32 %v370, %v385
      %v419 = vadd.f32 %v371, %v385
      %v420 = vadd.f32 %v372, %v385
      %v421 = vadd.f32 %v373, %v385
      %v422 = vadd.f32 %v374, %v385
      %v423 = vadd.f32 %v375, %v385
      %v424 = vadd.f32 %v376, %v385
      %v425 = vadd.f32 %v377, %v385
      %v426 = vadd.f32 %v378, %v385
      %v427 = vadd.f32 %v379, %v385
      %v428 = vmax.f32 %v387, 0.0
      %v429 = vmax.f32 %v388, 0.0
      %v430 = vmax.f32 %v389, 0.0
      %v431 = vmax.f32 %v390, 0.0
      %v432 = vmax.f32 %v391, 0.0
      %v433 = vmax.f32 %v392, 0.0
      %v434 = vmax.f32 %v393, 0.0
      %v435 = vmax.f32 %v394, 0.0
      %v436 = vmax.f32 %v395, 0.0
      %v437 = vmax.f32 %v396, 0.0
      %v438 = vmax.f32 %v397, 0.0
      %v439 = vmax.f32 %v398, 0.0
      %v440 = vmax.f32 %v399, 0.0
      %v441 = vmax.f32 %v400, 0.0
      %v442 = vmax.f32 %v401, 0.0
      %v443 = vmax.f32 %v402, 0.0
      %v444 = vmax.f32 %v403, 0.0
      %v445 = vmax.f32 %v404, 0.0
      %v446 = vmax.f32 %v405, 0.0
      %v447 = vmax.f32 %v406, 0.0
      %v448 = vmax.f32 %v407, 0.0
      %v449 = vmax.f32 %v408, 0.0
      %v450 = vmax.f32 %v409, 0.0
      %v451 = vmax.f32 %v410, 0.0
      %v452 = vmax.f32 %v411, 0.0
      %v453 = vmax.f32 %v412, 0.0
      %v454 = vmax.f32 %v413, 0.0
      %v455 = vmax.f32 %v414, 0.0
      %v456 = vmax.f32 %v415, 0.0
      %v457 = vmax.f32 %v416, 0.0
      %v458 = vmax.f32 %v417, 0.0
      %v459 = vmax.f32 %v418, 0.0
      %v460 = vmax.f32 %v419, 0.0
      %v461 = vmax.f32 %v420, 0.0
      %v462 = vmax.f32 %v421, 0.0
      %v463 = vmax.f32 %v422, 0.0
      %v464 = vmax.f32 %v423, 0.0
      %v465 = vmax.f32 %v424, 0.0
      %v466 = vmax.f32 %v425, 0.0
      %v467 = vmax.f32 %v426, 0.0
      %v468 = vmax.f32 %v427, 0.0
      %v469 = vld [vmem:[%s4] sm:$0xff]
      %v470 = vld [vmem:[%s4 + $0x8] sm:$0xff]
      %v471 = vld [vmem:[%s4 + $0x10] sm:$0xff]
      %v472 = vld [vmem:[%s4 + $0x18] sm:$0xff]
      %v473 = vld [vmem:[%s4 + $0x20] sm:$0xff]
      %v474 = vld [vmem:[%s4 + $0x28] sm:$0xff]
      %v475 = vld [vmem:[%s4 + $0x30] sm:$0xff]
      %v476 = vld [vmem:[%s4 + $0x38] sm:$0xff]
      %v477 = vld [vmem:[%s4 + $0x40] sm:$0xff]
      %v478 = vld [vmem:[%s4 + $0x48] sm:$0xff]
      %v479 = vld [vmem:[%s4 + $0x50] sm:$0xff]
      %v480 = vld [vmem:[%s4 + $0x58] sm:$0xff]
      %v481 = vld [vmem:[%s4 + $0x60] sm:$0xff]
      %v482 = vld [vmem:[%s4 + $0x68] sm:$0xff]
      %v483 = vld [vmem:[%s4 + $0x70] sm:$0xff]
      %v484 = vld [vmem:[%s4 + $0x78] sm:$0xff]
      %v485 = vld [vmem:[%s4 + $0x80] sm:$0xff]
      %v486 = vld [vmem:[%s4 + $0x88] sm:$0xff]
      %v487 = vld [vmem:[%s4 + $0x90] sm:$0xff]
      %v488 = vld [vmem:[%s4 + $0x98] sm:$0xff]
      %v489 = vld [vmem:[%s4 + $0xa0] sm:$0xff]
      %v490 = vld [vmem:[%s4 + $0xa8] sm:$0xff]
      %v491 = vld [vmem:[%s4 + $0xb0] sm:$0xff]
      %v492 = vld [vmem:[%s4 + $0xb8] sm:$0xff]
      %v493 = vld [vmem:[%s4 + $0xc0] sm:$0xff]
      %v494 = vld [vmem:[%s4 + $0xc8] sm:$0xff]
      %v495 = vld [vmem:[%s4 + $0xd0] sm:$0xff]
      %v496 = vld [vmem:[%s4 + $0xd8] sm:$0xff]
      %v497 = vld [vmem:[%s4 + $0xe0] sm:$0xff]
      %v498 = vld [vmem:[%s4 + $0xe8] sm:$0xff]
      %v499 = vld [vmem:[%s4 + $0xf0] sm:$0xff]
      %v500 = vld [vmem:[%s4 + $0xf8] sm:$0xff]
      %v501 = vld [vmem:[%s4 + $0x100] sm:$0xff]
      %v502 = vld [vmem:[%s4 + $0x108] sm:$0xff]
      %v503 = vld [vmem:[%s4 + $0x110] sm:$0xff]
      %v504 = vld [vmem:[%s4 + $0x118] sm:$0xff]
      %v505 = vld [vmem:[%s4 + $0x120] sm:$0xff]
      %v506 = vld [vmem:[%s4 + $0x128] sm:$0xff]
      %v507 = vld [vmem:[%s4 + $0x130] sm:$0xff]
      %v508 = vld [vmem:[%s4 + $0x138] sm:$0xff]
      %v509 = vld [vmem:[%s4 + $0x140] sm:$0xff]
      %511 = vset.pattern.permute.xlu0 0
      %512 = vperm.xlu0 %511, %v469
      %v513 = vpop.permute.xlu0 %512
      %516 = vset.pattern.permute.xlu0 0
      %517 = vperm.xlu0 %516, %v470
      %v518 = vpop.permute.xlu0 %517
      %521 = vset.pattern.permute.xlu0 0
      %522 = vperm.xlu0 %521, %v471
      %v523 = vpop.permute.xlu0 %522
      %526 = vset.pattern.permute.xlu0 0
      %527 = vperm.xlu0 %526, %v472
      %v528 = vpop.permute.xlu0 %527
      %531 = vset.pattern.permute.xlu0 0
      %532 = vperm.xlu0 %531, %v473
      %v533 = vpop.permute.xlu0 %532
      %536 = vset.pattern.permute.xlu0 0
      %537 = vperm.xlu0 %536, %v474
      %v538 = vpop.permute.xlu0 %537
      %541 = vset.pattern.permute.xlu0 0
      %542 = vperm.xlu0 %541, %v475
      %v543 = vpop.permute.xlu0 %542
      %546 = vset.pattern.permute.xlu0 0
      %547 = vperm.xlu0 %546, %v476
      %v548 = vpop.permute.xlu0 %547
      %551 = vset.pattern.permute.xlu0 0
      %552 = vperm.xlu0 %551, %v477
      %v553 = vpop.permute.xlu0 %552
      %556 = vset.pattern.permute.xlu0 0
      %557 = vperm.xlu0 %556, %v478
      %v558 = vpop.permute.xlu0 %557
      %561 = vset.pattern.permute.xlu0 0
      %562 = vperm.xlu0 %561, %v479
      %v563 = vpop.permute.xlu0 %562
      %566 = vset.pattern.permute.xlu0 0
      %567 = vperm.xlu0 %566, %v480
      %v568 = vpop.permute.xlu0 %567
      %571 = vset.pattern.permute.xlu0 0
      %572 = vperm.xlu0 %571, %v481
      %v573 = vpop.permute.xlu0 %572
      %576 = vset.pattern.permute.xlu0 0
      %577 = vperm.xlu0 %576, %v482
      %v578 = vpop.permute.xlu0 %577
      %581 = vset.pattern.permute.xlu0 0
      %582 = vperm.xlu0 %581, %v483
      %v583 = vpop.permute.xlu0 %582
      %586 = vset.pattern.permute.xlu0 0
      %587 = vperm.xlu0 %586, %v484
      %v588 = vpop.permute.xlu0 %587
      %591 = vset.pattern.permute.xlu0 0
      %592 = vperm.xlu0 %591, %v485
      %v593 = vpop.permute.xlu0 %592
      %596 = vset.pattern.permute.xlu0 0
      %597 = vperm.xlu0 %596, %v486
      %v598 = vpop.permute.xlu0 %597
      %601 = vset.pattern.permute.xlu0 0
      %602 = vperm.xlu0 %601, %v487
      %v603 = vpop.permute.xlu0 %602
      %606 = vset.pattern.permute.xlu0 0
      %607 = vperm.xlu0 %606, %v488
      %v608 = vpop.permute.xlu0 %607
      %611 = vset.pattern.permute.xlu0 0
      %612 = vperm.xlu0 %611, %v489
      %v613 = vpop.permute.xlu0 %612
      %616 = vset.pattern.permute.xlu0 0
      %617 = vperm.xlu0 %616, %v490
      %v618 = vpop.permute.xlu0 %617
      %621 = vset.pattern.permute.xlu0 0
      %622 = vperm.xlu0 %621, %v491
      %v623 = vpop.permute.xlu0 %622
      %626 = vset.pattern.permute.xlu0 0
      %627 = vperm.xlu0 %626, %v492
      %v628 = vpop.permute.xlu0 %627
      %631 = vset.pattern.permute.xlu0 0
      %632 = vperm.xlu0 %631, %v493
      %v633 = vpop.permute.xlu0 %632
      %636 = vset.pattern.permute.xlu0 0
      %637 = vperm.xlu0 %636, %v494
      %v638 = vpop.permute.xlu0 %637
      %641 = vset.pattern.permute.xlu0 0
      %642 = vperm.xlu0 %641, %v495
      %v643 = vpop.permute.xlu0 %642
      %646 = vset.pattern.permute.xlu0 0
      %647 = vperm.xlu0 %646, %v496
      %v648 = vpop.permute.xlu0 %647
      %651 = vset.pattern.permute.xlu0 0
      %652 = vperm.xlu0 %651, %v497
      %v653 = vpop.permute.xlu0 %652
      %656 = vset.pattern.permute.xlu0 0
      %657 = vperm.xlu0 %656, %v498
      %v658 = vpop.permute.xlu0 %657
      %661 = vset.pattern.permute.xlu0 0
      %662 = vperm.xlu0 %661, %v499
      %v663 = vpop.permute.xlu0 %662
      %666 = vset.pattern.permute.xlu0 0
      %667 = vperm.xlu0 %666, %v500
      %v668 = vpop.permute.xlu0 %667
      %671 = vset.pattern.permute.xlu0 0
      %672 = vperm.xlu0 %671, %v501
      %v673 = vpop.permute.xlu0 %672
      %676 = vset.pattern.permute.xlu0 0
      %677 = vperm.xlu0 %676, %v502
      %v678 = vpop.permute.xlu0 %677
      %681 = vset.pattern.permute.xlu0 0
      %682 = vperm.xlu0 %681, %v503
      %v683 = vpop.permute.xlu0 %682
      %686 = vset.pattern.permute.xlu0 0
      %687 = vperm.xlu0 %686, %v504
      %v688 = vpop.permute.xlu0 %687
      %691 = vset.pattern.permute.xlu0 0
      %692 = vperm.xlu0 %691, %v505
      %v693 = vpop.permute.xlu0 %692
      %696 = vset.pattern.permute.xlu0 0
      %697 = vperm.xlu0 %696, %v506
      %v698 = vpop.permute.xlu0 %697
      %701 = vset.pattern.permute.xlu0 0
      %702 = vperm.xlu0 %701, %v507
      %v703 = vpop.permute.xlu0 %702
      %706 = vset.pattern.permute.xlu0 0
      %707 = vperm.xlu0 %706, %v508
      %v708 = vpop.permute.xlu0 %707
      %711 = vset.pattern.permute.xlu0 0
      %712 = vperm.xlu0 %711, %v509
      %v713 = vpop.permute.xlu0 %712
      %v715 = vmul.f32 %v428, %v513
      %v716 = vmul.f32 %v429, %v518
      %v717 = vmul.f32 %v430, %v523
      %v718 = vmul.f32 %v431, %v528
      %v719 = vmul.f32 %v432, %v533
      %v720 = vmul.f32 %v433, %v538
      %v721 = vmul.f32 %v434, %v543
      %v722 = vmul.f32 %v435, %v548
      %v723 = vmul.f32 %v436, %v553
      %v724 = vmul.f32 %v437, %v558
      %v725 = vmul.f32 %v438, %v563
      %v726 = vmul.f32 %v439, %v568
      %v727 = vmul.f32 %v440, %v573
      %v728 = vmul.f32 %v441, %v578
      %v729 = vmul.f32 %v442, %v583
      %v730 = vmul.f32 %v443, %v588
      %v731 = vmul.f32 %v444, %v593
      %v732 = vmul.f32 %v445, %v598
      %v733 = vmul.f32 %v446, %v603
      %v734 = vmul.f32 %v447, %v608
      %v735 = vmul.f32 %v448, %v613
      %v736 = vmul.f32 %v449, %v618
      %v737 = vmul.f32 %v450, %v623
      %v738 = vmul.f32 %v451, %v628
      %v739 = vmul.f32 %v452, %v633
      %v740 = vmul.f32 %v453, %v638
      %v741 = vmul.f32 %v454, %v643
      %v742 = vmul.f32 %v455, %v648
      %v743 = vmul.f32 %v456, %v653
      %v744 = vmul.f32 %v457, %v658
      %v745 = vmul.f32 %v458, %v663
      %v746 = vmul.f32 %v459, %v668
      %v747 = vmul.f32 %v460, %v673
      %v748 = vmul.f32 %v461, %v678
      %v749 = vmul.f32 %v462, %v683
      %v750 = vmul.f32 %v463, %v688
      %v751 = vmul.f32 %v464, %v693
      %v752 = vmul.f32 %v465, %v698
      %v753 = vmul.f32 %v466, %v703
      %v754 = vmul.f32 %v467, %v708
      %v755 = vmul.f32 %v468, %v713
      %756 = vst [vmem:[#allocation2] sm:$0xff] %v715
      %757 = vst [vmem:[#allocation2 + $0x8] sm:$0xff] %v716
      %758 = vst [vmem:[#allocation2 + $0x10] sm:$0xff] %v717
      %759 = vst [vmem:[#allocation2 + $0x18] sm:$0xff] %v718
      %760 = vst [vmem:[#allocation2 + $0x20] sm:$0xff] %v719
      %761 = vst [vmem:[#allocation2 + $0x28] sm:$0xff] %v720
      %762 = vst [vmem:[#allocation2 + $0x30] sm:$0xff] %v721
      %763 = vst [vmem:[#allocation2 + $0x38] sm:$0xff] %v722
      %764 = vst [vmem:[#allocation2 + $0x40] sm:$0xff] %v723
      %765 = vst [vmem:[#allocation2 + $0x48] sm:$0xff] %v724
      %766 = vst [vmem:[#allocation2 + $0x50] sm:$0xff] %v725
      %767 = vst [vmem:[#allocation2 + $0x58] sm:$0xff] %v726
      %768 = vst [vmem:[#allocation2 + $0x60] sm:$0xff] %v727
      %769 = vst [vmem:[#allocation2 + $0x68] sm:$0xff] %v728
      %770 = vst [vmem:[#allocation2 + $0x70] sm:$0xff] %v729
      %771 = vst [vmem:[#allocation2 + $0x78] sm:$0xff] %v730
      %772 = vst [vmem:[#allocation2 + $0x80] sm:$0xff] %v731
      %773 = vst [vmem:[#allocation2 + $0x88] sm:$0xff] %v732
      %774 = vst [vmem:[#allocation2 + $0x90] sm:$0xff] %v733
      %775 = vst [vmem:[#allocation2 + $0x98] sm:$0xff] %v734
      %776 = vst [vmem:[#allocation2 + $0xa0] sm:$0xff] %v735
      %777 = vst [vmem:[#allocation2 + $0xa8] sm:$0xff] %v736
      %778 = vst [vmem:[#allocation2 + $0xb0] sm:$0xff] %v737
      %779 = vst [vmem:[#allocation2 + $0xb8] sm:$0xff] %v738
      %780 = vst [vmem:[#allocation2 + $0xc0] sm:$0xff] %v739
      %781 = vst [vmem:[#allocation2 + $0xc8] sm:$0xff] %v740
      %782 = vst [vmem:[#allocation2 + $0xd0] sm:$0xff] %v741
      %783 = vst [vmem:[#allocation2 + $0xd8] sm:$0xff] %v742
      %784 = vst [vmem:[#allocation2 + $0xe0] sm:$0xff] %v743
      %785 = vst [vmem:[#allocation2 + $0xe8] sm:$0xff] %v744
      %786 = vst [vmem:[#allocation2 + $0xf0] sm:$0xff] %v745
      %787 = vst [vmem:[#allocation2 + $0xf8] sm:$0xff] %v746
      %788 = vst [vmem:[#allocation2 + $0x100] sm:$0xff] %v747
      %789 = vst [vmem:[#allocation2 + $0x108] sm:$0xff] %v748
      %790 = vst [vmem:[#allocation2 + $0x110] sm:$0xff] %v749
      %791 = vst [vmem:[#allocation2 + $0x118] sm:$0xff] %v750
      %792 = vst [vmem:[#allocation2 + $0x120] sm:$0xff] %v751
      %793 = vst [vmem:[#allocation2 + $0x128] sm:$0xff] %v752
      %794 = vst [vmem:[#allocation2 + $0x130] sm:$0xff] %v753
      %795 = vst [vmem:[#allocation2 + $0x138] sm:$0xff] %v754
      %796 = vst [vmem:[#allocation2 + $0x140] sm:$0xff] %v755
      %v797 = vld [vmem:[#allocation2] sm:$0xff]
      %v798 = vld [vmem:[#allocation2 + $0x8] sm:$0xff]
      %v799 = vld [vmem:[#allocation2 + $0x10] sm:$0xff]
      %v800 = vld [vmem:[#allocation2 + $0x18] sm:$0xff]
      %v801 = vld [vmem:[#allocation2 + $0x20] sm:$0xff]
      %v802 = vld [vmem:[#allocation2 + $0x28] sm:$0xff]
      %v803 = vld [vmem:[#allocation2 + $0x30] sm:$0xff]
      %v804 = vld [vmem:[#allocation2 + $0x38] sm:$0xff]
      %v805 = vld [vmem:[#allocation2 + $0x40] sm:$0xff]
      %v806 = vld [vmem:[#allocation2 + $0x48] sm:$0xff]
      %v807 = vld [vmem:[#allocation2 + $0x50] sm:$0xff]
      %v808 = vld [vmem:[#allocation2 + $0x58] sm:$0xff]
      %v809 = vld [vmem:[#allocation2 + $0x60] sm:$0xff]
      %v810 = vld [vmem:[#allocation2 + $0x68] sm:$0xff]
      %v811 = vld [vmem:[#allocation2 + $0x70] sm:$0xff]
      %v812 = vld [vmem:[#allocation2 + $0x78] sm:$0xff]
      %v813 = vld [vmem:[#allocation2 + $0x80] sm:$0xff]
      %v814 = vld [vmem:[#allocation2 + $0x88] sm:$0xff]
      %v815 = vld [vmem:[#allocation2 + $0x90] sm:$0xff]
      %v816 = vld [vmem:[#allocation2 + $0x98] sm:$0xff]
      %v817 = vld [vmem:[#allocation2 + $0xa0] sm:$0xff]
      %v818 = vld [vmem:[#allocation2 + $0xa8] sm:$0xff]
      %v819 = vld [vmem:[#allocation2 + $0xb0] sm:$0xff]
      %v820 = vld [vmem:[#allocation2 + $0xb8] sm:$0xff]
      %v821 = vld [vmem:[#allocation2 + $0xc0] sm:$0xff]
      %v822 = vld [vmem:[#allocation2 + $0xc8] sm:$0xff]
      %v823 = vld [vmem:[#allocation2 + $0xd0] sm:$0xff]
      %v824 = vld [vmem:[#allocation2 + $0xd8] sm:$0xff]
      %v825 = vld [vmem:[#allocation2 + $0xe0] sm:$0xff]
      %v826 = vld [vmem:[#allocation2 + $0xe8] sm:$0xff]
      %v827 = vld [vmem:[#allocation2 + $0xf0] sm:$0xff]
      %v828 = vld [vmem:[#allocation2 + $0xf8] sm:$0xff]
      %v829 = vld [vmem:[#allocation2 + $0x100] sm:$0xff]
      %v830 = vld [vmem:[#allocation2 + $0x108] sm:$0xff]
      %v831 = vld [vmem:[#allocation2 + $0x110] sm:$0xff]
      %v832 = vld [vmem:[#allocation2 + $0x118] sm:$0xff]
      %v833 = vpack.c.bf16 %v798, %v797
      %v834 = vpack.c.bf16 %v800, %v799
      %v835 = vpack.c.bf16 %v802, %v801
      %v836 = vpack.c.bf16 %v804, %v803
      %v837 = vpack.c.bf16 %v806, %v805
      %v838 = vpack.c.bf16 %v808, %v807
      %v839 = vpack.c.bf16 %v810, %v809
      %v840 = vpack.c.bf16 %v812, %v811
      %v841 = vpack.c.bf16 %v814, %v813
      %v842 = vpack.c.bf16 %v816, %v815
      %v843 = vpack.c.bf16 %v818, %v817
      %v844 = vpack.c.bf16 %v820, %v819
      %v845 = vpack.c.bf16 %v822, %v821
      %v846 = vpack.c.bf16 %v824, %v823
      %v847 = vpack.c.bf16 %v826, %v825
      %v848 = vpack.c.bf16 %v828, %v827
      %v849 = vpack.c.bf16 %v830, %v829
      %v850 = vpack.c.bf16 %v832, %v831
      %v851 = vld [vmem:[%s3] sm:$0xf]
      %v852 = vld [vmem:[%s3 + $0x4] sm:$0xf]
      %v853 = vld [vmem:[%s3 + $0x8] sm:$0xf]
      %v854 = vld [vmem:[%s3 + $0xc] sm:$0xf]
      %v855 = vld [vmem:[%s3 + $0x10] sm:$0xf]
      %v856 = vld [vmem:[%s3 + $0x14] sm:$0xf]
      %v857 = vld [vmem:[%s3 + $0x18] sm:$0xf]
      %v858 = vld [vmem:[%s3 + $0x1c] sm:$0xf]
      %v859 = vld [vmem:[%s3 + $0x20] sm:$0xf]
      %v860 = vld [vmem:[%s3 + $0x24] sm:$0xf]
      %v861 = vld [vmem:[%s3 + $0x28] sm:$0xf]
      %v862 = vld [vmem:[%s3 + $0x2c] sm:$0xf]
      %v863 = vld [vmem:[%s3 + $0x30] sm:$0xf]
      %v864 = vld [vmem:[%s3 + $0x34] sm:$0xf]
      %v865 = vld [vmem:[%s3 + $0x38] sm:$0xf]
      %v866 = vld [vmem:[%s3 + $0x3c] sm:$0xf]
      %v867 = vld [vmem:[#allocation2 + $0x1] sm:$0xff]
      %v868 = vld [vmem:[#allocation2 + $0x9] sm:$0xff]
      %v869 = vld [vmem:[#allocation2 + $0x11] sm:$0xff]
      %v870 = vld [vmem:[#allocation2 + $0x19] sm:$0xff]
      %v871 = vld [vmem:[#allocation2 + $0x21] sm:$0xff]
      %v872 = vld [vmem:[#allocation2 + $0x29] sm:$0xff]
      %v873 = vld [vmem:[#allocation2 + $0x31] sm:$0xff]
      %v874 = vld [vmem:[#allocation2 + $0x39] sm:$0xff]
      %v875 = vld [vmem:[#allocation2 + $0x41] sm:$0xff]
      %v876 = vld [vmem:[#allocation2 + $0x49] sm:$0xff]
      %v877 = vld [vmem:[#allocation2 + $0x51] sm:$0xff]
      %v878 = vld [vmem:[#allocation2 + $0x59] sm:$0xff]
      %v879 = vld [vmem:[#allocation2 + $0x61] sm:$0xff]
      %v880 = vld [vmem:[#allocation2 + $0x69] sm:$0xff]
      %v881 = vld [vmem:[#allocation2 + $0x71] sm:$0xff]
      %v882 = vld [vmem:[#allocation2 + $0x79] sm:$0xff]
      %v883 = vld [vmem:[#allocation2 + $0x81] sm:$0xff]
      %v884 = vld [vmem:[#allocation2 + $0x89] sm:$0xff]
      %v885 = vld [vmem:[#allocation2 + $0x91] sm:$0xff]
      %v886 = vld [vmem:[#allocation2 + $0x99] sm:$0xff]
      %v887 = vld [vmem:[#allocation2 + $0xa1] sm:$0xff]
      %v888 = vld [vmem:[#allocation2 + $0xa9] sm:$0xff]
      %v889 = vld [vmem:[#allocation2 + $0xb1] sm:$0xff]
      %v890 = vld [vmem:[#allocation2 + $0xb9] sm:$0xff]
      %v891 = vld [vmem:[#allocation2 + $0xc1] sm:$0xff]
      %v892 = vld [vmem:[#allocation2 + $0xc9] sm:$0xff]
      %v893 = vld [vmem:[#allocation2 + $0xd1] sm:$0xff]
      %v894 = vld [vmem:[#allocation2 + $0xd9] sm:$0xff]
      %v895 = vld [vmem:[#allocation2 + $0xe1] sm:$0xff]
      %v896 = vld [vmem:[#allocation2 + $0xe9] sm:$0xff]
      %v897 = vld [vmem:[#allocation2 + $0xf1] sm:$0xff]
      %v898 = vld [vmem:[#allocation2 + $0xf9] sm:$0xff]
      %v899 = vld [vmem:[#allocation2 + $0x101] sm:$0xff]
      %v900 = vld [vmem:[#allocation2 + $0x109] sm:$0xff]
      %v901 = vld [vmem:[#allocation2 + $0x111] sm:$0xff]
      %v902 = vld [vmem:[#allocation2 + $0x119] sm:$0xff]
      %v903 = vpack.c.bf16 %v868, %v867
      %v904 = vpack.c.bf16 %v870, %v869
      %v905 = vpack.c.bf16 %v872, %v871
      %v906 = vpack.c.bf16 %v874, %v873
      %v907 = vpack.c.bf16 %v876, %v875
      %v908 = vpack.c.bf16 %v878, %v877
      %v909 = vpack.c.bf16 %v880, %v879
      %v910 = vpack.c.bf16 %v882, %v881
      %v911 = vpack.c.bf16 %v884, %v883
      %v912 = vpack.c.bf16 %v886, %v885
      %v913 = vpack.c.bf16 %v888, %v887
      %v914 = vpack.c.bf16 %v890, %v889
      %v915 = vpack.c.bf16 %v892, %v891
      %v916 = vpack.c.bf16 %v894, %v893
      %v917 = vpack.c.bf16 %v896, %v895
      %v918 = vpack.c.bf16 %v898, %v897
      %v919 = vpack.c.bf16 %v900, %v899
      %v920 = vpack.c.bf16 %v902, %v901
      %s921 = scalar_lea.vmem %s3, 64
      %v922 = vld [vmem:[%s921] sm:$0xf]
      %v923 = vld [vmem:[%s921 + $0x4] sm:$0xf]
      %v924 = vld [vmem:[%s921 + $0x8] sm:$0xf]
      %v925 = vld [vmem:[%s921 + $0xc] sm:$0xf]
      %v926 = vld [vmem:[%s921 + $0x10] sm:$0xf]
      %v927 = vld [vmem:[%s921 + $0x14] sm:$0xf]
      %v928 = vld [vmem:[%s921 + $0x18] sm:$0xf]
      %v929 = vld [vmem:[%s921 + $0x1c] sm:$0xf]
      %v930 = vld [vmem:[%s921 + $0x20] sm:$0xf]
      %v931 = vld [vmem:[%s921 + $0x24] sm:$0xf]
      %v932 = vld [vmem:[%s921 + $0x28] sm:$0xf]
      %v933 = vld [vmem:[%s921 + $0x2c] sm:$0xf]
      %v934 = vld [vmem:[%s921 + $0x30] sm:$0xf]
      %v935 = vld [vmem:[%s921 + $0x34] sm:$0xf]
      %v936 = vld [vmem:[%s921 + $0x38] sm:$0xf]
      %v937 = vld [vmem:[%s921 + $0x3c] sm:$0xf]
      %v954 = vunpack.c.l.b16 %v922
      %v955 = vunpack.c.l.b16 %v923
      %v956 = vunpack.c.l.b16 %v924
      %v957 = vunpack.c.l.b16 %v925
      %v958 = vunpack.c.l.b16 %v926
      %v959 = vunpack.c.l.b16 %v927
      %v960 = vunpack.c.l.b16 %v928
      %v961 = vunpack.c.l.b16 %v929
      %v962 = vunpack.c.l.b16 %v930
      %v963 = vunpack.c.l.b16 %v931
      %v964 = vunpack.c.l.b16 %v932
      %v965 = vunpack.c.l.b16 %v933
      %v966 = vunpack.c.l.b16 %v934
      %v967 = vunpack.c.l.b16 %v935
      %v968 = vunpack.c.l.b16 %v936
      %v969 = vunpack.c.l.b16 %v937
      %v970 = vpack.c.b16 %v955, %v954
      %v971 = vpack.c.b16 %v957, %v956
      %v972 = vpack.c.b16 %v959, %v958
      %v973 = vpack.c.b16 %v961, %v960
      %v974 = vpack.c.b16 %v963, %v962
      %v975 = vpack.c.b16 %v965, %v964
      %v976 = vpack.c.b16 %v967, %v966
      %v977 = vpack.c.b16 %v969, %v968
      %986 = vmatprep.subr.bf16.mxu0 0
      %987 = vmatpush1.bf16.msra.mxu0 %v977
      %988 = vmatprep.subr.bf16.mxu0 0
      %989 = vmatpush1.bf16.msra.mxu0 %v976
      %990 = vmatprep.subr.bf16.mxu0 0
      %991 = vmatpush1.bf16.msra.mxu0 %v975
      %992 = vmatprep.subr.bf16.mxu0 0
      %993 = vmatpush1.bf16.msra.mxu0 %v974
      %994 = vmatprep.subr.bf16.mxu0 0
      %995 = vmatpush1.bf16.msra.mxu0 %v973
      %996 = vmatprep.subr.bf16.mxu0 0
      %997 = vmatpush1.bf16.msra.mxu0 %v972
      %998 = vmatprep.subr.bf16.mxu0 0
      %999 = vmatpush1.bf16.msra.mxu0 %v971
      %1000 = vmatprep.subr.bf16.mxu0 0
      %1001 = vmatpush1.bf16.msra.mxu0 %v970
      %1002 = vmatprep.subr.bf16.mxu0 0
      %1003 = vmatpush2.bf16.msra.mxu0 0
      %1004 = vmatprep.subr.bf16.mxu0 0
      %1005 = vmatpush2.bf16.msra.mxu0 0
      %1006 = vmatprep.subr.bf16.mxu0 0
      %1007 = vmatpush2.bf16.msra.mxu0 0
      %1008 = vmatprep.subr.bf16.mxu0 0
      %1009 = vmatpush2.bf16.msra.mxu0 0
      %1010 = vmatprep.subr.bf16.mxu0 0
      %1011 = vmatpush2.bf16.msra.mxu0 0
      %1012 = vmatprep.subr.bf16.mxu0 0
      %1013 = vmatpush2.bf16.msra.mxu0 0
      %1014 = vmatprep.subr.bf16.mxu0 0
      %1015 = vmatpush2.bf16.msra.mxu0 0
      %1016 = vmatprep.subr.bf16.mxu0 0
      %1017 = vmatpush2.bf16.msra.mxu0 0
      %1018 = vmatprep.mubr.bf16.mxu0 0
      %1019 = vmatmul.mubr.bf16.gmra.mxu0 %v903
      %v1020 = vpop.f32.mrf.mxu0
      %v1021 = vadd.f32 0.0, %v1020
      %v1022 = vpop.f32.mrf.mxu0
      %v1023 = vpop.f32.mrf.mxu0
      %v1024 = vadd.f32 0.0, %v1023
      %v1025 = vpop.f32.mrf.mxu0
      %1026 = vmatprep.mubr.bf16.mxu0 0
      %1027 = vmatmul.mubr.bf16.gmra.mxu0 %v904
      %v1028 = vpop.f32.mrf.mxu0
      %v1029 = vadd.f32 0.0, %v1028
      %v1030 = vpop.f32.mrf.mxu0
      %v1031 = vpop.f32.mrf.mxu0
      %v1032 = vadd.f32 0.0, %v1031
      %v1033 = vpop.f32.mrf.mxu0
      %1034 = vmatprep.mubr.bf16.mxu0 0
      %1035 = vmatmul.mubr.bf16.gmra.mxu0 %v905
      %v1036 = vpop.f32.mrf.mxu0
      %v1037 = vadd.f32 0.0, %v1036
      %v1038 = vpop.f32.mrf.mxu0
      %v1039 = vpop.f32.mrf.mxu0
      %v1040 = vadd.f32 0.0, %v1039
      %v1041 = vpop.f32.mrf.mxu0
      %1042 = vmatprep.mubr.bf16.mxu0 0
      %1043 = vmatmul.mubr.bf16.gmra.mxu0 %v906
      %v1044 = vpop.f32.mrf.mxu0
      %v1045 = vadd.f32 0.0, %v1044
      %v1046 = vpop.f32.mrf.mxu0
      %v1047 = vpop.f32.mrf.mxu0
      %v1048 = vadd.f32 0.0, %v1047
      %v1049 = vpop.f32.mrf.mxu0
      %1050 = vmatprep.mubr.bf16.mxu0 0
      %1051 = vmatmul.mubr.bf16.gmra.mxu0 %v907
      %v1052 = vpop.f32.mrf.mxu0
      %v1053 = vadd.f32 0.0, %v1052
      %v1054 = vpop.f32.mrf.mxu0
      %v1055 = vpop.f32.mrf.mxu0
      %v1056 = vadd.f32 0.0, %v1055
      %v1057 = vpop.f32.mrf.mxu0
      %1058 = vmatprep.mubr.bf16.mxu0 0
      %1059 = vmatmul.mubr.bf16.gmra.mxu0 %v908
      %v1060 = vpop.f32.mrf.mxu0
      %v1061 = vadd.f32 0.0, %v1060
      %v1062 = vpop.f32.mrf.mxu0
      %v1063 = vpop.f32.mrf.mxu0
      %v1064 = vadd.f32 0.0, %v1063
      %v1065 = vpop.f32.mrf.mxu0
      %1066 = vmatprep.mubr.bf16.mxu0 0
      %1067 = vmatmul.mubr.bf16.gmra.mxu0 %v909
      %v1068 = vpop.f32.mrf.mxu0
      %v1069 = vadd.f32 0.0, %v1068
      %v1070 = vpop.f32.mrf.mxu0
      %v1071 = vpop.f32.mrf.mxu0
      %v1072 = vadd.f32 0.0, %v1071
      %v1073 = vpop.f32.mrf.mxu0
      %1074 = vmatprep.mubr.bf16.mxu0 0
      %1075 = vmatmul.mubr.bf16.gmra.mxu0 %v910
      %v1076 = vpop.f32.mrf.mxu0
      %v1077 = vadd.f32 0.0, %v1076
      %v1078 = vpop.f32.mrf.mxu0
      %v1079 = vpop.f32.mrf.mxu0
      %v1080 = vadd.f32 0.0, %v1079
      %v1081 = vpop.f32.mrf.mxu0
      %1082 = vmatprep.mubr.bf16.mxu0 0
      %1083 = vmatmul.mubr.bf16.gmra.mxu0 %v911
      %v1084 = vpop.f32.mrf.mxu0
      %v1085 = vadd.f32 0.0, %v1084
      %v1086 = vpop.f32.mrf.mxu0
      %v1087 = vpop.f32.mrf.mxu0
      %v1088 = vadd.f32 0.0, %v1087
      %v1089 = vpop.f32.mrf.mxu0
      %1090 = vmatprep.mubr.bf16.mxu0 0
      %1091 = vmatmul.mubr.bf16.gmra.mxu0 %v912
      %v1092 = vpop.f32.mrf.mxu0
      %v1093 = vadd.f32 0.0, %v1092
      %v1094 = vpop.f32.mrf.mxu0
      %v1095 = vpop.f32.mrf.mxu0
      %v1096 = vadd.f32 0.0, %v1095
      %v1097 = vpop.f32.mrf.mxu0
      %1098 = vmatprep.mubr.bf16.mxu0 0
      %1099 = vmatmul.mubr.bf16.gmra.mxu0 %v913
      %v1100 = vpop.f32.mrf.mxu0
      %v1101 = vadd.f32 0.0, %v1100
      %v1102 = vpop.f32.mrf.mxu0
      %v1103 = vpop.f32.mrf.mxu0
      %v1104 = vadd.f32 0.0, %v1103
      %v1105 = vpop.f32.mrf.mxu0
      %1106 = vmatprep.mubr.bf16.mxu0 0
      %1107 = vmatmul.mubr.bf16.gmra.mxu0 %v914
      %v1108 = vpop.f32.mrf.mxu0
      %v1109 = vadd.f32 0.0, %v1108
      %v1110 = vpop.f32.mrf.mxu0
      %v1111 = vpop.f32.mrf.mxu0
      %v1112 = vadd.f32 0.0, %v1111
      %v1113 = vpop.f32.mrf.mxu0
      %1114 = vmatprep.mubr.bf16.mxu0 0
      %1115 = vmatmul.mubr.bf16.gmra.mxu0 %v915
      %v1116 = vpop.f32.mrf.mxu0
      %v1117 = vadd.f32 0.0, %v1116
      %v1118 = vpop.f32.mrf.mxu0
      %v1119 = vpop.f32.mrf.mxu0
      %v1120 = vadd.f32 0.0, %v1119
      %v1121 = vpop.f32.mrf.mxu0
      %1122 = vmatprep.mubr.bf16.mxu0 0
      %1123 = vmatmul.mubr.bf16.gmra.mxu0 %v916
      %v1124 = vpop.f32.mrf.mxu0
      %v1125 = vadd.f32 0.0, %v1124
      %v1126 = vpop.f32.mrf.mxu0
      %v1127 = vpop.f32.mrf.mxu0
      %v1128 = vadd.f32 0.0, %v1127
      %v1129 = vpop.f32.mrf.mxu0
      %1130 = vmatprep.mubr.bf16.mxu0 0
      %1131 = vmatmul.mubr.bf16.gmra.mxu0 %v917
      %v1132 = vpop.f32.mrf.mxu0
      %v1133 = vadd.f32 0.0, %v1132
      %v1134 = vpop.f32.mrf.mxu0
      %v1135 = vpop.f32.mrf.mxu0
      %v1136 = vadd.f32 0.0, %v1135
      %v1137 = vpop.f32.mrf.mxu0
      %1138 = vmatprep.mubr.bf16.mxu0 0
      %1139 = vmatmul.mubr.bf16.gmra.mxu0 %v918
      %v1140 = vpop.f32.mrf.mxu0
      %v1141 = vadd.f32 0.0, %v1140
      %v1142 = vpop.f32.mrf.mxu0
      %v1143 = vpop.f32.mrf.mxu0
      %v1144 = vadd.f32 0.0, %v1143
      %v1145 = vpop.f32.mrf.mxu0
      %1146 = vmatprep.mubr.bf16.mxu0 0
      %1147 = vmatmul.mubr.bf16.gmra.mxu0 %v919
      %v1148 = vpop.f32.mrf.mxu0
      %v1149 = vadd.f32 0.0, %v1148
      %v1150 = vpop.f32.mrf.mxu0
      %v1151 = vpop.f32.mrf.mxu0
      %v1152 = vadd.f32 0.0, %v1151
      %v1153 = vpop.f32.mrf.mxu0
      %1154 = vmatprep.mubr.bf16.mxu0 0
      %1155 = vmatmul.mubr.bf16.gmra.mxu0 %v920
      %v1156 = vpop.f32.mrf.mxu0
      %v1157 = vadd.f32 0.0, %v1156
      %v1158 = vpop.f32.mrf.mxu0
      %v1159 = vpop.f32.mrf.mxu0
      %v1160 = vadd.f32 0.0, %v1159
      %v1161 = vpop.f32.mrf.mxu0
      %1162 = vdwg.mxu0
      %v1179 = vunpack.c.l.b16 %v851
      %v1180 = vunpack.c.l.b16 %v852
      %v1181 = vunpack.c.l.b16 %v853
      %v1182 = vunpack.c.l.b16 %v854
      %v1183 = vunpack.c.l.b16 %v855
      %v1184 = vunpack.c.l.b16 %v856
      %v1185 = vunpack.c.l.b16 %v857
      %v1186 = vunpack.c.l.b16 %v858
      %v1187 = vunpack.c.l.b16 %v859
      %v1188 = vunpack.c.l.b16 %v860
      %v1189 = vunpack.c.l.b16 %v861
      %v1190 = vunpack.c.l.b16 %v862
      %v1191 = vunpack.c.l.b16 %v863
      %v1192 = vunpack.c.l.b16 %v864
      %v1193 = vunpack.c.l.b16 %v865
      %v1194 = vunpack.c.l.b16 %v866
      %v1195 = vpack.c.b16 %v1180, %v1179
      %v1196 = vpack.c.b16 %v1182, %v1181
      %v1197 = vpack.c.b16 %v1184, %v1183
      %v1198 = vpack.c.b16 %v1186, %v1185
      %v1199 = vpack.c.b16 %v1188, %v1187
      %v1200 = vpack.c.b16 %v1190, %v1189
      %v1201 = vpack.c.b16 %v1192, %v1191
      %v1202 = vpack.c.b16 %v1194, %v1193
      %1211 = vmatprep.subr.bf16.mxu0 0
      %1212 = vmatpush1.bf16.msra.mxu0 %v1202
      %1213 = vmatprep.subr.bf16.mxu0 0
      %1214 = vmatpush1.bf16.msra.mxu0 %v1201
      %1215 = vmatprep.subr.bf16.mxu0 0
      %1216 = vmatpush1.bf16.msra.mxu0 %v1200
      %1217 = vmatprep.subr.bf16.mxu0 0
      %1218 = vmatpush1.bf16.msra.mxu0 %v1199
      %1219 = vmatprep.subr.bf16.mxu0 0
      %1220 = vmatpush1.bf16.msra.mxu0 %v1198
      %1221 = vmatprep.subr.bf16.mxu0 0
      %1222 = vmatpush1.bf16.msra.mxu0 %v1197
      %1223 = vmatprep.subr.bf16.mxu0 0
      %1224 = vmatpush1.bf16.msra.mxu0 %v1196
      %1225 = vmatprep.subr.bf16.mxu0 0
      %1226 = vmatpush1.bf16.msra.mxu0 %v1195
      %1227 = vmatprep.subr.bf16.mxu0 0
      %1228 = vmatpush2.bf16.msra.mxu0 0
      %1229 = vmatprep.subr.bf16.mxu0 0
      %1230 = vmatpush2.bf16.msra.mxu0 0
      %1231 = vmatprep.subr.bf16.mxu0 0
      %1232 = vmatpush2.bf16.msra.mxu0 0
      %1233 = vmatprep.subr.bf16.mxu0 0
      %1234 = vmatpush2.bf16.msra.mxu0 0
      %1235 = vmatprep.subr.bf16.mxu0 0
      %1236 = vmatpush2.bf16.msra.mxu0 0
      %1237 = vmatprep.subr.bf16.mxu0 0
      %1238 = vmatpush2.bf16.msra.mxu0 0
      %1239 = vmatprep.subr.bf16.mxu0 0
      %1240 = vmatpush2.bf16.msra.mxu0 0
      %1241 = vmatprep.subr.bf16.mxu0 0
      %1242 = vmatpush2.bf16.msra.mxu0 0
      %1243 = vmatprep.mubr.bf16.mxu0 0
      %1244 = vmatmul.mubr.bf16.gmra.mxu0 %v833
      %v1245 = vpop.f32.mrf.mxu0
      %v1246 = vadd.f32 %v1021, %v1245
      %v1247 = vpop.f32.mrf.mxu0
      %v1248 = vpop.f32.mrf.mxu0
      %v1249 = vadd.f32 %v1024, %v1248
      %v1250 = vpop.f32.mrf.mxu0
      %1251 = vmatprep.mubr.bf16.mxu0 0
      %1252 = vmatmul.mubr.bf16.gmra.mxu0 %v834
      %v1253 = vpop.f32.mrf.mxu0
      %v1254 = vadd.f32 %v1029, %v1253
      %v1255 = vpop.f32.mrf.mxu0
      %v1256 = vpop.f32.mrf.mxu0
      %v1257 = vadd.f32 %v1032, %v1256
      %v1258 = vpop.f32.mrf.mxu0
      %1259 = vmatprep.mubr.bf16.mxu0 0
      %1260 = vmatmul.mubr.bf16.gmra.mxu0 %v835
      %v1261 = vpop.f32.mrf.mxu0
      %v1262 = vadd.f32 %v1037, %v1261
      %v1263 = vpop.f32.mrf.mxu0
      %v1264 = vpop.f32.mrf.mxu0
      %v1265 = vadd.f32 %v1040, %v1264
      %v1266 = vpop.f32.mrf.mxu0
      %1267 = vmatprep.mubr.bf16.mxu0 0
      %1268 = vmatmul.mubr.bf16.gmra.mxu0 %v836
      %v1269 = vpop.f32.mrf.mxu0
      %v1270 = vadd.f32 %v1045, %v1269
      %v1271 = vpop.f32.mrf.mxu0
      %v1272 = vpop.f32.mrf.mxu0
      %v1273 = vadd.f32 %v1048, %v1272
      %v1274 = vpop.f32.mrf.mxu0
      %1275 = vmatprep.mubr.bf16.mxu0 0
      %1276 = vmatmul.mubr.bf16.gmra.mxu0 %v837
      %v1277 = vpop.f32.mrf.mxu0
      %v1278 = vadd.f32 %v1053, %v1277
      %v1279 = vpop.f32.mrf.mxu0
      %v1280 = vpop.f32.mrf.mxu0
      %v1281 = vadd.f32 %v1056, %v1280
      %v1282 = vpop.f32.mrf.mxu0
      %1283 = vmatprep.mubr.bf16.mxu0 0
      %1284 = vmatmul.mubr.bf16.gmra.mxu0 %v838
      %v1285 = vpop.f32.mrf.mxu0
      %v1286 = vadd.f32 %v1061, %v1285
      %v1287 = vpop.f32.mrf.mxu0
      %v1288 = vpop.f32.mrf.mxu0
      %v1289 = vadd.f32 %v1064, %v1288
      %v1290 = vpop.f32.mrf.mxu0
      %1291 = vmatprep.mubr.bf16.mxu0 0
      %1292 = vmatmul.mubr.bf16.gmra.mxu0 %v839
      %v1293 = vpop.f32.mrf.mxu0
      %v1294 = vadd.f32 %v1069, %v1293
      %v1295 = vpop.f32.mrf.mxu0
      %v1296 = vpop.f32.mrf.mxu0
      %v1297 = vadd.f32 %v1072, %v1296
      %v1298 = vpop.f32.mrf.mxu0
      %1299 = vmatprep.mubr.bf16.mxu0 0
      %1300 = vmatmul.mubr.bf16.gmra.mxu0 %v840
      %v1301 = vpop.f32.mrf.mxu0
      %v1302 = vadd.f32 %v1077, %v1301
      %v1303 = vpop.f32.mrf.mxu0
      %v1304 = vpop.f32.mrf.mxu0
      %v1305 = vadd.f32 %v1080, %v1304
      %v1306 = vpop.f32.mrf.mxu0
      %1307 = vmatprep.mubr.bf16.mxu0 0
      %1308 = vmatmul.mubr.bf16.gmra.mxu0 %v841
      %v1309 = vpop.f32.mrf.mxu0
      %v1310 = vadd.f32 %v1085, %v1309
      %v1311 = vpop.f32.mrf.mxu0
      %v1312 = vpop.f32.mrf.mxu0
      %v1313 = vadd.f32 %v1088, %v1312
      %v1314 = vpop.f32.mrf.mxu0
      %1315 = vmatprep.mubr.bf16.mxu0 0
      %1316 = vmatmul.mubr.bf16.gmra.mxu0 %v842
      %v1317 = vpop.f32.mrf.mxu0
      %v1318 = vadd.f32 %v1093, %v1317
      %v1319 = vpop.f32.mrf.mxu0
      %v1320 = vpop.f32.mrf.mxu0
      %v1321 = vadd.f32 %v1096, %v1320
      %v1322 = vpop.f32.mrf.mxu0
      %1323 = vmatprep.mubr.bf16.mxu0 0
      %1324 = vmatmul.mubr.bf16.gmra.mxu0 %v843
      %v1325 = vpop.f32.mrf.mxu0
      %v1326 = vadd.f32 %v1101, %v1325
      %v1327 = vpop.f32.mrf.mxu0
      %v1328 = vpop.f32.mrf.mxu0
      %v1329 = vadd.f32 %v1104, %v1328
      %v1330 = vpop.f32.mrf.mxu0
      %1331 = vmatprep.mubr.bf16.mxu0 0
      %1332 = vmatmul.mubr.bf16.gmra.mxu0 %v844
      %v1333 = vpop.f32.mrf.mxu0
      %v1334 = vadd.f32 %v1109, %v1333
      %v1335 = vpop.f32.mrf.mxu0
      %v1336 = vpop.f32.mrf.mxu0
      %v1337 = vadd.f32 %v1112, %v1336
      %v1338 = vpop.f32.mrf.mxu0
      %1339 = vmatprep.mubr.bf16.mxu0 0
      %1340 = vmatmul.mubr.bf16.gmra.mxu0 %v845
      %v1341 = vpop.f32.mrf.mxu0
      %v1342 = vadd.f32 %v1117, %v1341
      %v1343 = vpop.f32.mrf.mxu0
      %v1344 = vpop.f32.mrf.mxu0
      %v1345 = vadd.f32 %v1120, %v1344
      %v1346 = vpop.f32.mrf.mxu0
      %1347 = vmatprep.mubr.bf16.mxu0 0
      %1348 = vmatmul.mubr.bf16.gmra.mxu0 %v846
      %v1349 = vpop.f32.mrf.mxu0
      %v1350 = vadd.f32 %v1125, %v1349
      %v1351 = vpop.f32.mrf.mxu0
      %v1352 = vpop.f32.mrf.mxu0
      %v1353 = vadd.f32 %v1128, %v1352
      %v1354 = vpop.f32.mrf.mxu0
      %1355 = vmatprep.mubr.bf16.mxu0 0
      %1356 = vmatmul.mubr.bf16.gmra.mxu0 %v847
      %v1357 = vpop.f32.mrf.mxu0
      %v1358 = vadd.f32 %v1133, %v1357
      %v1359 = vpop.f32.mrf.mxu0
      %v1360 = vpop.f32.mrf.mxu0
      %v1361 = vadd.f32 %v1136, %v1360
      %v1362 = vpop.f32.mrf.mxu0
      %1363 = vmatprep.mubr.bf16.mxu0 0
      %1364 = vmatmul.mubr.bf16.gmra.mxu0 %v848
      %v1365 = vpop.f32.mrf.mxu0
      %v1366 = vadd.f32 %v1141, %v1365
      %v1367 = vpop.f32.mrf.mxu0
      %v1368 = vpop.f32.mrf.mxu0
      %v1369 = vadd.f32 %v1144, %v1368
      %v1370 = vpop.f32.mrf.mxu0
      %1371 = vmatprep.mubr.bf16.mxu0 0
      %1372 = vmatmul.mubr.bf16.gmra.mxu0 %v849
      %v1373 = vpop.f32.mrf.mxu0
      %v1374 = vadd.f32 %v1149, %v1373
      %v1375 = vpop.f32.mrf.mxu0
      %v1376 = vpop.f32.mrf.mxu0
      %v1377 = vadd.f32 %v1152, %v1376
      %v1378 = vpop.f32.mrf.mxu0
      %1379 = vmatprep.mubr.bf16.mxu0 0
      %1380 = vmatmul.mubr.bf16.gmra.mxu0 %v850
      %v1381 = vpop.f32.mrf.mxu0
      %v1382 = vadd.f32 %v1157, %v1381
      %v1383 = vpop.f32.mrf.mxu0
      %v1384 = vpop.f32.mrf.mxu0
      %v1385 = vadd.f32 %v1160, %v1384
      %v1386 = vpop.f32.mrf.mxu0
      %1387 = vdwg.mxu0
      %v1388 = vld [vmem:[#allocation2 + $0x2] sm:$0xff]
      %v1389 = vld [vmem:[#allocation2 + $0xa] sm:$0xff]
      %v1390 = vld [vmem:[#allocation2 + $0x12] sm:$0xff]
      %v1391 = vld [vmem:[#allocation2 + $0x1a] sm:$0xff]
      %v1392 = vld [vmem:[#allocation2 + $0x22] sm:$0xff]
      %v1393 = vld [vmem:[#allocation2 + $0x2a] sm:$0xff]
      %v1394 = vld [vmem:[#allocation2 + $0x32] sm:$0xff]
      %v1395 = vld [vmem:[#allocation2 + $0x3a] sm:$0xff]
      %v1396 = vld [vmem:[#allocation2 + $0x42] sm:$0xff]
      %v1397 = vld [vmem:[#allocation2 + $0x4a] sm:$0xff]
      %v1398 = vld [vmem:[#allocation2 + $0x52] sm:$0xff]
      %v1399 = vld [vmem:[#allocation2 + $0x5a] sm:$0xff]
      %v1400 = vld [vmem:[#allocation2 + $0x62] sm:$0xff]
      %v1401 = vld [vmem:[#allocation2 + $0x6a] sm:$0xff]
      %v1402 = vld [vmem:[#allocation2 + $0x72] sm:$0xff]
      %v1403 = vld [vmem:[#allocation2 + $0x7a] sm:$0xff]
      %v1404 = vld [vmem:[#allocation2 + $0x82] sm:$0xff]
      %v1405 = vld [vmem:[#allocation2 + $0x8a] sm:$0xff]
      %v1406 = vld [vmem:[#allocation2 + $0x92] sm:$0xff]
      %v1407 = vld [vmem:[#allocation2 + $0x9a] sm:$0xff]
      %v1408 = vld [vmem:[#allocation2 + $0xa2] sm:$0xff]
      %v1409 = vld [vmem:[#allocation2 + $0xaa] sm:$0xff]
      %v1410 = vld [vmem:[#allocation2 + $0xb2] sm:$0xff]
      %v1411 = vld [vmem:[#allocation2 + $0xba] sm:$0xff]
      %v1412 = vld [vmem:[#allocation2 + $0xc2] sm:$0xff]
      %v1413 = vld [vmem:[#allocation2 + $0xca] sm:$0xff]
      %v1414 = vld [vmem:[#allocation2 + $0xd2] sm:$0xff]
      %v1415 = vld [vmem:[#allocation2 + $0xda] sm:$0xff]
      %v1416 = vld [vmem:[#allocation2 + $0xe2] sm:$0xff]
      %v1417 = vld [vmem:[#allocation2 + $0xea] sm:$0xff]
      %v1418 = vld [vmem:[#allocation2 + $0xf2] sm:$0xff]
      %v1419 = vld [vmem:[#allocation2 + $0xfa] sm:$0xff]
      %v1420 = vld [vmem:[#allocation2 + $0x102] sm:$0xff]
      %v1421 = vld [vmem:[#allocation2 + $0x10a] sm:$0xff]
      %v1422 = vld [vmem:[#allocation2 + $0x112] sm:$0xff]
      %v1423 = vld [vmem:[#allocation2 + $0x11a] sm:$0xff]
      %v1424 = vpack.c.bf16 %v1389, %v1388
      %v1425 = vpack.c.bf16 %v1391, %v1390
      %v1426 = vpack.c.bf16 %v1393, %v1392
      %v1427 = vpack.c.bf16 %v1395, %v1394
      %v1428 = vpack.c.bf16 %v1397, %v1396
      %v1429 = vpack.c.bf16 %v1399, %v1398
      %v1430 = vpack.c.bf16 %v1401, %v1400
      %v1431 = vpack.c.bf16 %v1403, %v1402
      %v1432 = vpack.c.bf16 %v1405, %v1404
      %v1433 = vpack.c.bf16 %v1407, %v1406
      %v1434 = vpack.c.bf16 %v1409, %v1408
      %v1435 = vpack.c.bf16 %v1411, %v1410
      %v1436 = vpack.c.bf16 %v1413, %v1412
      %v1437 = vpack.c.bf16 %v1415, %v1414
      %v1438 = vpack.c.bf16 %v1417, %v1416
      %v1439 = vpack.c.bf16 %v1419, %v1418
      %v1440 = vpack.c.bf16 %v1421, %v1420
      %v1441 = vpack.c.bf16 %v1423, %v1422
      %s1442 = scalar_lea.vmem %s3, 128
      %v1443 = vld [vmem:[%s1442] sm:$0xf]
      %v1444 = vld [vmem:[%s1442 + $0x4] sm:$0xf]
      %v1445 = vld [vmem:[%s1442 + $0x8] sm:$0xf]
      %v1446 = vld [vmem:[%s1442 + $0xc] sm:$0xf]
      %v1447 = vld [vmem:[%s1442 + $0x10] sm:$0xf]
      %v1448 = vld [vmem:[%s1442 + $0x14] sm:$0xf]
      %v1449 = vld [vmem:[%s1442 + $0x18] sm:$0xf]
      %v1450 = vld [vmem:[%s1442 + $0x1c] sm:$0xf]
      %v1451 = vld [vmem:[%s1442 + $0x20] sm:$0xf]
      %v1452 = vld [vmem:[%s1442 + $0x24] sm:$0xf]
      %v1453 = vld [vmem:[%s1442 + $0x28] sm:$0xf]
      %v1454 = vld [vmem:[%s1442 + $0x2c] sm:$0xf]
      %v1455 = vld [vmem:[%s1442 + $0x30] sm:$0xf]
      %v1456 = vld [vmem:[%s1442 + $0x34] sm:$0xf]
      %v1457 = vld [vmem:[%s1442 + $0x38] sm:$0xf]
      %v1458 = vld [vmem:[%s1442 + $0x3c] sm:$0xf]
      %v1475 = vunpack.c.l.b16 %v1443
      %v1476 = vunpack.c.l.b16 %v1444
      %v1477 = vunpack.c.l.b16 %v1445
      %v1478 = vunpack.c.l.b16 %v1446
      %v1479 = vunpack.c.l.b16 %v1447
      %v1480 = vunpack.c.l.b16 %v1448
      %v1481 = vunpack.c.l.b16 %v1449
      %v1482 = vunpack.c.l.b16 %v1450
      %v1483 = vunpack.c.l.b16 %v1451
      %v1484 = vunpack.c.l.b16 %v1452
      %v1485 = vunpack.c.l.b16 %v1453
      %v1486 = vunpack.c.l.b16 %v1454
      %v1487 = vunpack.c.l.b16 %v1455
      %v1488 = vunpack.c.l.b16 %v1456
      %v1489 = vunpack.c.l.b16 %v1457
      %v1490 = vunpack.c.l.b16 %v1458
      %v1491 = vpack.c.b16 %v1476, %v1475
      %v1492 = vpack.c.b16 %v1478, %v1477
      %v1493 = vpack.c.b16 %v1480, %v1479
      %v1494 = vpack.c.b16 %v1482, %v1481
      %v1495 = vpack.c.b16 %v1484, %v1483
      %v1496 = vpack.c.b16 %v1486, %v1485
      %v1497 = vpack.c.b16 %v1488, %v1487
      %v1498 = vpack.c.b16 %v1490, %v1489
      %1507 = vmatprep.subr.bf16.mxu0 0
      %1508 = vmatpush1.bf16.msra.mxu0 %v1498
      %1509 = vmatprep.subr.bf16.mxu0 0
      %1510 = vmatpush1.bf16.msra.mxu0 %v1497
      %1511 = vmatprep.subr.bf16.mxu0 0
      %1512 = vmatpush1.bf16.msra.mxu0 %v1496
      %1513 = vmatprep.subr.bf16.mxu0 0
      %1514 = vmatpush1.bf16.msra.mxu0 %v1495
      %1515 = vmatprep.subr.bf16.mxu0 0
      %1516 = vmatpush1.bf16.msra.mxu0 %v1494
      %1517 = vmatprep.subr.bf16.mxu0 0
      %1518 = vmatpush1.bf16.msra.mxu0 %v1493
      %1519 = vmatprep.subr.bf16.mxu0 0
      %1520 = vmatpush1.bf16.msra.mxu0 %v1492
      %1521 = vmatprep.subr.bf16.mxu0 0
      %1522 = vmatpush1.bf16.msra.mxu0 %v1491
      %1523 = vmatprep.subr.bf16.mxu0 0
      %1524 = vmatpush2.bf16.msra.mxu0 0
      %1525 = vmatprep.subr.bf16.mxu0 0
      %1526 = vmatpush2.bf16.msra.mxu0 0
      %1527 = vmatprep.subr.bf16.mxu0 0
      %1528 = vmatpush2.bf16.msra.mxu0 0
      %1529 = vmatprep.subr.bf16.mxu0 0
      %1530 = vmatpush2.bf16.msra.mxu0 0
      %1531 = vmatprep.subr.bf16.mxu0 0
      %1532 = vmatpush2.bf16.msra.mxu0 0
      %1533 = vmatprep.subr.bf16.mxu0 0
      %1534 = vmatpush2.bf16.msra.mxu0 0
      %1535 = vmatprep.subr.bf16.mxu0 0
      %1536 = vmatpush2.bf16.msra.mxu0 0
      %1537 = vmatprep.subr.bf16.mxu0 0
      %1538 = vmatpush2.bf16.msra.mxu0 0
      %1539 = vmatprep.mubr.bf16.mxu0 0
      %1540 = vmatmul.mubr.bf16.gmra.mxu0 %v1424
      %v1541 = vpop.f32.mrf.mxu0
      %v1542 = vadd.f32 0.0, %v1541
      %v1543 = vpop.f32.mrf.mxu0
      %v1544 = vpop.f32.mrf.mxu0
      %v1545 = vadd.f32 0.0, %v1544
      %v1546 = vpop.f32.mrf.mxu0
      %1547 = vmatprep.mubr.bf16.mxu0 0
      %1548 = vmatmul.mubr.bf16.gmra.mxu0 %v1425
      %v1549 = vpop.f32.mrf.mxu0
      %v1550 = vadd.f32 0.0, %v1549
      %v1551 = vpop.f32.mrf.mxu0
      %v1552 = vpop.f32.mrf.mxu0
      %v1553 = vadd.f32 0.0, %v1552
      %v1554 = vpop.f32.mrf.mxu0
      %1555 = vmatprep.mubr.bf16.mxu0 0
      %1556 = vmatmul.mubr.bf16.gmra.mxu0 %v1426
      %v1557 = vpop.f32.mrf.mxu0
      %v1558 = vadd.f32 0.0, %v1557
      %v1559 = vpop.f32.mrf.mxu0
      %v1560 = vpop.f32.mrf.mxu0
      %v1561 = vadd.f32 0.0, %v1560
      %v1562 = vpop.f32.mrf.mxu0
      %1563 = vmatprep.mubr.bf16.mxu0 0
      %1564 = vmatmul.mubr.bf16.gmra.mxu0 %v1427
      %v1565 = vpop.f32.mrf.mxu0
      %v1566 = vadd.f32 0.0, %v1565
      %v1567 = vpop.f32.mrf.mxu0
      %v1568 = vpop.f32.mrf.mxu0
      %v1569 = vadd.f32 0.0, %v1568
      %v1570 = vpop.f32.mrf.mxu0
      %1571 = vmatprep.mubr.bf16.mxu0 0
      %1572 = vmatmul.mubr.bf16.gmra.mxu0 %v1428
      %v1573 = vpop.f32.mrf.mxu0
      %v1574 = vadd.f32 0.0, %v1573
      %v1575 = vpop.f32.mrf.mxu0
      %v1576 = vpop.f32.mrf.mxu0
      %v1577 = vadd.f32 0.0, %v1576
      %v1578 = vpop.f32.mrf.mxu0
      %1579 = vmatprep.mubr.bf16.mxu0 0
      %1580 = vmatmul.mubr.bf16.gmra.mxu0 %v1429
      %v1581 = vpop.f32.mrf.mxu0
      %v1582 = vadd.f32 0.0, %v1581
      %v1583 = vpop.f32.mrf.mxu0
      %v1584 = vpop.f32.mrf.mxu0
      %v1585 = vadd.f32 0.0, %v1584
      %v1586 = vpop.f32.mrf.mxu0
      %1587 = vmatprep.mubr.bf16.mxu0 0
      %1588 = vmatmul.mubr.bf16.gmra.mxu0 %v1430
      %v1589 = vpop.f32.mrf.mxu0
      %v1590 = vadd.f32 0.0, %v1589
      %v1591 = vpop.f32.mrf.mxu0
      %v1592 = vpop.f32.mrf.mxu0
      %v1593 = vadd.f32 0.0, %v1592
      %v1594 = vpop.f32.mrf.mxu0
      %1595 = vmatprep.mubr.bf16.mxu0 0
      %1596 = vmatmul.mubr.bf16.gmra.mxu0 %v1431
      %v1597 = vpop.f32.mrf.mxu0
      %v1598 = vadd.f32 0.0, %v1597
      %v1599 = vpop.f32.mrf.mxu0
      %v1600 = vpop.f32.mrf.mxu0
      %v1601 = vadd.f32 0.0, %v1600
      %v1602 = vpop.f32.mrf.mxu0
      %1603 = vmatprep.mubr.bf16.mxu0 0
      %1604 = vmatmul.mubr.bf16.gmra.mxu0 %v1432
      %v1605 = vpop.f32.mrf.mxu0
      %v1606 = vadd.f32 0.0, %v1605
      %v1607 = vpop.f32.mrf.mxu0
      %v1608 = vpop.f32.mrf.mxu0
      %v1609 = vadd.f32 0.0, %v1608
      %v1610 = vpop.f32.mrf.mxu0
      %1611 = vmatprep.mubr.bf16.mxu0 0
      %1612 = vmatmul.mubr.bf16.gmra.mxu0 %v1433
      %v1613 = vpop.f32.mrf.mxu0
      %v1614 = vadd.f32 0.0, %v1613
      %v1615 = vpop.f32.mrf.mxu0
      %v1616 = vpop.f32.mrf.mxu0
      %v1617 = vadd.f32 0.0, %v1616
      %v1618 = vpop.f32.mrf.mxu0
      %1619 = vmatprep.mubr.bf16.mxu0 0
      %1620 = vmatmul.mubr.bf16.gmra.mxu0 %v1434
      %v1621 = vpop.f32.mrf.mxu0
      %v1622 = vadd.f32 0.0, %v1621
      %v1623 = vpop.f32.mrf.mxu0
      %v1624 = vpop.f32.mrf.mxu0
      %v1625 = vadd.f32 0.0, %v1624
      %v1626 = vpop.f32.mrf.mxu0
      %1627 = vmatprep.mubr.bf16.mxu0 0
      %1628 = vmatmul.mubr.bf16.gmra.mxu0 %v1435
      %v1629 = vpop.f32.mrf.mxu0
      %v1630 = vadd.f32 0.0, %v1629
      %v1631 = vpop.f32.mrf.mxu0
      %v1632 = vpop.f32.mrf.mxu0
      %v1633 = vadd.f32 0.0, %v1632
      %v1634 = vpop.f32.mrf.mxu0
      %1635 = vmatprep.mubr.bf16.mxu0 0
      %1636 = vmatmul.mubr.bf16.gmra.mxu0 %v1436
      %v1637 = vpop.f32.mrf.mxu0
      %v1638 = vadd.f32 0.0, %v1637
      %v1639 = vpop.f32.mrf.mxu0
      %v1640 = vpop.f32.mrf.mxu0
      %v1641 = vadd.f32 0.0, %v1640
      %v1642 = vpop.f32.mrf.mxu0
      %1643 = vmatprep.mubr.bf16.mxu0 0
      %1644 = vmatmul.mubr.bf16.gmra.mxu0 %v1437
      %v1645 = vpop.f32.mrf.mxu0
      %v1646 = vadd.f32 0.0, %v1645
      %v1647 = vpop.f32.mrf.mxu0
      %v1648 = vpop.f32.mrf.mxu0
      %v1649 = vadd.f32 0.0, %v1648
      %v1650 = vpop.f32.mrf.mxu0
      %1651 = vmatprep.mubr.bf16.mxu0 0
      %1652 = vmatmul.mubr.bf16.gmra.mxu0 %v1438
      %v1653 = vpop.f32.mrf.mxu0
      %v1654 = vadd.f32 0.0, %v1653
      %v1655 = vpop.f32.mrf.mxu0
      %v1656 = vpop.f32.mrf.mxu0
      %v1657 = vadd.f32 0.0, %v1656
      %v1658 = vpop.f32.mrf.mxu0
      %1659 = vmatprep.mubr.bf16.mxu0 0
      %1660 = vmatmul.mubr.bf16.gmra.mxu0 %v1439
      %v1661 = vpop.f32.mrf.mxu0
      %v1662 = vadd.f32 0.0, %v1661
      %v1663 = vpop.f32.mrf.mxu0
      %v1664 = vpop.f32.mrf.mxu0
      %v1665 = vadd.f32 0.0, %v1664
      %v1666 = vpop.f32.mrf.mxu0
      %1667 = vmatprep.mubr.bf16.mxu0 0
      %1668 = vmatmul.mubr.bf16.gmra.mxu0 %v1440
      %v1669 = vpop.f32.mrf.mxu0
      %v1670 = vadd.f32 0.0, %v1669
      %v1671 = vpop.f32.mrf.mxu0
      %v1672 = vpop.f32.mrf.mxu0
      %v1673 = vadd.f32 0.0, %v1672
      %v1674 = vpop.f32.mrf.mxu0
      %1675 = vmatprep.mubr.bf16.mxu0 0
      %1676 = vmatmul.mubr.bf16.gmra.mxu0 %v1441
      %v1677 = vpop.f32.mrf.mxu0
      %v1678 = vadd.f32 0.0, %v1677
      %v1679 = vpop.f32.mrf.mxu0
      %v1680 = vpop.f32.mrf.mxu0
      %v1681 = vadd.f32 0.0, %v1680
      %v1682 = vpop.f32.mrf.mxu0
      %1683 = vdwg.mxu0
      %v1684 = vadd.f32 %v1246, %v1542
      %v1685 = vadd.f32 %v1249, %v1545
      %v1686 = vadd.f32 %v1254, %v1550
      %v1687 = vadd.f32 %v1257, %v1553
      %v1688 = vadd.f32 %v1262, %v1558
      %v1689 = vadd.f32 %v1265, %v1561
      %v1690 = vadd.f32 %v1270, %v1566
      %v1691 = vadd.f32 %v1273, %v1569
      %v1692 = vadd.f32 %v1278, %v1574
      %v1693 = vadd.f32 %v1281, %v1577
      %v1694 = vadd.f32 %v1286, %v1582
      %v1695 = vadd.f32 %v1289, %v1585
      %v1696 = vadd.f32 %v1294, %v1590
      %v1697 = vadd.f32 %v1297, %v1593
      %v1698 = vadd.f32 %v1302, %v1598
      %v1699 = vadd.f32 %v1305, %v1601
      %v1700 = vadd.f32 %v1310, %v1606
      %v1701 = vadd.f32 %v1313, %v1609
      %v1702 = vadd.f32 %v1318, %v1614
      %v1703 = vadd.f32 %v1321, %v1617
      %v1704 = vadd.f32 %v1326, %v1622
      %v1705 = vadd.f32 %v1329, %v1625
      %v1706 = vadd.f32 %v1334, %v1630
      %v1707 = vadd.f32 %v1337, %v1633
      %v1708 = vadd.f32 %v1342, %v1638
      %v1709 = vadd.f32 %v1345, %v1641
      %v1710 = vadd.f32 %v1350, %v1646
      %v1711 = vadd.f32 %v1353, %v1649
      %v1712 = vadd.f32 %v1358, %v1654
      %v1713 = vadd.f32 %v1361, %v1657
      %v1714 = vadd.f32 %v1366, %v1662
      %v1715 = vadd.f32 %v1369, %v1665
      %v1716 = vadd.f32 %v1374, %v1670
      %v1717 = vadd.f32 %v1377, %v1673
      %v1718 = vadd.f32 %v1382, %v1678
      %v1719 = vadd.f32 %v1385, %v1681
      %v1720 = vld [vmem:[#allocation2 + $0x12] sm:$0xff]
      %v1721 = vld [vmem:[#allocation2 + $0x1a] sm:$0xff]
      %v1722 = vld [vmem:[#allocation2 + $0x22] sm:$0xff]
      %v1723 = vld [vmem:[#allocation2 + $0x2a] sm:$0xff]
      %v1724 = vld [vmem:[#allocation2 + $0x32] sm:$0xff]
      %v1725 = vld [vmem:[#allocation2 + $0x3a] sm:$0xff]
      %v1726 = vld [vmem:[#allocation2 + $0x42] sm:$0xff]
      %v1727 = vld [vmem:[#allocation2 + $0x4a] sm:$0xff]
      %v1728 = vld [vmem:[#allocation2 + $0x52] sm:$0xff]
      %v1729 = vld [vmem:[#allocation2 + $0x5a] sm:$0xff]
      %v1730 = vld [vmem:[#allocation2 + $0x62] sm:$0xff]
      %v1731 = vld [vmem:[#allocation2 + $0x6a] sm:$0xff]
      %v1732 = vld [vmem:[#allocation2 + $0x72] sm:$0xff]
      %v1733 = vld [vmem:[#allocation2 + $0x7a] sm:$0xff]
      %v1734 = vld [vmem:[#allocation2 + $0x82] sm:$0xff]
      %v1735 = vld [vmem:[#allocation2 + $0x8a] sm:$0xff]
      %v1736 = vld [vmem:[#allocation2 + $0x92] sm:$0xff]
      %v1737 = vld [vmem:[#allocation2 + $0x9a] sm:$0xff]
      %v1738 = vld [vmem:[#allocation2 + $0xa2] sm:$0xff]
      %v1739 = vld [vmem:[#allocation2 + $0xaa] sm:$0xff]
      %v1740 = vld [vmem:[#allocation2 + $0xb2] sm:$0xff]
      %v1741 = vld [vmem:[#allocation2 + $0xba] sm:$0xff]
      %v1742 = vld [vmem:[#allocation2 + $0xc2] sm:$0xff]
      %v1743 = vld [vmem:[#allocation2 + $0xca] sm:$0xff]
      %v1744 = vld [vmem:[#allocation2 + $0xd2] sm:$0xff]
      %v1745 = vld [vmem:[#allocation2 + $0xda] sm:$0xff]
      %v1746 = vld [vmem:[#allocation2 + $0xe2] sm:$0xff]
      %v1747 = vld [vmem:[#allocation2 + $0xea] sm:$0xff]
      %v1748 = vld [vmem:[#allocation2 + $0xf2] sm:$0xff]
      %v1749 = vld [vmem:[#allocation2 + $0xfa] sm:$0xff]
      %v1750 = vld [vmem:[#allocation2 + $0x102] sm:$0xff]
      %v1751 = vld [vmem:[#allocation2 + $0x10a] sm:$0xff]
      %v1752 = vld [vmem:[#allocation2 + $0x112] sm:$0xff]
      %v1753 = vld [vmem:[#allocation2 + $0x11a] sm:$0xff]
      %v1754 = vld [vmem:[#allocation2 + $0x122] sm:$0xff]
      %v1755 = vld [vmem:[#allocation2 + $0x12a] sm:$0xff]
      %v1756 = vpack.c.bf16 %v1721, %v1720
      %v1757 = vpack.c.bf16 %v1723, %v1722
      %v1758 = vpack.c.bf16 %v1725, %v1724
      %v1759 = vpack.c.bf16 %v1727, %v1726
      %v1760 = vpack.c.bf16 %v1729, %v1728
      %v1761 = vpack.c.bf16 %v1731, %v1730
      %v1762 = vpack.c.bf16 %v1733, %v1732
      %v1763 = vpack.c.bf16 %v1735, %v1734
      %v1764 = vpack.c.bf16 %v1737, %v1736
      %v1765 = vpack.c.bf16 %v1739, %v1738
      %v1766 = vpack.c.bf16 %v1741, %v1740
      %v1767 = vpack.c.bf16 %v1743, %v1742
      %v1768 = vpack.c.bf16 %v1745, %v1744
      %v1769 = vpack.c.bf16 %v1747, %v1746
      %v1770 = vpack.c.bf16 %v1749, %v1748
      %v1771 = vpack.c.bf16 %v1751, %v1750
      %v1772 = vpack.c.bf16 %v1753, %v1752
      %v1773 = vpack.c.bf16 %v1755, %v1754
      %s1774 = scalar_lea.vmem %s3, 192
      %v1775 = vld [vmem:[%s1774] sm:$0xf]
      %v1776 = vld [vmem:[%s1774 + $0x4] sm:$0xf]
      %v1777 = vld [vmem:[%s1774 + $0x8] sm:$0xf]
      %v1778 = vld [vmem:[%s1774 + $0xc] sm:$0xf]
      %v1779 = vld [vmem:[%s1774 + $0x10] sm:$0xf]
      %v1780 = vld [vmem:[%s1774 + $0x14] sm:$0xf]
      %v1781 = vld [vmem:[%s1774 + $0x18] sm:$0xf]
      %v1782 = vld [vmem:[%s1774 + $0x1c] sm:$0xf]
      %v1783 = vld [vmem:[%s1774 + $0x20] sm:$0xf]
      %v1784 = vld [vmem:[%s1774 + $0x24] sm:$0xf]
      %v1785 = vld [vmem:[%s1774 + $0x28] sm:$0xf]
      %v1786 = vld [vmem:[%s1774 + $0x2c] sm:$0xf]
      %v1787 = vld [vmem:[%s1774 + $0x30] sm:$0xf]
      %v1788 = vld [vmem:[%s1774 + $0x34] sm:$0xf]
      %v1789 = vld [vmem:[%s1774 + $0x38] sm:$0xf]
      %v1790 = vld [vmem:[%s1774 + $0x3c] sm:$0xf]
      %v1807 = vunpack.c.l.b16 %v1775
      %v1808 = vunpack.c.l.b16 %v1776
      %v1809 = vunpack.c.l.b16 %v1777
      %v1810 = vunpack.c.l.b16 %v1778
      %v1811 = vunpack.c.l.b16 %v1779
      %v1812 = vunpack.c.l.b16 %v1780
      %v1813 = vunpack.c.l.b16 %v1781
      %v1814 = vunpack.c.l.b16 %v1782
      %v1815 = vunpack.c.l.b16 %v1783
      %v1816 = vunpack.c.l.b16 %v1784
      %v1817 = vunpack.c.l.b16 %v1785
      %v1818 = vunpack.c.l.b16 %v1786
      %v1819 = vunpack.c.l.b16 %v1787
      %v1820 = vunpack.c.l.b16 %v1788
      %v1821 = vunpack.c.l.b16 %v1789
      %v1822 = vunpack.c.l.b16 %v1790
      %v1823 = vpack.c.b16 %v1808, %v1807
      %v1824 = vpack.c.b16 %v1810, %v1809
      %v1825 = vpack.c.b16 %v1812, %v1811
      %v1826 = vpack.c.b16 %v1814, %v1813
      %v1827 = vpack.c.b16 %v1816, %v1815
      %v1828 = vpack.c.b16 %v1818, %v1817
      %v1829 = vpack.c.b16 %v1820, %v1819
      %v1830 = vpack.c.b16 %v1822, %v1821
      %1839 = vmatprep.subr.bf16.mxu0 0
      %1840 = vmatpush1.bf16.msra.mxu0 %v1830
      %1841 = vmatprep.subr.bf16.mxu0 0
      %1842 = vmatpush1.bf16.msra.mxu0 %v1829
      %1843 = vmatprep.subr.bf16.mxu0 0
      %1844 = vmatpush1.bf16.msra.mxu0 %v1828
      %1845 = vmatprep.subr.bf16.mxu0 0
      %1846 = vmatpush1.bf16.msra.mxu0 %v1827
      %1847 = vmatprep.subr.bf16.mxu0 0
      %1848 = vmatpush1.bf16.msra.mxu0 %v1826
      %1849 = vmatprep.subr.bf16.mxu0 0
      %1850 = vmatpush1.bf16.msra.mxu0 %v1825
      %1851 = vmatprep.subr.bf16.mxu0 0
      %1852 = vmatpush1.bf16.msra.mxu0 %v1824
      %1853 = vmatprep.subr.bf16.mxu0 0
      %1854 = vmatpush1.bf16.msra.mxu0 %v1823
      %1855 = vmatprep.subr.bf16.mxu0 0
      %1856 = vmatpush2.bf16.msra.mxu0 0
      %1857 = vmatprep.subr.bf16.mxu0 0
      %1858 = vmatpush2.bf16.msra.mxu0 0
      %1859 = vmatprep.subr.bf16.mxu0 0
      %1860 = vmatpush2.bf16.msra.mxu0 0
      %1861 = vmatprep.subr.bf16.mxu0 0
      %1862 = vmatpush2.bf16.msra.mxu0 0
      %1863 = vmatprep.subr.bf16.mxu0 0
      %1864 = vmatpush2.bf16.msra.mxu0 0
      %1865 = vmatprep.subr.bf16.mxu0 0
      %1866 = vmatpush2.bf16.msra.mxu0 0
      %1867 = vmatprep.subr.bf16.mxu0 0
      %1868 = vmatpush2.bf16.msra.mxu0 0
      %1869 = vmatprep.subr.bf16.mxu0 0
      %1870 = vmatpush2.bf16.msra.mxu0 0
      %1871 = vmatprep.mubr.bf16.mxu0 0
      %1872 = vmatmul.mubr.bf16.gmra.mxu0 %v1756
      %v1873 = vpop.f32.mrf.mxu0
      %v1874 = vadd.f32 0.0, %v1873
      %v1875 = vpop.f32.mrf.mxu0
      %v1876 = vpop.f32.mrf.mxu0
      %v1877 = vadd.f32 0.0, %v1876
      %v1878 = vpop.f32.mrf.mxu0
      %1879 = vmatprep.mubr.bf16.mxu0 0
      %1880 = vmatmul.mubr.bf16.gmra.mxu0 %v1757
      %v1881 = vpop.f32.mrf.mxu0
      %v1882 = vadd.f32 0.0, %v1881
      %v1883 = vpop.f32.mrf.mxu0
      %v1884 = vpop.f32.mrf.mxu0
      %v1885 = vadd.f32 0.0, %v1884
      %v1886 = vpop.f32.mrf.mxu0
      %1887 = vmatprep.mubr.bf16.mxu0 0
      %1888 = vmatmul.mubr.bf16.gmra.mxu0 %v1758
      %v1889 = vpop.f32.mrf.mxu0
      %v1890 = vadd.f32 0.0, %v1889
      %v1891 = vpop.f32.mrf.mxu0
      %v1892 = vpop.f32.mrf.mxu0
      %v1893 = vadd.f32 0.0, %v1892
      %v1894 = vpop.f32.mrf.mxu0
      %1895 = vmatprep.mubr.bf16.mxu0 0
      %1896 = vmatmul.mubr.bf16.gmra.mxu0 %v1759
      %v1897 = vpop.f32.mrf.mxu0
      %v1898 = vadd.f32 0.0, %v1897
      %v1899 = vpop.f32.mrf.mxu0
      %v1900 = vpop.f32.mrf.mxu0
      %v1901 = vadd.f32 0.0, %v1900
      %v1902 = vpop.f32.mrf.mxu0
      %1903 = vmatprep.mubr.bf16.mxu0 0
      %1904 = vmatmul.mubr.bf16.gmra.mxu0 %v1760
      %v1905 = vpop.f32.mrf.mxu0
      %v1906 = vadd.f32 0.0, %v1905
      %v1907 = vpop.f32.mrf.mxu0
      %v1908 = vpop.f32.mrf.mxu0
      %v1909 = vadd.f32 0.0, %v1908
      %v1910 = vpop.f32.mrf.mxu0
      %1911 = vmatprep.mubr.bf16.mxu0 0
      %1912 = vmatmul.mubr.bf16.gmra.mxu0 %v1761
      %v1913 = vpop.f32.mrf.mxu0
      %v1914 = vadd.f32 0.0, %v1913
      %v1915 = vpop.f32.mrf.mxu0
      %v1916 = vpop.f32.mrf.mxu0
      %v1917 = vadd.f32 0.0, %v1916
      %v1918 = vpop.f32.mrf.mxu0
      %1919 = vmatprep.mubr.bf16.mxu0 0
      %1920 = vmatmul.mubr.bf16.gmra.mxu0 %v1762
      %v1921 = vpop.f32.mrf.mxu0
      %v1922 = vadd.f32 0.0, %v1921
      %v1923 = vpop.f32.mrf.mxu0
      %v1924 = vpop.f32.mrf.mxu0
      %v1925 = vadd.f32 0.0, %v1924
      %v1926 = vpop.f32.mrf.mxu0
      %1927 = vmatprep.mubr.bf16.mxu0 0
      %1928 = vmatmul.mubr.bf16.gmra.mxu0 %v1763
      %v1929 = vpop.f32.mrf.mxu0
      %v1930 = vadd.f32 0.0, %v1929
      %v1931 = vpop.f32.mrf.mxu0
      %v1932 = vpop.f32.mrf.mxu0
      %v1933 = vadd.f32 0.0, %v1932
      %v1934 = vpop.f32.mrf.mxu0
      %1935 = vmatprep.mubr.bf16.mxu0 0
      %1936 = vmatmul.mubr.bf16.gmra.mxu0 %v1764
      %v1937 = vpop.f32.mrf.mxu0
      %v1938 = vadd.f32 0.0, %v1937
      %v1939 = vpop.f32.mrf.mxu0
      %v1940 = vpop.f32.mrf.mxu0
      %v1941 = vadd.f32 0.0, %v1940
      %v1942 = vpop.f32.mrf.mxu0
      %1943 = vmatprep.mubr.bf16.mxu0 0
      %1944 = vmatmul.mubr.bf16.gmra.mxu0 %v1765
      %v1945 = vpop.f32.mrf.mxu0
      %v1946 = vadd.f32 0.0, %v1945
      %v1947 = vpop.f32.mrf.mxu0
      %v1948 = vpop.f32.mrf.mxu0
      %v1949 = vadd.f32 0.0, %v1948
      %v1950 = vpop.f32.mrf.mxu0
      %1951 = vmatprep.mubr.bf16.mxu0 0
      %1952 = vmatmul.mubr.bf16.gmra.mxu0 %v1766
      %v1953 = vpop.f32.mrf.mxu0
      %v1954 = vadd.f32 0.0, %v1953
      %v1955 = vpop.f32.mrf.mxu0
      %v1956 = vpop.f32.mrf.mxu0
      %v1957 = vadd.f32 0.0, %v1956
      %v1958 = vpop.f32.mrf.mxu0
      %1959 = vmatprep.mubr.bf16.mxu0 0
      %1960 = vmatmul.mubr.bf16.gmra.mxu0 %v1767
      %v1961 = vpop.f32.mrf.mxu0
      %v1962 = vadd.f32 0.0, %v1961
      %v1963 = vpop.f32.mrf.mxu0
      %v1964 = vpop.f32.mrf.mxu0
      %v1965 = vadd.f32 0.0, %v1964
      %v1966 = vpop.f32.mrf.mxu0
      %1967 = vmatprep.mubr.bf16.mxu0 0
      %1968 = vmatmul.mubr.bf16.gmra.mxu0 %v1768
      %v1969 = vpop.f32.mrf.mxu0
      %v1970 = vadd.f32 0.0, %v1969
      %v1971 = vpop.f32.mrf.mxu0
      %v1972 = vpop.f32.mrf.mxu0
      %v1973 = vadd.f32 0.0, %v1972
      %v1974 = vpop.f32.mrf.mxu0
      %1975 = vmatprep.mubr.bf16.mxu0 0
      %1976 = vmatmul.mubr.bf16.gmra.mxu0 %v1769
      %v1977 = vpop.f32.mrf.mxu0
      %v1978 = vadd.f32 0.0, %v1977
      %v1979 = vpop.f32.mrf.mxu0
      %v1980 = vpop.f32.mrf.mxu0
      %v1981 = vadd.f32 0.0, %v1980
      %v1982 = vpop.f32.mrf.mxu0
      %1983 = vmatprep.mubr.bf16.mxu0 0
      %1984 = vmatmul.mubr.bf16.gmra.mxu0 %v1770
      %v1985 = vpop.f32.mrf.mxu0
      %v1986 = vadd.f32 0.0, %v1985
      %v1987 = vpop.f32.mrf.mxu0
      %v1988 = vpop.f32.mrf.mxu0
      %v1989 = vadd.f32 0.0, %v1988
      %v1990 = vpop.f32.mrf.mxu0
      %1991 = vmatprep.mubr.bf16.mxu0 0
      %1992 = vmatmul.mubr.bf16.gmra.mxu0 %v1771
      %v1993 = vpop.f32.mrf.mxu0
      %v1994 = vadd.f32 0.0, %v1993
      %v1995 = vpop.f32.mrf.mxu0
      %v1996 = vpop.f32.mrf.mxu0
      %v1997 = vadd.f32 0.0, %v1996
      %v1998 = vpop.f32.mrf.mxu0
      %1999 = vmatprep.mubr.bf16.mxu0 0
      %2000 = vmatmul.mubr.bf16.gmra.mxu0 %v1772
      %v2001 = vpop.f32.mrf.mxu0
      %v2002 = vadd.f32 0.0, %v2001
      %v2003 = vpop.f32.mrf.mxu0
      %v2004 = vpop.f32.mrf.mxu0
      %v2005 = vadd.f32 0.0, %v2004
      %v2006 = vpop.f32.mrf.mxu0
      %2007 = vmatprep.mubr.bf16.mxu0 0
      %2008 = vmatmul.mubr.bf16.gmra.mxu0 %v1773
      %v2009 = vpop.f32.mrf.mxu0
      %v2010 = vadd.f32 0.0, %v2009
      %v2011 = vpop.f32.mrf.mxu0
      %v2012 = vpop.f32.mrf.mxu0
      %v2013 = vadd.f32 0.0, %v2012
      %v2014 = vpop.f32.mrf.mxu0
      %2015 = vdwg.mxu0
      %v2016 = vadd.f32 %v1684, %v1874
      %v2017 = vadd.f32 %v1685, %v1877
      %v2018 = vadd.f32 %v1686, %v1882
      %v2019 = vadd.f32 %v1687, %v1885
      %v2020 = vadd.f32 %v1688, %v1890
      %v2021 = vadd.f32 %v1689, %v1893
      %v2022 = vadd.f32 %v1690, %v1898
      %v2023 = vadd.f32 %v1691, %v1901
      %v2024 = vadd.f32 %v1692, %v1906
      %v2025 = vadd.f32 %v1693, %v1909
      %v2026 = vadd.f32 %v1694, %v1914
      %v2027 = vadd.f32 %v1695, %v1917
      %v2028 = vadd.f32 %v1696, %v1922
      %v2029 = vadd.f32 %v1697, %v1925
      %v2030 = vadd.f32 %v1698, %v1930
      %v2031 = vadd.f32 %v1699, %v1933
      %v2032 = vadd.f32 %v1700, %v1938
      %v2033 = vadd.f32 %v1701, %v1941
      %v2034 = vadd.f32 %v1702, %v1946
      %v2035 = vadd.f32 %v1703, %v1949
      %v2036 = vadd.f32 %v1704, %v1954
      %v2037 = vadd.f32 %v1705, %v1957
      %v2038 = vadd.f32 %v1706, %v1962
      %v2039 = vadd.f32 %v1707, %v1965
      %v2040 = vadd.f32 %v1708, %v1970
      %v2041 = vadd.f32 %v1709, %v1973
      %v2042 = vadd.f32 %v1710, %v1978
      %v2043 = vadd.f32 %v1711, %v1981
      %v2044 = vadd.f32 %v1712, %v1986
      %v2045 = vadd.f32 %v1713, %v1989
      %v2046 = vadd.f32 %v1714, %v1994
      %v2047 = vadd.f32 %v1715, %v1997
      %v2048 = vadd.f32 %v1716, %v2002
      %v2049 = vadd.f32 %v1717, %v2005
      %v2050 = vadd.f32 %v1718, %v2010
      %v2051 = vadd.f32 %v1719, %v2013
      %v2052 = vld [vmem:[#allocation2 + $0x13] sm:$0xff]
      %v2053 = vld [vmem:[#allocation2 + $0x1b] sm:$0xff]
      %v2054 = vld [vmem:[#allocation2 + $0x23] sm:$0xff]
      %v2055 = vld [vmem:[#allocation2 + $0x2b] sm:$0xff]
      %v2056 = vld [vmem:[#allocation2 + $0x33] sm:$0xff]
      %v2057 = vld [vmem:[#allocation2 + $0x3b] sm:$0xff]
      %v2058 = vld [vmem:[#allocation2 + $0x43] sm:$0xff]
      %v2059 = vld [vmem:[#allocation2 + $0x4b] sm:$0xff]
      %v2060 = vld [vmem:[#allocation2 + $0x53] sm:$0xff]
      %v2061 = vld [vmem:[#allocation2 + $0x5b] sm:$0xff]
      %v2062 = vld [vmem:[#allocation2 + $0x63] sm:$0xff]
      %v2063 = vld [vmem:[#allocation2 + $0x6b] sm:$0xff]
      %v2064 = vld [vmem:[#allocation2 + $0x73] sm:$0xff]
      %v2065 = vld [vmem:[#allocation2 + $0x7b] sm:$0xff]
      %v2066 = vld [vmem:[#allocation2 + $0x83] sm:$0xff]
      %v2067 = vld [vmem:[#allocation2 + $0x8b] sm:$0xff]
      %v2068 = vld [vmem:[#allocation2 + $0x93] sm:$0xff]
      %v2069 = vld [vmem:[#allocation2 + $0x9b] sm:$0xff]
      %v2070 = vld [vmem:[#allocation2 + $0xa3] sm:$0xff]
      %v2071 = vld [vmem:[#allocation2 + $0xab] sm:$0xff]
      %v2072 = vld [vmem:[#allocation2 + $0xb3] sm:$0xff]
      %v2073 = vld [vmem:[#allocation2 + $0xbb] sm:$0xff]
      %v2074 = vld [vmem:[#allocation2 + $0xc3] sm:$0xff]
      %v2075 = vld [vmem:[#allocation2 + $0xcb] sm:$0xff]
      %v2076 = vld [vmem:[#allocation2 + $0xd3] sm:$0xff]
      %v2077 = vld [vmem:[#allocation2 + $0xdb] sm:$0xff]
      %v2078 = vld [vmem:[#allocation2 + $0xe3] sm:$0xff]
      %v2079 = vld [vmem:[#allocation2 + $0xeb] sm:$0xff]
      %v2080 = vld [vmem:[#allocation2 + $0xf3] sm:$0xff]
      %v2081 = vld [vmem:[#allocation2 + $0xfb] sm:$0xff]
      %v2082 = vld [vmem:[#allocation2 + $0x103] sm:$0xff]
      %v2083 = vld [vmem:[#allocation2 + $0x10b] sm:$0xff]
      %v2084 = vld [vmem:[#allocation2 + $0x113] sm:$0xff]
      %v2085 = vld [vmem:[#allocation2 + $0x11b] sm:$0xff]
      %v2086 = vld [vmem:[#allocation2 + $0x123] sm:$0xff]
      %v2087 = vld [vmem:[#allocation2 + $0x12b] sm:$0xff]
      %v2088 = vpack.c.bf16 %v2053, %v2052
      %v2089 = vpack.c.bf16 %v2055, %v2054
      %v2090 = vpack.c.bf16 %v2057, %v2056
      %v2091 = vpack.c.bf16 %v2059, %v2058
      %v2092 = vpack.c.bf16 %v2061, %v2060
      %v2093 = vpack.c.bf16 %v2063, %v2062
      %v2094 = vpack.c.bf16 %v2065, %v2064
      %v2095 = vpack.c.bf16 %v2067, %v2066
      %v2096 = vpack.c.bf16 %v2069, %v2068
      %v2097 = vpack.c.bf16 %v2071, %v2070
      %v2098 = vpack.c.bf16 %v2073, %v2072
      %v2099 = vpack.c.bf16 %v2075, %v2074
      %v2100 = vpack.c.bf16 %v2077, %v2076
      %v2101 = vpack.c.bf16 %v2079, %v2078
      %v2102 = vpack.c.bf16 %v2081, %v2080
      %v2103 = vpack.c.bf16 %v2083, %v2082
      %v2104 = vpack.c.bf16 %v2085, %v2084
      %v2105 = vpack.c.bf16 %v2087, %v2086
      %s2106 = scalar_lea.vmem %s3, 256
      %v2107 = vld [vmem:[%s2106] sm:$0xf]
      %v2108 = vld [vmem:[%s2106 + $0x4] sm:$0xf]
      %v2109 = vld [vmem:[%s2106 + $0x8] sm:$0xf]
      %v2110 = vld [vmem:[%s2106 + $0xc] sm:$0xf]
      %v2111 = vld [vmem:[%s2106 + $0x10] sm:$0xf]
      %v2112 = vld [vmem:[%s2106 + $0x14] sm:$0xf]
      %v2113 = vld [vmem:[%s2106 + $0x18] sm:$0xf]
      %v2114 = vld [vmem:[%s2106 + $0x1c] sm:$0xf]
      %v2115 = vld [vmem:[%s2106 + $0x20] sm:$0xf]
      %v2116 = vld [vmem:[%s2106 + $0x24] sm:$0xf]
      %v2117 = vld [vmem:[%s2106 + $0x28] sm:$0xf]
      %v2118 = vld [vmem:[%s2106 + $0x2c] sm:$0xf]
      %v2119 = vld [vmem:[%s2106 + $0x30] sm:$0xf]
      %v2120 = vld [vmem:[%s2106 + $0x34] sm:$0xf]
      %v2121 = vld [vmem:[%s2106 + $0x38] sm:$0xf]
      %v2122 = vld [vmem:[%s2106 + $0x3c] sm:$0xf]
      %v2139 = vunpack.c.l.b16 %v2107
      %v2140 = vunpack.c.l.b16 %v2108
      %v2141 = vunpack.c.l.b16 %v2109
      %v2142 = vunpack.c.l.b16 %v2110
      %v2143 = vunpack.c.l.b16 %v2111
      %v2144 = vunpack.c.l.b16 %v2112
      %v2145 = vunpack.c.l.b16 %v2113
      %v2146 = vunpack.c.l.b16 %v2114
      %v2147 = vunpack.c.l.b16 %v2115
      %v2148 = vunpack.c.l.b16 %v2116
      %v2149 = vunpack.c.l.b16 %v2117
      %v2150 = vunpack.c.l.b16 %v2118
      %v2151 = vunpack.c.l.b16 %v2119
      %v2152 = vunpack.c.l.b16 %v2120
      %v2153 = vunpack.c.l.b16 %v2121
      %v2154 = vunpack.c.l.b16 %v2122
      %v2155 = vpack.c.b16 %v2140, %v2139
      %v2156 = vpack.c.b16 %v2142, %v2141
      %v2157 = vpack.c.b16 %v2144, %v2143
      %v2158 = vpack.c.b16 %v2146, %v2145
      %v2159 = vpack.c.b16 %v2148, %v2147
      %v2160 = vpack.c.b16 %v2150, %v2149
      %v2161 = vpack.c.b16 %v2152, %v2151
      %v2162 = vpack.c.b16 %v2154, %v2153
      %2171 = vmatprep.subr.bf16.mxu0 0
      %2172 = vmatpush1.bf16.msra.mxu0 %v2162
      %2173 = vmatprep.subr.bf16.mxu0 0
      %2174 = vmatpush1.bf16.msra.mxu0 %v2161
      %2175 = vmatprep.subr.bf16.mxu0 0
      %2176 = vmatpush1.bf16.msra.mxu0 %v2160
      %2177 = vmatprep.subr.bf16.mxu0 0
      %2178 = vmatpush1.bf16.msra.mxu0 %v2159
      %2179 = vmatprep.subr.bf16.mxu0 0
      %2180 = vmatpush1.bf16.msra.mxu0 %v2158
      %2181 = vmatprep.subr.bf16.mxu0 0
      %2182 = vmatpush1.bf16.msra.mxu0 %v2157
      %2183 = vmatprep.subr.bf16.mxu0 0
      %2184 = vmatpush1.bf16.msra.mxu0 %v2156
      %2185 = vmatprep.subr.bf16.mxu0 0
      %2186 = vmatpush1.bf16.msra.mxu0 %v2155
      %2187 = vmatprep.subr.bf16.mxu0 0
      %2188 = vmatpush2.bf16.msra.mxu0 0
      %2189 = vmatprep.subr.bf16.mxu0 0
      %2190 = vmatpush2.bf16.msra.mxu0 0
      %2191 = vmatprep.subr.bf16.mxu0 0
      %2192 = vmatpush2.bf16.msra.mxu0 0
      %2193 = vmatprep.subr.bf16.mxu0 0
      %2194 = vmatpush2.bf16.msra.mxu0 0
      %2195 = vmatprep.subr.bf16.mxu0 0
      %2196 = vmatpush2.bf16.msra.mxu0 0
      %2197 = vmatprep.subr.bf16.mxu0 0
      %2198 = vmatpush2.bf16.msra.mxu0 0
      %2199 = vmatprep.subr.bf16.mxu0 0
      %2200 = vmatpush2.bf16.msra.mxu0 0
      %2201 = vmatprep.subr.bf16.mxu0 0
      %2202 = vmatpush2.bf16.msra.mxu0 0
      %2203 = vmatprep.mubr.bf16.mxu0 0
      %2204 = vmatmul.mubr.bf16.gmra.mxu0 %v2088
      %v2205 = vpop.f32.mrf.mxu0
      %v2206 = vadd.f32 0.0, %v2205
      %v2207 = vpop.f32.mrf.mxu0
      %v2208 = vpop.f32.mrf.mxu0
      %v2209 = vadd.f32 0.0, %v2208
      %v2210 = vpop.f32.mrf.mxu0
      %2211 = vmatprep.mubr.bf16.mxu0 0
      %2212 = vmatmul.mubr.bf16.gmra.mxu0 %v2089
      %v2213 = vpop.f32.mrf.mxu0
      %v2214 = vadd.f32 0.0, %v2213
      %v2215 = vpop.f32.mrf.mxu0
      %v2216 = vpop.f32.mrf.mxu0
      %v2217 = vadd.f32 0.0, %v2216
      %v2218 = vpop.f32.mrf.mxu0
      %2219 = vmatprep.mubr.bf16.mxu0 0
      %2220 = vmatmul.mubr.bf16.gmra.mxu0 %v2090
      %v2221 = vpop.f32.mrf.mxu0
      %v2222 = vadd.f32 0.0, %v2221
      %v2223 = vpop.f32.mrf.mxu0
      %v2224 = vpop.f32.mrf.mxu0
      %v2225 = vadd.f32 0.0, %v2224
      %v2226 = vpop.f32.mrf.mxu0
      %2227 = vmatprep.mubr.bf16.mxu0 0
      %2228 = vmatmul.mubr.bf16.gmra.mxu0 %v2091
      %v2229 = vpop.f32.mrf.mxu0
      %v2230 = vadd.f32 0.0, %v2229
      %v2231 = vpop.f32.mrf.mxu0
      %v2232 = vpop.f32.mrf.mxu0
      %v2233 = vadd.f32 0.0, %v2232
      %v2234 = vpop.f32.mrf.mxu0
      %2235 = vmatprep.mubr.bf16.mxu0 0
      %2236 = vmatmul.mubr.bf16.gmra.mxu0 %v2092
      %v2237 = vpop.f32.mrf.mxu0
      %v2238 = vadd.f32 0.0, %v2237
      %v2239 = vpop.f32.mrf.mxu0
      %v2240 = vpop.f32.mrf.mxu0
      %v2241 = vadd.f32 0.0, %v2240
      %v2242 = vpop.f32.mrf.mxu0
      %2243 = vmatprep.mubr.bf16.mxu0 0
      %2244 = vmatmul.mubr.bf16.gmra.mxu0 %v2093
      %v2245 = vpop.f32.mrf.mxu0
      %v2246 = vadd.f32 0.0, %v2245
      %v2247 = vpop.f32.mrf.mxu0
      %v2248 = vpop.f32.mrf.mxu0
      %v2249 = vadd.f32 0.0, %v2248
      %v2250 = vpop.f32.mrf.mxu0
      %2251 = vmatprep.mubr.bf16.mxu0 0
      %2252 = vmatmul.mubr.bf16.gmra.mxu0 %v2094
      %v2253 = vpop.f32.mrf.mxu0
      %v2254 = vadd.f32 0.0, %v2253
      %v2255 = vpop.f32.mrf.mxu0
      %v2256 = vpop.f32.mrf.mxu0
      %v2257 = vadd.f32 0.0, %v2256
      %v2258 = vpop.f32.mrf.mxu0
      %2259 = vmatprep.mubr.bf16.mxu0 0
      %2260 = vmatmul.mubr.bf16.gmra.mxu0 %v2095
      %v2261 = vpop.f32.mrf.mxu0
      %v2262 = vadd.f32 0.0, %v2261
      %v2263 = vpop.f32.mrf.mxu0
      %v2264 = vpop.f32.mrf.mxu0
      %v2265 = vadd.f32 0.0, %v2264
      %v2266 = vpop.f32.mrf.mxu0
      %2267 = vmatprep.mubr.bf16.mxu0 0
      %2268 = vmatmul.mubr.bf16.gmra.mxu0 %v2096
      %v2269 = vpop.f32.mrf.mxu0
      %v2270 = vadd.f32 0.0, %v2269
      %v2271 = vpop.f32.mrf.mxu0
      %v2272 = vpop.f32.mrf.mxu0
      %v2273 = vadd.f32 0.0, %v2272
      %v2274 = vpop.f32.mrf.mxu0
      %2275 = vmatprep.mubr.bf16.mxu0 0
      %2276 = vmatmul.mubr.bf16.gmra.mxu0 %v2097
      %v2277 = vpop.f32.mrf.mxu0
      %v2278 = vadd.f32 0.0, %v2277
      %v2279 = vpop.f32.mrf.mxu0
      %v2280 = vpop.f32.mrf.mxu0
      %v2281 = vadd.f32 0.0, %v2280
      %v2282 = vpop.f32.mrf.mxu0
      %2283 = vmatprep.mubr.bf16.mxu0 0
      %2284 = vmatmul.mubr.bf16.gmra.mxu0 %v2098
      %v2285 = vpop.f32.mrf.mxu0
      %v2286 = vadd.f32 0.0, %v2285
      %v2287 = vpop.f32.mrf.mxu0
      %v2288 = vpop.f32.mrf.mxu0
      %v2289 = vadd.f32 0.0, %v2288
      %v2290 = vpop.f32.mrf.mxu0
      %2291 = vmatprep.mubr.bf16.mxu0 0
      %2292 = vmatmul.mubr.bf16.gmra.mxu0 %v2099
      %v2293 = vpop.f32.mrf.mxu0
      %v2294 = vadd.f32 0.0, %v2293
      %v2295 = vpop.f32.mrf.mxu0
      %v2296 = vpop.f32.mrf.mxu0
      %v2297 = vadd.f32 0.0, %v2296
      %v2298 = vpop.f32.mrf.mxu0
      %2299 = vmatprep.mubr.bf16.mxu0 0
      %2300 = vmatmul.mubr.bf16.gmra.mxu0 %v2100
      %v2301 = vpop.f32.mrf.mxu0
      %v2302 = vadd.f32 0.0, %v2301
      %v2303 = vpop.f32.mrf.mxu0
      %v2304 = vpop.f32.mrf.mxu0
      %v2305 = vadd.f32 0.0, %v2304
      %v2306 = vpop.f32.mrf.mxu0
      %2307 = vmatprep.mubr.bf16.mxu0 0
      %2308 = vmatmul.mubr.bf16.gmra.mxu0 %v2101
      %v2309 = vpop.f32.mrf.mxu0
      %v2310 = vadd.f32 0.0, %v2309
      %v2311 = vpop.f32.mrf.mxu0
      %v2312 = vpop.f32.mrf.mxu0
      %v2313 = vadd.f32 0.0, %v2312
      %v2314 = vpop.f32.mrf.mxu0
      %2315 = vmatprep.mubr.bf16.mxu0 0
      %2316 = vmatmul.mubr.bf16.gmra.mxu0 %v2102
      %v2317 = vpop.f32.mrf.mxu0
      %v2318 = vadd.f32 0.0, %v2317
      %v2319 = vpop.f32.mrf.mxu0
      %v2320 = vpop.f32.mrf.mxu0
      %v2321 = vadd.f32 0.0, %v2320
      %v2322 = vpop.f32.mrf.mxu0
      %2323 = vmatprep.mubr.bf16.mxu0 0
      %2324 = vmatmul.mubr.bf16.gmra.mxu0 %v2103
      %v2325 = vpop.f32.mrf.mxu0
      %v2326 = vadd.f32 0.0, %v2325
      %v2327 = vpop.f32.mrf.mxu0
      %v2328 = vpop.f32.mrf.mxu0
      %v2329 = vadd.f32 0.0, %v2328
      %v2330 = vpop.f32.mrf.mxu0
      %2331 = vmatprep.mubr.bf16.mxu0 0
      %2332 = vmatmul.mubr.bf16.gmra.mxu0 %v2104
      %v2333 = vpop.f32.mrf.mxu0
      %v2334 = vadd.f32 0.0, %v2333
      %v2335 = vpop.f32.mrf.mxu0
      %v2336 = vpop.f32.mrf.mxu0
      %v2337 = vadd.f32 0.0, %v2336
      %v2338 = vpop.f32.mrf.mxu0
      %2339 = vmatprep.mubr.bf16.mxu0 0
      %2340 = vmatmul.mubr.bf16.gmra.mxu0 %v2105
      %v2341 = vpop.f32.mrf.mxu0
      %v2342 = vadd.f32 0.0, %v2341
      %v2343 = vpop.f32.mrf.mxu0
      %v2344 = vpop.f32.mrf.mxu0
      %v2345 = vadd.f32 0.0, %v2344
      %v2346 = vpop.f32.mrf.mxu0
      %2347 = vdwg.mxu0
      %v2348 = vadd.f32 %v2016, %v2206
      %v2349 = vadd.f32 %v2017, %v2209
      %v2350 = vadd.f32 %v2018, %v2214
      %v2351 = vadd.f32 %v2019, %v2217
      %v2352 = vadd.f32 %v2020, %v2222
      %v2353 = vadd.f32 %v2021, %v2225
      %v2354 = vadd.f32 %v2022, %v2230
      %v2355 = vadd.f32 %v2023, %v2233
      %v2356 = vadd.f32 %v2024, %v2238
      %v2357 = vadd.f32 %v2025, %v2241
      %v2358 = vadd.f32 %v2026, %v2246
      %v2359 = vadd.f32 %v2027, %v2249
      %v2360 = vadd.f32 %v2028, %v2254
      %v2361 = vadd.f32 %v2029, %v2257
      %v2362 = vadd.f32 %v2030, %v2262
      %v2363 = vadd.f32 %v2031, %v2265
      %v2364 = vadd.f32 %v2032, %v2270
      %v2365 = vadd.f32 %v2033, %v2273
      %v2366 = vadd.f32 %v2034, %v2278
      %v2367 = vadd.f32 %v2035, %v2281
      %v2368 = vadd.f32 %v2036, %v2286
      %v2369 = vadd.f32 %v2037, %v2289
      %v2370 = vadd.f32 %v2038, %v2294
      %v2371 = vadd.f32 %v2039, %v2297
      %v2372 = vadd.f32 %v2040, %v2302
      %v2373 = vadd.f32 %v2041, %v2305
      %v2374 = vadd.f32 %v2042, %v2310
      %v2375 = vadd.f32 %v2043, %v2313
      %v2376 = vadd.f32 %v2044, %v2318
      %v2377 = vadd.f32 %v2045, %v2321
      %v2378 = vadd.f32 %v2046, %v2326
      %v2379 = vadd.f32 %v2047, %v2329
      %v2380 = vadd.f32 %v2048, %v2334
      %v2381 = vadd.f32 %v2049, %v2337
      %v2382 = vadd.f32 %v2050, %v2342
      %v2383 = vadd.f32 %v2051, %v2345
      %v2384 = vld [vmem:[#allocation2 + $0x14] sm:$0xff]
      %v2385 = vld [vmem:[#allocation2 + $0x1c] sm:$0xff]
      %v2386 = vld [vmem:[#allocation2 + $0x24] sm:$0xff]
      %v2387 = vld [vmem:[#allocation2 + $0x2c] sm:$0xff]
      %v2388 = vld [vmem:[#allocation2 + $0x34] sm:$0xff]
      %v2389 = vld [vmem:[#allocation2 + $0x3c] sm:$0xff]
      %v2390 = vld [vmem:[#allocation2 + $0x44] sm:$0xff]
      %v2391 = vld [vmem:[#allocation2 + $0x4c] sm:$0xff]
      %v2392 = vld [vmem:[#allocation2 + $0x54] sm:$0xff]
      %v2393 = vld [vmem:[#allocation2 + $0x5c] sm:$0xff]
      %v2394 = vld [vmem:[#allocation2 + $0x64] sm:$0xff]
      %v2395 = vld [vmem:[#allocation2 + $0x6c] sm:$0xff]
      %v2396 = vld [vmem:[#allocation2 + $0x74] sm:$0xff]
      %v2397 = vld [vmem:[#allocation2 + $0x7c] sm:$0xff]
      %v2398 = vld [vmem:[#allocation2 + $0x84] sm:$0xff]
      %v2399 = vld [vmem:[#allocation2 + $0x8c] sm:$0xff]
      %v2400 = vld [vmem:[#allocation2 + $0x94] sm:$0xff]
      %v2401 = vld [vmem:[#allocation2 + $0x9c] sm:$0xff]
      %v2402 = vld [vmem:[#allocation2 + $0xa4] sm:$0xff]
      %v2403 = vld [vmem:[#allocation2 + $0xac] sm:$0xff]
      %v2404 = vld [vmem:[#allocation2 + $0xb4] sm:$0xff]
      %v2405 = vld [vmem:[#allocation2 + $0xbc] sm:$0xff]
      %v2406 = vld [vmem:[#allocation2 + $0xc4] sm:$0xff]
      %v2407 = vld [vmem:[#allocation2 + $0xcc] sm:$0xff]
      %v2408 = vld [vmem:[#allocation2 + $0xd4] sm:$0xff]
      %v2409 = vld [vmem:[#allocation2 + $0xdc] sm:$0xff]
      %v2410 = vld [vmem:[#allocation2 + $0xe4] sm:$0xff]
      %v2411 = vld [vmem:[#allocation2 + $0xec] sm:$0xff]
      %v2412 = vld [vmem:[#allocation2 + $0xf4] sm:$0xff]
      %v2413 = vld [vmem:[#allocation2 + $0xfc] sm:$0xff]
      %v2414 = vld [vmem:[#allocation2 + $0x104] sm:$0xff]
      %v2415 = vld [vmem:[#allocation2 + $0x10c] sm:$0xff]
      %v2416 = vld [vmem:[#allocation2 + $0x114] sm:$0xff]
      %v2417 = vld [vmem:[#allocation2 + $0x11c] sm:$0xff]
      %v2418 = vld [vmem:[#allocation2 + $0x124] sm:$0xff]
      %v2419 = vld [vmem:[#allocation2 + $0x12c] sm:$0xff]
      %v2420 = vpack.c.bf16 %v2385, %v2384
      %v2421 = vpack.c.bf16 %v2387, %v2386
      %v2422 = vpack.c.bf16 %v2389, %v2388
      %v2423 = vpack.c.bf16 %v2391, %v2390
      %v2424 = vpack.c.bf16 %v2393, %v2392
      %v2425 = vpack.c.bf16 %v2395, %v2394
      %v2426 = vpack.c.bf16 %v2397, %v2396
      %v2427 = vpack.c.bf16 %v2399, %v2398
      %v2428 = vpack.c.bf16 %v2401, %v2400
      %v2429 = vpack.c.bf16 %v2403, %v2402
      %v2430 = vpack.c.bf16 %v2405, %v2404
      %v2431 = vpack.c.bf16 %v2407, %v2406
      %v2432 = vpack.c.bf16 %v2409, %v2408
      %v2433 = vpack.c.bf16 %v2411, %v2410
      %v2434 = vpack.c.bf16 %v2413, %v2412
      %v2435 = vpack.c.bf16 %v2415, %v2414
      %v2436 = vpack.c.bf16 %v2417, %v2416
      %v2437 = vpack.c.bf16 %v2419, %v2418
      %s2438 = scalar_lea.vmem %s3, 320
      %v2439 = vld [vmem:[%s2438] sm:$0xf]
      %v2440 = vld [vmem:[%s2438 + $0x4] sm:$0xf]
      %v2441 = vld [vmem:[%s2438 + $0x8] sm:$0xf]
      %v2442 = vld [vmem:[%s2438 + $0xc] sm:$0xf]
      %v2443 = vld [vmem:[%s2438 + $0x10] sm:$0xf]
      %v2444 = vld [vmem:[%s2438 + $0x14] sm:$0xf]
      %v2445 = vld [vmem:[%s2438 + $0x18] sm:$0xf]
      %v2446 = vld [vmem:[%s2438 + $0x1c] sm:$0xf]
      %v2447 = vld [vmem:[%s2438 + $0x20] sm:$0xf]
      %v2448 = vld [vmem:[%s2438 + $0x24] sm:$0xf]
      %v2449 = vld [vmem:[%s2438 + $0x28] sm:$0xf]
      %v2450 = vld [vmem:[%s2438 + $0x2c] sm:$0xf]
      %v2451 = vld [vmem:[%s2438 + $0x30] sm:$0xf]
      %v2452 = vld [vmem:[%s2438 + $0x34] sm:$0xf]
      %v2453 = vld [vmem:[%s2438 + $0x38] sm:$0xf]
      %v2454 = vld [vmem:[%s2438 + $0x3c] sm:$0xf]
      %v2471 = vunpack.c.l.b16 %v2439
      %v2472 = vunpack.c.l.b16 %v2440
      %v2473 = vunpack.c.l.b16 %v2441
      %v2474 = vunpack.c.l.b16 %v2442
      %v2475 = vunpack.c.l.b16 %v2443
      %v2476 = vunpack.c.l.b16 %v2444
      %v2477 = vunpack.c.l.b16 %v2445
      %v2478 = vunpack.c.l.b16 %v2446
      %v2479 = vunpack.c.l.b16 %v2447
      %v2480 = vunpack.c.l.b16 %v2448
      %v2481 = vunpack.c.l.b16 %v2449
      %v2482 = vunpack.c.l.b16 %v2450
      %v2483 = vunpack.c.l.b16 %v2451
      %v2484 = vunpack.c.l.b16 %v2452
      %v2485 = vunpack.c.l.b16 %v2453
      %v2486 = vunpack.c.l.b16 %v2454
      %v2487 = vpack.c.b16 %v2472, %v2471
      %v2488 = vpack.c.b16 %v2474, %v2473
      %v2489 = vpack.c.b16 %v2476, %v2475
      %v2490 = vpack.c.b16 %v2478, %v2477
      %v2491 = vpack.c.b16 %v2480, %v2479
      %v2492 = vpack.c.b16 %v2482, %v2481
      %v2493 = vpack.c.b16 %v2484, %v2483
      %v2494 = vpack.c.b16 %v2486, %v2485
      %2503 = vmatprep.subr.bf16.mxu0 0
      %2504 = vmatpush1.bf16.msra.mxu0 %v2494
      %2505 = vmatprep.subr.bf16.mxu0 0
      %2506 = vmatpush1.bf16.msra.mxu0 %v2493
      %2507 = vmatprep.subr.bf16.mxu0 0
      %2508 = vmatpush1.bf16.msra.mxu0 %v2492
      %2509 = vmatprep.subr.bf16.mxu0 0
      %2510 = vmatpush1.bf16.msra.mxu0 %v2491
      %2511 = vmatprep.subr.bf16.mxu0 0
      %2512 = vmatpush1.bf16.msra.mxu0 %v2490
      %2513 = vmatprep.subr.bf16.mxu0 0
      %2514 = vmatpush1.bf16.msra.mxu0 %v2489
      %2515 = vmatprep.subr.bf16.mxu0 0
      %2516 = vmatpush1.bf16.msra.mxu0 %v2488
      %2517 = vmatprep.subr.bf16.mxu0 0
      %2518 = vmatpush1.bf16.msra.mxu0 %v2487
      %2519 = vmatprep.subr.bf16.mxu0 0
      %2520 = vmatpush2.bf16.msra.mxu0 0
      %2521 = vmatprep.subr.bf16.mxu0 0
      %2522 = vmatpush2.bf16.msra.mxu0 0
      %2523 = vmatprep.subr.bf16.mxu0 0
      %2524 = vmatpush2.bf16.msra.mxu0 0
      %2525 = vmatprep.subr.bf16.mxu0 0
      %2526 = vmatpush2.bf16.msra.mxu0 0
      %2527 = vmatprep.subr.bf16.mxu0 0
      %2528 = vmatpush2.bf16.msra.mxu0 0
      %2529 = vmatprep.subr.bf16.mxu0 0
      %2530 = vmatpush2.bf16.msra.mxu0 0
      %2531 = vmatprep.subr.bf16.mxu0 0
      %2532 = vmatpush2.bf16.msra.mxu0 0
      %2533 = vmatprep.subr.bf16.mxu0 0
      %2534 = vmatpush2.bf16.msra.mxu0 0
      %2535 = vmatprep.mubr.bf16.mxu0 0
      %2536 = vmatmul.mubr.bf16.gmra.mxu0 %v2420
      %v2537 = vpop.f32.mrf.mxu0
      %v2538 = vadd.f32 0.0, %v2537
      %v2539 = vpop.f32.mrf.mxu0
      %v2540 = vpop.f32.mrf.mxu0
      %v2541 = vadd.f32 0.0, %v2540
      %v2542 = vpop.f32.mrf.mxu0
      %2543 = vmatprep.mubr.bf16.mxu0 0
      %2544 = vmatmul.mubr.bf16.gmra.mxu0 %v2421
      %v2545 = vpop.f32.mrf.mxu0
      %v2546 = vadd.f32 0.0, %v2545
      %v2547 = vpop.f32.mrf.mxu0
      %v2548 = vpop.f32.mrf.mxu0
      %v2549 = vadd.f32 0.0, %v2548
      %v2550 = vpop.f32.mrf.mxu0
      %2551 = vmatprep.mubr.bf16.mxu0 0
      %2552 = vmatmul.mubr.bf16.gmra.mxu0 %v2422
      %v2553 = vpop.f32.mrf.mxu0
      %v2554 = vadd.f32 0.0, %v2553
      %v2555 = vpop.f32.mrf.mxu0
      %v2556 = vpop.f32.mrf.mxu0
      %v2557 = vadd.f32 0.0, %v2556
      %v2558 = vpop.f32.mrf.mxu0
      %2559 = vmatprep.mubr.bf16.mxu0 0
      %2560 = vmatmul.mubr.bf16.gmra.mxu0 %v2423
      %v2561 = vpop.f32.mrf.mxu0
      %v2562 = vadd.f32 0.0, %v2561
      %v2563 = vpop.f32.mrf.mxu0
      %v2564 = vpop.f32.mrf.mxu0
      %v2565 = vadd.f32 0.0, %v2564
      %v2566 = vpop.f32.mrf.mxu0
      %2567 = vmatprep.mubr.bf16.mxu0 0
      %2568 = vmatmul.mubr.bf16.gmra.mxu0 %v2424
      %v2569 = vpop.f32.mrf.mxu0
      %v2570 = vadd.f32 0.0, %v2569
      %v2571 = vpop.f32.mrf.mxu0
      %v2572 = vpop.f32.mrf.mxu0
      %v2573 = vadd.f32 0.0, %v2572
      %v2574 = vpop.f32.mrf.mxu0
      %2575 = vmatprep.mubr.bf16.mxu0 0
      %2576 = vmatmul.mubr.bf16.gmra.mxu0 %v2425
      %v2577 = vpop.f32.mrf.mxu0
      %v2578 = vadd.f32 0.0, %v2577
      %v2579 = vpop.f32.mrf.mxu0
      %v2580 = vpop.f32.mrf.mxu0
      %v2581 = vadd.f32 0.0, %v2580
      %v2582 = vpop.f32.mrf.mxu0
      %2583 = vmatprep.mubr.bf16.mxu0 0
      %2584 = vmatmul.mubr.bf16.gmra.mxu0 %v2426
      %v2585 = vpop.f32.mrf.mxu0
      %v2586 = vadd.f32 0.0, %v2585
      %v2587 = vpop.f32.mrf.mxu0
      %v2588 = vpop.f32.mrf.mxu0
      %v2589 = vadd.f32 0.0, %v2588
      %v2590 = vpop.f32.mrf.mxu0
      %2591 = vmatprep.mubr.bf16.mxu0 0
      %2592 = vmatmul.mubr.bf16.gmra.mxu0 %v2427
      %v2593 = vpop.f32.mrf.mxu0
      %v2594 = vadd.f32 0.0, %v2593
      %v2595 = vpop.f32.mrf.mxu0
      %v2596 = vpop.f32.mrf.mxu0
      %v2597 = vadd.f32 0.0, %v2596
      %v2598 = vpop.f32.mrf.mxu0
      %2599 = vmatprep.mubr.bf16.mxu0 0
      %2600 = vmatmul.mubr.bf16.gmra.mxu0 %v2428
      %v2601 = vpop.f32.mrf.mxu0
      %v2602 = vadd.f32 0.0, %v2601
      %v2603 = vpop.f32.mrf.mxu0
      %v2604 = vpop.f32.mrf.mxu0
      %v2605 = vadd.f32 0.0, %v2604
      %v2606 = vpop.f32.mrf.mxu0
      %2607 = vmatprep.mubr.bf16.mxu0 0
      %2608 = vmatmul.mubr.bf16.gmra.mxu0 %v2429
      %v2609 = vpop.f32.mrf.mxu0
      %v2610 = vadd.f32 0.0, %v2609
      %v2611 = vpop.f32.mrf.mxu0
      %v2612 = vpop.f32.mrf.mxu0
      %v2613 = vadd.f32 0.0, %v2612
      %v2614 = vpop.f32.mrf.mxu0
      %2615 = vmatprep.mubr.bf16.mxu0 0
      %2616 = vmatmul.mubr.bf16.gmra.mxu0 %v2430
      %v2617 = vpop.f32.mrf.mxu0
      %v2618 = vadd.f32 0.0, %v2617
      %v2619 = vpop.f32.mrf.mxu0
      %v2620 = vpop.f32.mrf.mxu0
      %v2621 = vadd.f32 0.0, %v2620
      %v2622 = vpop.f32.mrf.mxu0
      %2623 = vmatprep.mubr.bf16.mxu0 0
      %2624 = vmatmul.mubr.bf16.gmra.mxu0 %v2431
      %v2625 = vpop.f32.mrf.mxu0
      %v2626 = vadd.f32 0.0, %v2625
      %v2627 = vpop.f32.mrf.mxu0
      %v2628 = vpop.f32.mrf.mxu0
      %v2629 = vadd.f32 0.0, %v2628
      %v2630 = vpop.f32.mrf.mxu0
      %2631 = vmatprep.mubr.bf16.mxu0 0
      %2632 = vmatmul.mubr.bf16.gmra.mxu0 %v2432
      %v2633 = vpop.f32.mrf.mxu0
      %v2634 = vadd.f32 0.0, %v2633
      %v2635 = vpop.f32.mrf.mxu0
      %v2636 = vpop.f32.mrf.mxu0
      %v2637 = vadd.f32 0.0, %v2636
      %v2638 = vpop.f32.mrf.mxu0
      %2639 = vmatprep.mubr.bf16.mxu0 0
      %2640 = vmatmul.mubr.bf16.gmra.mxu0 %v2433
      %v2641 = vpop.f32.mrf.mxu0
      %v2642 = vadd.f32 0.0, %v2641
      %v2643 = vpop.f32.mrf.mxu0
      %v2644 = vpop.f32.mrf.mxu0
      %v2645 = vadd.f32 0.0, %v2644
      %v2646 = vpop.f32.mrf.mxu0
      %2647 = vmatprep.mubr.bf16.mxu0 0
      %2648 = vmatmul.mubr.bf16.gmra.mxu0 %v2434
      %v2649 = vpop.f32.mrf.mxu0
      %v2650 = vadd.f32 0.0, %v2649
      %v2651 = vpop.f32.mrf.mxu0
      %v2652 = vpop.f32.mrf.mxu0
      %v2653 = vadd.f32 0.0, %v2652
      %v2654 = vpop.f32.mrf.mxu0
      %2655 = vmatprep.mubr.bf16.mxu0 0
      %2656 = vmatmul.mubr.bf16.gmra.mxu0 %v2435
      %v2657 = vpop.f32.mrf.mxu0
      %v2658 = vadd.f32 0.0, %v2657
      %v2659 = vpop.f32.mrf.mxu0
      %v2660 = vpop.f32.mrf.mxu0
      %v2661 = vadd.f32 0.0, %v2660
      %v2662 = vpop.f32.mrf.mxu0
      %2663 = vmatprep.mubr.bf16.mxu0 0
      %2664 = vmatmul.mubr.bf16.gmra.mxu0 %v2436
      %v2665 = vpop.f32.mrf.mxu0
      %v2666 = vadd.f32 0.0, %v2665
      %v2667 = vpop.f32.mrf.mxu0
      %v2668 = vpop.f32.mrf.mxu0
      %v2669 = vadd.f32 0.0, %v2668
      %v2670 = vpop.f32.mrf.mxu0
      %2671 = vmatprep.mubr.bf16.mxu0 0
      %2672 = vmatmul.mubr.bf16.gmra.mxu0 %v2437
      %v2673 = vpop.f32.mrf.mxu0
      %v2674 = vadd.f32 0.0, %v2673
      %v2675 = vpop.f32.mrf.mxu0
      %v2676 = vpop.f32.mrf.mxu0
      %v2677 = vadd.f32 0.0, %v2676
      %v2678 = vpop.f32.mrf.mxu0
      %2679 = vdwg.mxu0
      %v2680 = vadd.f32 %v2348, %v2538
      %v2681 = vadd.f32 %v2349, %v2541
      %v2682 = vadd.f32 %v2350, %v2546
      %v2683 = vadd.f32 %v2351, %v2549
      %v2684 = vadd.f32 %v2352, %v2554
      %v2685 = vadd.f32 %v2353, %v2557
      %v2686 = vadd.f32 %v2354, %v2562
      %v2687 = vadd.f32 %v2355, %v2565
      %v2688 = vadd.f32 %v2356, %v2570
      %v2689 = vadd.f32 %v2357, %v2573
      %v2690 = vadd.f32 %v2358, %v2578
      %v2691 = vadd.f32 %v2359, %v2581
      %v2692 = vadd.f32 %v2360, %v2586
      %v2693 = vadd.f32 %v2361, %v2589
      %v2694 = vadd.f32 %v2362, %v2594
      %v2695 = vadd.f32 %v2363, %v2597
      %v2696 = vadd.f32 %v2364, %v2602
      %v2697 = vadd.f32 %v2365, %v2605
      %v2698 = vadd.f32 %v2366, %v2610
      %v2699 = vadd.f32 %v2367, %v2613
      %v2700 = vadd.f32 %v2368, %v2618
      %v2701 = vadd.f32 %v2369, %v2621
      %v2702 = vadd.f32 %v2370, %v2626
      %v2703 = vadd.f32 %v2371, %v2629
      %v2704 = vadd.f32 %v2372, %v2634
      %v2705 = vadd.f32 %v2373, %v2637
      %v2706 = vadd.f32 %v2374, %v2642
      %v2707 = vadd.f32 %v2375, %v2645
      %v2708 = vadd.f32 %v2376, %v2650
      %v2709 = vadd.f32 %v2377, %v2653
      %v2710 = vadd.f32 %v2378, %v2658
      %v2711 = vadd.f32 %v2379, %v2661
      %v2712 = vadd.f32 %v2380, %v2666
      %v2713 = vadd.f32 %v2381, %v2669
      %v2714 = vadd.f32 %v2382, %v2674
      %v2715 = vadd.f32 %v2383, %v2677
      %v2716 = vld [vmem:[#allocation2 + $0x24] sm:$0xff]
      %v2717 = vld [vmem:[#allocation2 + $0x2c] sm:$0xff]
      %v2718 = vld [vmem:[#allocation2 + $0x34] sm:$0xff]
      %v2719 = vld [vmem:[#allocation2 + $0x3c] sm:$0xff]
      %v2720 = vld [vmem:[#allocation2 + $0x44] sm:$0xff]
      %v2721 = vld [vmem:[#allocation2 + $0x4c] sm:$0xff]
      %v2722 = vld [vmem:[#allocation2 + $0x54] sm:$0xff]
      %v2723 = vld [vmem:[#allocation2 + $0x5c] sm:$0xff]
      %v2724 = vld [vmem:[#allocation2 + $0x64] sm:$0xff]
      %v2725 = vld [vmem:[#allocation2 + $0x6c] sm:$0xff]
      %v2726 = vld [vmem:[#allocation2 + $0x74] sm:$0xff]
      %v2727 = vld [vmem:[#allocation2 + $0x7c] sm:$0xff]
      %v2728 = vld [vmem:[#allocation2 + $0x84] sm:$0xff]
      %v2729 = vld [vmem:[#allocation2 + $0x8c] sm:$0xff]
      %v2730 = vld [vmem:[#allocation2 + $0x94] sm:$0xff]
      %v2731 = vld [vmem:[#allocation2 + $0x9c] sm:$0xff]
      %v2732 = vld [vmem:[#allocation2 + $0xa4] sm:$0xff]
      %v2733 = vld [vmem:[#allocation2 + $0xac] sm:$0xff]
      %v2734 = vld [vmem:[#allocation2 + $0xb4] sm:$0xff]
      %v2735 = vld [vmem:[#allocation2 + $0xbc] sm:$0xff]
      %v2736 = vld [vmem:[#allocation2 + $0xc4] sm:$0xff]
      %v2737 = vld [vmem:[#allocation2 + $0xcc] sm:$0xff]
      %v2738 = vld [vmem:[#allocation2 + $0xd4] sm:$0xff]
      %v2739 = vld [vmem:[#allocation2 + $0xdc] sm:$0xff]
      %v2740 = vld [vmem:[#allocation2 + $0xe4] sm:$0xff]
      %v2741 = vld [vmem:[#allocation2 + $0xec] sm:$0xff]
      %v2742 = vld [vmem:[#allocation2 + $0xf4] sm:$0xff]
      %v2743 = vld [vmem:[#allocation2 + $0xfc] sm:$0xff]
      %v2744 = vld [vmem:[#allocation2 + $0x104] sm:$0xff]
      %v2745 = vld [vmem:[#allocation2 + $0x10c] sm:$0xff]
      %v2746 = vld [vmem:[#allocation2 + $0x114] sm:$0xff]
      %v2747 = vld [vmem:[#allocation2 + $0x11c] sm:$0xff]
      %v2748 = vld [vmem:[#allocation2 + $0x124] sm:$0xff]
      %v2749 = vld [vmem:[#allocation2 + $0x12c] sm:$0xff]
      %v2750 = vld [vmem:[#allocation2 + $0x134] sm:$0xff]
      %v2751 = vld [vmem:[#allocation2 + $0x13c] sm:$0xff]
      %v2752 = vpack.c.bf16 %v2717, %v2716
      %v2753 = vpack.c.bf16 %v2719, %v2718
      %v2754 = vpack.c.bf16 %v2721, %v2720
      %v2755 = vpack.c.bf16 %v2723, %v2722
      %v2756 = vpack.c.bf16 %v2725, %v2724
      %v2757 = vpack.c.bf16 %v2727, %v2726
      %v2758 = vpack.c.bf16 %v2729, %v2728
      %v2759 = vpack.c.bf16 %v2731, %v2730
      %v2760 = vpack.c.bf16 %v2733, %v2732
      %v2761 = vpack.c.bf16 %v2735, %v2734
      %v2762 = vpack.c.bf16 %v2737, %v2736
      %v2763 = vpack.c.bf16 %v2739, %v2738
      %v2764 = vpack.c.bf16 %v2741, %v2740
      %v2765 = vpack.c.bf16 %v2743, %v2742
      %v2766 = vpack.c.bf16 %v2745, %v2744
      %v2767 = vpack.c.bf16 %v2747, %v2746
      %v2768 = vpack.c.bf16 %v2749, %v2748
      %v2769 = vpack.c.bf16 %v2751, %v2750
      %s2770 = scalar_lea.vmem %s3, 384
      %v2771 = vld [vmem:[%s2770] sm:$0xf]
      %v2772 = vld [vmem:[%s2770 + $0x4] sm:$0xf]
      %v2773 = vld [vmem:[%s2770 + $0x8] sm:$0xf]
      %v2774 = vld [vmem:[%s2770 + $0xc] sm:$0xf]
      %v2775 = vld [vmem:[%s2770 + $0x10] sm:$0xf]
      %v2776 = vld [vmem:[%s2770 + $0x14] sm:$0xf]
      %v2777 = vld [vmem:[%s2770 + $0x18] sm:$0xf]
      %v2778 = vld [vmem:[%s2770 + $0x1c] sm:$0xf]
      %v2779 = vld [vmem:[%s2770 + $0x20] sm:$0xf]
      %v2780 = vld [vmem:[%s2770 + $0x24] sm:$0xf]
      %v2781 = vld [vmem:[%s2770 + $0x28] sm:$0xf]
      %v2782 = vld [vmem:[%s2770 + $0x2c] sm:$0xf]
      %v2783 = vld [vmem:[%s2770 + $0x30] sm:$0xf]
      %v2784 = vld [vmem:[%s2770 + $0x34] sm:$0xf]
      %v2785 = vld [vmem:[%s2770 + $0x38] sm:$0xf]
      %v2786 = vld [vmem:[%s2770 + $0x3c] sm:$0xf]
      %v2803 = vunpack.c.l.b16 %v2771
      %v2804 = vunpack.c.l.b16 %v2772
      %v2805 = vunpack.c.l.b16 %v2773
      %v2806 = vunpack.c.l.b16 %v2774
      %v2807 = vunpack.c.l.b16 %v2775
      %v2808 = vunpack.c.l.b16 %v2776
      %v2809 = vunpack.c.l.b16 %v2777
      %v2810 = vunpack.c.l.b16 %v2778
      %v2811 = vunpack.c.l.b16 %v2779
      %v2812 = vunpack.c.l.b16 %v2780
      %v2813 = vunpack.c.l.b16 %v2781
      %v2814 = vunpack.c.l.b16 %v2782
      %v2815 = vunpack.c.l.b16 %v2783
      %v2816 = vunpack.c.l.b16 %v2784
      %v2817 = vunpack.c.l.b16 %v2785
      %v2818 = vunpack.c.l.b16 %v2786
      %v2819 = vpack.c.b16 %v2804, %v2803
      %v2820 = vpack.c.b16 %v2806, %v2805
      %v2821 = vpack.c.b16 %v2808, %v2807
      %v2822 = vpack.c.b16 %v2810, %v2809
      %v2823 = vpack.c.b16 %v2812, %v2811
      %v2824 = vpack.c.b16 %v2814, %v2813
      %v2825 = vpack.c.b16 %v2816, %v2815
      %v2826 = vpack.c.b16 %v2818, %v2817
      %2835 = vmatprep.subr.bf16.mxu0 0
      %2836 = vmatpush1.bf16.msra.mxu0 %v2826
      %2837 = vmatprep.subr.bf16.mxu0 0
      %2838 = vmatpush1.bf16.msra.mxu0 %v2825
      %2839 = vmatprep.subr.bf16.mxu0 0
      %2840 = vmatpush1.bf16.msra.mxu0 %v2824
      %2841 = vmatprep.subr.bf16.mxu0 0
      %2842 = vmatpush1.bf16.msra.mxu0 %v2823
      %2843 = vmatprep.subr.bf16.mxu0 0
      %2844 = vmatpush1.bf16.msra.mxu0 %v2822
      %2845 = vmatprep.subr.bf16.mxu0 0
      %2846 = vmatpush1.bf16.msra.mxu0 %v2821
      %2847 = vmatprep.subr.bf16.mxu0 0
      %2848 = vmatpush1.bf16.msra.mxu0 %v2820
      %2849 = vmatprep.subr.bf16.mxu0 0
      %2850 = vmatpush1.bf16.msra.mxu0 %v2819
      %2851 = vmatprep.subr.bf16.mxu0 0
      %2852 = vmatpush2.bf16.msra.mxu0 0
      %2853 = vmatprep.subr.bf16.mxu0 0
      %2854 = vmatpush2.bf16.msra.mxu0 0
      %2855 = vmatprep.subr.bf16.mxu0 0
      %2856 = vmatpush2.bf16.msra.mxu0 0
      %2857 = vmatprep.subr.bf16.mxu0 0
      %2858 = vmatpush2.bf16.msra.mxu0 0
      %2859 = vmatprep.subr.bf16.mxu0 0
      %2860 = vmatpush2.bf16.msra.mxu0 0
      %2861 = vmatprep.subr.bf16.mxu0 0
      %2862 = vmatpush2.bf16.msra.mxu0 0
      %2863 = vmatprep.subr.bf16.mxu0 0
      %2864 = vmatpush2.bf16.msra.mxu0 0
      %2865 = vmatprep.subr.bf16.mxu0 0
      %2866 = vmatpush2.bf16.msra.mxu0 0
      %2867 = vmatprep.mubr.bf16.mxu0 0
      %2868 = vmatmul.mubr.bf16.gmra.mxu0 %v2752
      %v2869 = vpop.f32.mrf.mxu0
      %v2870 = vadd.f32 0.0, %v2869
      %v2871 = vpop.f32.mrf.mxu0
      %v2872 = vpop.f32.mrf.mxu0
      %v2873 = vadd.f32 0.0, %v2872
      %v2874 = vpop.f32.mrf.mxu0
      %2875 = vmatprep.mubr.bf16.mxu0 0
      %2876 = vmatmul.mubr.bf16.gmra.mxu0 %v2753
      %v2877 = vpop.f32.mrf.mxu0
      %v2878 = vadd.f32 0.0, %v2877
      %v2879 = vpop.f32.mrf.mxu0
      %v2880 = vpop.f32.mrf.mxu0
      %v2881 = vadd.f32 0.0, %v2880
      %v2882 = vpop.f32.mrf.mxu0
      %2883 = vmatprep.mubr.bf16.mxu0 0
      %2884 = vmatmul.mubr.bf16.gmra.mxu0 %v2754
      %v2885 = vpop.f32.mrf.mxu0
      %v2886 = vadd.f32 0.0, %v2885
      %v2887 = vpop.f32.mrf.mxu0
      %v2888 = vpop.f32.mrf.mxu0
      %v2889 = vadd.f32 0.0, %v2888
      %v2890 = vpop.f32.mrf.mxu0
      %2891 = vmatprep.mubr.bf16.mxu0 0
      %2892 = vmatmul.mubr.bf16.gmra.mxu0 %v2755
      %v2893 = vpop.f32.mrf.mxu0
      %v2894 = vadd.f32 0.0, %v2893
      %v2895 = vpop.f32.mrf.mxu0
      %v2896 = vpop.f32.mrf.mxu0
      %v2897 = vadd.f32 0.0, %v2896
      %v2898 = vpop.f32.mrf.mxu0
      %2899 = vmatprep.mubr.bf16.mxu0 0
      %2900 = vmatmul.mubr.bf16.gmra.mxu0 %v2756
      %v2901 = vpop.f32.mrf.mxu0
      %v2902 = vadd.f32 0.0, %v2901
      %v2903 = vpop.f32.mrf.mxu0
      %v2904 = vpop.f32.mrf.mxu0
      %v2905 = vadd.f32 0.0, %v2904
      %v2906 = vpop.f32.mrf.mxu0
      %2907 = vmatprep.mubr.bf16.mxu0 0
      %2908 = vmatmul.mubr.bf16.gmra.mxu0 %v2757
      %v2909 = vpop.f32.mrf.mxu0
      %v2910 = vadd.f32 0.0, %v2909
      %v2911 = vpop.f32.mrf.mxu0
      %v2912 = vpop.f32.mrf.mxu0
      %v2913 = vadd.f32 0.0, %v2912
      %v2914 = vpop.f32.mrf.mxu0
      %2915 = vmatprep.mubr.bf16.mxu0 0
      %2916 = vmatmul.mubr.bf16.gmra.mxu0 %v2758
      %v2917 = vpop.f32.mrf.mxu0
      %v2918 = vadd.f32 0.0, %v2917
      %v2919 = vpop.f32.mrf.mxu0
      %v2920 = vpop.f32.mrf.mxu0
      %v2921 = vadd.f32 0.0, %v2920
      %v2922 = vpop.f32.mrf.mxu0
      %2923 = vmatprep.mubr.bf16.mxu0 0
      %2924 = vmatmul.mubr.bf16.gmra.mxu0 %v2759
      %v2925 = vpop.f32.mrf.mxu0
      %v2926 = vadd.f32 0.0, %v2925
      %v2927 = vpop.f32.mrf.mxu0
      %v2928 = vpop.f32.mrf.mxu0
      %v2929 = vadd.f32 0.0, %v2928
      %v2930 = vpop.f32.mrf.mxu0
      %2931 = vmatprep.mubr.bf16.mxu0 0
      %2932 = vmatmul.mubr.bf16.gmra.mxu0 %v2760
      %v2933 = vpop.f32.mrf.mxu0
      %v2934 = vadd.f32 0.0, %v2933
      %v2935 = vpop.f32.mrf.mxu0
      %v2936 = vpop.f32.mrf.mxu0
      %v2937 = vadd.f32 0.0, %v2936
      %v2938 = vpop.f32.mrf.mxu0
      %2939 = vmatprep.mubr.bf16.mxu0 0
      %2940 = vmatmul.mubr.bf16.gmra.mxu0 %v2761
      %v2941 = vpop.f32.mrf.mxu0
      %v2942 = vadd.f32 0.0, %v2941
      %v2943 = vpop.f32.mrf.mxu0
      %v2944 = vpop.f32.mrf.mxu0
      %v2945 = vadd.f32 0.0, %v2944
      %v2946 = vpop.f32.mrf.mxu0
      %2947 = vmatprep.mubr.bf16.mxu0 0
      %2948 = vmatmul.mubr.bf16.gmra.mxu0 %v2762
      %v2949 = vpop.f32.mrf.mxu0
      %v2950 = vadd.f32 0.0, %v2949
      %v2951 = vpop.f32.mrf.mxu0
      %v2952 = vpop.f32.mrf.mxu0
      %v2953 = vadd.f32 0.0, %v2952
      %v2954 = vpop.f32.mrf.mxu0
      %2955 = vmatprep.mubr.bf16.mxu0 0
      %2956 = vmatmul.mubr.bf16.gmra.mxu0 %v2763
      %v2957 = vpop.f32.mrf.mxu0
      %v2958 = vadd.f32 0.0, %v2957
      %v2959 = vpop.f32.mrf.mxu0
      %v2960 = vpop.f32.mrf.mxu0
      %v2961 = vadd.f32 0.0, %v2960
      %v2962 = vpop.f32.mrf.mxu0
      %2963 = vmatprep.mubr.bf16.mxu0 0
      %2964 = vmatmul.mubr.bf16.gmra.mxu0 %v2764
      %v2965 = vpop.f32.mrf.mxu0
      %v2966 = vadd.f32 0.0, %v2965
      %v2967 = vpop.f32.mrf.mxu0
      %v2968 = vpop.f32.mrf.mxu0
      %v2969 = vadd.f32 0.0, %v2968
      %v2970 = vpop.f32.mrf.mxu0
      %2971 = vmatprep.mubr.bf16.mxu0 0
      %2972 = vmatmul.mubr.bf16.gmra.mxu0 %v2765
      %v2973 = vpop.f32.mrf.mxu0
      %v2974 = vadd.f32 0.0, %v2973
      %v2975 = vpop.f32.mrf.mxu0
      %v2976 = vpop.f32.mrf.mxu0
      %v2977 = vadd.f32 0.0, %v2976
      %v2978 = vpop.f32.mrf.mxu0
      %2979 = vmatprep.mubr.bf16.mxu0 0
      %2980 = vmatmul.mubr.bf16.gmra.mxu0 %v2766
      %v2981 = vpop.f32.mrf.mxu0
      %v2982 = vadd.f32 0.0, %v2981
      %v2983 = vpop.f32.mrf.mxu0
      %v2984 = vpop.f32.mrf.mxu0
      %v2985 = vadd.f32 0.0, %v2984
      %v2986 = vpop.f32.mrf.mxu0
      %2987 = vmatprep.mubr.bf16.mxu0 0
      %2988 = vmatmul.mubr.bf16.gmra.mxu0 %v2767
      %v2989 = vpop.f32.mrf.mxu0
      %v2990 = vadd.f32 0.0, %v2989
      %v2991 = vpop.f32.mrf.mxu0
      %v2992 = vpop.f32.mrf.mxu0
      %v2993 = vadd.f32 0.0, %v2992
      %v2994 = vpop.f32.mrf.mxu0
      %2995 = vmatprep.mubr.bf16.mxu0 0
      %2996 = vmatmul.mubr.bf16.gmra.mxu0 %v2768
      %v2997 = vpop.f32.mrf.mxu0
      %v2998 = vadd.f32 0.0, %v2997
      %v2999 = vpop.f32.mrf.mxu0
      %v3000 = vpop.f32.mrf.mxu0
      %v3001 = vadd.f32 0.0, %v3000
      %v3002 = vpop.f32.mrf.mxu0
      %3003 = vmatprep.mubr.bf16.mxu0 0
      %3004 = vmatmul.mubr.bf16.gmra.mxu0 %v2769
      %v3005 = vpop.f32.mrf.mxu0
      %v3006 = vadd.f32 0.0, %v3005
      %v3007 = vpop.f32.mrf.mxu0
      %v3008 = vpop.f32.mrf.mxu0
      %v3009 = vadd.f32 0.0, %v3008
      %v3010 = vpop.f32.mrf.mxu0
      %3011 = vdwg.mxu0
      %v3012 = vadd.f32 %v2680, %v2870
      %v3013 = vadd.f32 %v2681, %v2873
      %v3014 = vadd.f32 %v2682, %v2878
      %v3015 = vadd.f32 %v2683, %v2881
      %v3016 = vadd.f32 %v2684, %v2886
      %v3017 = vadd.f32 %v2685, %v2889
      %v3018 = vadd.f32 %v2686, %v2894
      %v3019 = vadd.f32 %v2687, %v2897
      %v3020 = vadd.f32 %v2688, %v2902
      %v3021 = vadd.f32 %v2689, %v2905
      %v3022 = vadd.f32 %v2690, %v2910
      %v3023 = vadd.f32 %v2691, %v2913
      %v3024 = vadd.f32 %v2692, %v2918
      %v3025 = vadd.f32 %v2693, %v2921
      %v3026 = vadd.f32 %v2694, %v2926
      %v3027 = vadd.f32 %v2695, %v2929
      %v3028 = vadd.f32 %v2696, %v2934
      %v3029 = vadd.f32 %v2697, %v2937
      %v3030 = vadd.f32 %v2698, %v2942
      %v3031 = vadd.f32 %v2699, %v2945
      %v3032 = vadd.f32 %v2700, %v2950
      %v3033 = vadd.f32 %v2701, %v2953
      %v3034 = vadd.f32 %v2702, %v2958
      %v3035 = vadd.f32 %v2703, %v2961
      %v3036 = vadd.f32 %v2704, %v2966
      %v3037 = vadd.f32 %v2705, %v2969
      %v3038 = vadd.f32 %v2706, %v2974
      %v3039 = vadd.f32 %v2707, %v2977
      %v3040 = vadd.f32 %v2708, %v2982
      %v3041 = vadd.f32 %v2709, %v2985
      %v3042 = vadd.f32 %v2710, %v2990
      %v3043 = vadd.f32 %v2711, %v2993
      %v3044 = vadd.f32 %v2712, %v2998
      %v3045 = vadd.f32 %v2713, %v3001
      %v3046 = vadd.f32 %v2714, %v3006
      %v3047 = vadd.f32 %v2715, %v3009
      %v3048 = vld [vmem:[#allocation2 + $0x25] sm:$0xff]
      %v3049 = vld [vmem:[#allocation2 + $0x2d] sm:$0xff]
      %v3050 = vld [vmem:[#allocation2 + $0x35] sm:$0xff]
      %v3051 = vld [vmem:[#allocation2 + $0x3d] sm:$0xff]
      %v3052 = vld [vmem:[#allocation2 + $0x45] sm:$0xff]
      %v3053 = vld [vmem:[#allocation2 + $0x4d] sm:$0xff]
      %v3054 = vld [vmem:[#allocation2 + $0x55] sm:$0xff]
      %v3055 = vld [vmem:[#allocation2 + $0x5d] sm:$0xff]
      %v3056 = vld [vmem:[#allocation2 + $0x65] sm:$0xff]
      %v3057 = vld [vmem:[#allocation2 + $0x6d] sm:$0xff]
      %v3058 = vld [vmem:[#allocation2 + $0x75] sm:$0xff]
      %v3059 = vld [vmem:[#allocation2 + $0x7d] sm:$0xff]
      %v3060 = vld [vmem:[#allocation2 + $0x85] sm:$0xff]
      %v3061 = vld [vmem:[#allocation2 + $0x8d] sm:$0xff]
      %v3062 = vld [vmem:[#allocation2 + $0x95] sm:$0xff]
      %v3063 = vld [vmem:[#allocation2 + $0x9d] sm:$0xff]
      %v3064 = vld [vmem:[#allocation2 + $0xa5] sm:$0xff]
      %v3065 = vld [vmem:[#allocation2 + $0xad] sm:$0xff]
      %v3066 = vld [vmem:[#allocation2 + $0xb5] sm:$0xff]
      %v3067 = vld [vmem:[#allocation2 + $0xbd] sm:$0xff]
      %v3068 = vld [vmem:[#allocation2 + $0xc5] sm:$0xff]
      %v3069 = vld [vmem:[#allocation2 + $0xcd] sm:$0xff]
      %v3070 = vld [vmem:[#allocation2 + $0xd5] sm:$0xff]
      %v3071 = vld [vmem:[#allocation2 + $0xdd] sm:$0xff]
      %v3072 = vld [vmem:[#allocation2 + $0xe5] sm:$0xff]
      %v3073 = vld [vmem:[#allocation2 + $0xed] sm:$0xff]
      %v3074 = vld [vmem:[#allocation2 + $0xf5] sm:$0xff]
      %v3075 = vld [vmem:[#allocation2 + $0xfd] sm:$0xff]
      %v3076 = vld [vmem:[#allocation2 + $0x105] sm:$0xff]
      %v3077 = vld [vmem:[#allocation2 + $0x10d] sm:$0xff]
      %v3078 = vld [vmem:[#allocation2 + $0x115] sm:$0xff]
      %v3079 = vld [vmem:[#allocation2 + $0x11d] sm:$0xff]
      %v3080 = vld [vmem:[#allocation2 + $0x125] sm:$0xff]
      %v3081 = vld [vmem:[#allocation2 + $0x12d] sm:$0xff]
      %v3082 = vld [vmem:[#allocation2 + $0x135] sm:$0xff]
      %v3083 = vld [vmem:[#allocation2 + $0x13d] sm:$0xff]
      %v3084 = vpack.c.bf16 %v3049, %v3048
      %v3085 = vpack.c.bf16 %v3051, %v3050
      %v3086 = vpack.c.bf16 %v3053, %v3052
      %v3087 = vpack.c.bf16 %v3055, %v3054
      %v3088 = vpack.c.bf16 %v3057, %v3056
      %v3089 = vpack.c.bf16 %v3059, %v3058
      %v3090 = vpack.c.bf16 %v3061, %v3060
      %v3091 = vpack.c.bf16 %v3063, %v3062
      %v3092 = vpack.c.bf16 %v3065, %v3064
      %v3093 = vpack.c.bf16 %v3067, %v3066
      %v3094 = vpack.c.bf16 %v3069, %v3068
      %v3095 = vpack.c.bf16 %v3071, %v3070
      %v3096 = vpack.c.bf16 %v3073, %v3072
      %v3097 = vpack.c.bf16 %v3075, %v3074
      %v3098 = vpack.c.bf16 %v3077, %v3076
      %v3099 = vpack.c.bf16 %v3079, %v3078
      %v3100 = vpack.c.bf16 %v3081, %v3080
      %v3101 = vpack.c.bf16 %v3083, %v3082
      %s3102 = scalar_lea.vmem %s3, 448
      %v3103 = vld [vmem:[%s3102] sm:$0xf]
      %v3104 = vld [vmem:[%s3102 + $0x4] sm:$0xf]
      %v3105 = vld [vmem:[%s3102 + $0x8] sm:$0xf]
      %v3106 = vld [vmem:[%s3102 + $0xc] sm:$0xf]
      %v3107 = vld [vmem:[%s3102 + $0x10] sm:$0xf]
      %v3108 = vld [vmem:[%s3102 + $0x14] sm:$0xf]
      %v3109 = vld [vmem:[%s3102 + $0x18] sm:$0xf]
      %v3110 = vld [vmem:[%s3102 + $0x1c] sm:$0xf]
      %v3111 = vld [vmem:[%s3102 + $0x20] sm:$0xf]
      %v3112 = vld [vmem:[%s3102 + $0x24] sm:$0xf]
      %v3113 = vld [vmem:[%s3102 + $0x28] sm:$0xf]
      %v3114 = vld [vmem:[%s3102 + $0x2c] sm:$0xf]
      %v3115 = vld [vmem:[%s3102 + $0x30] sm:$0xf]
      %v3116 = vld [vmem:[%s3102 + $0x34] sm:$0xf]
      %v3117 = vld [vmem:[%s3102 + $0x38] sm:$0xf]
      %v3118 = vld [vmem:[%s3102 + $0x3c] sm:$0xf]
      %v3135 = vunpack.c.l.b16 %v3103
      %v3136 = vunpack.c.l.b16 %v3104
      %v3137 = vunpack.c.l.b16 %v3105
      %v3138 = vunpack.c.l.b16 %v3106
      %v3139 = vunpack.c.l.b16 %v3107
      %v3140 = vunpack.c.l.b16 %v3108
      %v3141 = vunpack.c.l.b16 %v3109
      %v3142 = vunpack.c.l.b16 %v3110
      %v3143 = vunpack.c.l.b16 %v3111
      %v3144 = vunpack.c.l.b16 %v3112
      %v3145 = vunpack.c.l.b16 %v3113
      %v3146 = vunpack.c.l.b16 %v3114
      %v3147 = vunpack.c.l.b16 %v3115
      %v3148 = vunpack.c.l.b16 %v3116
      %v3149 = vunpack.c.l.b16 %v3117
      %v3150 = vunpack.c.l.b16 %v3118
      %v3151 = vpack.c.b16 %v3136, %v3135
      %v3152 = vpack.c.b16 %v3138, %v3137
      %v3153 = vpack.c.b16 %v3140, %v3139
      %v3154 = vpack.c.b16 %v3142, %v3141
      %v3155 = vpack.c.b16 %v3144, %v3143
      %v3156 = vpack.c.b16 %v3146, %v3145
      %v3157 = vpack.c.b16 %v3148, %v3147
      %v3158 = vpack.c.b16 %v3150, %v3149
      %3167 = vmatprep.subr.bf16.mxu0 0
      %3168 = vmatpush1.bf16.msra.mxu0 %v3158
      %3169 = vmatprep.subr.bf16.mxu0 0
      %3170 = vmatpush1.bf16.msra.mxu0 %v3157
      %3171 = vmatprep.subr.bf16.mxu0 0
      %3172 = vmatpush1.bf16.msra.mxu0 %v3156
      %3173 = vmatprep.subr.bf16.mxu0 0
      %3174 = vmatpush1.bf16.msra.mxu0 %v3155
      %3175 = vmatprep.subr.bf16.mxu0 0
      %3176 = vmatpush1.bf16.msra.mxu0 %v3154
      %3177 = vmatprep.subr.bf16.mxu0 0
      %3178 = vmatpush1.bf16.msra.mxu0 %v3153
      %3179 = vmatprep.subr.bf16.mxu0 0
      %3180 = vmatpush1.bf16.msra.mxu0 %v3152
      %3181 = vmatprep.subr.bf16.mxu0 0
      %3182 = vmatpush1.bf16.msra.mxu0 %v3151
      %3183 = vmatprep.subr.bf16.mxu0 0
      %3184 = vmatpush2.bf16.msra.mxu0 0
      %3185 = vmatprep.subr.bf16.mxu0 0
      %3186 = vmatpush2.bf16.msra.mxu0 0
      %3187 = vmatprep.subr.bf16.mxu0 0
      %3188 = vmatpush2.bf16.msra.mxu0 0
      %3189 = vmatprep.subr.bf16.mxu0 0
      %3190 = vmatpush2.bf16.msra.mxu0 0
      %3191 = vmatprep.subr.bf16.mxu0 0
      %3192 = vmatpush2.bf16.msra.mxu0 0
      %3193 = vmatprep.subr.bf16.mxu0 0
      %3194 = vmatpush2.bf16.msra.mxu0 0
      %3195 = vmatprep.subr.bf16.mxu0 0
      %3196 = vmatpush2.bf16.msra.mxu0 0
      %3197 = vmatprep.subr.bf16.mxu0 0
      %3198 = vmatpush2.bf16.msra.mxu0 0
      %3199 = vmatprep.mubr.bf16.mxu0 0
      %3200 = vmatmul.mubr.bf16.gmra.mxu0 %v3084
      %v3201 = vpop.f32.mrf.mxu0
      %v3202 = vadd.f32 0.0, %v3201
      %v3203 = vpop.f32.mrf.mxu0
      %v3204 = vpop.f32.mrf.mxu0
      %v3205 = vadd.f32 0.0, %v3204
      %v3206 = vpop.f32.mrf.mxu0
      %3207 = vmatprep.mubr.bf16.mxu0 0
      %3208 = vmatmul.mubr.bf16.gmra.mxu0 %v3085
      %v3209 = vpop.f32.mrf.mxu0
      %v3210 = vadd.f32 0.0, %v3209
      %v3211 = vpop.f32.mrf.mxu0
      %v3212 = vpop.f32.mrf.mxu0
      %v3213 = vadd.f32 0.0, %v3212
      %v3214 = vpop.f32.mrf.mxu0
      %3215 = vmatprep.mubr.bf16.mxu0 0
      %3216 = vmatmul.mubr.bf16.gmra.mxu0 %v3086
      %v3217 = vpop.f32.mrf.mxu0
      %v3218 = vadd.f32 0.0, %v3217
      %v3219 = vpop.f32.mrf.mxu0
      %v3220 = vpop.f32.mrf.mxu0
      %v3221 = vadd.f32 0.0, %v3220
      %v3222 = vpop.f32.mrf.mxu0
      %3223 = vmatprep.mubr.bf16.mxu0 0
      %3224 = vmatmul.mubr.bf16.gmra.mxu0 %v3087
      %v3225 = vpop.f32.mrf.mxu0
      %v3226 = vadd.f32 0.0, %v3225
      %v3227 = vpop.f32.mrf.mxu0
      %v3228 = vpop.f32.mrf.mxu0
      %v3229 = vadd.f32 0.0, %v3228
      %v3230 = vpop.f32.mrf.mxu0
      %3231 = vmatprep.mubr.bf16.mxu0 0
      %3232 = vmatmul.mubr.bf16.gmra.mxu0 %v3088
      %v3233 = vpop.f32.mrf.mxu0
      %v3234 = vadd.f32 0.0, %v3233
      %v3235 = vpop.f32.mrf.mxu0
      %v3236 = vpop.f32.mrf.mxu0
      %v3237 = vadd.f32 0.0, %v3236
      %v3238 = vpop.f32.mrf.mxu0
      %3239 = vmatprep.mubr.bf16.mxu0 0
      %3240 = vmatmul.mubr.bf16.gmra.mxu0 %v3089
      %v3241 = vpop.f32.mrf.mxu0
      %v3242 = vadd.f32 0.0, %v3241
      %v3243 = vpop.f32.mrf.mxu0
      %v3244 = vpop.f32.mrf.mxu0
      %v3245 = vadd.f32 0.0, %v3244
      %v3246 = vpop.f32.mrf.mxu0
      %3247 = vmatprep.mubr.bf16.mxu0 0
      %3248 = vmatmul.mubr.bf16.gmra.mxu0 %v3090
      %v3249 = vpop.f32.mrf.mxu0
      %v3250 = vadd.f32 0.0, %v3249
      %v3251 = vpop.f32.mrf.mxu0
      %v3252 = vpop.f32.mrf.mxu0
      %v3253 = vadd.f32 0.0, %v3252
      %v3254 = vpop.f32.mrf.mxu0
      %3255 = vmatprep.mubr.bf16.mxu0 0
      %3256 = vmatmul.mubr.bf16.gmra.mxu0 %v3091
      %v3257 = vpop.f32.mrf.mxu0
      %v3258 = vadd.f32 0.0, %v3257
      %v3259 = vpop.f32.mrf.mxu0
      %v3260 = vpop.f32.mrf.mxu0
      %v3261 = vadd.f32 0.0, %v3260
      %v3262 = vpop.f32.mrf.mxu0
      %3263 = vmatprep.mubr.bf16.mxu0 0
      %3264 = vmatmul.mubr.bf16.gmra.mxu0 %v3092
      %v3265 = vpop.f32.mrf.mxu0
      %v3266 = vadd.f32 0.0, %v3265
      %v3267 = vpop.f32.mrf.mxu0
      %v3268 = vpop.f32.mrf.mxu0
      %v3269 = vadd.f32 0.0, %v3268
      %v3270 = vpop.f32.mrf.mxu0
      %3271 = vmatprep.mubr.bf16.mxu0 0
      %3272 = vmatmul.mubr.bf16.gmra.mxu0 %v3093
      %v3273 = vpop.f32.mrf.mxu0
      %v3274 = vadd.f32 0.0, %v3273
      %v3275 = vpop.f32.mrf.mxu0
      %v3276 = vpop.f32.mrf.mxu0
      %v3277 = vadd.f32 0.0, %v3276
      %v3278 = vpop.f32.mrf.mxu0
      %3279 = vmatprep.mubr.bf16.mxu0 0
      %3280 = vmatmul.mubr.bf16.gmra.mxu0 %v3094
      %v3281 = vpop.f32.mrf.mxu0
      %v3282 = vadd.f32 0.0, %v3281
      %v3283 = vpop.f32.mrf.mxu0
      %v3284 = vpop.f32.mrf.mxu0
      %v3285 = vadd.f32 0.0, %v3284
      %v3286 = vpop.f32.mrf.mxu0
      %3287 = vmatprep.mubr.bf16.mxu0 0
      %3288 = vmatmul.mubr.bf16.gmra.mxu0 %v3095
      %v3289 = vpop.f32.mrf.mxu0
      %v3290 = vadd.f32 0.0, %v3289
      %v3291 = vpop.f32.mrf.mxu0
      %v3292 = vpop.f32.mrf.mxu0
      %v3293 = vadd.f32 0.0, %v3292
      %v3294 = vpop.f32.mrf.mxu0
      %3295 = vmatprep.mubr.bf16.mxu0 0
      %3296 = vmatmul.mubr.bf16.gmra.mxu0 %v3096
      %v3297 = vpop.f32.mrf.mxu0
      %v3298 = vadd.f32 0.0, %v3297
      %v3299 = vpop.f32.mrf.mxu0
      %v3300 = vpop.f32.mrf.mxu0
      %v3301 = vadd.f32 0.0, %v3300
      %v3302 = vpop.f32.mrf.mxu0
      %3303 = vmatprep.mubr.bf16.mxu0 0
      %3304 = vmatmul.mubr.bf16.gmra.mxu0 %v3097
      %v3305 = vpop.f32.mrf.mxu0
      %v3306 = vadd.f32 0.0, %v3305
      %v3307 = vpop.f32.mrf.mxu0
      %v3308 = vpop.f32.mrf.mxu0
      %v3309 = vadd.f32 0.0, %v3308
      %v3310 = vpop.f32.mrf.mxu0
      %3311 = vmatprep.mubr.bf16.mxu0 0
      %3312 = vmatmul.mubr.bf16.gmra.mxu0 %v3098
      %v3313 = vpop.f32.mrf.mxu0
      %v3314 = vadd.f32 0.0, %v3313
      %v3315 = vpop.f32.mrf.mxu0
      %v3316 = vpop.f32.mrf.mxu0
      %v3317 = vadd.f32 0.0, %v3316
      %v3318 = vpop.f32.mrf.mxu0
      %3319 = vmatprep.mubr.bf16.mxu0 0
      %3320 = vmatmul.mubr.bf16.gmra.mxu0 %v3099
      %v3321 = vpop.f32.mrf.mxu0
      %v3322 = vadd.f32 0.0, %v3321
      %v3323 = vpop.f32.mrf.mxu0
      %v3324 = vpop.f32.mrf.mxu0
      %v3325 = vadd.f32 0.0, %v3324
      %v3326 = vpop.f32.mrf.mxu0
      %3327 = vmatprep.mubr.bf16.mxu0 0
      %3328 = vmatmul.mubr.bf16.gmra.mxu0 %v3100
      %v3329 = vpop.f32.mrf.mxu0
      %v3330 = vadd.f32 0.0, %v3329
      %v3331 = vpop.f32.mrf.mxu0
      %v3332 = vpop.f32.mrf.mxu0
      %v3333 = vadd.f32 0.0, %v3332
      %v3334 = vpop.f32.mrf.mxu0
      %3335 = vmatprep.mubr.bf16.mxu0 0
      %3336 = vmatmul.mubr.bf16.gmra.mxu0 %v3101
      %v3337 = vpop.f32.mrf.mxu0
      %v3338 = vadd.f32 0.0, %v3337
      %v3339 = vpop.f32.mrf.mxu0
      %v3340 = vpop.f32.mrf.mxu0
      %v3341 = vadd.f32 0.0, %v3340
      %v3342 = vpop.f32.mrf.mxu0
      %3343 = vdwg.mxu0
      %v3344 = vadd.f32 %v3012, %v3202
      %v3345 = vadd.f32 %v3013, %v3205
      %v3346 = vadd.f32 %v3014, %v3210
      %v3347 = vadd.f32 %v3015, %v3213
      %v3348 = vadd.f32 %v3016, %v3218
      %v3349 = vadd.f32 %v3017, %v3221
      %v3350 = vadd.f32 %v3018, %v3226
      %v3351 = vadd.f32 %v3019, %v3229
      %v3352 = vadd.f32 %v3020, %v3234
      %v3353 = vadd.f32 %v3021, %v3237
      %v3354 = vadd.f32 %v3022, %v3242
      %v3355 = vadd.f32 %v3023, %v3245
      %v3356 = vadd.f32 %v3024, %v3250
      %v3357 = vadd.f32 %v3025, %v3253
      %v3358 = vadd.f32 %v3026, %v3258
      %v3359 = vadd.f32 %v3027, %v3261
      %v3360 = vadd.f32 %v3028, %v3266
      %v3361 = vadd.f32 %v3029, %v3269
      %v3362 = vadd.f32 %v3030, %v3274
      %v3363 = vadd.f32 %v3031, %v3277
      %v3364 = vadd.f32 %v3032, %v3282
      %v3365 = vadd.f32 %v3033, %v3285
      %v3366 = vadd.f32 %v3034, %v3290
      %v3367 = vadd.f32 %v3035, %v3293
      %v3368 = vadd.f32 %v3036, %v3298
      %v3369 = vadd.f32 %v3037, %v3301
      %v3370 = vadd.f32 %v3038, %v3306
      %v3371 = vadd.f32 %v3039, %v3309
      %v3372 = vadd.f32 %v3040, %v3314
      %v3373 = vadd.f32 %v3041, %v3317
      %v3374 = vadd.f32 %v3042, %v3322
      %v3375 = vadd.f32 %v3043, %v3325
      %v3376 = vadd.f32 %v3044, %v3330
      %v3377 = vadd.f32 %v3045, %v3333
      %v3378 = vadd.f32 %v3046, %v3338
      %v3379 = vadd.f32 %v3047, %v3341
      %v3380 = vld [vmem:[#allocation2 + $0x26] sm:$0xff]
      %v3381 = vld [vmem:[#allocation2 + $0x2e] sm:$0xff]
      %v3382 = vld [vmem:[#allocation2 + $0x36] sm:$0xff]
      %v3383 = vld [vmem:[#allocation2 + $0x3e] sm:$0xff]
      %v3384 = vld [vmem:[#allocation2 + $0x46] sm:$0xff]
      %v3385 = vld [vmem:[#allocation2 + $0x4e] sm:$0xff]
      %v3386 = vld [vmem:[#allocation2 + $0x56] sm:$0xff]
      %v3387 = vld [vmem:[#allocation2 + $0x5e] sm:$0xff]
      %v3388 = vld [vmem:[#allocation2 + $0x66] sm:$0xff]
      %v3389 = vld [vmem:[#allocation2 + $0x6e] sm:$0xff]
      %v3390 = vld [vmem:[#allocation2 + $0x76] sm:$0xff]
      %v3391 = vld [vmem:[#allocation2 + $0x7e] sm:$0xff]
      %v3392 = vld [vmem:[#allocation2 + $0x86] sm:$0xff]
      %v3393 = vld [vmem:[#allocation2 + $0x8e] sm:$0xff]
      %v3394 = vld [vmem:[#allocation2 + $0x96] sm:$0xff]
      %v3395 = vld [vmem:[#allocation2 + $0x9e] sm:$0xff]
      %v3396 = vld [vmem:[#allocation2 + $0xa6] sm:$0xff]
      %v3397 = vld [vmem:[#allocation2 + $0xae] sm:$0xff]
      %v3398 = vld [vmem:[#allocation2 + $0xb6] sm:$0xff]
      %v3399 = vld [vmem:[#allocation2 + $0xbe] sm:$0xff]
      %v3400 = vld [vmem:[#allocation2 + $0xc6] sm:$0xff]
      %v3401 = vld [vmem:[#allocation2 + $0xce] sm:$0xff]
      %v3402 = vld [vmem:[#allocation2 + $0xd6] sm:$0xff]
      %v3403 = vld [vmem:[#allocation2 + $0xde] sm:$0xff]
      %v3404 = vld [vmem:[#allocation2 + $0xe6] sm:$0xff]
      %v3405 = vld [vmem:[#allocation2 + $0xee] sm:$0xff]
      %v3406 = vld [vmem:[#allocation2 + $0xf6] sm:$0xff]
      %v3407 = vld [vmem:[#allocation2 + $0xfe] sm:$0xff]
      %v3408 = vld [vmem:[#allocation2 + $0x106] sm:$0xff]
      %v3409 = vld [vmem:[#allocation2 + $0x10e] sm:$0xff]
      %v3410 = vld [vmem:[#allocation2 + $0x116] sm:$0xff]
      %v3411 = vld [vmem:[#allocation2 + $0x11e] sm:$0xff]
      %v3412 = vld [vmem:[#allocation2 + $0x126] sm:$0xff]
      %v3413 = vld [vmem:[#allocation2 + $0x12e] sm:$0xff]
      %v3414 = vld [vmem:[#allocation2 + $0x136] sm:$0xff]
      %v3415 = vld [vmem:[#allocation2 + $0x13e] sm:$0xff]
      %v3416 = vpack.c.bf16 %v3381, %v3380
      %v3417 = vpack.c.bf16 %v3383, %v3382
      %v3418 = vpack.c.bf16 %v3385, %v3384
      %v3419 = vpack.c.bf16 %v3387, %v3386
      %v3420 = vpack.c.bf16 %v3389, %v3388
      %v3421 = vpack.c.bf16 %v3391, %v3390
      %v3422 = vpack.c.bf16 %v3393, %v3392
      %v3423 = vpack.c.bf16 %v3395, %v3394
      %v3424 = vpack.c.bf16 %v3397, %v3396
      %v3425 = vpack.c.bf16 %v3399, %v3398
      %v3426 = vpack.c.bf16 %v3401, %v3400
      %v3427 = vpack.c.bf16 %v3403, %v3402
      %v3428 = vpack.c.bf16 %v3405, %v3404
      %v3429 = vpack.c.bf16 %v3407, %v3406
      %v3430 = vpack.c.bf16 %v3409, %v3408
      %v3431 = vpack.c.bf16 %v3411, %v3410
      %v3432 = vpack.c.bf16 %v3413, %v3412
      %v3433 = vpack.c.bf16 %v3415, %v3414
      %s3434 = scalar_lea.vmem %s3, 512
      %v3435 = vld [vmem:[%s3434] sm:$0xf]
      %v3436 = vld [vmem:[%s3434 + $0x4] sm:$0xf]
      %v3437 = vld [vmem:[%s3434 + $0x8] sm:$0xf]
      %v3438 = vld [vmem:[%s3434 + $0xc] sm:$0xf]
      %v3439 = vld [vmem:[%s3434 + $0x10] sm:$0xf]
      %v3440 = vld [vmem:[%s3434 + $0x14] sm:$0xf]
      %v3441 = vld [vmem:[%s3434 + $0x18] sm:$0xf]
      %v3442 = vld [vmem:[%s3434 + $0x1c] sm:$0xf]
      %v3443 = vld [vmem:[%s3434 + $0x20] sm:$0xf]
      %v3444 = vld [vmem:[%s3434 + $0x24] sm:$0xf]
      %v3445 = vld [vmem:[%s3434 + $0x28] sm:$0xf]
      %v3446 = vld [vmem:[%s3434 + $0x2c] sm:$0xf]
      %v3447 = vld [vmem:[%s3434 + $0x30] sm:$0xf]
      %v3448 = vld [vmem:[%s3434 + $0x34] sm:$0xf]
      %v3449 = vld [vmem:[%s3434 + $0x38] sm:$0xf]
      %v3450 = vld [vmem:[%s3434 + $0x3c] sm:$0xf]
      %v3467 = vunpack.c.l.b16 %v3435
      %v3468 = vunpack.c.l.b16 %v3436
      %v3469 = vunpack.c.l.b16 %v3437
      %v3470 = vunpack.c.l.b16 %v3438
      %v3471 = vunpack.c.l.b16 %v3439
      %v3472 = vunpack.c.l.b16 %v3440
      %v3473 = vunpack.c.l.b16 %v3441
      %v3474 = vunpack.c.l.b16 %v3442
      %v3475 = vunpack.c.l.b16 %v3443
      %v3476 = vunpack.c.l.b16 %v3444
      %v3477 = vunpack.c.l.b16 %v3445
      %v3478 = vunpack.c.l.b16 %v3446
      %v3479 = vunpack.c.l.b16 %v3447
      %v3480 = vunpack.c.l.b16 %v3448
      %v3481 = vunpack.c.l.b16 %v3449
      %v3482 = vunpack.c.l.b16 %v3450
      %v3483 = vpack.c.b16 %v3468, %v3467
      %v3484 = vpack.c.b16 %v3470, %v3469
      %v3485 = vpack.c.b16 %v3472, %v3471
      %v3486 = vpack.c.b16 %v3474, %v3473
      %v3487 = vpack.c.b16 %v3476, %v3475
      %v3488 = vpack.c.b16 %v3478, %v3477
      %v3489 = vpack.c.b16 %v3480, %v3479
      %v3490 = vpack.c.b16 %v3482, %v3481
      %3499 = vmatprep.subr.bf16.mxu0 0
      %3500 = vmatpush1.bf16.msra.mxu0 %v3490
      %3501 = vmatprep.subr.bf16.mxu0 0
      %3502 = vmatpush1.bf16.msra.mxu0 %v3489
      %3503 = vmatprep.subr.bf16.mxu0 0
      %3504 = vmatpush1.bf16.msra.mxu0 %v3488
      %3505 = vmatprep.subr.bf16.mxu0 0
      %3506 = vmatpush1.bf16.msra.mxu0 %v3487
      %3507 = vmatprep.subr.bf16.mxu0 0
      %3508 = vmatpush1.bf16.msra.mxu0 %v3486
      %3509 = vmatprep.subr.bf16.mxu0 0
      %3510 = vmatpush1.bf16.msra.mxu0 %v3485
      %3511 = vmatprep.subr.bf16.mxu0 0
      %3512 = vmatpush1.bf16.msra.mxu0 %v3484
      %3513 = vmatprep.subr.bf16.mxu0 0
      %3514 = vmatpush1.bf16.msra.mxu0 %v3483
      %3515 = vmatprep.subr.bf16.mxu0 0
      %3516 = vmatpush2.bf16.msra.mxu0 0
      %3517 = vmatprep.subr.bf16.mxu0 0
      %3518 = vmatpush2.bf16.msra.mxu0 0
      %3519 = vmatprep.subr.bf16.mxu0 0
      %3520 = vmatpush2.bf16.msra.mxu0 0
      %3521 = vmatprep.subr.bf16.mxu0 0
      %3522 = vmatpush2.bf16.msra.mxu0 0
      %3523 = vmatprep.subr.bf16.mxu0 0
      %3524 = vmatpush2.bf16.msra.mxu0 0
      %3525 = vmatprep.subr.bf16.mxu0 0
      %3526 = vmatpush2.bf16.msra.mxu0 0
      %3527 = vmatprep.subr.bf16.mxu0 0
      %3528 = vmatpush2.bf16.msra.mxu0 0
      %3529 = vmatprep.subr.bf16.mxu0 0
      %3530 = vmatpush2.bf16.msra.mxu0 0
      %3531 = vmatprep.mubr.bf16.mxu0 0
      %3532 = vmatmul.mubr.bf16.gmra.mxu0 %v3416
      %v3533 = vpop.f32.mrf.mxu0
      %v3534 = vadd.f32 0.0, %v3533
      %v3535 = vpop.f32.mrf.mxu0
      %v3536 = vpop.f32.mrf.mxu0
      %v3537 = vadd.f32 0.0, %v3536
      %v3538 = vpop.f32.mrf.mxu0
      %3539 = vmatprep.mubr.bf16.mxu0 0
      %3540 = vmatmul.mubr.bf16.gmra.mxu0 %v3417
      %v3541 = vpop.f32.mrf.mxu0
      %v3542 = vadd.f32 0.0, %v3541
      %v3543 = vpop.f32.mrf.mxu0
      %v3544 = vpop.f32.mrf.mxu0
      %v3545 = vadd.f32 0.0, %v3544
      %v3546 = vpop.f32.mrf.mxu0
      %3547 = vmatprep.mubr.bf16.mxu0 0
      %3548 = vmatmul.mubr.bf16.gmra.mxu0 %v3418
      %v3549 = vpop.f32.mrf.mxu0
      %v3550 = vadd.f32 0.0, %v3549
      %v3551 = vpop.f32.mrf.mxu0
      %v3552 = vpop.f32.mrf.mxu0
      %v3553 = vadd.f32 0.0, %v3552
      %v3554 = vpop.f32.mrf.mxu0
      %3555 = vmatprep.mubr.bf16.mxu0 0
      %3556 = vmatmul.mubr.bf16.gmra.mxu0 %v3419
      %v3557 = vpop.f32.mrf.mxu0
      %v3558 = vadd.f32 0.0, %v3557
      %v3559 = vpop.f32.mrf.mxu0
      %v3560 = vpop.f32.mrf.mxu0
      %v3561 = vadd.f32 0.0, %v3560
      %v3562 = vpop.f32.mrf.mxu0
      %3563 = vmatprep.mubr.bf16.mxu0 0
      %3564 = vmatmul.mubr.bf16.gmra.mxu0 %v3420
      %v3565 = vpop.f32.mrf.mxu0
      %v3566 = vadd.f32 0.0, %v3565
      %v3567 = vpop.f32.mrf.mxu0
      %v3568 = vpop.f32.mrf.mxu0
      %v3569 = vadd.f32 0.0, %v3568
      %v3570 = vpop.f32.mrf.mxu0
      %3571 = vmatprep.mubr.bf16.mxu0 0
      %3572 = vmatmul.mubr.bf16.gmra.mxu0 %v3421
      %v3573 = vpop.f32.mrf.mxu0
      %v3574 = vadd.f32 0.0, %v3573
      %v3575 = vpop.f32.mrf.mxu0
      %v3576 = vpop.f32.mrf.mxu0
      %v3577 = vadd.f32 0.0, %v3576
      %v3578 = vpop.f32.mrf.mxu0
      %3579 = vmatprep.mubr.bf16.mxu0 0
      %3580 = vmatmul.mubr.bf16.gmra.mxu0 %v3422
      %v3581 = vpop.f32.mrf.mxu0
      %v3582 = vadd.f32 0.0, %v3581
      %v3583 = vpop.f32.mrf.mxu0
      %v3584 = vpop.f32.mrf.mxu0
      %v3585 = vadd.f32 0.0, %v3584
      %v3586 = vpop.f32.mrf.mxu0
      %3587 = vmatprep.mubr.bf16.mxu0 0
      %3588 = vmatmul.mubr.bf16.gmra.mxu0 %v3423
      %v3589 = vpop.f32.mrf.mxu0
      %v3590 = vadd.f32 0.0, %v3589
      %v3591 = vpop.f32.mrf.mxu0
      %v3592 = vpop.f32.mrf.mxu0
      %v3593 = vadd.f32 0.0, %v3592
      %v3594 = vpop.f32.mrf.mxu0
      %3595 = vmatprep.mubr.bf16.mxu0 0
      %3596 = vmatmul.mubr.bf16.gmra.mxu0 %v3424
      %v3597 = vpop.f32.mrf.mxu0
      %v3598 = vadd.f32 0.0, %v3597
      %v3599 = vpop.f32.mrf.mxu0
      %v3600 = vpop.f32.mrf.mxu0
      %v3601 = vadd.f32 0.0, %v3600
      %v3602 = vpop.f32.mrf.mxu0
      %3603 = vmatprep.mubr.bf16.mxu0 0
      %3604 = vmatmul.mubr.bf16.gmra.mxu0 %v3425
      %v3605 = vpop.f32.mrf.mxu0
      %v3606 = vadd.f32 0.0, %v3605
      %v3607 = vpop.f32.mrf.mxu0
      %v3608 = vpop.f32.mrf.mxu0
      %v3609 = vadd.f32 0.0, %v3608
      %v3610 = vpop.f32.mrf.mxu0
      %3611 = vmatprep.mubr.bf16.mxu0 0
      %3612 = vmatmul.mubr.bf16.gmra.mxu0 %v3426
      %v3613 = vpop.f32.mrf.mxu0
      %v3614 = vadd.f32 0.0, %v3613
      %v3615 = vpop.f32.mrf.mxu0
      %v3616 = vpop.f32.mrf.mxu0
      %v3617 = vadd.f32 0.0, %v3616
      %v3618 = vpop.f32.mrf.mxu0
      %3619 = vmatprep.mubr.bf16.mxu0 0
      %3620 = vmatmul.mubr.bf16.gmra.mxu0 %v3427
      %v3621 = vpop.f32.mrf.mxu0
      %v3622 = vadd.f32 0.0, %v3621
      %v3623 = vpop.f32.mrf.mxu0
      %v3624 = vpop.f32.mrf.mxu0
      %v3625 = vadd.f32 0.0, %v3624
      %v3626 = vpop.f32.mrf.mxu0
      %3627 = vmatprep.mubr.bf16.mxu0 0
      %3628 = vmatmul.mubr.bf16.gmra.mxu0 %v3428
      %v3629 = vpop.f32.mrf.mxu0
      %v3630 = vadd.f32 0.0, %v3629
      %v3631 = vpop.f32.mrf.mxu0
      %v3632 = vpop.f32.mrf.mxu0
      %v3633 = vadd.f32 0.0, %v3632
      %v3634 = vpop.f32.mrf.mxu0
      %3635 = vmatprep.mubr.bf16.mxu0 0
      %3636 = vmatmul.mubr.bf16.gmra.mxu0 %v3429
      %v3637 = vpop.f32.mrf.mxu0
      %v3638 = vadd.f32 0.0, %v3637
      %v3639 = vpop.f32.mrf.mxu0
      %v3640 = vpop.f32.mrf.mxu0
      %v3641 = vadd.f32 0.0, %v3640
      %v3642 = vpop.f32.mrf.mxu0
      %3643 = vmatprep.mubr.bf16.mxu0 0
      %3644 = vmatmul.mubr.bf16.gmra.mxu0 %v3430
      %v3645 = vpop.f32.mrf.mxu0
      %v3646 = vadd.f32 0.0, %v3645
      %v3647 = vpop.f32.mrf.mxu0
      %v3648 = vpop.f32.mrf.mxu0
      %v3649 = vadd.f32 0.0, %v3648
      %v3650 = vpop.f32.mrf.mxu0
      %3651 = vmatprep.mubr.bf16.mxu0 0
      %3652 = vmatmul.mubr.bf16.gmra.mxu0 %v3431
      %v3653 = vpop.f32.mrf.mxu0
      %v3654 = vadd.f32 0.0, %v3653
      %v3655 = vpop.f32.mrf.mxu0
      %v3656 = vpop.f32.mrf.mxu0
      %v3657 = vadd.f32 0.0, %v3656
      %v3658 = vpop.f32.mrf.mxu0
      %3659 = vmatprep.mubr.bf16.mxu0 0
      %3660 = vmatmul.mubr.bf16.gmra.mxu0 %v3432
      %v3661 = vpop.f32.mrf.mxu0
      %v3662 = vadd.f32 0.0, %v3661
      %v3663 = vpop.f32.mrf.mxu0
      %v3664 = vpop.f32.mrf.mxu0
      %v3665 = vadd.f32 0.0, %v3664
      %v3666 = vpop.f32.mrf.mxu0
      %3667 = vmatprep.mubr.bf16.mxu0 0
      %3668 = vmatmul.mubr.bf16.gmra.mxu0 %v3433
      %v3669 = vpop.f32.mrf.mxu0
      %v3670 = vadd.f32 0.0, %v3669
      %v3671 = vpop.f32.mrf.mxu0
      %v3672 = vpop.f32.mrf.mxu0
      %v3673 = vadd.f32 0.0, %v3672
      %v3674 = vpop.f32.mrf.mxu0
      %3675 = vdwg.mxu0
      %v3676 = vadd.f32 %v3344, %v3534
      %v3677 = vadd.f32 %v3345, %v3537
      %v3678 = vadd.f32 %v3346, %v3542
      %v3679 = vadd.f32 %v3347, %v3545
      %v3680 = vadd.f32 %v3348, %v3550
      %v3681 = vadd.f32 %v3349, %v3553
      %v3682 = vadd.f32 %v3350, %v3558
      %v3683 = vadd.f32 %v3351, %v3561
      %v3684 = vadd.f32 %v3352, %v3566
      %v3685 = vadd.f32 %v3353, %v3569
      %v3686 = vadd.f32 %v3354, %v3574
      %v3687 = vadd.f32 %v3355, %v3577
      %v3688 = vadd.f32 %v3356, %v3582
      %v3689 = vadd.f32 %v3357, %v3585
      %v3690 = vadd.f32 %v3358, %v3590
      %v3691 = vadd.f32 %v3359, %v3593
      %v3692 = vadd.f32 %v3360, %v3598
      %v3693 = vadd.f32 %v3361, %v3601
      %v3694 = vadd.f32 %v3362, %v3606
      %v3695 = vadd.f32 %v3363, %v3609
      %v3696 = vadd.f32 %v3364, %v3614
      %v3697 = vadd.f32 %v3365, %v3617
      %v3698 = vadd.f32 %v3366, %v3622
      %v3699 = vadd.f32 %v3367, %v3625
      %v3700 = vadd.f32 %v3368, %v3630
      %v3701 = vadd.f32 %v3369, %v3633
      %v3702 = vadd.f32 %v3370, %v3638
      %v3703 = vadd.f32 %v3371, %v3641
      %v3704 = vadd.f32 %v3372, %v3646
      %v3705 = vadd.f32 %v3373, %v3649
      %v3706 = vadd.f32 %v3374, %v3654
      %v3707 = vadd.f32 %v3375, %v3657
      %v3708 = vadd.f32 %v3376, %v3662
      %v3709 = vadd.f32 %v3377, %v3665
      %v3710 = vadd.f32 %v3378, %v3670
      %v3711 = vadd.f32 %v3379, %v3673
      %v3712 = vld [vmem:[%s5] sm:$0xff]
      %v3713 = vld [vmem:[%s5 + $0x8] sm:$0xff]
      %v3714 = vld [vmem:[%s5 + $0x10] sm:$0xff]
      %v3715 = vld [vmem:[%s5 + $0x18] sm:$0xff]
      %v3716 = vld [vmem:[%s5 + $0x20] sm:$0xff]
      %v3717 = vld [vmem:[%s5 + $0x28] sm:$0xff]
      %v3718 = vld [vmem:[%s5 + $0x30] sm:$0xff]
      %v3719 = vld [vmem:[%s5 + $0x38] sm:$0xff]
      %v3720 = vld [vmem:[%s5 + $0x40] sm:$0xff]
      %v3721 = vld [vmem:[%s5 + $0x48] sm:$0xff]
      %v3722 = vld [vmem:[%s5 + $0x50] sm:$0xff]
      %v3723 = vld [vmem:[%s5 + $0x58] sm:$0xff]
      %v3724 = vld [vmem:[%s5 + $0x60] sm:$0xff]
      %v3725 = vld [vmem:[%s5 + $0x68] sm:$0xff]
      %v3726 = vld [vmem:[%s5 + $0x70] sm:$0xff]
      %v3727 = vld [vmem:[%s5 + $0x78] sm:$0xff]
      %v3728 = vld [vmem:[%s5 + $0x80] sm:$0xff]
      %v3729 = vld [vmem:[%s5 + $0x88] sm:$0xff]
      %v3730 = vld [vmem:[%s5 + $0x90] sm:$0xff]
      %v3731 = vld [vmem:[%s5 + $0x98] sm:$0xff]
      %v3732 = vld [vmem:[%s5 + $0xa0] sm:$0xff]
      %v3733 = vld [vmem:[%s5 + $0xa8] sm:$0xff]
      %v3734 = vld [vmem:[%s5 + $0xb0] sm:$0xff]
      %v3735 = vld [vmem:[%s5 + $0xb8] sm:$0xff]
      %v3736 = vld [vmem:[%s5 + $0xc0] sm:$0xff]
      %v3737 = vld [vmem:[%s5 + $0xc8] sm:$0xff]
      %v3738 = vld [vmem:[%s5 + $0xd0] sm:$0xff]
      %v3739 = vld [vmem:[%s5 + $0xd8] sm:$0xff]
      %v3740 = vld [vmem:[%s5 + $0xe0] sm:$0xff]
      %v3741 = vld [vmem:[%s5 + $0xe8] sm:$0xff]
      %v3742 = vld [vmem:[%s5 + $0xf0] sm:$0xff]
      %v3743 = vld [vmem:[%s5 + $0xf8] sm:$0xff]
      %v3744 = vld [vmem:[%s5 + $0x100] sm:$0xff]
      %v3745 = vld [vmem:[%s5 + $0x108] sm:$0xff]
      %v3746 = vld [vmem:[%s5 + $0x110] sm:$0xff]
      %v3747 = vld [vmem:[%s5 + $0x118] sm:$0xff]
      %3749 = vset.pattern.permute.xlu0 0
      %3750 = vperm.xlu0 %3749, %v3712
      %v3751 = vpop.permute.xlu0 %3750
      %3754 = vset.pattern.permute.xlu0 0
      %3755 = vperm.xlu0 %3754, %v3713
      %v3756 = vpop.permute.xlu0 %3755
      %3759 = vset.pattern.permute.xlu0 0
      %3760 = vperm.xlu0 %3759, %v3714
      %v3761 = vpop.permute.xlu0 %3760
      %3764 = vset.pattern.permute.xlu0 0
      %3765 = vperm.xlu0 %3764, %v3715
      %v3766 = vpop.permute.xlu0 %3765
      %3769 = vset.pattern.permute.xlu0 0
      %3770 = vperm.xlu0 %3769, %v3716
      %v3771 = vpop.permute.xlu0 %3770
      %3774 = vset.pattern.permute.xlu0 0
      %3775 = vperm.xlu0 %3774, %v3717
      %v3776 = vpop.permute.xlu0 %3775
      %3779 = vset.pattern.permute.xlu0 0
      %3780 = vperm.xlu0 %3779, %v3718
      %v3781 = vpop.permute.xlu0 %3780
      %3784 = vset.pattern.permute.xlu0 0
      %3785 = vperm.xlu0 %3784, %v3719
      %v3786 = vpop.permute.xlu0 %3785
      %3789 = vset.pattern.permute.xlu0 0
      %3790 = vperm.xlu0 %3789, %v3720
      %v3791 = vpop.permute.xlu0 %3790
      %3794 = vset.pattern.permute.xlu0 0
      %3795 = vperm.xlu0 %3794, %v3721
      %v3796 = vpop.permute.xlu0 %3795
      %3799 = vset.pattern.permute.xlu0 0
      %3800 = vperm.xlu0 %3799, %v3722
      %v3801 = vpop.permute.xlu0 %3800
      %3804 = vset.pattern.permute.xlu0 0
      %3805 = vperm.xlu0 %3804, %v3723
      %v3806 = vpop.permute.xlu0 %3805
      %3809 = vset.pattern.permute.xlu0 0
      %3810 = vperm.xlu0 %3809, %v3724
      %v3811 = vpop.permute.xlu0 %3810
      %3814 = vset.pattern.permute.xlu0 0
      %3815 = vperm.xlu0 %3814, %v3725
      %v3816 = vpop.permute.xlu0 %3815
      %3819 = vset.pattern.permute.xlu0 0
      %3820 = vperm.xlu0 %3819, %v3726
      %v3821 = vpop.permute.xlu0 %3820
      %3824 = vset.pattern.permute.xlu0 0
      %3825 = vperm.xlu0 %3824, %v3727
      %v3826 = vpop.permute.xlu0 %3825
      %3829 = vset.pattern.permute.xlu0 0
      %3830 = vperm.xlu0 %3829, %v3728
      %v3831 = vpop.permute.xlu0 %3830
      %3834 = vset.pattern.permute.xlu0 0
      %3835 = vperm.xlu0 %3834, %v3729
      %v3836 = vpop.permute.xlu0 %3835
      %3839 = vset.pattern.permute.xlu0 0
      %3840 = vperm.xlu0 %3839, %v3730
      %v3841 = vpop.permute.xlu0 %3840
      %3844 = vset.pattern.permute.xlu0 0
      %3845 = vperm.xlu0 %3844, %v3731
      %v3846 = vpop.permute.xlu0 %3845
      %3849 = vset.pattern.permute.xlu0 0
      %3850 = vperm.xlu0 %3849, %v3732
      %v3851 = vpop.permute.xlu0 %3850
      %3854 = vset.pattern.permute.xlu0 0
      %3855 = vperm.xlu0 %3854, %v3733
      %v3856 = vpop.permute.xlu0 %3855
      %3859 = vset.pattern.permute.xlu0 0
      %3860 = vperm.xlu0 %3859, %v3734
      %v3861 = vpop.permute.xlu0 %3860
      %3864 = vset.pattern.permute.xlu0 0
      %3865 = vperm.xlu0 %3864, %v3735
      %v3866 = vpop.permute.xlu0 %3865
      %3869 = vset.pattern.permute.xlu0 0
      %3870 = vperm.xlu0 %3869, %v3736
      %v3871 = vpop.permute.xlu0 %3870
      %3874 = vset.pattern.permute.xlu0 0
      %3875 = vperm.xlu0 %3874, %v3737
      %v3876 = vpop.permute.xlu0 %3875
      %3879 = vset.pattern.permute.xlu0 0
      %3880 = vperm.xlu0 %3879, %v3738
      %v3881 = vpop.permute.xlu0 %3880
      %3884 = vset.pattern.permute.xlu0 0
      %3885 = vperm.xlu0 %3884, %v3739
      %v3886 = vpop.permute.xlu0 %3885
      %3889 = vset.pattern.permute.xlu0 0
      %3890 = vperm.xlu0 %3889, %v3740
      %v3891 = vpop.permute.xlu0 %3890
      %3894 = vset.pattern.permute.xlu0 0
      %3895 = vperm.xlu0 %3894, %v3741
      %v3896 = vpop.permute.xlu0 %3895
      %3899 = vset.pattern.permute.xlu0 0
      %3900 = vperm.xlu0 %3899, %v3742
      %v3901 = vpop.permute.xlu0 %3900
      %3904 = vset.pattern.permute.xlu0 0
      %3905 = vperm.xlu0 %3904, %v3743
      %v3906 = vpop.permute.xlu0 %3905
      %3909 = vset.pattern.permute.xlu0 0
      %3910 = vperm.xlu0 %3909, %v3744
      %v3911 = vpop.permute.xlu0 %3910
      %3914 = vset.pattern.permute.xlu0 0
      %3915 = vperm.xlu0 %3914, %v3745
      %v3916 = vpop.permute.xlu0 %3915
      %3919 = vset.pattern.permute.xlu0 0
      %3920 = vperm.xlu0 %3919, %v3746
      %v3921 = vpop.permute.xlu0 %3920
      %3924 = vset.pattern.permute.xlu0 0
      %3925 = vperm.xlu0 %3924, %v3747
      %v3926 = vpop.permute.xlu0 %3925
      %v3928 = vmul.f32 %v3676, %v3751
      %v3929 = vmul.f32 %v3677, %v3756
      %v3930 = vmul.f32 %v3678, %v3761
      %v3931 = vmul.f32 %v3679, %v3766
      %v3932 = vmul.f32 %v3680, %v3771
      %v3933 = vmul.f32 %v3681, %v3776
      %v3934 = vmul.f32 %v3682, %v3781
      %v3935 = vmul.f32 %v3683, %v3786
      %v3936 = vmul.f32 %v3684, %v3791
      %v3937 = vmul.f32 %v3685, %v3796
      %v3938 = vmul.f32 %v3686, %v3801
      %v3939 = vmul.f32 %v3687, %v3806
      %v3940 = vmul.f32 %v3688, %v3811
      %v3941 = vmul.f32 %v3689, %v3816
      %v3942 = vmul.f32 %v3690, %v3821
      %v3943 = vmul.f32 %v3691, %v3826
      %v3944 = vmul.f32 %v3692, %v3831
      %v3945 = vmul.f32 %v3693, %v3836
      %v3946 = vmul.f32 %v3694, %v3841
      %v3947 = vmul.f32 %v3695, %v3846
      %v3948 = vmul.f32 %v3696, %v3851
      %v3949 = vmul.f32 %v3697, %v3856
      %v3950 = vmul.f32 %v3698, %v3861
      %v3951 = vmul.f32 %v3699, %v3866
      %v3952 = vmul.f32 %v3700, %v3871
      %v3953 = vmul.f32 %v3701, %v3876
      %v3954 = vmul.f32 %v3702, %v3881
      %v3955 = vmul.f32 %v3703, %v3886
      %v3956 = vmul.f32 %v3704, %v3891
      %v3957 = vmul.f32 %v3705, %v3896
      %v3958 = vmul.f32 %v3706, %v3901
      %v3959 = vmul.f32 %v3707, %v3906
      %v3960 = vmul.f32 %v3708, %v3911
      %v3961 = vmul.f32 %v3709, %v3916
      %v3962 = vmul.f32 %v3710, %v3921
      %v3963 = vmul.f32 %v3711, %v3926
      %v3964 = vadd.f32 %v3928, %v3929
      %v3965 = vadd.f32 %v3964, %v3930
      %v3966 = vadd.f32 %v3965, %v3931
      %v3967 = vadd.f32 %v3966, %v3932
      %v3968 = vadd.f32 %v3967, %v3933
      %v3969 = vadd.f32 %v3968, %v3934
      %v3970 = vadd.f32 %v3969, %v3935
      %v3971 = vadd.f32 %v3970, %v3936
      %v3972 = vadd.f32 %v3971, %v3937
      %v3973 = vadd.f32 %v3972, %v3938
      %v3974 = vadd.f32 %v3973, %v3939
      %v3975 = vadd.f32 %v3974, %v3940
      %v3976 = vadd.f32 %v3975, %v3941
      %v3977 = vadd.f32 %v3976, %v3942
      %v3978 = vadd.f32 %v3977, %v3943
      %v3979 = vadd.f32 %v3978, %v3944
      %v3980 = vadd.f32 %v3979, %v3945
      %v3981 = vadd.f32 %v3980, %v3946
      %v3982 = vadd.f32 %v3981, %v3947
      %v3983 = vadd.f32 %v3982, %v3948
      %v3984 = vadd.f32 %v3983, %v3949
      %v3985 = vadd.f32 %v3984, %v3950
      %v3986 = vadd.f32 %v3985, %v3951
      %v3987 = vadd.f32 %v3986, %v3952
      %v3988 = vadd.f32 %v3987, %v3953
      %v3989 = vadd.f32 %v3988, %v3954
      %v3990 = vadd.f32 %v3989, %v3955
      %v3991 = vadd.f32 %v3990, %v3956
      %v3992 = vadd.f32 %v3991, %v3957
      %v3993 = vadd.f32 %v3992, %v3958
      %v3994 = vadd.f32 %v3993, %v3959
      %v3995 = vadd.f32 %v3994, %v3960
      %v3996 = vadd.f32 %v3995, %v3961
      %v3997 = vadd.f32 %v3996, %v3962
      %v3998 = vadd.f32 %v3997, %v3963
      %v3999 = vrot.slane %v3998, 4
      %v4000 = vadd.f32 %v3998, %v3999
      %v4001 = vrot.slane %v4000, 2
      %v4002 = vadd.f32 %v4000, %v4001
      %v4003 = vrot.slane %v4002, 1
      %v4004 = vadd.f32 %v4002, %v4003
      %4005 = vst [vmem:[%s289] sm:$0x1] %v4004
      %v4006 = vmul.f32 %v3928, %v3928
      %v4007 = vmul.f32 %v3929, %v3929
      %v4008 = vmul.f32 %v3930, %v3930
      %v4009 = vmul.f32 %v3931, %v3931
      %v4010 = vmul.f32 %v3932, %v3932
      %v4011 = vmul.f32 %v3933, %v3933
      %v4012 = vmul.f32 %v3934, %v3934
      %v4013 = vmul.f32 %v3935, %v3935
      %v4014 = vmul.f32 %v3936, %v3936
      %v4015 = vmul.f32 %v3937, %v3937
      %v4016 = vmul.f32 %v3938, %v3938
      %v4017 = vmul.f32 %v3939, %v3939
      %v4018 = vmul.f32 %v3940, %v3940
      %v4019 = vmul.f32 %v3941, %v3941
      %v4020 = vmul.f32 %v3942, %v3942
      %v4021 = vmul.f32 %v3943, %v3943
      %v4022 = vmul.f32 %v3944, %v3944
      %v4023 = vmul.f32 %v3945, %v3945
      %v4024 = vmul.f32 %v3946, %v3946
      %v4025 = vmul.f32 %v3947, %v3947
      %v4026 = vmul.f32 %v3948, %v3948
      %v4027 = vmul.f32 %v3949, %v3949
      %v4028 = vmul.f32 %v3950, %v3950
      %v4029 = vmul.f32 %v3951, %v3951
      %v4030 = vmul.f32 %v3952, %v3952
      %v4031 = vmul.f32 %v3953, %v3953
      %v4032 = vmul.f32 %v3954, %v3954
      %v4033 = vmul.f32 %v3955, %v3955
      %v4034 = vmul.f32 %v3956, %v3956
      %v4035 = vmul.f32 %v3957, %v3957
      %v4036 = vmul.f32 %v3958, %v3958
      %v4037 = vmul.f32 %v3959, %v3959
      %v4038 = vmul.f32 %v3960, %v3960
      %v4039 = vmul.f32 %v3961, %v3961
      %v4040 = vmul.f32 %v3962, %v3962
      %v4041 = vmul.f32 %v3963, %v3963
      %v4042 = vadd.f32 %v4006, %v4007
      %v4043 = vadd.f32 %v4042, %v4008
      %v4044 = vadd.f32 %v4043, %v4009
      %v4045 = vadd.f32 %v4044, %v4010
      %v4046 = vadd.f32 %v4045, %v4011
      %v4047 = vadd.f32 %v4046, %v4012
      %v4048 = vadd.f32 %v4047, %v4013
      %v4049 = vadd.f32 %v4048, %v4014
      %v4050 = vadd.f32 %v4049, %v4015
      %v4051 = vadd.f32 %v4050, %v4016
      %v4052 = vadd.f32 %v4051, %v4017
      %v4053 = vadd.f32 %v4052, %v4018
      %v4054 = vadd.f32 %v4053, %v4019
      %v4055 = vadd.f32 %v4054, %v4020
      %v4056 = vadd.f32 %v4055, %v4021
      %v4057 = vadd.f32 %v4056, %v4022
      %v4058 = vadd.f32 %v4057, %v4023
      %v4059 = vadd.f32 %v4058, %v4024
      %v4060 = vadd.f32 %v4059, %v4025
      %v4061 = vadd.f32 %v4060, %v4026
      %v4062 = vadd.f32 %v4061, %v4027
      %v4063 = vadd.f32 %v4062, %v4028
      %v4064 = vadd.f32 %v4063, %v4029
      %v4065 = vadd.f32 %v4064, %v4030
      %v4066 = vadd.f32 %v4065, %v4031
      %v4067 = vadd.f32 %v4066, %v4032
      %v4068 = vadd.f32 %v4067, %v4033
      %v4069 = vadd.f32 %v4068, %v4034
      %v4070 = vadd.f32 %v4069, %v4035
      %v4071 = vadd.f32 %v4070, %v4036
      %v4072 = vadd.f32 %v4071, %v4037
      %v4073 = vadd.f32 %v4072, %v4038
      %v4074 = vadd.f32 %v4073, %v4039
      %v4075 = vadd.f32 %v4074, %v4040
      %v4076 = vadd.f32 %v4075, %v4041
      %v4077 = vrot.slane %v4076, 4
      %v4078 = vadd.f32 %v4076, %v4077
      %v4079 = vrot.slane %v4078, 2
      %v4080 = vadd.f32 %v4078, %v4079
      %v4081 = vrot.slane %v4080, 1
      %v4082 = vadd.f32 %v4080, %v4081
      %4083 = vst [vmem:[%s289 + $0x1] sm:$0x1] %v4082
      %4084 = vst [vmem:[%s285] sm:$0xff] 0.0
      %4085 = vst [vmem:[%s285 + $0x8] sm:$0xff] 0.0
      %4086 = vst [vmem:[%s285 + $0x10] sm:$0x7] 0.0
      %4087 = vst [vmem:[%s285 + $0x13] sm:$0xff] %v3928
      %4088 = vst [vmem:[%s285 + $0x1b] sm:$0xff] %v3929
      %4089 = vst [vmem:[%s285 + $0x23] sm:$0xff] %v3930
      %4090 = vst [vmem:[%s285 + $0x2b] sm:$0xff] %v3931
      %4091 = vst [vmem:[%s285 + $0x33] sm:$0xff] %v3932
      %4092 = vst [vmem:[%s285 + $0x3b] sm:$0xff] %v3933
      %4093 = vst [vmem:[%s285 + $0x43] sm:$0xff] %v3934
      %4094 = vst [vmem:[%s285 + $0x4b] sm:$0xff] %v3935
      %4095 = vst [vmem:[%s285 + $0x53] sm:$0xff] %v3936
      %4096 = vst [vmem:[%s285 + $0x5b] sm:$0xff] %v3937
      %4097 = vst [vmem:[%s285 + $0x63] sm:$0xff] %v3938
      %4098 = vst [vmem:[%s285 + $0x6b] sm:$0xff] %v3939
      %4099 = vst [vmem:[%s285 + $0x73] sm:$0xff] %v3940
      %4100 = vst [vmem:[%s285 + $0x7b] sm:$0xff] %v3941
      %4101 = vst [vmem:[%s285 + $0x83] sm:$0xff] %v3942
      %4102 = vst [vmem:[%s285 + $0x8b] sm:$0xff] %v3943
      %4103 = vst [vmem:[%s285 + $0x93] sm:$0xff] %v3944
      %4104 = vst [vmem:[%s285 + $0x9b] sm:$0xff] %v3945
      %4105 = vst [vmem:[%s285 + $0xa3] sm:$0xff] %v3946
      %4106 = vst [vmem:[%s285 + $0xab] sm:$0xff] %v3947
      %4107 = vst [vmem:[%s285 + $0xb3] sm:$0xff] %v3948
      %4108 = vst [vmem:[%s285 + $0xbb] sm:$0xff] %v3949
      %4109 = vst [vmem:[%s285 + $0xc3] sm:$0xff] %v3950
      %4110 = vst [vmem:[%s285 + $0xcb] sm:$0xff] %v3951
      %4111 = vst [vmem:[%s285 + $0xd3] sm:$0xff] %v3952
      %4112 = vst [vmem:[%s285 + $0xdb] sm:$0xff] %v3953
      %4113 = vst [vmem:[%s285 + $0xe3] sm:$0xff] %v3954
      %4114 = vst [vmem:[%s285 + $0xeb] sm:$0xff] %v3955
      %4115 = vst [vmem:[%s285 + $0xf3] sm:$0xff] %v3956
      %4116 = vst [vmem:[%s285 + $0xfb] sm:$0xff] %v3957
      %4117 = vst [vmem:[%s285 + $0x103] sm:$0xff] %v3958
      %4118 = vst [vmem:[%s285 + $0x10b] sm:$0xff] %v3959
      %4119 = vst [vmem:[%s285 + $0x113] sm:$0xff] %v3960
      %4120 = vst [vmem:[%s285 + $0x11b] sm:$0xff] %v3961
      %4121 = vst [vmem:[%s285 + $0x123] sm:$0xff] %v3962
      %4122 = vst [vmem:[%s285 + $0x12b] sm:$0xff] %v3963
      %4123 = vst [vmem:[%s285 + $0x133] sm:$0xff] 0.0
      %4124 = vst [vmem:[%s285 + $0x13b] sm:$0xff] 0.0
      %4125 = vst [vmem:[%s285 + $0x143] sm:$0x1f] 0.0
      %p4126 = scmp.lt.s32.totalorder %s19, 1
      %s4127 = scalar_select %p4126, %s19, 1
      %s4128 = smul.addr %s4127, 41
      %s4129 = smul.addr %s4128, 8
      %s4130 = scalar_lea.vmem %s6, %s4129
      %p4131 = scmp.lt.s32.totalorder %s19, 1
      %s4132 = scalar_select %p4131, %s19, 1
      %s4133 = smul.addr %s4132, 2
      %s4134 = scalar_lea.vmem %s7, %s4133
      // Predicated region
      $region45: #{residual_block_forward.4} parent=43 // pred_check
        %p4135 = pneg %p168
      $region46: #{residual_block_forward.4} parent=43 // pred_check_branch
        %4137 = sbr.rel (%p4135) target = $region48
      $region47: #{residual_block_forward.4} parent=43 // pred_region
        _
      $region48: #{residual_block_forward.4} parent=43 // pred_fallthru
        _
      // Predicated region
      $region49: #{residual_block_forward.4} parent=43 // pred_check
        %p4138 = pneg %p194
      $region50: #{residual_block_forward.4} parent=43 // pred_check_branch
        %4140 = sbr.rel (%p4138) target = $region52
      $region51: #{residual_block_forward.4} parent=43 // pred_region
        _
      $region52: #{residual_block_forward.4} parent=43 // pred_fallthru
        _
    $region44: #{residual_block_forward.4} parent=5 // pred_fallthru
      _
    %p4141 = scmp.le.s32.totalorder 2, %s14
    // Predicated region
    $region53: #{residual_block_forward.4} parent=5 // pred_check
      %p4142 = pneg %p4141
    $region54: #{residual_block_forward.4} parent=5 // pred_check_branch
      %4144 = sbr.rel (%p4142) target = $region56
    $region55: #{residual_block_forward.4} parent=5 // pred_region
      %s4145 = ssub.s32 %s14, 2
      // Predicated region
      $region57: #{residual_block_forward.4} parent=55 // pred_check
        %p4146 = pneg %p174
      $region58: #{residual_block_forward.4} parent=55 // pred_check_branch
        %4148 = sbr.rel (%p4146) target = $region60
      $region59: #{residual_block_forward.4} parent=55 // pred_region
        %p4149 = scmp.lt.s32.totalorder %s20, 1
        %s4150 = scalar_select %p4149, %s20, 1
        %s4151 = smul.addr %s4150, 41
        %s4152 = smul.addr %s4151, 8
        %s4153 = scalar_lea.vmem %s6, %s4152
      $region60: #{residual_block_forward.4} parent=55 // pred_fallthru
        _
      // Predicated region
      $region61: #{residual_block_forward.4} parent=55 // pred_check
        %p4154 = pneg %p200
      $region62: #{residual_block_forward.4} parent=55 // pred_check_branch
        %4156 = sbr.rel (%p4154) target = $region64
      $region63: #{residual_block_forward.4} parent=55 // pred_region
        %p4157 = scmp.lt.s32.totalorder %s20, 1
        %s4158 = scalar_select %p4157, %s20, 1
        %s4159 = smul.addr %s4158, 2
        %s4160 = scalar_lea.vmem %s7, %s4159
      $region64: #{residual_block_forward.4} parent=55 // pred_fallthru
        _
    $region56: #{residual_block_forward.4} parent=5 // pred_fallthru
      _
  $region6: #{residual_block_forward.4} parent=0 // loop_footer
    %s18 = sadd.s32 1, %s14
  $region7: #{residual_block_forward.4} parent=0 // loop_footer_branch
    %13 = sbr.rel target = $region3
  $region8: #{residual_block_forward.4} parent=0 // loop_exit
    _

</llo_original>
